<compile_context>
chip_gen: v5e
topology: v5e:2x2
jax: 0.10.0
libtpu: 0.0.40
codegen_flags: <defaults>
</compile_context>

<pallas_src>
import functools
import math

import jax
import jax.numpy as jnp
from jax.experimental import pallas as pl
from jax.experimental.pallas import tpu as pltpu

BN_EPS = 1e-5
C_PAD = 128                      # lane-dense output-channel padding
VMEM_LIMIT = 48 * 1024 * 1024    # headroom below v7x's 64 MiB physical VMEM


def _round_up(x, m):
    return (x + m - 1) // m * m


# ----------------------------------------------------------------------------
# Pallas kernels
# ----------------------------------------------------------------------------
def _conv_bn_kernel(a_ref, w_ref, scale_ref, bias_ref, o_ref, *, relu):
    """bf16 im2col-matmul conv + folded-BN affine (+ ReLU), f32 epilogue."""
    acc = jnp.dot(a_ref[...], w_ref[...], preferred_element_type=jnp.float32)
    acc = acc * scale_ref[...] + bias_ref[...]
    if relu:
        acc = jnp.maximum(acc, 0.0)
    o_ref[...] = acc.astype(o_ref.dtype)


def _conv_bn_res_kernel(a_ref, w_ref, scale_ref, bias_ref, res_ref, o_ref, *, relu):
    """Same as above + residual add before the (optional) ReLU."""
    acc = jnp.dot(a_ref[...], w_ref[...], preferred_element_type=jnp.float32)
    acc = acc * scale_ref[...] + bias_ref[...] + res_ref[...]
    if relu:
        acc = jnp.maximum(acc, 0.0)
    o_ref[...] = acc.astype(o_ref.dtype)


def conv_bn_pallas(patches, w_mat, scale, bias, residual, relu, tm):
    M, K = patches.shape
    Cp = w_mat.shape[1]                      # 128 (lane-dense)
    grid = (M // tm,)

    in_specs = [
        pl.BlockSpec((tm, K), lambda i: (i, 0)),     # patch tile (bf16)
        pl.BlockSpec((K, Cp), lambda i: (0, 0)),     # full weight (bf16)
        pl.BlockSpec((1, Cp), lambda i: (0, 0)),     # BN scale (f32)
        pl.BlockSpec((1, Cp), lambda i: (0, 0)),     # BN bias  (f32)
    ]
    args = [patches, w_mat, scale, bias]
    res_bytes = 0
    if residual is not None:
        kern = functools.partial(_conv_bn_res_kernel, relu=relu)
        in_specs.append(pl.BlockSpec((tm, Cp), lambda i: (i, 0)))
        args.append(residual)
        res_bytes = residual.size * residual.dtype.itemsize
    else:
        kern = functools.partial(_conv_bn_kernel, relu=relu)

    bytes_accessed = (patches.size * patches.dtype.itemsize
                      + w_mat.size * w_mat.dtype.itemsize
                      + M * Cp * 4            # f32 output
                      + res_bytes)

    return pl.pallas_call(
        kern,
        out_shape=jax.ShapeDtypeStruct((M, Cp), jnp.float32),
        grid=grid,
        in_specs=in_specs,
        out_specs=pl.BlockSpec((tm, Cp), lambda i: (i, 0)),
        compiler_params=pltpu.CompilerParams(
            dimension_semantics=("parallel",),
            vmem_limit_bytes=VMEM_LIMIT),
        cost_estimate=pl.CostEstimate(
            flops=2 * M * K * Cp,
            transcendentals=0,
            bytes_accessed=bytes_accessed),
    )(*args)


def _pool_fc_kernel(x_ref, w_ref, b_ref, o_ref):
    """Global average pool folded into the FC matmul (1/HW pre-scaled weights)."""
    out = jnp.dot(x_ref[...], w_ref[...], preferred_element_type=jnp.float32)
    o_ref[...] = (out + b_ref[...]).astype(o_ref.dtype)


def pool_fc_pallas(x_flat, w_big, bias):
    N, D = x_flat.shape
    Cp = w_big.shape[1]
    bytes_accessed = (x_flat.size * x_flat.dtype.itemsize
                      + w_big.size * w_big.dtype.itemsize
                      + N * Cp * 4)
    return pl.pallas_call(
        _pool_fc_kernel,
        out_shape=jax.ShapeDtypeStruct((N, Cp), jnp.float32),
        grid=(1,),
        in_specs=[
            pl.BlockSpec((N, D), lambda i: (0, 0)),
            pl.BlockSpec((D, Cp), lambda i: (0, 0)),
            pl.BlockSpec((1, Cp), lambda i: (0, 0)),
        ],
        out_specs=pl.BlockSpec((N, Cp), lambda i: (0, 0)),
        compiler_params=pltpu.CompilerParams(
            dimension_semantics=("arbitrary",),
            vmem_limit_bytes=VMEM_LIMIT),
        cost_estimate=pl.CostEstimate(
            flops=2 * N * D * Cp,
            transcendentals=0,
            bytes_accessed=bytes_accessed),
    )(x_flat, w_big, bias)


# ----------------------------------------------------------------------------
# JAX glue (im2col, BN folding, padding)
# ----------------------------------------------------------------------------
def im2col(x_nhwc, kh, kw, stride, pad):
    x = x_nhwc.astype(jnp.bfloat16)                      # bf16 MXU inputs
    N, H, W, C = x.shape
    xp = jnp.pad(x, ((0, 0), (pad, pad), (pad, pad), (0, 0)))
    Ho = (H + 2 * pad - kh) // stride + 1
    Wo = (W + 2 * pad - kw) // stride + 1
    cols = []
    for i in range(kh):
        for j in range(kw):
            cols.append(xp[:, i:i + Ho * stride:stride, j:j + Wo * stride:stride, :])
    patches = jnp.stack(cols, axis=3)                    # (N, Ho, Wo, kh*kw, C)
    return patches.reshape(N * Ho * Wo, kh * kw * C), Ho, Wo


def conv_bn(x_nhwc, conv_w, bn, stride, relu, residual_nhwc=None):
    """conv (no bias) + BatchNorm (eval-mode, folded) + optional residual/ReLU."""
    Cout, Cin, kh, kw = conv_w.shape
    pad = (kh - 1) // 2
    patches, Ho, Wo = im2col(x_nhwc, kh, kw, stride, pad)

    # weights: (Cout, Cin, kh, kw) -> (kh*kw*Cin, Cout) -> pad Cout to 128, bf16
    w_mat = jnp.transpose(conv_w, (2, 3, 1, 0)).reshape(kh * kw * Cin, Cout)
    w_mat = jnp.pad(w_mat, ((0, 0), (0, C_PAD - Cout))).astype(jnp.bfloat16)

    gamma, beta, mean, var = bn
    inv = gamma / jnp.sqrt(var + BN_EPS)
    scale = jnp.pad(inv, (0, C_PAD - Cout)).reshape(1, C_PAD).astype(jnp.float32)
    bias = jnp.pad(beta - mean * inv, (0, C_PAD - Cout)).reshape(1, C_PAD).astype(jnp.float32)

    N = x_nhwc.shape[0]
    M = N * Ho * Wo
    tm = min(512, _round_up(M, 8))
    M_pad = _round_up(M, tm)
    if M_pad != M:
        patches = jnp.pad(patches, ((0, M_pad - M), (0, 0)))

    residual = None
    if residual_nhwc is not None:
        residual = residual_nhwc.reshape(M, Cout).astype(jnp.float32)
        residual = jnp.pad(residual, ((0, M_pad - M), (0, C_PAD - Cout)))

    out = conv_bn_pallas(patches, w_mat, scale, bias, residual, relu, tm)
    out = out[:M, :Cout]
    return out.reshape(N, Ho, Wo, Cout)


# ----------------------------------------------------------------------------
# Parameter construction (deterministic, mirrors the PyTorch __init__)
# ----------------------------------------------------------------------------
def _kaiming_conv(key, cout, cin, kh, kw):
    fan_out = cout * kh * kw
    std = math.sqrt(2.0 / fan_out)
    return jax.random.normal(key, (cout, cin, kh, kw), jnp.float32) * std


def _bn_params(c):
    return (jnp.ones((c,), jnp.float32), jnp.zeros((c,), jnp.float32),
            jnp.zeros((c,), jnp.float32), jnp.ones((c,), jnp.float32))


def build_resnet20_params(key, num_classes=10):
    params = {}
    keys = iter(jax.random.split(key, 64))

    params["conv1"] = _kaiming_conv(next(keys), 16, 3, 3, 3)
    params["bn1"] = _bn_params(16)

    layers_cfg = [("layer1", 16, 3, 1), ("layer2", 32, 3, 2), ("layer3", 64, 3, 2)]
    inplanes = 16
    for name, planes, blocks, stride in layers_cfg:
        blk_list = []
        for b in range(blocks):
            s = stride if b == 0 else 1
            blk = {
                "conv1": _kaiming_conv(next(keys), planes, inplanes, 3, 3),
                "bn1": _bn_params(planes),
                "conv2": _kaiming_conv(next(keys), planes, planes, 3, 3),
                "bn2": _bn_params(planes),
                "stride": s,
                "downsample": None,
            }
            if s != 1 or inplanes != planes:
                blk["downsample"] = {
                    "conv": _kaiming_conv(next(keys), planes, inplanes, 1, 1),
                    "bn": _bn_params(planes),
                }
            blk_list.append(blk)
            inplanes = planes
        params[name] = blk_list

    params["fc_w"] = jax.random.normal(next(keys), (num_classes, 64), jnp.float32) * 0.001
    params["fc_b"] = jnp.zeros((num_classes,), jnp.float32)
    return params


# ----------------------------------------------------------------------------
# Forward pass
# ----------------------------------------------------------------------------
def basic_block(x, blk):
    out = conv_bn(x, blk["conv1"], blk["bn1"], blk["stride"], relu=True)
    if blk["downsample"] is not None:
        identity = conv_bn(x, blk["downsample"]["conv"], blk["downsample"]["bn"],
                           blk["stride"], relu=False)
    else:
        identity = x
    # conv2 + bn2 + residual add + relu fused in one call
    out = conv_bn(out, blk["conv2"], blk["bn2"], 1, relu=True,
                  residual_nhwc=identity)
    return out


def resnet20_forward(params, x_nchw):
    # convert PyTorch NCHW input to NHWC for the kernel path
    x = jnp.transpose(x_nchw, (0, 2, 3, 1)).astype(jnp.float32)

    x = conv_bn(x, params["conv1"], params["bn1"], 1, relu=True)
    for name in ("layer1", "layer2", "layer3"):
        for blk in params[name]:
            x = basic_block(x, blk)

    # fused global-average-pool + FC: fold 1/HW into replicated FC weights
    N, H, W, C = x.shape
    HW = H * W
    nc = params["fc_w"].shape[0]
    x_flat = x.reshape(N, HW * C).astype(jnp.bfloat16)           # (N, HW*C)
    fc_w = jnp.transpose(params["fc_w"], (1, 0))                 # (C, nc)
    fc_w = jnp.pad(fc_w, ((0, 0), (0, C_PAD - nc))) / HW         # fold mean
    w_big = jnp.tile(fc_w, (HW, 1)).astype(jnp.bfloat16)         # (HW*C, 128)
    fc_b = jnp.pad(params["fc_b"], (0, C_PAD - nc)).reshape(1, C_PAD)

    logits = pool_fc_pallas(x_flat, w_big, fc_b)[:, :nc]         # (N, num_classes)
    return logits


# ----------------------------------------------------------------------------
if __name__ == "__main__":
    key = jax.random.PRNGKey(0)
    pkey, xkey = jax.random.split(key)

    params = build_resnet20_params(pkey, num_classes=10)
    # small CIFAR-like input: batch=2, 3 channels, 16x16 spatial (NCHW)
    x = jax.random.normal(xkey, (2, 3, 16, 16), jnp.float32)

    fwd = jax.jit(lambda inp: resnet20_forward(params, inp))
    logits = fwd(x)
    logits = jax.block_until_ready(logits)
    assert logits.shape == (2, 10), logits.shape
    print("KERNEL_OK")
</pallas_src>

<mosaic_0001>
module attributes {stable_mosaic.version = 11 : i64} {
  func.func @_conv_bn_kernel(%arg0: i32, %arg1: memref<512x27xbf16, #tpu.memory_space<vmem>>, %arg2: memref<27x128xbf16, #tpu.memory_space<vmem>>, %arg3: memref<1x128xf32, #tpu.memory_space<vmem>>, %arg4: memref<1x128xf32, #tpu.memory_space<vmem>>, %arg5: memref<512x128xf32, #tpu.memory_space<vmem>>) attributes {dimension_semantics = [#tpu.dimension_semantics<parallel>], iteration_bounds = array<i64: 1>, scalar_prefetch = 0 : i64, scratch_operands = 0 : i64, tpu.core_type = #tpu.core_type<tc>, window_params = [{transform_indices = @transform_0, window_bounds = array<i64: 512, 27>}, {pipeline_mode = #tpu.pipeline_mode<synchronous>, transform_indices = @transform_1, window_bounds = array<i64: 27, 128>}, {pipeline_mode = #tpu.pipeline_mode<synchronous>, transform_indices = @transform_2, window_bounds = array<i64: 1, 128>}, {pipeline_mode = #tpu.pipeline_mode<synchronous>, transform_indices = @transform_3, window_bounds = array<i64: 1, 128>}, {transform_indices = @transform_4, window_bounds = array<i64: 512, 128>}]} {
    %c0 = arith.constant 0 : index
    %c0_0 = arith.constant 0 : index
    %0 = vector.load %arg1[%c0, %c0_0] : memref<512x27xbf16, #tpu.memory_space<vmem>>, vector<512x27xbf16>
    %c0_1 = arith.constant 0 : index
    %c0_2 = arith.constant 0 : index
    %1 = vector.load %arg2[%c0_1, %c0_2] : memref<27x128xbf16, #tpu.memory_space<vmem>>, vector<27x128xbf16>
    %cst = arith.constant dense<0.000000e+00> : vector<512x128xf32>
    %2 = tpu.matmul %0, %1, %cst {dimension_numbers = #tpu.dot_dimension_numbers<[1], [0], [0], [1], [0, 0, 1, 1], [], []>} : vector<512x27xbf16>, vector<27x128xbf16>, vector<512x128xf32> -> vector<512x128xf32>
    %c0_3 = arith.constant 0 : index
    %c0_4 = arith.constant 0 : index
    %3 = vector.load %arg3[%c0_3, %c0_4] : memref<1x128xf32, #tpu.memory_space<vmem>>, vector<1x128xf32>
    %4 = vector.broadcast %3 : vector<1x128xf32> to vector<512x128xf32>
    %5 = arith.mulf %2, %4 : vector<512x128xf32>
    %c0_5 = arith.constant 0 : index
    %c0_6 = arith.constant 0 : index
    %6 = vector.load %arg4[%c0_5, %c0_6] : memref<1x128xf32, #tpu.memory_space<vmem>>, vector<1x128xf32>
    %7 = vector.broadcast %6 : vector<1x128xf32> to vector<512x128xf32>
    %8 = arith.addf %5, %7 : vector<512x128xf32>
    %cst_7 = arith.constant 0.000000e+00 : f32
    %9 = vector.broadcast %cst_7 : f32 to vector<512x128xf32>
    %10 = arith.maximumf %8, %9 : vector<512x128xf32>
    %c0_8 = arith.constant 0 : index
    %c0_9 = arith.constant 0 : index
    %11 = vector.load %arg5[%c0_8, %c0_9] : memref<512x128xf32, #tpu.memory_space<vmem>>, vector<512x128xf32>
    tpu.vector_store %arg5[%c0_8, %c0_9], %10 {strides = array<i32>} : memref<512x128xf32, #tpu.memory_space<vmem>>, vector<512x128xf32>,
    return
  }
  func.func @transform_0(%arg0: i32) -> (i32, i32) {
    %c0_i32 = arith.constant 0 : i32
    %c0_i32_0 = arith.constant 0 : i32
    return %arg0, %c0_i32 : i32, i32
  }
  func.func @transform_1(%arg0: i32) -> (i32, i32) {
    %c0_i32 = arith.constant 0 : i32
    %c0_i32_0 = arith.constant 0 : i32
    %c0_i32_1 = arith.constant 0 : i32
    return %c0_i32, %c0_i32_0 : i32, i32
  }
  func.func @transform_2(%arg0: i32) -> (i32, i32) {
    %c0_i32 = arith.constant 0 : i32
    %c0_i32_0 = arith.constant 0 : i32
    %c0_i32_1 = arith.constant 0 : i32
    return %c0_i32, %c0_i32_0 : i32, i32
  }
  func.func @transform_3(%arg0: i32) -> (i32, i32) {
    %c0_i32 = arith.constant 0 : i32
    %c0_i32_0 = arith.constant 0 : i32
    %c0_i32_1 = arith.constant 0 : i32
    return %c0_i32, %c0_i32_0 : i32, i32
  }
  func.func @transform_4(%arg0: i32) -> (i32, i32) {
    %c0_i32 = arith.constant 0 : i32
    %c0_i32_0 = arith.constant 0 : i32
    return %arg0, %c0_i32 : i32, i32
  }
}

module attributes {stable_mosaic.version = 11 : i64} {
  func.func @_conv_bn_kernel(%arg0: i32, %arg1: memref<512x144xbf16, #tpu.memory_space<vmem>>, %arg2: memref<144x128xbf16, #tpu.memory_space<vmem>>, %arg3: memref<1x128xf32, #tpu.memory_space<vmem>>, %arg4: memref<1x128xf32, #tpu.memory_space<vmem>>, %arg5: memref<512x128xf32, #tpu.memory_space<vmem>>) attributes {dimension_semantics = [#tpu.dimension_semantics<parallel>], iteration_bounds = array<i64: 1>, scalar_prefetch = 0 : i64, scratch_operands = 0 : i64, tpu.core_type = #tpu.core_type<tc>, window_params = [{transform_indices = @transform_0, window_bounds = array<i64: 512, 144>}, {pipeline_mode = #tpu.pipeline_mode<synchronous>, transform_indices = @transform_1, window_bounds = array<i64: 144, 128>}, {pipeline_mode = #tpu.pipeline_mode<synchronous>, transform_indices = @transform_2, window_bounds = array<i64: 1, 128>}, {pipeline_mode = #tpu.pipeline_mode<synchronous>, transform_indices = @transform_3, window_bounds = array<i64: 1, 128>}, {transform_indices = @transform_4, window_bounds = array<i64: 512, 128>}]} {
    %c0 = arith.constant 0 : index
    %c0_0 = arith.constant 0 : index
    %0 = vector.load %arg1[%c0, %c0_0] : memref<512x144xbf16, #tpu.memory_space<vmem>>, vector<512x144xbf16>
    %c0_1 = arith.constant 0 : index
    %c0_2 = arith.constant 0 : index
    %1 = vector.load %arg2[%c0_1, %c0_2] : memref<144x128xbf16, #tpu.memory_space<vmem>>, vector<144x128xbf16>
    %cst = arith.constant dense<0.000000e+00> : vector<512x128xf32>
    %2 = tpu.matmul %0, %1, %cst {dimension_numbers = #tpu.dot_dimension_numbers<[1], [0], [0], [1], [0, 0, 1, 1], [], []>} : vector<512x144xbf16>, vector<144x128xbf16>, vector<512x128xf32> -> vector<512x128xf32>
    %c0_3 = arith.constant 0 : index
    %c0_4 = arith.constant 0 : index
    %3 = vector.load %arg3[%c0_3, %c0_4] : memref<1x128xf32, #tpu.memory_space<vmem>>, vector<1x128xf32>
    %4 = vector.broadcast %3 : vector<1x128xf32> to vector<512x128xf32>
    %5 = arith.mulf %2, %4 : vector<512x128xf32>
    %c0_5 = arith.constant 0 : index
    %c0_6 = arith.constant 0 : index
    %6 = vector.load %arg4[%c0_5, %c0_6] : memref<1x128xf32, #tpu.memory_space<vmem>>, vector<1x128xf32>
    %7 = vector.broadcast %6 : vector<1x128xf32> to vector<512x128xf32>
    %8 = arith.addf %5, %7 : vector<512x128xf32>
    %cst_7 = arith.constant 0.000000e+00 : f32
    %9 = vector.broadcast %cst_7 : f32 to vector<512x128xf32>
    %10 = arith.maximumf %8, %9 : vector<512x128xf32>
    %c0_8 = arith.constant 0 : index
    %c0_9 = arith.constant 0 : index
    %11 = vector.load %arg5[%c0_8, %c0_9] : memref<512x128xf32, #tpu.memory_space<vmem>>, vector<512x128xf32>
    tpu.vector_store %arg5[%c0_8, %c0_9], %10 {strides = array<i32>} : memref<512x128xf32, #tpu.memory_space<vmem>>, vector<512x128xf32>,
    return
  }
  func.func @transform_0(%arg0: i32) -> (i32, i32) {
    %c0_i32 = arith.constant 0 : i32
    %c0_i32_0 = arith.constant 0 : i32
    return %arg0, %c0_i32 : i32, i32
  }
  func.func @transform_1(%arg0: i32) -> (i32, i32) {
    %c0_i32 = arith.constant 0 : i32
    %c0_i32_0 = arith.constant 0 : i32
    %c0_i32_1 = arith.constant 0 : i32
    return %c0_i32, %c0_i32_0 : i32, i32
  }
  func.func @transform_2(%arg0: i32) -> (i32, i32) {
    %c0_i32 = arith.constant 0 : i32
    %c0_i32_0 = arith.constant 0 : i32
    %c0_i32_1 = arith.constant 0 : i32
    return %c0_i32, %c0_i32_0 : i32, i32
  }
  func.func @transform_3(%arg0: i32) -> (i32, i32) {
    %c0_i32 = arith.constant 0 : i32
    %c0_i32_0 = arith.constant 0 : i32
    %c0_i32_1 = arith.constant 0 : i32
    return %c0_i32, %c0_i32_0 : i32, i32
  }
  func.func @transform_4(%arg0: i32) -> (i32, i32) {
    %c0_i32 = arith.constant 0 : i32
    %c0_i32_0 = arith.constant 0 : i32
    return %arg0, %c0_i32 : i32, i32
  }
}

module attributes {stable_mosaic.version = 11 : i64} {
  func.func @_conv_bn_res_kernel(%arg0: i32, %arg1: memref<512x144xbf16, #tpu.memory_space<vmem>>, %arg2: memref<144x128xbf16, #tpu.memory_space<vmem>>, %arg3: memref<1x128xf32, #tpu.memory_space<vmem>>, %arg4: memref<1x128xf32, #tpu.memory_space<vmem>>, %arg5: memref<512x128xf32, #tpu.memory_space<vmem>>, %arg6: memref<512x128xf32, #tpu.memory_space<vmem>>) attributes {dimension_semantics = [#tpu.dimension_semantics<parallel>], iteration_bounds = array<i64: 1>, scalar_prefetch = 0 : i64, scratch_operands = 0 : i64, tpu.core_type = #tpu.core_type<tc>, window_params = [{transform_indices = @transform_0, window_bounds = array<i64: 512, 144>}, {pipeline_mode = #tpu.pipeline_mode<synchronous>, transform_indices = @transform_1, window_bounds = array<i64: 144, 128>}, {pipeline_mode = #tpu.pipeline_mode<synchronous>, transform_indices = @transform_2, window_bounds = array<i64: 1, 128>}, {pipeline_mode = #tpu.pipeline_mode<synchronous>, transform_indices = @transform_3, window_bounds = array<i64: 1, 128>}, {transform_indices = @transform_4, window_bounds = array<i64: 512, 128>}, {transform_indices = @transform_5, window_bounds = array<i64: 512, 128>}]} {
    %c0 = arith.constant 0 : index
    %c0_0 = arith.constant 0 : index
    %0 = vector.load %arg1[%c0, %c0_0] : memref<512x144xbf16, #tpu.memory_space<vmem>>, vector<512x144xbf16>
    %c0_1 = arith.constant 0 : index
    %c0_2 = arith.constant 0 : index
    %1 = vector.load %arg2[%c0_1, %c0_2] : memref<144x128xbf16, #tpu.memory_space<vmem>>, vector<144x128xbf16>
    %cst = arith.constant dense<0.000000e+00> : vector<512x128xf32>
    %2 = tpu.matmul %0, %1, %cst {dimension_numbers = #tpu.dot_dimension_numbers<[1], [0], [0], [1], [0, 0, 1, 1], [], []>} : vector<512x144xbf16>, vector<144x128xbf16>, vector<512x128xf32> -> vector<512x128xf32>
    %c0_3 = arith.constant 0 : index
    %c0_4 = arith.constant 0 : index
    %3 = vector.load %arg3[%c0_3, %c0_4] : memref<1x128xf32, #tpu.memory_space<vmem>>, vector<1x128xf32>
    %4 = vector.broadcast %3 : vector<1x128xf32> to vector<512x128xf32>
    %5 = arith.mulf %2, %4 : vector<512x128xf32>
    %c0_5 = arith.constant 0 : index
    %c0_6 = arith.constant 0 : index
    %6 = vector.load %arg4[%c0_5, %c0_6] : memref<1x128xf32, #tpu.memory_space<vmem>>, vector<1x128xf32>
    %7 = vector.broadcast %6 : vector<1x128xf32> to vector<512x128xf32>
    %8 = arith.addf %5, %7 : vector<512x128xf32>
    %c0_7 = arith.constant 0 : index
    %c0_8 = arith.constant 0 : index
    %9 = vector.load %arg5[%c0_7, %c0_8] : memref<512x128xf32, #tpu.memory_space<vmem>>, vector<512x128xf32>
    %10 = arith.addf %8, %9 : vector<512x128xf32>
    %cst_9 = arith.constant 0.000000e+00 : f32
    %11 = vector.broadcast %cst_9 : f32 to vector<512x128xf32>
    %12 = arith.maximumf %10, %11 : vector<512x128xf32>
    %c0_10 = arith.constant 0 : index
    %c0_11 = arith.constant 0 : index
    %13 = vector.load %arg6[%c0_10, %c0_11] : memref<512x128xf32, #tpu.memory_space<vmem>>, vector<512x128xf32>
    tpu.vector_store %arg6[%c0_10, %c0_11], %12 {strides = array<i32>} : memref<512x128xf32, #tpu.memory_space<vmem>>, vector<512x128xf32>,
    return
  }
  func.func @transform_0(%arg0: i32) -> (i32, i32) {
    %c0_i32 = arith.constant 0 : i32
    %c0_i32_0 = arith.constant 0 : i32
    return %arg0, %c0_i32 : i32, i32
  }
  func.func @transform_1(%arg0: i32) -> (i32, i32) {
    %c0_i32 = arith.constant 0 : i32
    %c0_i32_0 = arith.constant 0 : i32
    %c0_i32_1 = arith.constant 0 : i32
    return %c0_i32, %c0_i32_0 : i32, i32
  }
  func.func @transform_2(%arg0: i32) -> (i32, i32) {
    %c0_i32 = arith.constant 0 : i32
    %c0_i32_0 = arith.constant 0 : i32
    %c0_i32_1 = arith.constant 0 : i32
    return %c0_i32, %c0_i32_0 : i32, i32
  }
  func.func @transform_3(%arg0: i32) -> (i32, i32) {
    %c0_i32 = arith.constant 0 : i32
    %c0_i32_0 = arith.constant 0 : i32
    %c0_i32_1 = arith.constant 0 : i32
    return %c0_i32, %c0_i32_0 : i32, i32
  }
  func.func @transform_4(%arg0: i32) -> (i32, i32) {
    %c0_i32 = arith.constant 0 : i32
    %c0_i32_0 = arith.constant 0 : i32
    return %arg0, %c0_i32 : i32, i32
  }
  func.func @transform_5(%arg0: i32) -> (i32, i32) {
    %c0_i32 = arith.constant 0 : i32
    %c0_i32_0 = arith.constant 0 : i32
    return %arg0, %c0_i32 : i32, i32
  }
}

module attributes {stable_mosaic.version = 11 : i64} {
  func.func @_conv_bn_kernel(%arg0: i32, %arg1: memref<128x144xbf16, #tpu.memory_space<vmem>>, %arg2: memref<144x128xbf16, #tpu.memory_space<vmem>>, %arg3: memref<1x128xf32, #tpu.memory_space<vmem>>, %arg4: memref<1x128xf32, #tpu.memory_space<vmem>>, %arg5: memref<128x128xf32, #tpu.memory_space<vmem>>) attributes {dimension_semantics = [#tpu.dimension_semantics<parallel>], iteration_bounds = array<i64: 1>, scalar_prefetch = 0 : i64, scratch_operands = 0 : i64, tpu.core_type = #tpu.core_type<tc>, window_params = [{transform_indices = @transform_0, window_bounds = array<i64: 128, 144>}, {pipeline_mode = #tpu.pipeline_mode<synchronous>, transform_indices = @transform_1, window_bounds = array<i64: 144, 128>}, {pipeline_mode = #tpu.pipeline_mode<synchronous>, transform_indices = @transform_2, window_bounds = array<i64: 1, 128>}, {pipeline_mode = #tpu.pipeline_mode<synchronous>, transform_indices = @transform_3, window_bounds = array<i64: 1, 128>}, {transform_indices = @transform_4, window_bounds = array<i64: 128, 128>}]} {
    %c0 = arith.constant 0 : index
    %c0_0 = arith.constant 0 : index
    %0 = vector.load %arg1[%c0, %c0_0] : memref<128x144xbf16, #tpu.memory_space<vmem>>, vector<128x144xbf16>
    %c0_1 = arith.constant 0 : index
    %c0_2 = arith.constant 0 : index
    %1 = vector.load %arg2[%c0_1, %c0_2] : memref<144x128xbf16, #tpu.memory_space<vmem>>, vector<144x128xbf16>
    %cst = arith.constant dense<0.000000e+00> : vector<128x128xf32>
    %2 = tpu.matmul %0, %1, %cst {dimension_numbers = #tpu.dot_dimension_numbers<[1], [0], [0], [1], [0, 0, 1, 1], [], []>} : vector<128x144xbf16>, vector<144x128xbf16>, vector<128x128xf32> -> vector<128x128xf32>
    %c0_3 = arith.constant 0 : index
    %c0_4 = arith.constant 0 : index
    %3 = vector.load %arg3[%c0_3, %c0_4] : memref<1x128xf32, #tpu.memory_space<vmem>>, vector<1x128xf32>
    %4 = vector.broadcast %3 : vector<1x128xf32> to vector<128x128xf32>
    %5 = arith.mulf %2, %4 : vector<128x128xf32>
    %c0_5 = arith.constant 0 : index
    %c0_6 = arith.constant 0 : index
    %6 = vector.load %arg4[%c0_5, %c0_6] : memref<1x128xf32, #tpu.memory_space<vmem>>, vector<1x128xf32>
    %7 = vector.broadcast %6 : vector<1x128xf32> to vector<128x128xf32>
    %8 = arith.addf %5, %7 : vector<128x128xf32>
    %cst_7 = arith.constant 0.000000e+00 : f32
    %9 = vector.broadcast %cst_7 : f32 to vector<128x128xf32>
    %10 = arith.maximumf %8, %9 : vector<128x128xf32>
    %c0_8 = arith.constant 0 : index
    %c0_9 = arith.constant 0 : index
    %11 = vector.load %arg5[%c0_8, %c0_9] : memref<128x128xf32, #tpu.memory_space<vmem>>, vector<128x128xf32>
    tpu.vector_store %arg5[%c0_8, %c0_9], %10 {strides = array<i32>} : memref<128x128xf32, #tpu.memory_space<vmem>>, vector<128x128xf32>,
    return
  }
  func.func @transform_0(%arg0: i32) -> (i32, i32) {
    %c0_i32 = arith.constant 0 : i32
    %c0_i32_0 = arith.constant 0 : i32
    return %arg0, %c0_i32 : i32, i32
  }
  func.func @transform_1(%arg0: i32) -> (i32, i32) {
    %c0_i32 = arith.constant 0 : i32
    %c0_i32_0 = arith.constant 0 : i32
    %c0_i32_1 = arith.constant 0 : i32
    return %c0_i32, %c0_i32_0 : i32, i32
  }
  func.func @transform_2(%arg0: i32) -> (i32, i32) {
    %c0_i32 = arith.constant 0 : i32
    %c0_i32_0 = arith.constant 0 : i32
    %c0_i32_1 = arith.constant 0 : i32
    return %c0_i32, %c0_i32_0 : i32, i32
  }
  func.func @transform_3(%arg0: i32) -> (i32, i32) {
    %c0_i32 = arith.constant 0 : i32
    %c0_i32_0 = arith.constant 0 : i32
    %c0_i32_1 = arith.constant 0 : i32
    return %c0_i32, %c0_i32_0 : i32, i32
  }
  func.func @transform_4(%arg0: i32) -> (i32, i32) {
    %c0_i32 = arith.constant 0 : i32
    %c0_i32_0 = arith.constant 0 : i32
    return %arg0, %c0_i32 : i32, i32
  }
}

module attributes {stable_mosaic.version = 11 : i64} {
  func.func @_conv_bn_kernel(%arg0: i32, %arg1: memref<128x16xbf16, #tpu.memory_space<vmem>>, %arg2: memref<16x128xbf16, #tpu.memory_space<vmem>>, %arg3: memref<1x128xf32, #tpu.memory_space<vmem>>, %arg4: memref<1x128xf32, #tpu.memory_space<vmem>>, %arg5: memref<128x128xf32, #tpu.memory_space<vmem>>) attributes {dimension_semantics = [#tpu.dimension_semantics<parallel>], iteration_bounds = array<i64: 1>, scalar_prefetch = 0 : i64, scratch_operands = 0 : i64, tpu.core_type = #tpu.core_type<tc>, window_params = [{transform_indices = @transform_0, window_bounds = array<i64: 128, 16>}, {pipeline_mode = #tpu.pipeline_mode<synchronous>, transform_indices = @transform_1, window_bounds = array<i64: 16, 128>}, {pipeline_mode = #tpu.pipeline_mode<synchronous>, transform_indices = @transform_2, window_bounds = array<i64: 1, 128>}, {pipeline_mode = #tpu.pipeline_mode<synchronous>, transform_indices = @transform_3, window_bounds = array<i64: 1, 128>}, {transform_indices = @transform_4, window_bounds = array<i64: 128, 128>}]} {
    %c0 = arith.constant 0 : index
    %c0_0 = arith.constant 0 : index
    %0 = vector.load %arg1[%c0, %c0_0] : memref<128x16xbf16, #tpu.memory_space<vmem>>, vector<128x16xbf16>
    %c0_1 = arith.constant 0 : index
    %c0_2 = arith.constant 0 : index
    %1 = vector.load %arg2[%c0_1, %c0_2] : memref<16x128xbf16, #tpu.memory_space<vmem>>, vector<16x128xbf16>
    %cst = arith.constant dense<0.000000e+00> : vector<128x128xf32>
    %2 = tpu.matmul %0, %1, %cst {dimension_numbers = #tpu.dot_dimension_numbers<[1], [0], [0], [1], [0, 0, 1, 1], [], []>} : vector<128x16xbf16>, vector<16x128xbf16>, vector<128x128xf32> -> vector<128x128xf32>
    %c0_3 = arith.constant 0 : index
    %c0_4 = arith.constant 0 : index
    %3 = vector.load %arg3[%c0_3, %c0_4] : memref<1x128xf32, #tpu.memory_space<vmem>>, vector<1x128xf32>
    %4 = vector.broadcast %3 : vector<1x128xf32> to vector<128x128xf32>
    %5 = arith.mulf %2, %4 : vector<128x128xf32>
    %c0_5 = arith.constant 0 : index
    %c0_6 = arith.constant 0 : index
    %6 = vector.load %arg4[%c0_5, %c0_6] : memref<1x128xf32, #tpu.memory_space<vmem>>, vector<1x128xf32>
    %7 = vector.broadcast %6 : vector<1x128xf32> to vector<128x128xf32>
    %8 = arith.addf %5, %7 : vector<128x128xf32>
    %c0_7 = arith.constant 0 : index
    %c0_8 = arith.constant 0 : index
    %9 = vector.load %arg5[%c0_7, %c0_8] : memref<128x128xf32, #tpu.memory_space<vmem>>, vector<128x128xf32>
    tpu.vector_store %arg5[%c0_7, %c0_8], %8 {strides = array<i32>} : memref<128x128xf32, #tpu.memory_space<vmem>>, vector<128x128xf32>,
    return
  }
  func.func @transform_0(%arg0: i32) -> (i32, i32) {
    %c0_i32 = arith.constant 0 : i32
    %c0_i32_0 = arith.constant 0 : i32
    return %arg0, %c0_i32 : i32, i32
  }
  func.func @transform_1(%arg0: i32) -> (i32, i32) {
    %c0_i32 = arith.constant 0 : i32
    %c0_i32_0 = arith.constant 0 : i32
    %c0_i32_1 = arith.constant 0 : i32
    return %c0_i32, %c0_i32_0 : i32, i32
  }
  func.func @transform_2(%arg0: i32) -> (i32, i32) {
    %c0_i32 = arith.constant 0 : i32
    %c0_i32_0 = arith.constant 0 : i32
    %c0_i32_1 = arith.constant 0 : i32
    return %c0_i32, %c0_i32_0 : i32, i32
  }
  func.func @transform_3(%arg0: i32) -> (i32, i32) {
    %c0_i32 = arith.constant 0 : i32
    %c0_i32_0 = arith.constant 0 : i32
    %c0_i32_1 = arith.constant 0 : i32
    return %c0_i32, %c0_i32_0 : i32, i32
  }
  func.func @transform_4(%arg0: i32) -> (i32, i32) {
    %c0_i32 = arith.constant 0 : i32
    %c0_i32_0 = arith.constant 0 : i32
    return %arg0, %c0_i32 : i32, i32
  }
}

module attributes {stable_mosaic.version = 11 : i64} {
  func.func @_conv_bn_res_kernel(%arg0: i32, %arg1: memref<128x288xbf16, #tpu.memory_space<vmem>>, %arg2: memref<288x128xbf16, #tpu.memory_space<vmem>>, %arg3: memref<1x128xf32, #tpu.memory_space<vmem>>, %arg4: memref<1x128xf32, #tpu.memory_space<vmem>>, %arg5: memref<128x128xf32, #tpu.memory_space<vmem>>, %arg6: memref<128x128xf32, #tpu.memory_space<vmem>>) attributes {dimension_semantics = [#tpu.dimension_semantics<parallel>], iteration_bounds = array<i64: 1>, scalar_prefetch = 0 : i64, scratch_operands = 0 : i64, tpu.core_type = #tpu.core_type<tc>, window_params = [{transform_indices = @transform_0, window_bounds = array<i64: 128, 288>}, {pipeline_mode = #tpu.pipeline_mode<synchronous>, transform_indices = @transform_1, window_bounds = array<i64: 288, 128>}, {pipeline_mode = #tpu.pipeline_mode<synchronous>, transform_indices = @transform_2, window_bounds = array<i64: 1, 128>}, {pipeline_mode = #tpu.pipeline_mode<synchronous>, transform_indices = @transform_3, window_bounds = array<i64: 1, 128>}, {transform_indices = @transform_4, window_bounds = array<i64: 128, 128>}, {transform_indices = @transform_5, window_bounds = array<i64: 128, 128>}]} {
    %c0 = arith.constant 0 : index
    %c0_0 = arith.constant 0 : index
    %0 = vector.load %arg1[%c0, %c0_0] : memref<128x288xbf16, #tpu.memory_space<vmem>>, vector<128x288xbf16>
    %c0_1 = arith.constant 0 : index
    %c0_2 = arith.constant 0 : index
    %1 = vector.load %arg2[%c0_1, %c0_2] : memref<288x128xbf16, #tpu.memory_space<vmem>>, vector<288x128xbf16>
    %cst = arith.constant dense<0.000000e+00> : vector<128x128xf32>
    %2 = tpu.matmul %0, %1, %cst {dimension_numbers = #tpu.dot_dimension_numbers<[1], [0], [0], [1], [0, 0, 1, 1], [], []>} : vector<128x288xbf16>, vector<288x128xbf16>, vector<128x128xf32> -> vector<128x128xf32>
    %c0_3 = arith.constant 0 : index
    %c0_4 = arith.constant 0 : index
    %3 = vector.load %arg3[%c0_3, %c0_4] : memref<1x128xf32, #tpu.memory_space<vmem>>, vector<1x128xf32>
    %4 = vector.broadcast %3 : vector<1x128xf32> to vector<128x128xf32>
    %5 = arith.mulf %2, %4 : vector<128x128xf32>
    %c0_5 = arith.constant 0 : index
    %c0_6 = arith.constant 0 : index
    %6 = vector.load %arg4[%c0_5, %c0_6] : memref<1x128xf32, #tpu.memory_space<vmem>>, vector<1x128xf32>
    %7 = vector.broadcast %6 : vector<1x128xf32> to vector<128x128xf32>
    %8 = arith.addf %5, %7 : vector<128x128xf32>
    %c0_7 = arith.constant 0 : index
    %c0_8 = arith.constant 0 : index
    %9 = vector.load %arg5[%c0_7, %c0_8] : memref<128x128xf32, #tpu.memory_space<vmem>>, vector<128x128xf32>
    %10 = arith.addf %8, %9 : vector<128x128xf32>
    %cst_9 = arith.constant 0.000000e+00 : f32
    %11 = vector.broadcast %cst_9 : f32 to vector<128x128xf32>
    %12 = arith.maximumf %10, %11 : vector<128x128xf32>
    %c0_10 = arith.constant 0 : index
    %c0_11 = arith.constant 0 : index
    %13 = vector.load %arg6[%c0_10, %c0_11] : memref<128x128xf32, #tpu.memory_space<vmem>>, vector<128x128xf32>
    tpu.vector_store %arg6[%c0_10, %c0_11], %12 {strides = array<i32>} : memref<128x128xf32, #tpu.memory_space<vmem>>, vector<128x128xf32>,
    return
  }
  func.func @transform_0(%arg0: i32) -> (i32, i32) {
    %c0_i32 = arith.constant 0 : i32
    %c0_i32_0 = arith.constant 0 : i32
    return %arg0, %c0_i32 : i32, i32
  }
  func.func @transform_1(%arg0: i32) -> (i32, i32) {
    %c0_i32 = arith.constant 0 : i32
    %c0_i32_0 = arith.constant 0 : i32
    %c0_i32_1 = arith.constant 0 : i32
    return %c0_i32, %c0_i32_0 : i32, i32
  }
  func.func @transform_2(%arg0: i32) -> (i32, i32) {
    %c0_i32 = arith.constant 0 : i32
    %c0_i32_0 = arith.constant 0 : i32
    %c0_i32_1 = arith.constant 0 : i32
    return %c0_i32, %c0_i32_0 : i32, i32
  }
  func.func @transform_3(%arg0: i32) -> (i32, i32) {
    %c0_i32 = arith.constant 0 : i32
    %c0_i32_0 = arith.constant 0 : i32
    %c0_i32_1 = arith.constant 0 : i32
    return %c0_i32, %c0_i32_0 : i32, i32
  }
  func.func @transform_4(%arg0: i32) -> (i32, i32) {
    %c0_i32 = arith.constant 0 : i32
    %c0_i32_0 = arith.constant 0 : i32
    return %arg0, %c0_i32 : i32, i32
  }
  func.func @transform_5(%arg0: i32) -> (i32, i32) {
    %c0_i32 = arith.constant 0 : i32
    %c0_i32_0 = arith.constant 0 : i32
    return %arg0, %c0_i32 : i32, i32
  }
}

module attributes {stable_mosaic.version = 11 : i64} {
  func.func @_conv_bn_kernel(%arg0: i32, %arg1: memref<128x288xbf16, #tpu.memory_space<vmem>>, %arg2: memref<288x128xbf16, #tpu.memory_space<vmem>>, %arg3: memref<1x128xf32, #tpu.memory_space<vmem>>, %arg4: memref<1x128xf32, #tpu.memory_space<vmem>>, %arg5: memref<128x128xf32, #tpu.memory_space<vmem>>) attributes {dimension_semantics = [#tpu.dimension_semantics<parallel>], iteration_bounds = array<i64: 1>, scalar_prefetch = 0 : i64, scratch_operands = 0 : i64, tpu.core_type = #tpu.core_type<tc>, window_params = [{transform_indices = @transform_0, window_bounds = array<i64: 128, 288>}, {pipeline_mode = #tpu.pipeline_mode<synchronous>, transform_indices = @transform_1, window_bounds = array<i64: 288, 128>}, {pipeline_mode = #tpu.pipeline_mode<synchronous>, transform_indices = @transform_2, window_bounds = array<i64: 1, 128>}, {pipeline_mode = #tpu.pipeline_mode<synchronous>, transform_indices = @transform_3, window_bounds = array<i64: 1, 128>}, {transform_indices = @transform_4, window_bounds = array<i64: 128, 128>}]} {
    %c0 = arith.constant 0 : index
    %c0_0 = arith.constant 0 : index
    %0 = vector.load %arg1[%c0, %c0_0] : memref<128x288xbf16, #tpu.memory_space<vmem>>, vector<128x288xbf16>
    %c0_1 = arith.constant 0 : index
    %c0_2 = arith.constant 0 : index
    %1 = vector.load %arg2[%c0_1, %c0_2] : memref<288x128xbf16, #tpu.memory_space<vmem>>, vector<288x128xbf16>
    %cst = arith.constant dense<0.000000e+00> : vector<128x128xf32>
    %2 = tpu.matmul %0, %1, %cst {dimension_numbers = #tpu.dot_dimension_numbers<[1], [0], [0], [1], [0, 0, 1, 1], [], []>} : vector<128x288xbf16>, vector<288x128xbf16>, vector<128x128xf32> -> vector<128x128xf32>
    %c0_3 = arith.constant 0 : index
    %c0_4 = arith.constant 0 : index
    %3 = vector.load %arg3[%c0_3, %c0_4] : memref<1x128xf32, #tpu.memory_space<vmem>>, vector<1x128xf32>
    %4 = vector.broadcast %3 : vector<1x128xf32> to vector<128x128xf32>
    %5 = arith.mulf %2, %4 : vector<128x128xf32>
    %c0_5 = arith.constant 0 : index
    %c0_6 = arith.constant 0 : index
    %6 = vector.load %arg4[%c0_5, %c0_6] : memref<1x128xf32, #tpu.memory_space<vmem>>, vector<1x128xf32>
    %7 = vector.broadcast %6 : vector<1x128xf32> to vector<128x128xf32>
    %8 = arith.addf %5, %7 : vector<128x128xf32>
    %cst_7 = arith.constant 0.000000e+00 : f32
    %9 = vector.broadcast %cst_7 : f32 to vector<128x128xf32>
    %10 = arith.maximumf %8, %9 : vector<128x128xf32>
    %c0_8 = arith.constant 0 : index
    %c0_9 = arith.constant 0 : index
    %11 = vector.load %arg5[%c0_8, %c0_9] : memref<128x128xf32, #tpu.memory_space<vmem>>, vector<128x128xf32>
    tpu.vector_store %arg5[%c0_8, %c0_9], %10 {strides = array<i32>} : memref<128x128xf32, #tpu.memory_space<vmem>>, vector<128x128xf32>,
    return
  }
  func.func @transform_0(%arg0: i32) -> (i32, i32) {
    %c0_i32 = arith.constant 0 : i32
    %c0_i32_0 = arith.constant 0 : i32
    return %arg0, %c0_i32 : i32, i32
  }
  func.func @transform_1(%arg0: i32) -> (i32, i32) {
    %c0_i32 = arith.constant 0 : i32
    %c0_i32_0 = arith.constant 0 : i32
    %c0_i32_1 = arith.constant 0 : i32
    return %c0_i32, %c0_i32_0 : i32, i32
  }
  func.func @transform_2(%arg0: i32) -> (i32, i32) {
    %c0_i32 = arith.constant 0 : i32
    %c0_i32_0 = arith.constant 0 : i32
    %c0_i32_1 = arith.constant 0 : i32
    return %c0_i32, %c0_i32_0 : i32, i32
  }
  func.func @transform_3(%arg0: i32) -> (i32, i32) {
    %c0_i32 = arith.constant 0 : i32
    %c0_i32_0 = arith.constant 0 : i32
    %c0_i32_1 = arith.constant 0 : i32
    return %c0_i32, %c0_i32_0 : i32, i32
  }
  func.func @transform_4(%arg0: i32) -> (i32, i32) {
    %c0_i32 = arith.constant 0 : i32
    %c0_i32_0 = arith.constant 0 : i32
    return %arg0, %c0_i32 : i32, i32
  }
}

module attributes {stable_mosaic.version = 11 : i64} {
  func.func @_conv_bn_kernel(%arg0: i32, %arg1: memref<32x288xbf16, #tpu.memory_space<vmem>>, %arg2: memref<288x128xbf16, #tpu.memory_space<vmem>>, %arg3: memref<1x128xf32, #tpu.memory_space<vmem>>, %arg4: memref<1x128xf32, #tpu.memory_space<vmem>>, %arg5: memref<32x128xf32, #tpu.memory_space<vmem>>) attributes {dimension_semantics = [#tpu.dimension_semantics<parallel>], iteration_bounds = array<i64: 1>, scalar_prefetch = 0 : i64, scratch_operands = 0 : i64, tpu.core_type = #tpu.core_type<tc>, window_params = [{transform_indices = @transform_0, window_bounds = array<i64: 32, 288>}, {pipeline_mode = #tpu.pipeline_mode<synchronous>, transform_indices = @transform_1, window_bounds = array<i64: 288, 128>}, {pipeline_mode = #tpu.pipeline_mode<synchronous>, transform_indices = @transform_2, window_bounds = array<i64: 1, 128>}, {pipeline_mode = #tpu.pipeline_mode<synchronous>, transform_indices = @transform_3, window_bounds = array<i64: 1, 128>}, {transform_indices = @transform_4, window_bounds = array<i64: 32, 128>}]} {
    %c0 = arith.constant 0 : index
    %c0_0 = arith.constant 0 : index
    %0 = vector.load %arg1[%c0, %c0_0] : memref<32x288xbf16, #tpu.memory_space<vmem>>, vector<32x288xbf16>
    %c0_1 = arith.constant 0 : index
    %c0_2 = arith.constant 0 : index
    %1 = vector.load %arg2[%c0_1, %c0_2] : memref<288x128xbf16, #tpu.memory_space<vmem>>, vector<288x128xbf16>
    %cst = arith.constant dense<0.000000e+00> : vector<32x128xf32>
    %2 = tpu.matmul %0, %1, %cst {dimension_numbers = #tpu.dot_dimension_numbers<[1], [0], [0], [1], [0, 0, 1, 1], [], []>} : vector<32x288xbf16>, vector<288x128xbf16>, vector<32x128xf32> -> vector<32x128xf32>
    %c0_3 = arith.constant 0 : index
    %c0_4 = arith.constant 0 : index
    %3 = vector.load %arg3[%c0_3, %c0_4] : memref<1x128xf32, #tpu.memory_space<vmem>>, vector<1x128xf32>
    %4 = vector.broadcast %3 : vector<1x128xf32> to vector<32x128xf32>
    %5 = arith.mulf %2, %4 : vector<32x128xf32>
    %c0_5 = arith.constant 0 : index
    %c0_6 = arith.constant 0 : index
    %6 = vector.load %arg4[%c0_5, %c0_6] : memref<1x128xf32, #tpu.memory_space<vmem>>, vector<1x128xf32>
    %7 = vector.broadcast %6 : vector<1x128xf32> to vector<32x128xf32>
    %8 = arith.addf %5, %7 : vector<32x128xf32>
    %cst_7 = arith.constant 0.000000e+00 : f32
    %9 = vector.broadcast %cst_7 : f32 to vector<32x128xf32>
    %10 = arith.maximumf %8, %9 : vector<32x128xf32>
    %c0_8 = arith.constant 0 : index
    %c0_9 = arith.constant 0 : index
    %11 = vector.load %arg5[%c0_8, %c0_9] : memref<32x128xf32, #tpu.memory_space<vmem>>, vector<32x128xf32>
    tpu.vector_store %arg5[%c0_8, %c0_9], %10 {strides = array<i32>} : memref<32x128xf32, #tpu.memory_space<vmem>>, vector<32x128xf32>,
    return
  }
  func.func @transform_0(%arg0: i32) -> (i32, i32) {
    %c0_i32 = arith.constant 0 : i32
    %c0_i32_0 = arith.constant 0 : i32
    return %arg0, %c0_i32 : i32, i32
  }
  func.func @transform_1(%arg0: i32) -> (i32, i32) {
    %c0_i32 = arith.constant 0 : i32
    %c0_i32_0 = arith.constant 0 : i32
    %c0_i32_1 = arith.constant 0 : i32
    return %c0_i32, %c0_i32_0 : i32, i32
  }
  func.func @transform_2(%arg0: i32) -> (i32, i32) {
    %c0_i32 = arith.constant 0 : i32
    %c0_i32_0 = arith.constant 0 : i32
    %c0_i32_1 = arith.constant 0 : i32
    return %c0_i32, %c0_i32_0 : i32, i32
  }
  func.func @transform_3(%arg0: i32) -> (i32, i32) {
    %c0_i32 = arith.constant 0 : i32
    %c0_i32_0 = arith.constant 0 : i32
    %c0_i32_1 = arith.constant 0 : i32
    return %c0_i32, %c0_i32_0 : i32, i32
  }
  func.func @transform_4(%arg0: i32) -> (i32, i32) {
    %c0_i32 = arith.constant 0 : i32
    %c0_i32_0 = arith.constant 0 : i32
    return %arg0, %c0_i32 : i32, i32
  }
}

module attributes {stable_mosaic.version = 11 : i64} {
  func.func @_conv_bn_res_kernel(%arg0: i32, %arg1: memref<32x576xbf16, #tpu.memory_space<vmem>>, %arg2: memref<576x128xbf16, #tpu.memory_space<vmem>>, %arg3: memref<1x128xf32, #tpu.memory_space<vmem>>, %arg4: memref<1x128xf32, #tpu.memory_space<vmem>>, %arg5: memref<32x128xf32, #tpu.memory_space<vmem>>, %arg6: memref<32x128xf32, #tpu.memory_space<vmem>>) attributes {dimension_semantics = [#tpu.dimension_semantics<parallel>], iteration_bounds = array<i64: 1>, scalar_prefetch = 0 : i64, scratch_operands = 0 : i64, tpu.core_type = #tpu.core_type<tc>, window_params = [{transform_indices = @transform_0, window_bounds = array<i64: 32, 576>}, {pipeline_mode = #tpu.pipeline_mode<synchronous>, transform_indices = @transform_1, window_bounds = array<i64: 576, 128>}, {pipeline_mode = #tpu.pipeline_mode<synchronous>, transform_indices = @transform_2, window_bounds = array<i64: 1, 128>}, {pipeline_mode = #tpu.pipeline_mode<synchronous>, transform_indices = @transform_3, window_bounds = array<i64: 1, 128>}, {transform_indices = @transform_4, window_bounds = array<i64: 32, 128>}, {transform_indices = @transform_5, window_bounds = array<i64: 32, 128>}]} {
    %c0 = arith.constant 0 : index
    %c0_0 = arith.constant 0 : index
    %0 = vector.load %arg1[%c0, %c0_0] : memref<32x576xbf16, #tpu.memory_space<vmem>>, vector<32x576xbf16>
    %c0_1 = arith.constant 0 : index
    %c0_2 = arith.constant 0 : index
    %1 = vector.load %arg2[%c0_1, %c0_2] : memref<576x128xbf16, #tpu.memory_space<vmem>>, vector<576x128xbf16>
    %cst = arith.constant dense<0.000000e+00> : vector<32x128xf32>
    %2 = tpu.matmul %0, %1, %cst {dimension_numbers = #tpu.dot_dimension_numbers<[1], [0], [0], [1], [0, 0, 1, 1], [], []>} : vector<32x576xbf16>, vector<576x128xbf16>, vector<32x128xf32> -> vector<32x128xf32>
    %c0_3 = arith.constant 0 : index
    %c0_4 = arith.constant 0 : index
    %3 = vector.load %arg3[%c0_3, %c0_4] : memref<1x128xf32, #tpu.memory_space<vmem>>, vector<1x128xf32>
    %4 = vector.broadcast %3 : vector<1x128xf32> to vector<32x128xf32>
    %5 = arith.mulf %2, %4 : vector<32x128xf32>
    %c0_5 = arith.constant 0 : index
    %c0_6 = arith.constant 0 : index
    %6 = vector.load %arg4[%c0_5, %c0_6] : memref<1x128xf32, #tpu.memory_space<vmem>>, vector<1x128xf32>
    %7 = vector.broadcast %6 : vector<1x128xf32> to vector<32x128xf32>
    %8 = arith.addf %5, %7 : vector<32x128xf32>
    %c0_7 = arith.constant 0 : index
    %c0_8 = arith.constant 0 : index
    %9 = vector.load %arg5[%c0_7, %c0_8] : memref<32x128xf32, #tpu.memory_space<vmem>>, vector<32x128xf32>
    %10 = arith.addf %8, %9 : vector<32x128xf32>
    %cst_9 = arith.constant 0.000000e+00 : f32
    %11 = vector.broadcast %cst_9 : f32 to vector<32x128xf32>
    %12 = arith.maximumf %10, %11 : vector<32x128xf32>
    %c0_10 = arith.constant 0 : index
    %c0_11 = arith.constant 0 : index
    %13 = vector.load %arg6[%c0_10, %c0_11] : memref<32x128xf32, #tpu.memory_space<vmem>>, vector<32x128xf32>
    tpu.vector_store %arg6[%c0_10, %c0_11], %12 {strides = array<i32>} : memref<32x128xf32, #tpu.memory_space<vmem>>, vector<32x128xf32>,
    return
  }
  func.func @transform_0(%arg0: i32) -> (i32, i32) {
    %c0_i32 = arith.constant 0 : i32
    %c0_i32_0 = arith.constant 0 : i32
    return %arg0, %c0_i32 : i32, i32
  }
  func.func @transform_1(%arg0: i32) -> (i32, i32) {
    %c0_i32 = arith.constant 0 : i32
    %c0_i32_0 = arith.constant 0 : i32
    %c0_i32_1 = arith.constant 0 : i32
    return %c0_i32, %c0_i32_0 : i32, i32
  }
  func.func @transform_2(%arg0: i32) -> (i32, i32) {
    %c0_i32 = arith.constant 0 : i32
    %c0_i32_0 = arith.constant 0 : i32
    %c0_i32_1 = arith.constant 0 : i32
    return %c0_i32, %c0_i32_0 : i32, i32
  }
  func.func @transform_3(%arg0: i32) -> (i32, i32) {
    %c0_i32 = arith.constant 0 : i32
    %c0_i32_0 = arith.constant 0 : i32
    %c0_i32_1 = arith.constant 0 : i32
    return %c0_i32, %c0_i32_0 : i32, i32
  }
  func.func @transform_4(%arg0: i32) -> (i32, i32) {
    %c0_i32 = arith.constant 0 : i32
    %c0_i32_0 = arith.constant 0 : i32
    return %arg0, %c0_i32 : i32, i32
  }
  func.func @transform_5(%arg0: i32) -> (i32, i32) {
    %c0_i32 = arith.constant 0 : i32
    %c0_i32_0 = arith.constant 0 : i32
    return %arg0, %c0_i32 : i32, i32
  }
}

module attributes {stable_mosaic.version = 11 : i64} {
  func.func @_conv_bn_kernel(%arg0: i32, %arg1: memref<32x32xbf16, #tpu.memory_space<vmem>>, %arg2: memref<32x128xbf16, #tpu.memory_space<vmem>>, %arg3: memref<1x128xf32, #tpu.memory_space<vmem>>, %arg4: memref<1x128xf32, #tpu.memory_space<vmem>>, %arg5: memref<32x128xf32, #tpu.memory_space<vmem>>) attributes {dimension_semantics = [#tpu.dimension_semantics<parallel>], iteration_bounds = array<i64: 1>, scalar_prefetch = 0 : i64, scratch_operands = 0 : i64, tpu.core_type = #tpu.core_type<tc>, window_params = [{transform_indices = @transform_0, window_bounds = array<i64: 32, 32>}, {pipeline_mode = #tpu.pipeline_mode<synchronous>, transform_indices = @transform_1, window_bounds = array<i64: 32, 128>}, {pipeline_mode = #tpu.pipeline_mode<synchronous>, transform_indices = @transform_2, window_bounds = array<i64: 1, 128>}, {pipeline_mode = #tpu.pipeline_mode<synchronous>, transform_indices = @transform_3, window_bounds = array<i64: 1, 128>}, {transform_indices = @transform_4, window_bounds = array<i64: 32, 128>}]} {
    %c0 = arith.constant 0 : index
    %c0_0 = arith.constant 0 : index
    %0 = vector.load %arg1[%c0, %c0_0] : memref<32x32xbf16, #tpu.memory_space<vmem>>, vector<32x32xbf16>
    %c0_1 = arith.constant 0 : index
    %c0_2 = arith.constant 0 : index
    %1 = vector.load %arg2[%c0_1, %c0_2] : memref<32x128xbf16, #tpu.memory_space<vmem>>, vector<32x128xbf16>
    %cst = arith.constant dense<0.000000e+00> : vector<32x128xf32>
    %2 = tpu.matmul %0, %1, %cst {dimension_numbers = #tpu.dot_dimension_numbers<[1], [0], [0], [1], [0, 0, 1, 1], [], []>} : vector<32x32xbf16>, vector<32x128xbf16>, vector<32x128xf32> -> vector<32x128xf32>
    %c0_3 = arith.constant 0 : index
    %c0_4 = arith.constant 0 : index
    %3 = vector.load %arg3[%c0_3, %c0_4] : memref<1x128xf32, #tpu.memory_space<vmem>>, vector<1x128xf32>
    %4 = vector.broadcast %3 : vector<1x128xf32> to vector<32x128xf32>
    %5 = arith.mulf %2, %4 : vector<32x128xf32>
    %c0_5 = arith.constant 0 : index
    %c0_6 = arith.constant 0 : index
    %6 = vector.load %arg4[%c0_5, %c0_6] : memref<1x128xf32, #tpu.memory_space<vmem>>, vector<1x128xf32>
    %7 = vector.broadcast %6 : vector<1x128xf32> to vector<32x128xf32>
    %8 = arith.addf %5, %7 : vector<32x128xf32>
    %c0_7 = arith.constant 0 : index
    %c0_8 = arith.constant 0 : index
    %9 = vector.load %arg5[%c0_7, %c0_8] : memref<32x128xf32, #tpu.memory_space<vmem>>, vector<32x128xf32>
    tpu.vector_store %arg5[%c0_7, %c0_8], %8 {strides = array<i32>} : memref<32x128xf32, #tpu.memory_space<vmem>>, vector<32x128xf32>,
    return
  }
  func.func @transform_0(%arg0: i32) -> (i32, i32) {
    %c0_i32 = arith.constant 0 : i32
    %c0_i32_0 = arith.constant 0 : i32
    return %arg0, %c0_i32 : i32, i32
  }
  func.func @transform_1(%arg0: i32) -> (i32, i32) {
    %c0_i32 = arith.constant 0 : i32
    %c0_i32_0 = arith.constant 0 : i32
    %c0_i32_1 = arith.constant 0 : i32
    return %c0_i32, %c0_i32_0 : i32, i32
  }
  func.func @transform_2(%arg0: i32) -> (i32, i32) {
    %c0_i32 = arith.constant 0 : i32
    %c0_i32_0 = arith.constant 0 : i32
    %c0_i32_1 = arith.constant 0 : i32
    return %c0_i32, %c0_i32_0 : i32, i32
  }
  func.func @transform_3(%arg0: i32) -> (i32, i32) {
    %c0_i32 = arith.constant 0 : i32
    %c0_i32_0 = arith.constant 0 : i32
    %c0_i32_1 = arith.constant 0 : i32
    return %c0_i32, %c0_i32_0 : i32, i32
  }
  func.func @transform_4(%arg0: i32) -> (i32, i32) {
    %c0_i32 = arith.constant 0 : i32
    %c0_i32_0 = arith.constant 0 : i32
    return %arg0, %c0_i32 : i32, i32
  }
}

module attributes {stable_mosaic.version = 11 : i64} {
  func.func @_conv_bn_kernel(%arg0: i32, %arg1: memref<32x576xbf16, #tpu.memory_space<vmem>>, %arg2: memref<576x128xbf16, #tpu.memory_space<vmem>>, %arg3: memref<1x128xf32, #tpu.memory_space<vmem>>, %arg4: memref<1x128xf32, #tpu.memory_space<vmem>>, %arg5: memref<32x128xf32, #tpu.memory_space<vmem>>) attributes {dimension_semantics = [#tpu.dimension_semantics<parallel>], iteration_bounds = array<i64: 1>, scalar_prefetch = 0 : i64, scratch_operands = 0 : i64, tpu.core_type = #tpu.core_type<tc>, window_params = [{transform_indices = @transform_0, window_bounds = array<i64: 32, 576>}, {pipeline_mode = #tpu.pipeline_mode<synchronous>, transform_indices = @transform_1, window_bounds = array<i64: 576, 128>}, {pipeline_mode = #tpu.pipeline_mode<synchronous>, transform_indices = @transform_2, window_bounds = array<i64: 1, 128>}, {pipeline_mode = #tpu.pipeline_mode<synchronous>, transform_indices = @transform_3, window_bounds = array<i64: 1, 128>}, {transform_indices = @transform_4, window_bounds = array<i64: 32, 128>}]} {
    %c0 = arith.constant 0 : index
    %c0_0 = arith.constant 0 : index
    %0 = vector.load %arg1[%c0, %c0_0] : memref<32x576xbf16, #tpu.memory_space<vmem>>, vector<32x576xbf16>
    %c0_1 = arith.constant 0 : index
    %c0_2 = arith.constant 0 : index
    %1 = vector.load %arg2[%c0_1, %c0_2] : memref<576x128xbf16, #tpu.memory_space<vmem>>, vector<576x128xbf16>
    %cst = arith.constant dense<0.000000e+00> : vector<32x128xf32>
    %2 = tpu.matmul %0, %1, %cst {dimension_numbers = #tpu.dot_dimension_numbers<[1], [0], [0], [1], [0, 0, 1, 1], [], []>} : vector<32x576xbf16>, vector<576x128xbf16>, vector<32x128xf32> -> vector<32x128xf32>
    %c0_3 = arith.constant 0 : index
    %c0_4 = arith.constant 0 : index
    %3 = vector.load %arg3[%c0_3, %c0_4] : memref<1x128xf32, #tpu.memory_space<vmem>>, vector<1x128xf32>
    %4 = vector.broadcast %3 : vector<1x128xf32> to vector<32x128xf32>
    %5 = arith.mulf %2, %4 : vector<32x128xf32>
    %c0_5 = arith.constant 0 : index
    %c0_6 = arith.constant 0 : index
    %6 = vector.load %arg4[%c0_5, %c0_6] : memref<1x128xf32, #tpu.memory_space<vmem>>, vector<1x128xf32>
    %7 = vector.broadcast %6 : vector<1x128xf32> to vector<32x128xf32>
    %8 = arith.addf %5, %7 : vector<32x128xf32>
    %cst_7 = arith.constant 0.000000e+00 : f32
    %9 = vector.broadcast %cst_7 : f32 to vector<32x128xf32>
    %10 = arith.maximumf %8, %9 : vector<32x128xf32>
    %c0_8 = arith.constant 0 : index
    %c0_9 = arith.constant 0 : index
    %11 = vector.load %arg5[%c0_8, %c0_9] : memref<32x128xf32, #tpu.memory_space<vmem>>, vector<32x128xf32>
    tpu.vector_store %arg5[%c0_8, %c0_9], %10 {strides = array<i32>} : memref<32x128xf32, #tpu.memory_space<vmem>>, vector<32x128xf32>,
    return
  }
  func.func @transform_0(%arg0: i32) -> (i32, i32) {
    %c0_i32 = arith.constant 0 : i32
    %c0_i32_0 = arith.constant 0 : i32
    return %arg0, %c0_i32 : i32, i32
  }
  func.func @transform_1(%arg0: i32) -> (i32, i32) {
    %c0_i32 = arith.constant 0 : i32
    %c0_i32_0 = arith.constant 0 : i32
    %c0_i32_1 = arith.constant 0 : i32
    return %c0_i32, %c0_i32_0 : i32, i32
  }
  func.func @transform_2(%arg0: i32) -> (i32, i32) {
    %c0_i32 = arith.constant 0 : i32
    %c0_i32_0 = arith.constant 0 : i32
    %c0_i32_1 = arith.constant 0 : i32
    return %c0_i32, %c0_i32_0 : i32, i32
  }
  func.func @transform_3(%arg0: i32) -> (i32, i32) {
    %c0_i32 = arith.constant 0 : i32
    %c0_i32_0 = arith.constant 0 : i32
    %c0_i32_1 = arith.constant 0 : i32
    return %c0_i32, %c0_i32_0 : i32, i32
  }
  func.func @transform_4(%arg0: i32) -> (i32, i32) {
    %c0_i32 = arith.constant 0 : i32
    %c0_i32_0 = arith.constant 0 : i32
    return %arg0, %c0_i32 : i32, i32
  }
}

module attributes {stable_mosaic.version = 11 : i64} {
  func.func @_pool_fc_kernel(%arg0: i32, %arg1: memref<2x1024xbf16, #tpu.memory_space<vmem>>, %arg2: memref<1024x128xbf16, #tpu.memory_space<vmem>>, %arg3: memref<1x128xf32, #tpu.memory_space<vmem>>, %arg4: memref<2x128xf32, #tpu.memory_space<vmem>>) attributes {dimension_semantics = [#tpu.dimension_semantics<arbitrary>], iteration_bounds = array<i64: 1>, scalar_prefetch = 0 : i64, scratch_operands = 0 : i64, tpu.core_type = #tpu.core_type<tc>, window_params = [{pipeline_mode = #tpu.pipeline_mode<synchronous>, transform_indices = @transform_0, window_bounds = array<i64: 2, 1024>}, {pipeline_mode = #tpu.pipeline_mode<synchronous>, transform_indices = @transform_1, window_bounds = array<i64: 1024, 128>}, {pipeline_mode = #tpu.pipeline_mode<synchronous>, transform_indices = @transform_2, window_bounds = array<i64: 1, 128>}, {pipeline_mode = #tpu.pipeline_mode<synchronous>, transform_indices = @transform_3, window_bounds = array<i64: 2, 128>}]} {
    %c0 = arith.constant 0 : index
    %c0_0 = arith.constant 0 : index
    %0 = vector.load %arg1[%c0, %c0_0] : memref<2x1024xbf16, #tpu.memory_space<vmem>>, vector<2x1024xbf16>
    %c0_1 = arith.constant 0 : index
    %c0_2 = arith.constant 0 : index
    %1 = vector.load %arg2[%c0_1, %c0_2] : memref<1024x128xbf16, #tpu.memory_space<vmem>>, vector<1024x128xbf16>
    %cst = arith.constant dense<0.000000e+00> : vector<2x128xf32>
    %2 = tpu.matmul %0, %1, %cst {dimension_numbers = #tpu.dot_dimension_numbers<[1], [0], [0], [1], [0, 0, 1, 1], [], []>} : vector<2x1024xbf16>, vector<1024x128xbf16>, vector<2x128xf32> -> vector<2x128xf32>
    %c0_3 = arith.constant 0 : index
    %c0_4 = arith.constant 0 : index
    %3 = vector.load %arg3[%c0_3, %c0_4] : memref<1x128xf32, #tpu.memory_space<vmem>>, vector<1x128xf32>
    %4 = vector.broadcast %3 : vector<1x128xf32> to vector<2x128xf32>
    %5 = arith.addf %2, %4 : vector<2x128xf32>
    %c0_5 = arith.constant 0 : index
    %c0_6 = arith.constant 0 : index
    %6 = vector.load %arg4[%c0_5, %c0_6] : memref<2x128xf32, #tpu.memory_space<vmem>>, vector<2x128xf32>
    tpu.vector_store %arg4[%c0_5, %c0_6], %5 {strides = array<i32>} : memref<2x128xf32, #tpu.memory_space<vmem>>, vector<2x128xf32>,
    return
  }
  func.func @transform_0(%arg0: i32) -> (i32, i32) {
    %c0_i32 = arith.constant 0 : i32
    %c0_i32_0 = arith.constant 0 : i32
    %c0_i32_1 = arith.constant 0 : i32
    return %c0_i32, %c0_i32_0 : i32, i32
  }
  func.func @transform_1(%arg0: i32) -> (i32, i32) {
    %c0_i32 = arith.constant 0 : i32
    %c0_i32_0 = arith.constant 0 : i32
    %c0_i32_1 = arith.constant 0 : i32
    return %c0_i32, %c0_i32_0 : i32, i32
  }
  func.func @transform_2(%arg0: i32) -> (i32, i32) {
    %c0_i32 = arith.constant 0 : i32
    %c0_i32_0 = arith.constant 0 : i32
    %c0_i32_1 = arith.constant 0 : i32
    return %c0_i32, %c0_i32_0 : i32, i32
  }
  func.func @transform_3(%arg0: i32) -> (i32, i32) {
    %c0_i32 = arith.constant 0 : i32
    %c0_i32_0 = arith.constant 0 : i32
    %c0_i32_1 = arith.constant 0 : i32
    return %c0_i32, %c0_i32_0 : i32, i32
  }
}

</mosaic_0001>

<llo_original>
// kernel: _lambda_.22
$region0: #{_lambda_.22}
  #allocation0 [shape = 'u32[]', space=smem, size = 0x4, offset = 0x4, fixed_abs, tag = 'smem constant byte address 0x4 - core index']
  #allocation1 [shape = 'u32[72,128]{1,0:T(1,128)}', space=vmem, size = 0x9000, scoped, tag = 'internal scratch']
  %s0 = inlined_call_operand.vmem [shape: bf16[512,27], index: 0, kind: input, shape index: {}]
  %s1 = inlined_call_operand.vmem [shape: bf16[27,128], index: 1, kind: input, shape index: {}]
  %s2 = inlined_call_operand.vmem [shape: f32[1,128], index: 2, kind: input, shape index: {}]
  %s3 = inlined_call_operand.vmem [shape: f32[1,128], index: 3, kind: input, shape index: {}]
  %s4 = inlined_call_operand.vmem [shape: f32[512,128], index: 4, kind: output, shape index: {}]
  %s5 = sld [smem:[#allocation0]]
  $region26: #{_lambda_.22} parent=0
    _
  %s7 = ssub.s32 1, %s5
  %s8 = scalar_select 0, %s7, %s5
  // Predicated region
  $region2: #{_lambda_.22} parent=0 // pred_check
    _
  $region3: #{_lambda_.22} parent=0 // pred_check_branch
    %10 = sbr.rel (0) target = $region5
  $region4: #{_lambda_.22} parent=0 // pred_region
    _
  $region5: #{_lambda_.22} parent=0 // pred_fallthru
    _
  // Predicated region
  $region6: #{_lambda_.22} parent=0 // pred_check
    _
  $region7: #{_lambda_.22} parent=0 // pred_check_branch
    %12 = sbr.rel (0) target = $region9
  $region8: #{_lambda_.22} parent=0 // pred_region
    _
  $region9: #{_lambda_.22} parent=0 // pred_fallthru
    _
  // Predicated region
  $region10: #{_lambda_.22} parent=0 // pred_check
    _
  $region11: #{_lambda_.22} parent=0 // pred_check_branch
    %14 = sbr.rel (0) target = $region13
  $region12: #{_lambda_.22} parent=0 // pred_region
    _
  $region13: #{_lambda_.22} parent=0 // pred_fallthru
    _
  // Predicated region
  $region14: #{_lambda_.22} parent=0 // pred_check
    _
  $region15: #{_lambda_.22} parent=0 // pred_check_branch
    %16 = sbr.rel (0) target = $region17
  $region16: #{_lambda_.22} parent=0 // pred_region
    _
  $region17: #{_lambda_.22} parent=0 // pred_fallthru
    _
  %v18 = vld [vmem:[%s0] sm:$0xf]
  %v19 = vld [vmem:[%s0 + $0x4] sm:$0xf]
  %v20 = vld [vmem:[%s0 + $0x8] sm:$0xf]
  %v21 = vld [vmem:[%s0 + $0xc] sm:$0xf]
  %v22 = vld [vmem:[%s0 + $0x10] sm:$0xf]
  %v23 = vld [vmem:[%s0 + $0x14] sm:$0xf]
  %v24 = vld [vmem:[%s0 + $0x18] sm:$0xf]
  %v25 = vld [vmem:[%s0 + $0x1c] sm:$0xf]
  %v26 = vld [vmem:[%s0 + $0x20] sm:$0xf]
  %v27 = vld [vmem:[%s0 + $0x24] sm:$0xf]
  %v28 = vld [vmem:[%s0 + $0x28] sm:$0xf]
  %v29 = vld [vmem:[%s0 + $0x2c] sm:$0xf]
  %v30 = vld [vmem:[%s0 + $0x30] sm:$0xf]
  %v31 = vld [vmem:[%s0 + $0x34] sm:$0xf]
  %v32 = vld [vmem:[%s0 + $0x38] sm:$0xf]
  %v33 = vld [vmem:[%s0 + $0x3c] sm:$0xf]
  %v34 = vld [vmem:[%s0 + $0x40] sm:$0xf]
  %v35 = vld [vmem:[%s0 + $0x44] sm:$0xf]
  %v36 = vld [vmem:[%s0 + $0x48] sm:$0xf]
  %v37 = vld [vmem:[%s0 + $0x4c] sm:$0xf]
  %v38 = vld [vmem:[%s0 + $0x50] sm:$0xf]
  %v39 = vld [vmem:[%s0 + $0x54] sm:$0xf]
  %v40 = vld [vmem:[%s0 + $0x58] sm:$0xf]
  %v41 = vld [vmem:[%s0 + $0x5c] sm:$0xf]
  %v42 = vld [vmem:[%s0 + $0x60] sm:$0xf]
  %v43 = vld [vmem:[%s0 + $0x64] sm:$0xf]
  %v44 = vld [vmem:[%s0 + $0x68] sm:$0xf]
  %v45 = vld [vmem:[%s0 + $0x6c] sm:$0xf]
  %v46 = vld [vmem:[%s0 + $0x70] sm:$0xf]
  %v47 = vld [vmem:[%s0 + $0x74] sm:$0xf]
  %v48 = vld [vmem:[%s0 + $0x78] sm:$0xf]
  %v49 = vld [vmem:[%s0 + $0x7c] sm:$0xf]
  %v50 = vld [vmem:[%s0 + $0x80] sm:$0xf]
  %v51 = vld [vmem:[%s0 + $0x84] sm:$0xf]
  %v52 = vld [vmem:[%s0 + $0x88] sm:$0xf]
  %v53 = vld [vmem:[%s0 + $0x8c] sm:$0xf]
  %v54 = vld [vmem:[%s0 + $0x90] sm:$0xf]
  %v55 = vld [vmem:[%s0 + $0x94] sm:$0xf]
  %v56 = vld [vmem:[%s0 + $0x98] sm:$0xf]
  %v57 = vld [vmem:[%s0 + $0x9c] sm:$0xf]
  %v58 = vld [vmem:[%s0 + $0xa0] sm:$0xf]
  %v59 = vld [vmem:[%s0 + $0xa4] sm:$0xf]
  %v60 = vld [vmem:[%s0 + $0xa8] sm:$0xf]
  %v61 = vld [vmem:[%s0 + $0xac] sm:$0xf]
  %v62 = vld [vmem:[%s0 + $0xb0] sm:$0xf]
  %v63 = vld [vmem:[%s0 + $0xb4] sm:$0xf]
  %v64 = vld [vmem:[%s0 + $0xb8] sm:$0xf]
  %v65 = vld [vmem:[%s0 + $0xbc] sm:$0xf]
  %v66 = vld [vmem:[%s0 + $0xc0] sm:$0xf]
  %v67 = vld [vmem:[%s0 + $0xc4] sm:$0xf]
  %v68 = vld [vmem:[%s0 + $0xc8] sm:$0xf]
  %v69 = vld [vmem:[%s0 + $0xcc] sm:$0xf]
  %v70 = vld [vmem:[%s0 + $0xd0] sm:$0xf]
  %v71 = vld [vmem:[%s0 + $0xd4] sm:$0xf]
  %v72 = vld [vmem:[%s0 + $0xd8] sm:$0xf]
  %v73 = vld [vmem:[%s0 + $0xdc] sm:$0xf]
  %v74 = vld [vmem:[%s0 + $0xe0] sm:$0xf]
  %v75 = vld [vmem:[%s0 + $0xe4] sm:$0xf]
  %v76 = vld [vmem:[%s0 + $0xe8] sm:$0xf]
  %v77 = vld [vmem:[%s0 + $0xec] sm:$0xf]
  %v78 = vld [vmem:[%s0 + $0xf0] sm:$0xf]
  %v79 = vld [vmem:[%s0 + $0xf4] sm:$0xf]
  %v80 = vld [vmem:[%s0 + $0xf8] sm:$0xf]
  %v81 = vld [vmem:[%s0 + $0xfc] sm:$0xf]
  %v82 = vld [vmem:[%s1] sm:$0xf]
  %v83 = vld [vmem:[%s1 + $0x4] sm:$0xf]
  %v84 = vld [vmem:[%s1 + $0x8] sm:$0xf]
  %v85 = vld [vmem:[%s1 + $0xc] sm:$0x3]
  %v150 = vunpack.c.l.b16 %v18
  %v151 = vunpack.c.l.b16 %v19
  %v152 = vunpack.c.l.b16 %v20
  %v153 = vunpack.c.l.b16 %v21
  %v154 = vunpack.c.l.b16 %v22
  %v155 = vunpack.c.l.b16 %v23
  %v156 = vunpack.c.l.b16 %v24
  %v157 = vunpack.c.l.b16 %v25
  %v158 = vunpack.c.l.b16 %v26
  %v159 = vunpack.c.l.b16 %v27
  %v160 = vunpack.c.l.b16 %v28
  %v161 = vunpack.c.l.b16 %v29
  %v162 = vunpack.c.l.b16 %v30
  %v163 = vunpack.c.l.b16 %v31
  %v164 = vunpack.c.l.b16 %v32
  %v165 = vunpack.c.l.b16 %v33
  %v166 = vunpack.c.l.b16 %v34
  %v167 = vunpack.c.l.b16 %v35
  %v168 = vunpack.c.l.b16 %v36
  %v169 = vunpack.c.l.b16 %v37
  %v170 = vunpack.c.l.b16 %v38
  %v171 = vunpack.c.l.b16 %v39
  %v172 = vunpack.c.l.b16 %v40
  %v173 = vunpack.c.l.b16 %v41
  %v174 = vunpack.c.l.b16 %v42
  %v175 = vunpack.c.l.b16 %v43
  %v176 = vunpack.c.l.b16 %v44
  %v177 = vunpack.c.l.b16 %v45
  %v178 = vunpack.c.l.b16 %v46
  %v179 = vunpack.c.l.b16 %v47
  %v180 = vunpack.c.l.b16 %v48
  %v181 = vunpack.c.l.b16 %v49
  %v182 = vunpack.c.l.b16 %v50
  %v183 = vunpack.c.l.b16 %v51
  %v184 = vunpack.c.l.b16 %v52
  %v185 = vunpack.c.l.b16 %v53
  %v186 = vunpack.c.l.b16 %v54
  %v187 = vunpack.c.l.b16 %v55
  %v188 = vunpack.c.l.b16 %v56
  %v189 = vunpack.c.l.b16 %v57
  %v190 = vunpack.c.l.b16 %v58
  %v191 = vunpack.c.l.b16 %v59
  %v192 = vunpack.c.l.b16 %v60
  %v193 = vunpack.c.l.b16 %v61
  %v194 = vunpack.c.l.b16 %v62
  %v195 = vunpack.c.l.b16 %v63
  %v196 = vunpack.c.l.b16 %v64
  %v197 = vunpack.c.l.b16 %v65
  %v198 = vunpack.c.l.b16 %v66
  %v199 = vunpack.c.l.b16 %v67
  %v200 = vunpack.c.l.b16 %v68
  %v201 = vunpack.c.l.b16 %v69
  %v202 = vunpack.c.l.b16 %v70
  %v203 = vunpack.c.l.b16 %v71
  %v204 = vunpack.c.l.b16 %v72
  %v205 = vunpack.c.l.b16 %v73
  %v206 = vunpack.c.l.b16 %v74
  %v207 = vunpack.c.l.b16 %v75
  %v208 = vunpack.c.l.b16 %v76
  %v209 = vunpack.c.l.b16 %v77
  %v210 = vunpack.c.l.b16 %v78
  %v211 = vunpack.c.l.b16 %v79
  %v212 = vunpack.c.l.b16 %v80
  %v213 = vunpack.c.l.b16 %v81
  %v214 = vpack.c.b16 %v151, %v150
  %v215 = vpack.c.b16 %v153, %v152
  %v216 = vpack.c.b16 %v155, %v154
  %v217 = vpack.c.b16 %v157, %v156
  %v218 = vpack.c.b16 %v159, %v158
  %v219 = vpack.c.b16 %v161, %v160
  %v220 = vpack.c.b16 %v163, %v162
  %v221 = vpack.c.b16 %v165, %v164
  %v222 = vpack.c.b16 %v167, %v166
  %v223 = vpack.c.b16 %v169, %v168
  %v224 = vpack.c.b16 %v171, %v170
  %v225 = vpack.c.b16 %v173, %v172
  %v226 = vpack.c.b16 %v175, %v174
  %v227 = vpack.c.b16 %v177, %v176
  %v228 = vpack.c.b16 %v179, %v178
  %v229 = vpack.c.b16 %v181, %v180
  %v230 = vpack.c.b16 %v183, %v182
  %v231 = vpack.c.b16 %v185, %v184
  %v232 = vpack.c.b16 %v187, %v186
  %v233 = vpack.c.b16 %v189, %v188
  %v234 = vpack.c.b16 %v191, %v190
  %v235 = vpack.c.b16 %v193, %v192
  %v236 = vpack.c.b16 %v195, %v194
  %v237 = vpack.c.b16 %v197, %v196
  %v238 = vpack.c.b16 %v199, %v198
  %v239 = vpack.c.b16 %v201, %v200
  %v240 = vpack.c.b16 %v203, %v202
  %v241 = vpack.c.b16 %v205, %v204
  %v242 = vpack.c.b16 %v207, %v206
  %v243 = vpack.c.b16 %v209, %v208
  %v244 = vpack.c.b16 %v211, %v210
  %v245 = vpack.c.b16 %v213, %v212
  %v250 = vunpack.c.l.b16 %v82
  %v251 = vunpack.c.l.b16 %v83
  %v252 = vunpack.c.l.b16 %v84
  %v253 = vunpack.c.l.b16 %v85
  %v254 = vpack.c.b16 %v251, %v250
  %v255 = vpack.c.b16 %v253, %v252
  %vm257 = vcmask 220160
  %v259 = vsel %vm257, %v214, 0
  %v262 = vsel %vm257, %v215, 0
  %v265 = vsel %vm257, %v216, 0
  %v268 = vsel %vm257, %v217, 0
  %v271 = vsel %vm257, %v218, 0
  %v274 = vsel %vm257, %v219, 0
  %v277 = vsel %vm257, %v220, 0
  %v280 = vsel %vm257, %v221, 0
  %v283 = vsel %vm257, %v222, 0
  %v286 = vsel %vm257, %v223, 0
  %v289 = vsel %vm257, %v224, 0
  %v292 = vsel %vm257, %v225, 0
  %v295 = vsel %vm257, %v226, 0
  %v298 = vsel %vm257, %v227, 0
  %v301 = vsel %vm257, %v228, 0
  %v304 = vsel %vm257, %v229, 0
  %v307 = vsel %vm257, %v230, 0
  %v310 = vsel %vm257, %v231, 0
  %v313 = vsel %vm257, %v232, 0
  %v316 = vsel %vm257, %v233, 0
  %v319 = vsel %vm257, %v234, 0
  %v322 = vsel %vm257, %v235, 0
  %v325 = vsel %vm257, %v236, 0
  %v328 = vsel %vm257, %v237, 0
  %v331 = vsel %vm257, %v238, 0
  %v334 = vsel %vm257, %v239, 0
  %v337 = vsel %vm257, %v240, 0
  %v340 = vsel %vm257, %v241, 0
  %v343 = vsel %vm257, %v242, 0
  %v346 = vsel %vm257, %v243, 0
  %v349 = vsel %vm257, %v244, 0
  %v352 = vsel %vm257, %v245, 0
  %vm354 = vcmask 1044480
  %vm355 = vcmask 1045504
  %v356 = vsel %vm354, 4294967295, 65535
  %v357 = vsel %vm355, %v356, 0
  %v359 = vand.u32 %v255, %v357
  %361 = vmatpush.bf16.msra.mxu0 0
  %362 = vmatpush.bf16.msra.mxu0 0
  %363 = vmatpush.bf16.msra.mxu0 0
  %364 = vmatpush.bf16.msra.mxu0 0
  %365 = vmatpush.bf16.msra.mxu0 0
  %366 = vmatpush.bf16.msra.mxu0 0
  %367 = vmatpush.bf16.msra.mxu0 %v359
  %368 = vmatpush.bf16.msra.mxu0 %v254
  %369 = vmatmul.bf16.gmra.mxu0 %v259
  %v370 = vpop.f32.mrf.mxu0
  %v371 = vadd.f32 0.0, %v370
  %v372 = vpop.f32.mrf.mxu0
  %v373 = vadd.f32 0.0, %v372
  %374 = vmatmul.bf16.gmra.mxu0 %v262
  %v375 = vpop.f32.mrf.mxu0
  %v376 = vadd.f32 0.0, %v375
  %v377 = vpop.f32.mrf.mxu0
  %v378 = vadd.f32 0.0, %v377
  %379 = vmatmul.bf16.gmra.mxu0 %v265
  %v380 = vpop.f32.mrf.mxu0
  %v381 = vadd.f32 0.0, %v380
  %v382 = vpop.f32.mrf.mxu0
  %v383 = vadd.f32 0.0, %v382
  %384 = vmatmul.bf16.gmra.mxu0 %v268
  %v385 = vpop.f32.mrf.mxu0
  %v386 = vadd.f32 0.0, %v385
  %v387 = vpop.f32.mrf.mxu0
  %v388 = vadd.f32 0.0, %v387
  %389 = vmatmul.bf16.gmra.mxu0 %v271
  %v390 = vpop.f32.mrf.mxu0
  %v391 = vadd.f32 0.0, %v390
  %v392 = vpop.f32.mrf.mxu0
  %v393 = vadd.f32 0.0, %v392
  %394 = vmatmul.bf16.gmra.mxu0 %v274
  %v395 = vpop.f32.mrf.mxu0
  %v396 = vadd.f32 0.0, %v395
  %v397 = vpop.f32.mrf.mxu0
  %v398 = vadd.f32 0.0, %v397
  %399 = vmatmul.bf16.gmra.mxu0 %v277
  %v400 = vpop.f32.mrf.mxu0
  %v401 = vadd.f32 0.0, %v400
  %v402 = vpop.f32.mrf.mxu0
  %v403 = vadd.f32 0.0, %v402
  %404 = vmatmul.bf16.gmra.mxu0 %v280
  %v405 = vpop.f32.mrf.mxu0
  %v406 = vadd.f32 0.0, %v405
  %v407 = vpop.f32.mrf.mxu0
  %v408 = vadd.f32 0.0, %v407
  %409 = vmatmul.bf16.gmra.mxu0 %v283
  %v410 = vpop.f32.mrf.mxu0
  %v411 = vadd.f32 0.0, %v410
  %v412 = vpop.f32.mrf.mxu0
  %v413 = vadd.f32 0.0, %v412
  %414 = vmatmul.bf16.gmra.mxu0 %v286
  %v415 = vpop.f32.mrf.mxu0
  %v416 = vadd.f32 0.0, %v415
  %v417 = vpop.f32.mrf.mxu0
  %v418 = vadd.f32 0.0, %v417
  %419 = vmatmul.bf16.gmra.mxu0 %v289
  %v420 = vpop.f32.mrf.mxu0
  %v421 = vadd.f32 0.0, %v420
  %v422 = vpop.f32.mrf.mxu0
  %v423 = vadd.f32 0.0, %v422
  %424 = vmatmul.bf16.gmra.mxu0 %v292
  %v425 = vpop.f32.mrf.mxu0
  %v426 = vadd.f32 0.0, %v425
  %v427 = vpop.f32.mrf.mxu0
  %v428 = vadd.f32 0.0, %v427
  %429 = vmatmul.bf16.gmra.mxu0 %v295
  %v430 = vpop.f32.mrf.mxu0
  %v431 = vadd.f32 0.0, %v430
  %v432 = vpop.f32.mrf.mxu0
  %v433 = vadd.f32 0.0, %v432
  %434 = vmatmul.bf16.gmra.mxu0 %v298
  %v435 = vpop.f32.mrf.mxu0
  %v436 = vadd.f32 0.0, %v435
  %v437 = vpop.f32.mrf.mxu0
  %v438 = vadd.f32 0.0, %v437
  %439 = vmatmul.bf16.gmra.mxu0 %v301
  %v440 = vpop.f32.mrf.mxu0
  %v441 = vadd.f32 0.0, %v440
  %v442 = vpop.f32.mrf.mxu0
  %v443 = vadd.f32 0.0, %v442
  %444 = vmatmul.bf16.gmra.mxu0 %v304
  %v445 = vpop.f32.mrf.mxu0
  %v446 = vadd.f32 0.0, %v445
  %v447 = vpop.f32.mrf.mxu0
  %v448 = vadd.f32 0.0, %v447
  %449 = vmatmul.bf16.gmra.mxu0 %v307
  %v450 = vpop.f32.mrf.mxu0
  %v451 = vadd.f32 0.0, %v450
  %v452 = vpop.f32.mrf.mxu0
  %v453 = vadd.f32 0.0, %v452
  %454 = vmatmul.bf16.gmra.mxu0 %v310
  %v455 = vpop.f32.mrf.mxu0
  %v456 = vadd.f32 0.0, %v455
  %v457 = vpop.f32.mrf.mxu0
  %v458 = vadd.f32 0.0, %v457
  %459 = vmatmul.bf16.gmra.mxu0 %v313
  %v460 = vpop.f32.mrf.mxu0
  %v461 = vadd.f32 0.0, %v460
  %v462 = vpop.f32.mrf.mxu0
  %v463 = vadd.f32 0.0, %v462
  %464 = vmatmul.bf16.gmra.mxu0 %v316
  %v465 = vpop.f32.mrf.mxu0
  %v466 = vadd.f32 0.0, %v465
  %v467 = vpop.f32.mrf.mxu0
  %v468 = vadd.f32 0.0, %v467
  %469 = vmatmul.bf16.gmra.mxu0 %v319
  %v470 = vpop.f32.mrf.mxu0
  %v471 = vadd.f32 0.0, %v470
  %v472 = vpop.f32.mrf.mxu0
  %v473 = vadd.f32 0.0, %v472
  %474 = vmatmul.bf16.gmra.mxu0 %v322
  %v475 = vpop.f32.mrf.mxu0
  %v476 = vadd.f32 0.0, %v475
  %v477 = vpop.f32.mrf.mxu0
  %v478 = vadd.f32 0.0, %v477
  %479 = vmatmul.bf16.gmra.mxu0 %v325
  %v480 = vpop.f32.mrf.mxu0
  %v481 = vadd.f32 0.0, %v480
  %v482 = vpop.f32.mrf.mxu0
  %v483 = vadd.f32 0.0, %v482
  %484 = vmatmul.bf16.gmra.mxu0 %v328
  %v485 = vpop.f32.mrf.mxu0
  %v486 = vadd.f32 0.0, %v485
  %v487 = vpop.f32.mrf.mxu0
  %v488 = vadd.f32 0.0, %v487
  %489 = vmatmul.bf16.gmra.mxu0 %v331
  %v490 = vpop.f32.mrf.mxu0
  %v491 = vadd.f32 0.0, %v490
  %v492 = vpop.f32.mrf.mxu0
  %v493 = vadd.f32 0.0, %v492
  %494 = vmatmul.bf16.gmra.mxu0 %v334
  %v495 = vpop.f32.mrf.mxu0
  %v496 = vadd.f32 0.0, %v495
  %v497 = vpop.f32.mrf.mxu0
  %v498 = vadd.f32 0.0, %v497
  %499 = vmatmul.bf16.gmra.mxu0 %v337
  %v500 = vpop.f32.mrf.mxu0
  %v501 = vadd.f32 0.0, %v500
  %v502 = vpop.f32.mrf.mxu0
  %v503 = vadd.f32 0.0, %v502
  %504 = vmatmul.bf16.gmra.mxu0 %v340
  %v505 = vpop.f32.mrf.mxu0
  %v506 = vadd.f32 0.0, %v505
  %v507 = vpop.f32.mrf.mxu0
  %v508 = vadd.f32 0.0, %v507
  %509 = vmatmul.bf16.gmra.mxu0 %v343
  %v510 = vpop.f32.mrf.mxu0
  %v511 = vadd.f32 0.0, %v510
  %v512 = vpop.f32.mrf.mxu0
  %v513 = vadd.f32 0.0, %v512
  %514 = vmatmul.bf16.gmra.mxu0 %v346
  %v515 = vpop.f32.mrf.mxu0
  %v516 = vadd.f32 0.0, %v515
  %v517 = vpop.f32.mrf.mxu0
  %v518 = vadd.f32 0.0, %v517
  %519 = vmatmul.bf16.gmra.mxu0 %v349
  %v520 = vpop.f32.mrf.mxu0
  %v521 = vadd.f32 0.0, %v520
  %v522 = vpop.f32.mrf.mxu0
  %v523 = vadd.f32 0.0, %v522
  %524 = vmatmul.bf16.gmra.mxu0 %v352
  %v525 = vpop.f32.mrf.mxu0
  %v526 = vadd.f32 0.0, %v525
  %v527 = vpop.f32.mrf.mxu0
  %v528 = vadd.f32 0.0, %v527
  %529 = vdwg.mxu0
  %v530 = vld [vmem:[%s2] sm:$0x1]
  %v532 = vperm.slane %v530, 0
  %v534 = vmul.f32 %v371, %v532
  %v535 = vmul.f32 %v373, %v532
  %v536 = vmul.f32 %v376, %v532
  %v537 = vmul.f32 %v378, %v532
  %v538 = vmul.f32 %v381, %v532
  %v539 = vmul.f32 %v383, %v532
  %v540 = vmul.f32 %v386, %v532
  %v541 = vmul.f32 %v388, %v532
  %v542 = vmul.f32 %v391, %v532
  %v543 = vmul.f32 %v393, %v532
  %v544 = vmul.f32 %v396, %v532
  %v545 = vmul.f32 %v398, %v532
  %v546 = vmul.f32 %v401, %v532
  %v547 = vmul.f32 %v403, %v532
  %v548 = vmul.f32 %v406, %v532
  %v549 = vmul.f32 %v408, %v532
  %v550 = vmul.f32 %v411, %v532
  %v551 = vmul.f32 %v413, %v532
  %v552 = vmul.f32 %v416, %v532
  %v553 = vmul.f32 %v418, %v532
  %v554 = vmul.f32 %v421, %v532
  %v555 = vmul.f32 %v423, %v532
  %v556 = vmul.f32 %v426, %v532
  %v557 = vmul.f32 %v428, %v532
  %v558 = vmul.f32 %v431, %v532
  %v559 = vmul.f32 %v433, %v532
  %v560 = vmul.f32 %v436, %v532
  %v561 = vmul.f32 %v438, %v532
  %v562 = vmul.f32 %v441, %v532
  %v563 = vmul.f32 %v443, %v532
  %v564 = vmul.f32 %v446, %v532
  %v565 = vmul.f32 %v448, %v532
  %v566 = vmul.f32 %v451, %v532
  %v567 = vmul.f32 %v453, %v532
  %v568 = vmul.f32 %v456, %v532
  %v569 = vmul.f32 %v458, %v532
  %v570 = vmul.f32 %v461, %v532
  %v571 = vmul.f32 %v463, %v532
  %v572 = vmul.f32 %v466, %v532
  %v573 = vmul.f32 %v468, %v532
  %v574 = vmul.f32 %v471, %v532
  %v575 = vmul.f32 %v473, %v532
  %v576 = vmul.f32 %v476, %v532
  %v577 = vmul.f32 %v478, %v532
  %v578 = vmul.f32 %v481, %v532
  %v579 = vmul.f32 %v483, %v532
  %v580 = vmul.f32 %v486, %v532
  %v581 = vmul.f32 %v488, %v532
  %v582 = vmul.f32 %v491, %v532
  %v583 = vmul.f32 %v493, %v532
  %v584 = vmul.f32 %v496, %v532
  %v585 = vmul.f32 %v498, %v532
  %v586 = vmul.f32 %v501, %v532
  %v587 = vmul.f32 %v503, %v532
  %v588 = vmul.f32 %v506, %v532
  %v589 = vmul.f32 %v508, %v532
  %v590 = vmul.f32 %v511, %v532
  %v591 = vmul.f32 %v513, %v532
  %v592 = vmul.f32 %v516, %v532
  %v593 = vmul.f32 %v518, %v532
  %v594 = vmul.f32 %v521, %v532
  %v595 = vmul.f32 %v523, %v532
  %v596 = vmul.f32 %v526, %v532
  %v597 = vmul.f32 %v528, %v532
  %v598 = vld [vmem:[%s3] sm:$0x1]
  %v600 = vperm.slane %v598, 0
  %v602 = vadd.f32 %v534, %v600
  %v603 = vadd.f32 %v535, %v600
  %v604 = vadd.f32 %v536, %v600
  %v605 = vadd.f32 %v537, %v600
  %v606 = vadd.f32 %v538, %v600
  %v607 = vadd.f32 %v539, %v600
  %v608 = vadd.f32 %v540, %v600
  %v609 = vadd.f32 %v541, %v600
  %v610 = vadd.f32 %v542, %v600
  %v611 = vadd.f32 %v543, %v600
  %v612 = vadd.f32 %v544, %v600
  %v613 = vadd.f32 %v545, %v600
  %v614 = vadd.f32 %v546, %v600
  %v615 = vadd.f32 %v547, %v600
  %v616 = vadd.f32 %v548, %v600
  %v617 = vadd.f32 %v549, %v600
  %v618 = vadd.f32 %v550, %v600
  %v619 = vadd.f32 %v551, %v600
  %v620 = vadd.f32 %v552, %v600
  %v621 = vadd.f32 %v553, %v600
  %v622 = vadd.f32 %v554, %v600
  %v623 = vadd.f32 %v555, %v600
  %v624 = vadd.f32 %v556, %v600
  %v625 = vadd.f32 %v557, %v600
  %v626 = vadd.f32 %v558, %v600
  %v627 = vadd.f32 %v559, %v600
  %v628 = vadd.f32 %v560, %v600
  %v629 = vadd.f32 %v561, %v600
  %v630 = vadd.f32 %v562, %v600
  %v631 = vadd.f32 %v563, %v600
  %v632 = vadd.f32 %v564, %v600
  %v633 = vadd.f32 %v565, %v600
  %v634 = vadd.f32 %v566, %v600
  %v635 = vadd.f32 %v567, %v600
  %v636 = vadd.f32 %v568, %v600
  %v637 = vadd.f32 %v569, %v600
  %v638 = vadd.f32 %v570, %v600
  %v639 = vadd.f32 %v571, %v600
  %v640 = vadd.f32 %v572, %v600
  %v641 = vadd.f32 %v573, %v600
  %v642 = vadd.f32 %v574, %v600
  %v643 = vadd.f32 %v575, %v600
  %v644 = vadd.f32 %v576, %v600
  %v645 = vadd.f32 %v577, %v600
  %v646 = vadd.f32 %v578, %v600
  %v647 = vadd.f32 %v579, %v600
  %v648 = vadd.f32 %v580, %v600
  %v649 = vadd.f32 %v581, %v600
  %v650 = vadd.f32 %v582, %v600
  %v651 = vadd.f32 %v583, %v600
  %v652 = vadd.f32 %v584, %v600
  %v653 = vadd.f32 %v585, %v600
  %v654 = vadd.f32 %v586, %v600
  %v655 = vadd.f32 %v587, %v600
  %v656 = vadd.f32 %v588, %v600
  %v657 = vadd.f32 %v589, %v600
  %v658 = vadd.f32 %v590, %v600
  %v659 = vadd.f32 %v591, %v600
  %v660 = vadd.f32 %v592, %v600
  %v661 = vadd.f32 %v593, %v600
  %v662 = vadd.f32 %v594, %v600
  %v663 = vadd.f32 %v595, %v600
  %v664 = vadd.f32 %v596, %v600
  %v665 = vadd.f32 %v597, %v600
  %v666 = vmax.f32 %v602, 0.0
  %v667 = vmax.f32 %v603, 0.0
  %v668 = vmax.f32 %v604, 0.0
  %v669 = vmax.f32 %v605, 0.0
  %v670 = vmax.f32 %v606, 0.0
  %v671 = vmax.f32 %v607, 0.0
  %v672 = vmax.f32 %v608, 0.0
  %v673 = vmax.f32 %v609, 0.0
  %v674 = vmax.f32 %v610, 0.0
  %v675 = vmax.f32 %v611, 0.0
  %v676 = vmax.f32 %v612, 0.0
  %v677 = vmax.f32 %v613, 0.0
  %v678 = vmax.f32 %v614, 0.0
  %v679 = vmax.f32 %v615, 0.0
  %v680 = vmax.f32 %v616, 0.0
  %v681 = vmax.f32 %v617, 0.0
  %v682 = vmax.f32 %v618, 0.0
  %v683 = vmax.f32 %v619, 0.0
  %v684 = vmax.f32 %v620, 0.0
  %v685 = vmax.f32 %v621, 0.0
  %v686 = vmax.f32 %v622, 0.0
  %v687 = vmax.f32 %v623, 0.0
  %v688 = vmax.f32 %v624, 0.0
  %v689 = vmax.f32 %v625, 0.0
  %v690 = vmax.f32 %v626, 0.0
  %v691 = vmax.f32 %v627, 0.0
  %v692 = vmax.f32 %v628, 0.0
  %v693 = vmax.f32 %v629, 0.0
  %v694 = vmax.f32 %v630, 0.0
  %v695 = vmax.f32 %v631, 0.0
  %v696 = vmax.f32 %v632, 0.0
  %v697 = vmax.f32 %v633, 0.0
  %v698 = vmax.f32 %v634, 0.0
  %v699 = vmax.f32 %v635, 0.0
  %v700 = vmax.f32 %v636, 0.0
  %v701 = vmax.f32 %v637, 0.0
  %v702 = vmax.f32 %v638, 0.0
  %v703 = vmax.f32 %v639, 0.0
  %v704 = vmax.f32 %v640, 0.0
  %v705 = vmax.f32 %v641, 0.0
  %v706 = vmax.f32 %v642, 0.0
  %v707 = vmax.f32 %v643, 0.0
  %v708 = vmax.f32 %v644, 0.0
  %v709 = vmax.f32 %v645, 0.0
  %v710 = vmax.f32 %v646, 0.0
  %v711 = vmax.f32 %v647, 0.0
  %v712 = vmax.f32 %v648, 0.0
  %v713 = vmax.f32 %v649, 0.0
  %v714 = vmax.f32 %v650, 0.0
  %v715 = vmax.f32 %v651, 0.0
  %v716 = vmax.f32 %v652, 0.0
  %v717 = vmax.f32 %v653, 0.0
  %v718 = vmax.f32 %v654, 0.0
  %v719 = vmax.f32 %v655, 0.0
  %v720 = vmax.f32 %v656, 0.0
  %v721 = vmax.f32 %v657, 0.0
  %v722 = vmax.f32 %v658, 0.0
  %v723 = vmax.f32 %v659, 0.0
  %v724 = vmax.f32 %v660, 0.0
  %v725 = vmax.f32 %v661, 0.0
  %v726 = vmax.f32 %v662, 0.0
  %v727 = vmax.f32 %v663, 0.0
  %v728 = vmax.f32 %v664, 0.0
  %v729 = vmax.f32 %v665, 0.0
  %730 = vst [vmem:[%s4] sm:$0xff] %v666
  %731 = vst [vmem:[%s4 + $0x8] sm:$0xff] %v667
  %732 = vst [vmem:[%s4 + $0x10] sm:$0xff] %v668
  %733 = vst [vmem:[%s4 + $0x18] sm:$0xff] %v669
  %734 = vst [vmem:[%s4 + $0x20] sm:$0xff] %v670
  %735 = vst [vmem:[%s4 + $0x28] sm:$0xff] %v671
  %736 = vst [vmem:[%s4 + $0x30] sm:$0xff] %v672
  %737 = vst [vmem:[%s4 + $0x38] sm:$0xff] %v673
  %738 = vst [vmem:[%s4 + $0x40] sm:$0xff] %v674
  %739 = vst [vmem:[%s4 + $0x48] sm:$0xff] %v675
  %740 = vst [vmem:[%s4 + $0x50] sm:$0xff] %v676
  %741 = vst [vmem:[%s4 + $0x58] sm:$0xff] %v677
  %742 = vst [vmem:[%s4 + $0x60] sm:$0xff] %v678
  %743 = vst [vmem:[%s4 + $0x68] sm:$0xff] %v679
  %744 = vst [vmem:[%s4 + $0x70] sm:$0xff] %v680
  %745 = vst [vmem:[%s4 + $0x78] sm:$0xff] %v681
  %746 = vst [vmem:[%s4 + $0x80] sm:$0xff] %v682
  %747 = vst [vmem:[%s4 + $0x88] sm:$0xff] %v683
  %748 = vst [vmem:[%s4 + $0x90] sm:$0xff] %v684
  %749 = vst [vmem:[%s4 + $0x98] sm:$0xff] %v685
  %750 = vst [vmem:[%s4 + $0xa0] sm:$0xff] %v686
  %751 = vst [vmem:[%s4 + $0xa8] sm:$0xff] %v687
  %752 = vst [vmem:[%s4 + $0xb0] sm:$0xff] %v688
  %753 = vst [vmem:[%s4 + $0xb8] sm:$0xff] %v689
  %754 = vst [vmem:[%s4 + $0xc0] sm:$0xff] %v690
  %755 = vst [vmem:[%s4 + $0xc8] sm:$0xff] %v691
  %756 = vst [vmem:[%s4 + $0xd0] sm:$0xff] %v692
  %757 = vst [vmem:[%s4 + $0xd8] sm:$0xff] %v693
  %758 = vst [vmem:[%s4 + $0xe0] sm:$0xff] %v694
  %759 = vst [vmem:[%s4 + $0xe8] sm:$0xff] %v695
  %760 = vst [vmem:[%s4 + $0xf0] sm:$0xff] %v696
  %761 = vst [vmem:[%s4 + $0xf8] sm:$0xff] %v697
  %762 = vst [vmem:[%s4 + $0x100] sm:$0xff] %v698
  %763 = vst [vmem:[%s4 + $0x108] sm:$0xff] %v699
  %764 = vst [vmem:[%s4 + $0x110] sm:$0xff] %v700
  %765 = vst [vmem:[%s4 + $0x118] sm:$0xff] %v701
  %766 = vst [vmem:[%s4 + $0x120] sm:$0xff] %v702
  %767 = vst [vmem:[%s4 + $0x128] sm:$0xff] %v703
  %768 = vst [vmem:[%s4 + $0x130] sm:$0xff] %v704
  %769 = vst [vmem:[%s4 + $0x138] sm:$0xff] %v705
  %770 = vst [vmem:[%s4 + $0x140] sm:$0xff] %v706
  %771 = vst [vmem:[%s4 + $0x148] sm:$0xff] %v707
  %772 = vst [vmem:[%s4 + $0x150] sm:$0xff] %v708
  %773 = vst [vmem:[%s4 + $0x158] sm:$0xff] %v709
  %774 = vst [vmem:[%s4 + $0x160] sm:$0xff] %v710
  %775 = vst [vmem:[%s4 + $0x168] sm:$0xff] %v711
  %776 = vst [vmem:[%s4 + $0x170] sm:$0xff] %v712
  %777 = vst [vmem:[%s4 + $0x178] sm:$0xff] %v713
  %778 = vst [vmem:[%s4 + $0x180] sm:$0xff] %v714
  %779 = vst [vmem:[%s4 + $0x188] sm:$0xff] %v715
  %780 = vst [vmem:[%s4 + $0x190] sm:$0xff] %v716
  %781 = vst [vmem:[%s4 + $0x198] sm:$0xff] %v717
  %782 = vst [vmem:[%s4 + $0x1a0] sm:$0xff] %v718
  %783 = vst [vmem:[%s4 + $0x1a8] sm:$0xff] %v719
  %784 = vst [vmem:[%s4 + $0x1b0] sm:$0xff] %v720
  %785 = vst [vmem:[%s4 + $0x1b8] sm:$0xff] %v721
  %786 = vst [vmem:[%s4 + $0x1c0] sm:$0xff] %v722
  %787 = vst [vmem:[%s4 + $0x1c8] sm:$0xff] %v723
  %788 = vst [vmem:[%s4 + $0x1d0] sm:$0xff] %v724
  %789 = vst [vmem:[%s4 + $0x1d8] sm:$0xff] %v725
  %790 = vst [vmem:[%s4 + $0x1e0] sm:$0xff] %v726
  %791 = vst [vmem:[%s4 + $0x1e8] sm:$0xff] %v727
  %792 = vst [vmem:[%s4 + $0x1f0] sm:$0xff] %v728
  %793 = vst [vmem:[%s4 + $0x1f8] sm:$0xff] %v729
  // Predicated region
  $region18: #{_lambda_.22} parent=0 // pred_check
    _
  $region19: #{_lambda_.22} parent=0 // pred_check_branch
    %795 = sbr.rel (0) target = $region21
  $region20: #{_lambda_.22} parent=0 // pred_region
    _
  $region21: #{_lambda_.22} parent=0 // pred_fallthru
    _
  // Predicated region
  $region22: #{_lambda_.22} parent=0 // pred_check
    _
  $region23: #{_lambda_.22} parent=0 // pred_check_branch
    %797 = sbr.rel (0) target = $region25
  $region24: #{_lambda_.22} parent=0 // pred_region
    _
  $region25: #{_lambda_.22} parent=0 // pred_fallthru
    _

// kernel: _lambda_.23
$region0: #{_lambda_.23}
  #allocation0 [shape = 'u32[]', space=smem, size = 0x4, offset = 0x4, fixed_abs, tag = 'smem constant byte address 0x4 - core index']
  #allocation1 [shape = 'u32[72,128]{1,0:T(1,128)}', space=vmem, size = 0x9000, scoped, tag = 'internal scratch']
  %s0 = inlined_call_operand.vmem [shape: bf16[512,144], index: 0, kind: input, shape index: {}]
  %s1 = inlined_call_operand.vmem [shape: bf16[144,128], index: 1, kind: input, shape index: {}]
  %s2 = inlined_call_operand.vmem [shape: f32[1,128], index: 2, kind: input, shape index: {}]
  %s3 = inlined_call_operand.vmem [shape: f32[1,128], index: 3, kind: input, shape index: {}]
  %s4 = inlined_call_operand.vmem [shape: f32[512,128], index: 4, kind: output, shape index: {}]
  %s5 = sld [smem:[#allocation0]]
  $region26: #{_lambda_.23} parent=0
    _
  %s7 = ssub.s32 1, %s5
  %s8 = scalar_select 0, %s7, %s5
  // Predicated region
  $region2: #{_lambda_.23} parent=0 // pred_check
    _
  $region3: #{_lambda_.23} parent=0 // pred_check_branch
    %10 = sbr.rel (0) target = $region5
  $region4: #{_lambda_.23} parent=0 // pred_region
    _
  $region5: #{_lambda_.23} parent=0 // pred_fallthru
    _
  // Predicated region
  $region6: #{_lambda_.23} parent=0 // pred_check
    _
  $region7: #{_lambda_.23} parent=0 // pred_check_branch
    %12 = sbr.rel (0) target = $region9
  $region8: #{_lambda_.23} parent=0 // pred_region
    _
  $region9: #{_lambda_.23} parent=0 // pred_fallthru
    _
  // Predicated region
  $region10: #{_lambda_.23} parent=0 // pred_check
    _
  $region11: #{_lambda_.23} parent=0 // pred_check_branch
    %14 = sbr.rel (0) target = $region13
  $region12: #{_lambda_.23} parent=0 // pred_region
    _
  $region13: #{_lambda_.23} parent=0 // pred_fallthru
    _
  // Predicated region
  $region14: #{_lambda_.23} parent=0 // pred_check
    _
  $region15: #{_lambda_.23} parent=0 // pred_check_branch
    %16 = sbr.rel (0) target = $region17
  $region16: #{_lambda_.23} parent=0 // pred_region
    _
  $region17: #{_lambda_.23} parent=0 // pred_fallthru
    _
  %v18 = vld [vmem:[%s0] sm:$0xff]
  %v19 = vld [vmem:[%s0 + $0x8] sm:$0xff]
  %v20 = vld [vmem:[%s0 + $0x10] sm:$0xff]
  %v21 = vld [vmem:[%s0 + $0x18] sm:$0xff]
  %v22 = vld [vmem:[%s0 + $0x20] sm:$0xff]
  %v23 = vld [vmem:[%s0 + $0x28] sm:$0xff]
  %v24 = vld [vmem:[%s0 + $0x30] sm:$0xff]
  %v25 = vld [vmem:[%s0 + $0x38] sm:$0xff]
  %v26 = vld [vmem:[%s0 + $0x40] sm:$0xff]
  %v27 = vld [vmem:[%s0 + $0x48] sm:$0xff]
  %v28 = vld [vmem:[%s0 + $0x50] sm:$0xff]
  %v29 = vld [vmem:[%s0 + $0x58] sm:$0xff]
  %v30 = vld [vmem:[%s0 + $0x60] sm:$0xff]
  %v31 = vld [vmem:[%s0 + $0x68] sm:$0xff]
  %v32 = vld [vmem:[%s0 + $0x70] sm:$0xff]
  %v33 = vld [vmem:[%s0 + $0x78] sm:$0xff]
  %v34 = vld [vmem:[%s0 + $0x80] sm:$0xff]
  %v35 = vld [vmem:[%s0 + $0x88] sm:$0xff]
  %v36 = vld [vmem:[%s0 + $0x90] sm:$0xff]
  %v37 = vld [vmem:[%s0 + $0x98] sm:$0xff]
  %v38 = vld [vmem:[%s0 + $0xa0] sm:$0xff]
  %v39 = vld [vmem:[%s0 + $0xa8] sm:$0xff]
  %v40 = vld [vmem:[%s0 + $0xb0] sm:$0xff]
  %v41 = vld [vmem:[%s0 + $0xb8] sm:$0xff]
  %v42 = vld [vmem:[%s0 + $0xc0] sm:$0xff]
  %v43 = vld [vmem:[%s0 + $0xc8] sm:$0xff]
  %v44 = vld [vmem:[%s0 + $0xd0] sm:$0xff]
  %v45 = vld [vmem:[%s0 + $0xd8] sm:$0xff]
  %v46 = vld [vmem:[%s0 + $0xe0] sm:$0xff]
  %v47 = vld [vmem:[%s0 + $0xe8] sm:$0xff]
  %v48 = vld [vmem:[%s0 + $0xf0] sm:$0xff]
  %v49 = vld [vmem:[%s0 + $0xf8] sm:$0xff]
  %v50 = vld [vmem:[%s0 + $0x100] sm:$0xff]
  %v51 = vld [vmem:[%s0 + $0x108] sm:$0xff]
  %v52 = vld [vmem:[%s0 + $0x110] sm:$0xff]
  %v53 = vld [vmem:[%s0 + $0x118] sm:$0xff]
  %v54 = vld [vmem:[%s0 + $0x120] sm:$0xff]
  %v55 = vld [vmem:[%s0 + $0x128] sm:$0xff]
  %v56 = vld [vmem:[%s0 + $0x130] sm:$0xff]
  %v57 = vld [vmem:[%s0 + $0x138] sm:$0xff]
  %v58 = vld [vmem:[%s0 + $0x140] sm:$0xff]
  %v59 = vld [vmem:[%s0 + $0x148] sm:$0xff]
  %v60 = vld [vmem:[%s0 + $0x150] sm:$0xff]
  %v61 = vld [vmem:[%s0 + $0x158] sm:$0xff]
  %v62 = vld [vmem:[%s0 + $0x160] sm:$0xff]
  %v63 = vld [vmem:[%s0 + $0x168] sm:$0xff]
  %v64 = vld [vmem:[%s0 + $0x170] sm:$0xff]
  %v65 = vld [vmem:[%s0 + $0x178] sm:$0xff]
  %v66 = vld [vmem:[%s0 + $0x180] sm:$0xff]
  %v67 = vld [vmem:[%s0 + $0x188] sm:$0xff]
  %v68 = vld [vmem:[%s0 + $0x190] sm:$0xff]
  %v69 = vld [vmem:[%s0 + $0x198] sm:$0xff]
  %v70 = vld [vmem:[%s0 + $0x1a0] sm:$0xff]
  %v71 = vld [vmem:[%s0 + $0x1a8] sm:$0xff]
  %v72 = vld [vmem:[%s0 + $0x1b0] sm:$0xff]
  %v73 = vld [vmem:[%s0 + $0x1b8] sm:$0xff]
  %v74 = vld [vmem:[%s0 + $0x1c0] sm:$0xff]
  %v75 = vld [vmem:[%s0 + $0x1c8] sm:$0xff]
  %v76 = vld [vmem:[%s0 + $0x1d0] sm:$0xff]
  %v77 = vld [vmem:[%s0 + $0x1d8] sm:$0xff]
  %v78 = vld [vmem:[%s0 + $0x1e0] sm:$0xff]
  %v79 = vld [vmem:[%s0 + $0x1e8] sm:$0xff]
  %v80 = vld [vmem:[%s0 + $0x1f0] sm:$0xff]
  %v81 = vld [vmem:[%s0 + $0x1f8] sm:$0xff]
  %v82 = vld [vmem:[%s1] sm:$0xf]
  %v83 = vld [vmem:[%s1 + $0x4] sm:$0xf]
  %v84 = vld [vmem:[%s1 + $0x8] sm:$0xf]
  %v85 = vld [vmem:[%s1 + $0xc] sm:$0xf]
  %v86 = vld [vmem:[%s1 + $0x10] sm:$0xf]
  %v87 = vld [vmem:[%s1 + $0x14] sm:$0xf]
  %v88 = vld [vmem:[%s1 + $0x18] sm:$0xf]
  %v89 = vld [vmem:[%s1 + $0x1c] sm:$0xf]
  %v90 = vld [vmem:[%s1 + $0x20] sm:$0xf]
  %v91 = vld [vmem:[%s1 + $0x24] sm:$0xf]
  %v92 = vld [vmem:[%s1 + $0x28] sm:$0xf]
  %v93 = vld [vmem:[%s1 + $0x2c] sm:$0xf]
  %v94 = vld [vmem:[%s1 + $0x30] sm:$0xf]
  %v95 = vld [vmem:[%s1 + $0x34] sm:$0xf]
  %v96 = vld [vmem:[%s1 + $0x38] sm:$0xf]
  %v97 = vld [vmem:[%s1 + $0x3c] sm:$0xf]
  %v98 = vld [vmem:[%s1 + $0x40] sm:$0xf]
  %v99 = vld [vmem:[%s1 + $0x44] sm:$0xf]
  %v164 = vunpack.c.l.b16 %v18
  %v165 = vunpack.c.h.b16 %v18
  %v166 = vunpack.c.l.b16 %v19
  %v167 = vunpack.c.h.b16 %v19
  %v168 = vunpack.c.l.b16 %v20
  %v169 = vunpack.c.h.b16 %v20
  %v170 = vunpack.c.l.b16 %v21
  %v171 = vunpack.c.h.b16 %v21
  %v172 = vunpack.c.l.b16 %v22
  %v173 = vunpack.c.h.b16 %v22
  %v174 = vunpack.c.l.b16 %v23
  %v175 = vunpack.c.h.b16 %v23
  %v176 = vunpack.c.l.b16 %v24
  %v177 = vunpack.c.h.b16 %v24
  %v178 = vunpack.c.l.b16 %v25
  %v179 = vunpack.c.h.b16 %v25
  %v180 = vunpack.c.l.b16 %v26
  %v181 = vunpack.c.h.b16 %v26
  %v182 = vunpack.c.l.b16 %v27
  %v183 = vunpack.c.h.b16 %v27
  %v184 = vunpack.c.l.b16 %v28
  %v185 = vunpack.c.h.b16 %v28
  %v186 = vunpack.c.l.b16 %v29
  %v187 = vunpack.c.h.b16 %v29
  %v188 = vunpack.c.l.b16 %v30
  %v189 = vunpack.c.h.b16 %v30
  %v190 = vunpack.c.l.b16 %v31
  %v191 = vunpack.c.h.b16 %v31
  %v192 = vunpack.c.l.b16 %v32
  %v193 = vunpack.c.h.b16 %v32
  %v194 = vunpack.c.l.b16 %v33
  %v195 = vunpack.c.h.b16 %v33
  %v196 = vunpack.c.l.b16 %v34
  %v197 = vunpack.c.h.b16 %v34
  %v198 = vunpack.c.l.b16 %v35
  %v199 = vunpack.c.h.b16 %v35
  %v200 = vunpack.c.l.b16 %v36
  %v201 = vunpack.c.h.b16 %v36
  %v202 = vunpack.c.l.b16 %v37
  %v203 = vunpack.c.h.b16 %v37
  %v204 = vunpack.c.l.b16 %v38
  %v205 = vunpack.c.h.b16 %v38
  %v206 = vunpack.c.l.b16 %v39
  %v207 = vunpack.c.h.b16 %v39
  %v208 = vunpack.c.l.b16 %v40
  %v209 = vunpack.c.h.b16 %v40
  %v210 = vunpack.c.l.b16 %v41
  %v211 = vunpack.c.h.b16 %v41
  %v212 = vunpack.c.l.b16 %v42
  %v213 = vunpack.c.h.b16 %v42
  %v214 = vunpack.c.l.b16 %v43
  %v215 = vunpack.c.h.b16 %v43
  %v216 = vunpack.c.l.b16 %v44
  %v217 = vunpack.c.h.b16 %v44
  %v218 = vunpack.c.l.b16 %v45
  %v219 = vunpack.c.h.b16 %v45
  %v220 = vunpack.c.l.b16 %v46
  %v221 = vunpack.c.h.b16 %v46
  %v222 = vunpack.c.l.b16 %v47
  %v223 = vunpack.c.h.b16 %v47
  %v224 = vunpack.c.l.b16 %v48
  %v225 = vunpack.c.h.b16 %v48
  %v226 = vunpack.c.l.b16 %v49
  %v227 = vunpack.c.h.b16 %v49
  %v228 = vunpack.c.l.b16 %v50
  %v229 = vunpack.c.h.b16 %v50
  %v230 = vunpack.c.l.b16 %v51
  %v231 = vunpack.c.h.b16 %v51
  %v232 = vunpack.c.l.b16 %v52
  %v233 = vunpack.c.h.b16 %v52
  %v234 = vunpack.c.l.b16 %v53
  %v235 = vunpack.c.h.b16 %v53
  %v236 = vunpack.c.l.b16 %v54
  %v237 = vunpack.c.h.b16 %v54
  %v238 = vunpack.c.l.b16 %v55
  %v239 = vunpack.c.h.b16 %v55
  %v240 = vunpack.c.l.b16 %v56
  %v241 = vunpack.c.h.b16 %v56
  %v242 = vunpack.c.l.b16 %v57
  %v243 = vunpack.c.h.b16 %v57
  %v244 = vunpack.c.l.b16 %v58
  %v245 = vunpack.c.h.b16 %v58
  %v246 = vunpack.c.l.b16 %v59
  %v247 = vunpack.c.h.b16 %v59
  %v248 = vunpack.c.l.b16 %v60
  %v249 = vunpack.c.h.b16 %v60
  %v250 = vunpack.c.l.b16 %v61
  %v251 = vunpack.c.h.b16 %v61
  %v252 = vunpack.c.l.b16 %v62
  %v253 = vunpack.c.h.b16 %v62
  %v254 = vunpack.c.l.b16 %v63
  %v255 = vunpack.c.h.b16 %v63
  %v256 = vunpack.c.l.b16 %v64
  %v257 = vunpack.c.h.b16 %v64
  %v258 = vunpack.c.l.b16 %v65
  %v259 = vunpack.c.h.b16 %v65
  %v260 = vunpack.c.l.b16 %v66
  %v261 = vunpack.c.h.b16 %v66
  %v262 = vunpack.c.l.b16 %v67
  %v263 = vunpack.c.h.b16 %v67
  %v264 = vunpack.c.l.b16 %v68
  %v265 = vunpack.c.h.b16 %v68
  %v266 = vunpack.c.l.b16 %v69
  %v267 = vunpack.c.h.b16 %v69
  %v268 = vunpack.c.l.b16 %v70
  %v269 = vunpack.c.h.b16 %v70
  %v270 = vunpack.c.l.b16 %v71
  %v271 = vunpack.c.h.b16 %v71
  %v272 = vunpack.c.l.b16 %v72
  %v273 = vunpack.c.h.b16 %v72
  %v274 = vunpack.c.l.b16 %v73
  %v275 = vunpack.c.h.b16 %v73
  %v276 = vunpack.c.l.b16 %v74
  %v277 = vunpack.c.h.b16 %v74
  %v278 = vunpack.c.l.b16 %v75
  %v279 = vunpack.c.h.b16 %v75
  %v280 = vunpack.c.l.b16 %v76
  %v281 = vunpack.c.h.b16 %v76
  %v282 = vunpack.c.l.b16 %v77
  %v283 = vunpack.c.h.b16 %v77
  %v284 = vunpack.c.l.b16 %v78
  %v285 = vunpack.c.h.b16 %v78
  %v286 = vunpack.c.l.b16 %v79
  %v287 = vunpack.c.h.b16 %v79
  %v288 = vunpack.c.l.b16 %v80
  %v289 = vunpack.c.h.b16 %v80
  %v290 = vunpack.c.l.b16 %v81
  %v291 = vunpack.c.h.b16 %v81
  %v292 = vpack.c.b16 %v166, %v164
  %v293 = vpack.c.b16 %v167, %v165
  %v294 = vpack.c.b16 %v170, %v168
  %v295 = vpack.c.b16 %v171, %v169
  %v296 = vpack.c.b16 %v174, %v172
  %v297 = vpack.c.b16 %v175, %v173
  %v298 = vpack.c.b16 %v178, %v176
  %v299 = vpack.c.b16 %v179, %v177
  %v300 = vpack.c.b16 %v182, %v180
  %v301 = vpack.c.b16 %v183, %v181
  %v302 = vpack.c.b16 %v186, %v184
  %v303 = vpack.c.b16 %v187, %v185
  %v304 = vpack.c.b16 %v190, %v188
  %v305 = vpack.c.b16 %v191, %v189
  %v306 = vpack.c.b16 %v194, %v192
  %v307 = vpack.c.b16 %v195, %v193
  %v308 = vpack.c.b16 %v198, %v196
  %v309 = vpack.c.b16 %v199, %v197
  %v310 = vpack.c.b16 %v202, %v200
  %v311 = vpack.c.b16 %v203, %v201
  %v312 = vpack.c.b16 %v206, %v204
  %v313 = vpack.c.b16 %v207, %v205
  %v314 = vpack.c.b16 %v210, %v208
  %v315 = vpack.c.b16 %v211, %v209
  %v316 = vpack.c.b16 %v214, %v212
  %v317 = vpack.c.b16 %v215, %v213
  %v318 = vpack.c.b16 %v218, %v216
  %v319 = vpack.c.b16 %v219, %v217
  %v320 = vpack.c.b16 %v222, %v220
  %v321 = vpack.c.b16 %v223, %v221
  %v322 = vpack.c.b16 %v226, %v224
  %v323 = vpack.c.b16 %v227, %v225
  %v324 = vpack.c.b16 %v230, %v228
  %v325 = vpack.c.b16 %v231, %v229
  %v326 = vpack.c.b16 %v234, %v232
  %v327 = vpack.c.b16 %v235, %v233
  %v328 = vpack.c.b16 %v238, %v236
  %v329 = vpack.c.b16 %v239, %v237
  %v330 = vpack.c.b16 %v242, %v240
  %v331 = vpack.c.b16 %v243, %v241
  %v332 = vpack.c.b16 %v246, %v244
  %v333 = vpack.c.b16 %v247, %v245
  %v334 = vpack.c.b16 %v250, %v248
  %v335 = vpack.c.b16 %v251, %v249
  %v336 = vpack.c.b16 %v254, %v252
  %v337 = vpack.c.b16 %v255, %v253
  %v338 = vpack.c.b16 %v258, %v256
  %v339 = vpack.c.b16 %v259, %v257
  %v340 = vpack.c.b16 %v262, %v260
  %v341 = vpack.c.b16 %v263, %v261
  %v342 = vpack.c.b16 %v266, %v264
  %v343 = vpack.c.b16 %v267, %v265
  %v344 = vpack.c.b16 %v270, %v268
  %v345 = vpack.c.b16 %v271, %v269
  %v346 = vpack.c.b16 %v274, %v272
  %v347 = vpack.c.b16 %v275, %v273
  %v348 = vpack.c.b16 %v278, %v276
  %v349 = vpack.c.b16 %v279, %v277
  %v350 = vpack.c.b16 %v282, %v280
  %v351 = vpack.c.b16 %v283, %v281
  %v352 = vpack.c.b16 %v286, %v284
  %v353 = vpack.c.b16 %v287, %v285
  %v354 = vpack.c.b16 %v290, %v288
  %v355 = vpack.c.b16 %v291, %v289
  %v406 = vunpack.c.l.b16 %v82
  %v407 = vunpack.c.l.b16 %v83
  %v408 = vunpack.c.l.b16 %v84
  %v409 = vunpack.c.l.b16 %v85
  %v410 = vunpack.c.l.b16 %v86
  %v411 = vunpack.c.l.b16 %v87
  %v412 = vunpack.c.l.b16 %v88
  %v413 = vunpack.c.l.b16 %v89
  %v414 = vunpack.c.l.b16 %v90
  %v415 = vunpack.c.l.b16 %v91
  %v416 = vunpack.c.l.b16 %v92
  %v417 = vunpack.c.l.b16 %v93
  %v418 = vunpack.c.l.b16 %v94
  %v419 = vunpack.c.l.b16 %v95
  %v420 = vunpack.c.l.b16 %v96
  %v421 = vunpack.c.l.b16 %v97
  %v422 = vunpack.c.l.b16 %v98
  %v423 = vunpack.c.l.b16 %v99
  %v424 = vpack.c.b16 %v407, %v406
  %v425 = vpack.c.b16 %v409, %v408
  %v426 = vpack.c.b16 %v411, %v410
  %v427 = vpack.c.b16 %v413, %v412
  %v428 = vpack.c.b16 %v415, %v414
  %v429 = vpack.c.b16 %v417, %v416
  %v430 = vpack.c.b16 %v419, %v418
  %v431 = vpack.c.b16 %v421, %v420
  %v432 = vpack.c.b16 %v423, %v422
  %vm442 = vcmask 130048
  %v444 = vsel %vm442, %v293, 0
  %v447 = vsel %vm442, %v295, 0
  %v450 = vsel %vm442, %v297, 0
  %v453 = vsel %vm442, %v299, 0
  %v456 = vsel %vm442, %v301, 0
  %v459 = vsel %vm442, %v303, 0
  %v462 = vsel %vm442, %v305, 0
  %v465 = vsel %vm442, %v307, 0
  %v468 = vsel %vm442, %v309, 0
  %v471 = vsel %vm442, %v311, 0
  %v474 = vsel %vm442, %v313, 0
  %v477 = vsel %vm442, %v315, 0
  %v480 = vsel %vm442, %v317, 0
  %v483 = vsel %vm442, %v319, 0
  %v486 = vsel %vm442, %v321, 0
  %v489 = vsel %vm442, %v323, 0
  %v492 = vsel %vm442, %v325, 0
  %v495 = vsel %vm442, %v327, 0
  %v498 = vsel %vm442, %v329, 0
  %v501 = vsel %vm442, %v331, 0
  %v504 = vsel %vm442, %v333, 0
  %v507 = vsel %vm442, %v335, 0
  %v510 = vsel %vm442, %v337, 0
  %v513 = vsel %vm442, %v339, 0
  %v516 = vsel %vm442, %v341, 0
  %v519 = vsel %vm442, %v343, 0
  %v522 = vsel %vm442, %v345, 0
  %v525 = vsel %vm442, %v347, 0
  %v528 = vsel %vm442, %v349, 0
  %v531 = vsel %vm442, %v351, 0
  %v534 = vsel %vm442, %v353, 0
  %v537 = vsel %vm442, %v355, 0
  %539 = vmatpush.bf16.msra.mxu0 %v431
  %540 = vmatpush.bf16.msra.mxu0 %v430
  %541 = vmatpush.bf16.msra.mxu0 %v429
  %542 = vmatpush.bf16.msra.mxu0 %v428
  %543 = vmatpush.bf16.msra.mxu0 %v427
  %544 = vmatpush.bf16.msra.mxu0 %v426
  %545 = vmatpush.bf16.msra.mxu0 %v425
  %546 = vmatpush.bf16.msra.mxu0 %v424
  %547 = vmatmul.bf16.gmra.mxu0 %v292
  %v548 = vpop.f32.mrf.mxu0
  %v549 = vadd.f32 0.0, %v548
  %v550 = vpop.f32.mrf.mxu0
  %v551 = vadd.f32 0.0, %v550
  %552 = vmatmul.bf16.gmra.mxu0 %v294
  %v553 = vpop.f32.mrf.mxu0
  %v554 = vadd.f32 0.0, %v553
  %v555 = vpop.f32.mrf.mxu0
  %v556 = vadd.f32 0.0, %v555
  %557 = vmatmul.bf16.gmra.mxu0 %v296
  %v558 = vpop.f32.mrf.mxu0
  %v559 = vadd.f32 0.0, %v558
  %v560 = vpop.f32.mrf.mxu0
  %v561 = vadd.f32 0.0, %v560
  %562 = vmatmul.bf16.gmra.mxu0 %v298
  %v563 = vpop.f32.mrf.mxu0
  %v564 = vadd.f32 0.0, %v563
  %v565 = vpop.f32.mrf.mxu0
  %v566 = vadd.f32 0.0, %v565
  %567 = vmatmul.bf16.gmra.mxu0 %v300
  %v568 = vpop.f32.mrf.mxu0
  %v569 = vadd.f32 0.0, %v568
  %v570 = vpop.f32.mrf.mxu0
  %v571 = vadd.f32 0.0, %v570
  %572 = vmatmul.bf16.gmra.mxu0 %v302
  %v573 = vpop.f32.mrf.mxu0
  %v574 = vadd.f32 0.0, %v573
  %v575 = vpop.f32.mrf.mxu0
  %v576 = vadd.f32 0.0, %v575
  %577 = vmatmul.bf16.gmra.mxu0 %v304
  %v578 = vpop.f32.mrf.mxu0
  %v579 = vadd.f32 0.0, %v578
  %v580 = vpop.f32.mrf.mxu0
  %v581 = vadd.f32 0.0, %v580
  %582 = vmatmul.bf16.gmra.mxu0 %v306
  %v583 = vpop.f32.mrf.mxu0
  %v584 = vadd.f32 0.0, %v583
  %v585 = vpop.f32.mrf.mxu0
  %v586 = vadd.f32 0.0, %v585
  %587 = vmatmul.bf16.gmra.mxu0 %v308
  %v588 = vpop.f32.mrf.mxu0
  %v589 = vadd.f32 0.0, %v588
  %v590 = vpop.f32.mrf.mxu0
  %v591 = vadd.f32 0.0, %v590
  %592 = vmatmul.bf16.gmra.mxu0 %v310
  %v593 = vpop.f32.mrf.mxu0
  %v594 = vadd.f32 0.0, %v593
  %v595 = vpop.f32.mrf.mxu0
  %v596 = vadd.f32 0.0, %v595
  %597 = vmatmul.bf16.gmra.mxu0 %v312
  %v598 = vpop.f32.mrf.mxu0
  %v599 = vadd.f32 0.0, %v598
  %v600 = vpop.f32.mrf.mxu0
  %v601 = vadd.f32 0.0, %v600
  %602 = vmatmul.bf16.gmra.mxu0 %v314
  %v603 = vpop.f32.mrf.mxu0
  %v604 = vadd.f32 0.0, %v603
  %v605 = vpop.f32.mrf.mxu0
  %v606 = vadd.f32 0.0, %v605
  %607 = vmatmul.bf16.gmra.mxu0 %v316
  %v608 = vpop.f32.mrf.mxu0
  %v609 = vadd.f32 0.0, %v608
  %v610 = vpop.f32.mrf.mxu0
  %v611 = vadd.f32 0.0, %v610
  %612 = vmatmul.bf16.gmra.mxu0 %v318
  %v613 = vpop.f32.mrf.mxu0
  %v614 = vadd.f32 0.0, %v613
  %v615 = vpop.f32.mrf.mxu0
  %v616 = vadd.f32 0.0, %v615
  %617 = vmatmul.bf16.gmra.mxu0 %v320
  %v618 = vpop.f32.mrf.mxu0
  %v619 = vadd.f32 0.0, %v618
  %v620 = vpop.f32.mrf.mxu0
  %v621 = vadd.f32 0.0, %v620
  %622 = vmatmul.bf16.gmra.mxu0 %v322
  %v623 = vpop.f32.mrf.mxu0
  %v624 = vadd.f32 0.0, %v623
  %v625 = vpop.f32.mrf.mxu0
  %v626 = vadd.f32 0.0, %v625
  %627 = vmatmul.bf16.gmra.mxu0 %v324
  %v628 = vpop.f32.mrf.mxu0
  %v629 = vadd.f32 0.0, %v628
  %v630 = vpop.f32.mrf.mxu0
  %v631 = vadd.f32 0.0, %v630
  %632 = vmatmul.bf16.gmra.mxu0 %v326
  %v633 = vpop.f32.mrf.mxu0
  %v634 = vadd.f32 0.0, %v633
  %v635 = vpop.f32.mrf.mxu0
  %v636 = vadd.f32 0.0, %v635
  %637 = vmatmul.bf16.gmra.mxu0 %v328
  %v638 = vpop.f32.mrf.mxu0
  %v639 = vadd.f32 0.0, %v638
  %v640 = vpop.f32.mrf.mxu0
  %v641 = vadd.f32 0.0, %v640
  %642 = vmatmul.bf16.gmra.mxu0 %v330
  %v643 = vpop.f32.mrf.mxu0
  %v644 = vadd.f32 0.0, %v643
  %v645 = vpop.f32.mrf.mxu0
  %v646 = vadd.f32 0.0, %v645
  %647 = vmatmul.bf16.gmra.mxu0 %v332
  %v648 = vpop.f32.mrf.mxu0
  %v649 = vadd.f32 0.0, %v648
  %v650 = vpop.f32.mrf.mxu0
  %v651 = vadd.f32 0.0, %v650
  %652 = vmatmul.bf16.gmra.mxu0 %v334
  %v653 = vpop.f32.mrf.mxu0
  %v654 = vadd.f32 0.0, %v653
  %v655 = vpop.f32.mrf.mxu0
  %v656 = vadd.f32 0.0, %v655
  %657 = vmatmul.bf16.gmra.mxu0 %v336
  %v658 = vpop.f32.mrf.mxu0
  %v659 = vadd.f32 0.0, %v658
  %v660 = vpop.f32.mrf.mxu0
  %v661 = vadd.f32 0.0, %v660
  %662 = vmatmul.bf16.gmra.mxu0 %v338
  %v663 = vpop.f32.mrf.mxu0
  %v664 = vadd.f32 0.0, %v663
  %v665 = vpop.f32.mrf.mxu0
  %v666 = vadd.f32 0.0, %v665
  %667 = vmatmul.bf16.gmra.mxu0 %v340
  %v668 = vpop.f32.mrf.mxu0
  %v669 = vadd.f32 0.0, %v668
  %v670 = vpop.f32.mrf.mxu0
  %v671 = vadd.f32 0.0, %v670
  %672 = vmatmul.bf16.gmra.mxu0 %v342
  %v673 = vpop.f32.mrf.mxu0
  %v674 = vadd.f32 0.0, %v673
  %v675 = vpop.f32.mrf.mxu0
  %v676 = vadd.f32 0.0, %v675
  %677 = vmatmul.bf16.gmra.mxu0 %v344
  %v678 = vpop.f32.mrf.mxu0
  %v679 = vadd.f32 0.0, %v678
  %v680 = vpop.f32.mrf.mxu0
  %v681 = vadd.f32 0.0, %v680
  %682 = vmatmul.bf16.gmra.mxu0 %v346
  %v683 = vpop.f32.mrf.mxu0
  %v684 = vadd.f32 0.0, %v683
  %v685 = vpop.f32.mrf.mxu0
  %v686 = vadd.f32 0.0, %v685
  %687 = vmatmul.bf16.gmra.mxu0 %v348
  %v688 = vpop.f32.mrf.mxu0
  %v689 = vadd.f32 0.0, %v688
  %v690 = vpop.f32.mrf.mxu0
  %v691 = vadd.f32 0.0, %v690
  %692 = vmatmul.bf16.gmra.mxu0 %v350
  %v693 = vpop.f32.mrf.mxu0
  %v694 = vadd.f32 0.0, %v693
  %v695 = vpop.f32.mrf.mxu0
  %v696 = vadd.f32 0.0, %v695
  %697 = vmatmul.bf16.gmra.mxu0 %v352
  %v698 = vpop.f32.mrf.mxu0
  %v699 = vadd.f32 0.0, %v698
  %v700 = vpop.f32.mrf.mxu0
  %v701 = vadd.f32 0.0, %v700
  %702 = vmatmul.bf16.gmra.mxu0 %v354
  %v703 = vpop.f32.mrf.mxu0
  %v704 = vadd.f32 0.0, %v703
  %v705 = vpop.f32.mrf.mxu0
  %v706 = vadd.f32 0.0, %v705
  %707 = vdwg.mxu0
  %708 = vmatpush.bf16.msra.mxu0 0
  %709 = vmatpush.bf16.msra.mxu0 0
  %710 = vmatpush.bf16.msra.mxu0 0
  %711 = vmatpush.bf16.msra.mxu0 0
  %712 = vmatpush.bf16.msra.mxu0 0
  %713 = vmatpush.bf16.msra.mxu0 0
  %714 = vmatpush.bf16.msra.mxu0 0
  %715 = vmatpush.bf16.msra.mxu0 %v432
  %716 = vmatmul.bf16.gmra.mxu0 %v444
  %v717 = vpop.f32.mrf.mxu0
  %v718 = vadd.f32 %v549, %v717
  %v719 = vpop.f32.mrf.mxu0
  %v720 = vadd.f32 %v551, %v719
  %721 = vmatmul.bf16.gmra.mxu0 %v447
  %v722 = vpop.f32.mrf.mxu0
  %v723 = vadd.f32 %v554, %v722
  %v724 = vpop.f32.mrf.mxu0
  %v725 = vadd.f32 %v556, %v724
  %726 = vmatmul.bf16.gmra.mxu0 %v450
  %v727 = vpop.f32.mrf.mxu0
  %v728 = vadd.f32 %v559, %v727
  %v729 = vpop.f32.mrf.mxu0
  %v730 = vadd.f32 %v561, %v729
  %731 = vmatmul.bf16.gmra.mxu0 %v453
  %v732 = vpop.f32.mrf.mxu0
  %v733 = vadd.f32 %v564, %v732
  %v734 = vpop.f32.mrf.mxu0
  %v735 = vadd.f32 %v566, %v734
  %736 = vmatmul.bf16.gmra.mxu0 %v456
  %v737 = vpop.f32.mrf.mxu0
  %v738 = vadd.f32 %v569, %v737
  %v739 = vpop.f32.mrf.mxu0
  %v740 = vadd.f32 %v571, %v739
  %741 = vmatmul.bf16.gmra.mxu0 %v459
  %v742 = vpop.f32.mrf.mxu0
  %v743 = vadd.f32 %v574, %v742
  %v744 = vpop.f32.mrf.mxu0
  %v745 = vadd.f32 %v576, %v744
  %746 = vmatmul.bf16.gmra.mxu0 %v462
  %v747 = vpop.f32.mrf.mxu0
  %v748 = vadd.f32 %v579, %v747
  %v749 = vpop.f32.mrf.mxu0
  %v750 = vadd.f32 %v581, %v749
  %751 = vmatmul.bf16.gmra.mxu0 %v465
  %v752 = vpop.f32.mrf.mxu0
  %v753 = vadd.f32 %v584, %v752
  %v754 = vpop.f32.mrf.mxu0
  %v755 = vadd.f32 %v586, %v754
  %756 = vmatmul.bf16.gmra.mxu0 %v468
  %v757 = vpop.f32.mrf.mxu0
  %v758 = vadd.f32 %v589, %v757
  %v759 = vpop.f32.mrf.mxu0
  %v760 = vadd.f32 %v591, %v759
  %761 = vmatmul.bf16.gmra.mxu0 %v471
  %v762 = vpop.f32.mrf.mxu0
  %v763 = vadd.f32 %v594, %v762
  %v764 = vpop.f32.mrf.mxu0
  %v765 = vadd.f32 %v596, %v764
  %766 = vmatmul.bf16.gmra.mxu0 %v474
  %v767 = vpop.f32.mrf.mxu0
  %v768 = vadd.f32 %v599, %v767
  %v769 = vpop.f32.mrf.mxu0
  %v770 = vadd.f32 %v601, %v769
  %771 = vmatmul.bf16.gmra.mxu0 %v477
  %v772 = vpop.f32.mrf.mxu0
  %v773 = vadd.f32 %v604, %v772
  %v774 = vpop.f32.mrf.mxu0
  %v775 = vadd.f32 %v606, %v774
  %776 = vmatmul.bf16.gmra.mxu0 %v480
  %v777 = vpop.f32.mrf.mxu0
  %v778 = vadd.f32 %v609, %v777
  %v779 = vpop.f32.mrf.mxu0
  %v780 = vadd.f32 %v611, %v779
  %781 = vmatmul.bf16.gmra.mxu0 %v483
  %v782 = vpop.f32.mrf.mxu0
  %v783 = vadd.f32 %v614, %v782
  %v784 = vpop.f32.mrf.mxu0
  %v785 = vadd.f32 %v616, %v784
  %786 = vmatmul.bf16.gmra.mxu0 %v486
  %v787 = vpop.f32.mrf.mxu0
  %v788 = vadd.f32 %v619, %v787
  %v789 = vpop.f32.mrf.mxu0
  %v790 = vadd.f32 %v621, %v789
  %791 = vmatmul.bf16.gmra.mxu0 %v489
  %v792 = vpop.f32.mrf.mxu0
  %v793 = vadd.f32 %v624, %v792
  %v794 = vpop.f32.mrf.mxu0
  %v795 = vadd.f32 %v626, %v794
  %796 = vmatmul.bf16.gmra.mxu0 %v492
  %v797 = vpop.f32.mrf.mxu0
  %v798 = vadd.f32 %v629, %v797
  %v799 = vpop.f32.mrf.mxu0
  %v800 = vadd.f32 %v631, %v799
  %801 = vmatmul.bf16.gmra.mxu0 %v495
  %v802 = vpop.f32.mrf.mxu0
  %v803 = vadd.f32 %v634, %v802
  %v804 = vpop.f32.mrf.mxu0
  %v805 = vadd.f32 %v636, %v804
  %806 = vmatmul.bf16.gmra.mxu0 %v498
  %v807 = vpop.f32.mrf.mxu0
  %v808 = vadd.f32 %v639, %v807
  %v809 = vpop.f32.mrf.mxu0
  %v810 = vadd.f32 %v641, %v809
  %811 = vmatmul.bf16.gmra.mxu0 %v501
  %v812 = vpop.f32.mrf.mxu0
  %v813 = vadd.f32 %v644, %v812
  %v814 = vpop.f32.mrf.mxu0
  %v815 = vadd.f32 %v646, %v814
  %816 = vmatmul.bf16.gmra.mxu0 %v504
  %v817 = vpop.f32.mrf.mxu0
  %v818 = vadd.f32 %v649, %v817
  %v819 = vpop.f32.mrf.mxu0
  %v820 = vadd.f32 %v651, %v819
  %821 = vmatmul.bf16.gmra.mxu0 %v507
  %v822 = vpop.f32.mrf.mxu0
  %v823 = vadd.f32 %v654, %v822
  %v824 = vpop.f32.mrf.mxu0
  %v825 = vadd.f32 %v656, %v824
  %826 = vmatmul.bf16.gmra.mxu0 %v510
  %v827 = vpop.f32.mrf.mxu0
  %v828 = vadd.f32 %v659, %v827
  %v829 = vpop.f32.mrf.mxu0
  %v830 = vadd.f32 %v661, %v829
  %831 = vmatmul.bf16.gmra.mxu0 %v513
  %v832 = vpop.f32.mrf.mxu0
  %v833 = vadd.f32 %v664, %v832
  %v834 = vpop.f32.mrf.mxu0
  %v835 = vadd.f32 %v666, %v834
  %836 = vmatmul.bf16.gmra.mxu0 %v516
  %v837 = vpop.f32.mrf.mxu0
  %v838 = vadd.f32 %v669, %v837
  %v839 = vpop.f32.mrf.mxu0
  %v840 = vadd.f32 %v671, %v839
  %841 = vmatmul.bf16.gmra.mxu0 %v519
  %v842 = vpop.f32.mrf.mxu0
  %v843 = vadd.f32 %v674, %v842
  %v844 = vpop.f32.mrf.mxu0
  %v845 = vadd.f32 %v676, %v844
  %846 = vmatmul.bf16.gmra.mxu0 %v522
  %v847 = vpop.f32.mrf.mxu0
  %v848 = vadd.f32 %v679, %v847
  %v849 = vpop.f32.mrf.mxu0
  %v850 = vadd.f32 %v681, %v849
  %851 = vmatmul.bf16.gmra.mxu0 %v525
  %v852 = vpop.f32.mrf.mxu0
  %v853 = vadd.f32 %v684, %v852
  %v854 = vpop.f32.mrf.mxu0
  %v855 = vadd.f32 %v686, %v854
  %856 = vmatmul.bf16.gmra.mxu0 %v528
  %v857 = vpop.f32.mrf.mxu0
  %v858 = vadd.f32 %v689, %v857
  %v859 = vpop.f32.mrf.mxu0
  %v860 = vadd.f32 %v691, %v859
  %861 = vmatmul.bf16.gmra.mxu0 %v531
  %v862 = vpop.f32.mrf.mxu0
  %v863 = vadd.f32 %v694, %v862
  %v864 = vpop.f32.mrf.mxu0
  %v865 = vadd.f32 %v696, %v864
  %866 = vmatmul.bf16.gmra.mxu0 %v534
  %v867 = vpop.f32.mrf.mxu0
  %v868 = vadd.f32 %v699, %v867
  %v869 = vpop.f32.mrf.mxu0
  %v870 = vadd.f32 %v701, %v869
  %871 = vmatmul.bf16.gmra.mxu0 %v537
  %v872 = vpop.f32.mrf.mxu0
  %v873 = vadd.f32 %v704, %v872
  %v874 = vpop.f32.mrf.mxu0
  %v875 = vadd.f32 %v706, %v874
  %876 = vdwg.mxu0
  %v877 = vld [vmem:[%s2] sm:$0x1]
  %v879 = vperm.slane %v877, 0
  %v881 = vmul.f32 %v718, %v879
  %v882 = vmul.f32 %v720, %v879
  %v883 = vmul.f32 %v723, %v879
  %v884 = vmul.f32 %v725, %v879
  %v885 = vmul.f32 %v728, %v879
  %v886 = vmul.f32 %v730, %v879
  %v887 = vmul.f32 %v733, %v879
  %v888 = vmul.f32 %v735, %v879
  %v889 = vmul.f32 %v738, %v879
  %v890 = vmul.f32 %v740, %v879
  %v891 = vmul.f32 %v743, %v879
  %v892 = vmul.f32 %v745, %v879
  %v893 = vmul.f32 %v748, %v879
  %v894 = vmul.f32 %v750, %v879
  %v895 = vmul.f32 %v753, %v879
  %v896 = vmul.f32 %v755, %v879
  %v897 = vmul.f32 %v758, %v879
  %v898 = vmul.f32 %v760, %v879
  %v899 = vmul.f32 %v763, %v879
  %v900 = vmul.f32 %v765, %v879
  %v901 = vmul.f32 %v768, %v879
  %v902 = vmul.f32 %v770, %v879
  %v903 = vmul.f32 %v773, %v879
  %v904 = vmul.f32 %v775, %v879
  %v905 = vmul.f32 %v778, %v879
  %v906 = vmul.f32 %v780, %v879
  %v907 = vmul.f32 %v783, %v879
  %v908 = vmul.f32 %v785, %v879
  %v909 = vmul.f32 %v788, %v879
  %v910 = vmul.f32 %v790, %v879
  %v911 = vmul.f32 %v793, %v879
  %v912 = vmul.f32 %v795, %v879
  %v913 = vmul.f32 %v798, %v879
  %v914 = vmul.f32 %v800, %v879
  %v915 = vmul.f32 %v803, %v879
  %v916 = vmul.f32 %v805, %v879
  %v917 = vmul.f32 %v808, %v879
  %v918 = vmul.f32 %v810, %v879
  %v919 = vmul.f32 %v813, %v879
  %v920 = vmul.f32 %v815, %v879
  %v921 = vmul.f32 %v818, %v879
  %v922 = vmul.f32 %v820, %v879
  %v923 = vmul.f32 %v823, %v879
  %v924 = vmul.f32 %v825, %v879
  %v925 = vmul.f32 %v828, %v879
  %v926 = vmul.f32 %v830, %v879
  %v927 = vmul.f32 %v833, %v879
  %v928 = vmul.f32 %v835, %v879
  %v929 = vmul.f32 %v838, %v879
  %v930 = vmul.f32 %v840, %v879
  %v931 = vmul.f32 %v843, %v879
  %v932 = vmul.f32 %v845, %v879
  %v933 = vmul.f32 %v848, %v879
  %v934 = vmul.f32 %v850, %v879
  %v935 = vmul.f32 %v853, %v879
  %v936 = vmul.f32 %v855, %v879
  %v937 = vmul.f32 %v858, %v879
  %v938 = vmul.f32 %v860, %v879
  %v939 = vmul.f32 %v863, %v879
  %v940 = vmul.f32 %v865, %v879
  %v941 = vmul.f32 %v868, %v879
  %v942 = vmul.f32 %v870, %v879
  %v943 = vmul.f32 %v873, %v879
  %v944 = vmul.f32 %v875, %v879
  %v945 = vld [vmem:[%s3] sm:$0x1]
  %v947 = vperm.slane %v945, 0
  %v949 = vadd.f32 %v881, %v947
  %v950 = vadd.f32 %v882, %v947
  %v951 = vadd.f32 %v883, %v947
  %v952 = vadd.f32 %v884, %v947
  %v953 = vadd.f32 %v885, %v947
  %v954 = vadd.f32 %v886, %v947
  %v955 = vadd.f32 %v887, %v947
  %v956 = vadd.f32 %v888, %v947
  %v957 = vadd.f32 %v889, %v947
  %v958 = vadd.f32 %v890, %v947
  %v959 = vadd.f32 %v891, %v947
  %v960 = vadd.f32 %v892, %v947
  %v961 = vadd.f32 %v893, %v947
  %v962 = vadd.f32 %v894, %v947
  %v963 = vadd.f32 %v895, %v947
  %v964 = vadd.f32 %v896, %v947
  %v965 = vadd.f32 %v897, %v947
  %v966 = vadd.f32 %v898, %v947
  %v967 = vadd.f32 %v899, %v947
  %v968 = vadd.f32 %v900, %v947
  %v969 = vadd.f32 %v901, %v947
  %v970 = vadd.f32 %v902, %v947
  %v971 = vadd.f32 %v903, %v947
  %v972 = vadd.f32 %v904, %v947
  %v973 = vadd.f32 %v905, %v947
  %v974 = vadd.f32 %v906, %v947
  %v975 = vadd.f32 %v907, %v947
  %v976 = vadd.f32 %v908, %v947
  %v977 = vadd.f32 %v909, %v947
  %v978 = vadd.f32 %v910, %v947
  %v979 = vadd.f32 %v911, %v947
  %v980 = vadd.f32 %v912, %v947
  %v981 = vadd.f32 %v913, %v947
  %v982 = vadd.f32 %v914, %v947
  %v983 = vadd.f32 %v915, %v947
  %v984 = vadd.f32 %v916, %v947
  %v985 = vadd.f32 %v917, %v947
  %v986 = vadd.f32 %v918, %v947
  %v987 = vadd.f32 %v919, %v947
  %v988 = vadd.f32 %v920, %v947
  %v989 = vadd.f32 %v921, %v947
  %v990 = vadd.f32 %v922, %v947
  %v991 = vadd.f32 %v923, %v947
  %v992 = vadd.f32 %v924, %v947
  %v993 = vadd.f32 %v925, %v947
  %v994 = vadd.f32 %v926, %v947
  %v995 = vadd.f32 %v927, %v947
  %v996 = vadd.f32 %v928, %v947
  %v997 = vadd.f32 %v929, %v947
  %v998 = vadd.f32 %v930, %v947
  %v999 = vadd.f32 %v931, %v947
  %v1000 = vadd.f32 %v932, %v947
  %v1001 = vadd.f32 %v933, %v947
  %v1002 = vadd.f32 %v934, %v947
  %v1003 = vadd.f32 %v935, %v947
  %v1004 = vadd.f32 %v936, %v947
  %v1005 = vadd.f32 %v937, %v947
  %v1006 = vadd.f32 %v938, %v947
  %v1007 = vadd.f32 %v939, %v947
  %v1008 = vadd.f32 %v940, %v947
  %v1009 = vadd.f32 %v941, %v947
  %v1010 = vadd.f32 %v942, %v947
  %v1011 = vadd.f32 %v943, %v947
  %v1012 = vadd.f32 %v944, %v947
  %v1013 = vmax.f32 %v949, 0.0
  %v1014 = vmax.f32 %v950, 0.0
  %v1015 = vmax.f32 %v951, 0.0
  %v1016 = vmax.f32 %v952, 0.0
  %v1017 = vmax.f32 %v953, 0.0
  %v1018 = vmax.f32 %v954, 0.0
  %v1019 = vmax.f32 %v955, 0.0
  %v1020 = vmax.f32 %v956, 0.0
  %v1021 = vmax.f32 %v957, 0.0
  %v1022 = vmax.f32 %v958, 0.0
  %v1023 = vmax.f32 %v959, 0.0
  %v1024 = vmax.f32 %v960, 0.0
  %v1025 = vmax.f32 %v961, 0.0
  %v1026 = vmax.f32 %v962, 0.0
  %v1027 = vmax.f32 %v963, 0.0
  %v1028 = vmax.f32 %v964, 0.0
  %v1029 = vmax.f32 %v965, 0.0
  %v1030 = vmax.f32 %v966, 0.0
  %v1031 = vmax.f32 %v967, 0.0
  %v1032 = vmax.f32 %v968, 0.0
  %v1033 = vmax.f32 %v969, 0.0
  %v1034 = vmax.f32 %v970, 0.0
  %v1035 = vmax.f32 %v971, 0.0
  %v1036 = vmax.f32 %v972, 0.0
  %v1037 = vmax.f32 %v973, 0.0
  %v1038 = vmax.f32 %v974, 0.0
  %v1039 = vmax.f32 %v975, 0.0
  %v1040 = vmax.f32 %v976, 0.0
  %v1041 = vmax.f32 %v977, 0.0
  %v1042 = vmax.f32 %v978, 0.0
  %v1043 = vmax.f32 %v979, 0.0
  %v1044 = vmax.f32 %v980, 0.0
  %v1045 = vmax.f32 %v981, 0.0
  %v1046 = vmax.f32 %v982, 0.0
  %v1047 = vmax.f32 %v983, 0.0
  %v1048 = vmax.f32 %v984, 0.0
  %v1049 = vmax.f32 %v985, 0.0
  %v1050 = vmax.f32 %v986, 0.0
  %v1051 = vmax.f32 %v987, 0.0
  %v1052 = vmax.f32 %v988, 0.0
  %v1053 = vmax.f32 %v989, 0.0
  %v1054 = vmax.f32 %v990, 0.0
  %v1055 = vmax.f32 %v991, 0.0
  %v1056 = vmax.f32 %v992, 0.0
  %v1057 = vmax.f32 %v993, 0.0
  %v1058 = vmax.f32 %v994, 0.0
  %v1059 = vmax.f32 %v995, 0.0
  %v1060 = vmax.f32 %v996, 0.0
  %v1061 = vmax.f32 %v997, 0.0
  %v1062 = vmax.f32 %v998, 0.0
  %v1063 = vmax.f32 %v999, 0.0
  %v1064 = vmax.f32 %v1000, 0.0
  %v1065 = vmax.f32 %v1001, 0.0
  %v1066 = vmax.f32 %v1002, 0.0
  %v1067 = vmax.f32 %v1003, 0.0
  %v1068 = vmax.f32 %v1004, 0.0
  %v1069 = vmax.f32 %v1005, 0.0
  %v1070 = vmax.f32 %v1006, 0.0
  %v1071 = vmax.f32 %v1007, 0.0
  %v1072 = vmax.f32 %v1008, 0.0
  %v1073 = vmax.f32 %v1009, 0.0
  %v1074 = vmax.f32 %v1010, 0.0
  %v1075 = vmax.f32 %v1011, 0.0
  %v1076 = vmax.f32 %v1012, 0.0
  %1077 = vst [vmem:[%s4] sm:$0xff] %v1013
  %1078 = vst [vmem:[%s4 + $0x8] sm:$0xff] %v1014
  %1079 = vst [vmem:[%s4 + $0x10] sm:$0xff] %v1015
  %1080 = vst [vmem:[%s4 + $0x18] sm:$0xff] %v1016
  %1081 = vst [vmem:[%s4 + $0x20] sm:$0xff] %v1017
  %1082 = vst [vmem:[%s4 + $0x28] sm:$0xff] %v1018
  %1083 = vst [vmem:[%s4 + $0x30] sm:$0xff] %v1019
  %1084 = vst [vmem:[%s4 + $0x38] sm:$0xff] %v1020
  %1085 = vst [vmem:[%s4 + $0x40] sm:$0xff] %v1021
  %1086 = vst [vmem:[%s4 + $0x48] sm:$0xff] %v1022
  %1087 = vst [vmem:[%s4 + $0x50] sm:$0xff] %v1023
  %1088 = vst [vmem:[%s4 + $0x58] sm:$0xff] %v1024
  %1089 = vst [vmem:[%s4 + $0x60] sm:$0xff] %v1025
  %1090 = vst [vmem:[%s4 + $0x68] sm:$0xff] %v1026
  %1091 = vst [vmem:[%s4 + $0x70] sm:$0xff] %v1027
  %1092 = vst [vmem:[%s4 + $0x78] sm:$0xff] %v1028
  %1093 = vst [vmem:[%s4 + $0x80] sm:$0xff] %v1029
  %1094 = vst [vmem:[%s4 + $0x88] sm:$0xff] %v1030
  %1095 = vst [vmem:[%s4 + $0x90] sm:$0xff] %v1031
  %1096 = vst [vmem:[%s4 + $0x98] sm:$0xff] %v1032
  %1097 = vst [vmem:[%s4 + $0xa0] sm:$0xff] %v1033
  %1098 = vst [vmem:[%s4 + $0xa8] sm:$0xff] %v1034
  %1099 = vst [vmem:[%s4 + $0xb0] sm:$0xff] %v1035
  %1100 = vst [vmem:[%s4 + $0xb8] sm:$0xff] %v1036
  %1101 = vst [vmem:[%s4 + $0xc0] sm:$0xff] %v1037
  %1102 = vst [vmem:[%s4 + $0xc8] sm:$0xff] %v1038
  %1103 = vst [vmem:[%s4 + $0xd0] sm:$0xff] %v1039
  %1104 = vst [vmem:[%s4 + $0xd8] sm:$0xff] %v1040
  %1105 = vst [vmem:[%s4 + $0xe0] sm:$0xff] %v1041
  %1106 = vst [vmem:[%s4 + $0xe8] sm:$0xff] %v1042
  %1107 = vst [vmem:[%s4 + $0xf0] sm:$0xff] %v1043
  %1108 = vst [vmem:[%s4 + $0xf8] sm:$0xff] %v1044
  %1109 = vst [vmem:[%s4 + $0x100] sm:$0xff] %v1045
  %1110 = vst [vmem:[%s4 + $0x108] sm:$0xff] %v1046
  %1111 = vst [vmem:[%s4 + $0x110] sm:$0xff] %v1047
  %1112 = vst [vmem:[%s4 + $0x118] sm:$0xff] %v1048
  %1113 = vst [vmem:[%s4 + $0x120] sm:$0xff] %v1049
  %1114 = vst [vmem:[%s4 + $0x128] sm:$0xff] %v1050
  %1115 = vst [vmem:[%s4 + $0x130] sm:$0xff] %v1051
  %1116 = vst [vmem:[%s4 + $0x138] sm:$0xff] %v1052
  %1117 = vst [vmem:[%s4 + $0x140] sm:$0xff] %v1053
  %1118 = vst [vmem:[%s4 + $0x148] sm:$0xff] %v1054
  %1119 = vst [vmem:[%s4 + $0x150] sm:$0xff] %v1055
  %1120 = vst [vmem:[%s4 + $0x158] sm:$0xff] %v1056
  %1121 = vst [vmem:[%s4 + $0x160] sm:$0xff] %v1057
  %1122 = vst [vmem:[%s4 + $0x168] sm:$0xff] %v1058
  %1123 = vst [vmem:[%s4 + $0x170] sm:$0xff] %v1059
  %1124 = vst [vmem:[%s4 + $0x178] sm:$0xff] %v1060
  %1125 = vst [vmem:[%s4 + $0x180] sm:$0xff] %v1061
  %1126 = vst [vmem:[%s4 + $0x188] sm:$0xff] %v1062
  %1127 = vst [vmem:[%s4 + $0x190] sm:$0xff] %v1063
  %1128 = vst [vmem:[%s4 + $0x198] sm:$0xff] %v1064
  %1129 = vst [vmem:[%s4 + $0x1a0] sm:$0xff] %v1065
  %1130 = vst [vmem:[%s4 + $0x1a8] sm:$0xff] %v1066
  %1131 = vst [vmem:[%s4 + $0x1b0] sm:$0xff] %v1067
  %1132 = vst [vmem:[%s4 + $0x1b8] sm:$0xff] %v1068
  %1133 = vst [vmem:[%s4 + $0x1c0] sm:$0xff] %v1069
  %1134 = vst [vmem:[%s4 + $0x1c8] sm:$0xff] %v1070
  %1135 = vst [vmem:[%s4 + $0x1d0] sm:$0xff] %v1071
  %1136 = vst [vmem:[%s4 + $0x1d8] sm:$0xff] %v1072
  %1137 = vst [vmem:[%s4 + $0x1e0] sm:$0xff] %v1073
  %1138 = vst [vmem:[%s4 + $0x1e8] sm:$0xff] %v1074
  %1139 = vst [vmem:[%s4 + $0x1f0] sm:$0xff] %v1075
  %1140 = vst [vmem:[%s4 + $0x1f8] sm:$0xff] %v1076
  // Predicated region
  $region18: #{_lambda_.23} parent=0 // pred_check
    _
  $region19: #{_lambda_.23} parent=0 // pred_check_branch
    %1142 = sbr.rel (0) target = $region21
  $region20: #{_lambda_.23} parent=0 // pred_region
    _
  $region21: #{_lambda_.23} parent=0 // pred_fallthru
    _
  // Predicated region
  $region22: #{_lambda_.23} parent=0 // pred_check
    _
  $region23: #{_lambda_.23} parent=0 // pred_check_branch
    %1144 = sbr.rel (0) target = $region25
  $region24: #{_lambda_.23} parent=0 // pred_region
    _
  $region25: #{_lambda_.23} parent=0 // pred_fallthru
    _

// kernel: _lambda_.24
$region0: #{_lambda_.24}
  #allocation0 [shape = 'u32[]', space=smem, size = 0x4, offset = 0x4, fixed_abs, tag = 'smem constant byte address 0x4 - core index']
  #allocation1 [shape = 'u32[72,128]{1,0:T(1,128)}', space=vmem, size = 0x9000, scoped, tag = 'internal scratch']
  %s0 = inlined_call_operand.vmem [shape: bf16[512,144], index: 0, kind: input, shape index: {}]
  %s1 = inlined_call_operand.vmem [shape: bf16[144,128], index: 1, kind: input, shape index: {}]
  %s2 = inlined_call_operand.vmem [shape: f32[1,128], index: 2, kind: input, shape index: {}]
  %s3 = inlined_call_operand.vmem [shape: f32[1,128], index: 3, kind: input, shape index: {}]
  %s4 = inlined_call_operand.vmem [shape: f32[512,128], index: 4, kind: input, shape index: {}]
  %s5 = inlined_call_operand.vmem [shape: f32[512,128], index: 5, kind: output, shape index: {}]
  %s6 = sld [smem:[#allocation0]]
  $region30: #{_lambda_.24} parent=0
    _
  %s8 = ssub.s32 1, %s6
  %s9 = scalar_select 0, %s8, %s6
  // Predicated region
  $region2: #{_lambda_.24} parent=0 // pred_check
    _
  $region3: #{_lambda_.24} parent=0 // pred_check_branch
    %11 = sbr.rel (0) target = $region5
  $region4: #{_lambda_.24} parent=0 // pred_region
    _
  $region5: #{_lambda_.24} parent=0 // pred_fallthru
    _
  // Predicated region
  $region6: #{_lambda_.24} parent=0 // pred_check
    _
  $region7: #{_lambda_.24} parent=0 // pred_check_branch
    %13 = sbr.rel (0) target = $region9
  $region8: #{_lambda_.24} parent=0 // pred_region
    _
  $region9: #{_lambda_.24} parent=0 // pred_fallthru
    _
  // Predicated region
  $region10: #{_lambda_.24} parent=0 // pred_check
    _
  $region11: #{_lambda_.24} parent=0 // pred_check_branch
    %15 = sbr.rel (0) target = $region13
  $region12: #{_lambda_.24} parent=0 // pred_region
    _
  $region13: #{_lambda_.24} parent=0 // pred_fallthru
    _
  // Predicated region
  $region14: #{_lambda_.24} parent=0 // pred_check
    _
  $region15: #{_lambda_.24} parent=0 // pred_check_branch
    %17 = sbr.rel (0) target = $region17
  $region16: #{_lambda_.24} parent=0 // pred_region
    _
  $region17: #{_lambda_.24} parent=0 // pred_fallthru
    _
  // Predicated region
  $region18: #{_lambda_.24} parent=0 // pred_check
    _
  $region19: #{_lambda_.24} parent=0 // pred_check_branch
    %19 = sbr.rel (0) target = $region21
  $region20: #{_lambda_.24} parent=0 // pred_region
    _
  $region21: #{_lambda_.24} parent=0 // pred_fallthru
    _
  %v21 = vld [vmem:[%s0] sm:$0xff]
  %v22 = vld [vmem:[%s0 + $0x8] sm:$0xff]
  %v23 = vld [vmem:[%s0 + $0x10] sm:$0xff]
  %v24 = vld [vmem:[%s0 + $0x18] sm:$0xff]
  %v25 = vld [vmem:[%s0 + $0x20] sm:$0xff]
  %v26 = vld [vmem:[%s0 + $0x28] sm:$0xff]
  %v27 = vld [vmem:[%s0 + $0x30] sm:$0xff]
  %v28 = vld [vmem:[%s0 + $0x38] sm:$0xff]
  %v29 = vld [vmem:[%s0 + $0x40] sm:$0xff]
  %v30 = vld [vmem:[%s0 + $0x48] sm:$0xff]
  %v31 = vld [vmem:[%s0 + $0x50] sm:$0xff]
  %v32 = vld [vmem:[%s0 + $0x58] sm:$0xff]
  %v33 = vld [vmem:[%s0 + $0x60] sm:$0xff]
  %v34 = vld [vmem:[%s0 + $0x68] sm:$0xff]
  %v35 = vld [vmem:[%s0 + $0x70] sm:$0xff]
  %v36 = vld [vmem:[%s0 + $0x78] sm:$0xff]
  %v37 = vld [vmem:[%s0 + $0x80] sm:$0xff]
  %v38 = vld [vmem:[%s0 + $0x88] sm:$0xff]
  %v39 = vld [vmem:[%s0 + $0x90] sm:$0xff]
  %v40 = vld [vmem:[%s0 + $0x98] sm:$0xff]
  %v41 = vld [vmem:[%s0 + $0xa0] sm:$0xff]
  %v42 = vld [vmem:[%s0 + $0xa8] sm:$0xff]
  %v43 = vld [vmem:[%s0 + $0xb0] sm:$0xff]
  %v44 = vld [vmem:[%s0 + $0xb8] sm:$0xff]
  %v45 = vld [vmem:[%s0 + $0xc0] sm:$0xff]
  %v46 = vld [vmem:[%s0 + $0xc8] sm:$0xff]
  %v47 = vld [vmem:[%s0 + $0xd0] sm:$0xff]
  %v48 = vld [vmem:[%s0 + $0xd8] sm:$0xff]
  %v49 = vld [vmem:[%s0 + $0xe0] sm:$0xff]
  %v50 = vld [vmem:[%s0 + $0xe8] sm:$0xff]
  %v51 = vld [vmem:[%s0 + $0xf0] sm:$0xff]
  %v52 = vld [vmem:[%s0 + $0xf8] sm:$0xff]
  %v53 = vld [vmem:[%s0 + $0x100] sm:$0xff]
  %v54 = vld [vmem:[%s0 + $0x108] sm:$0xff]
  %v55 = vld [vmem:[%s0 + $0x110] sm:$0xff]
  %v56 = vld [vmem:[%s0 + $0x118] sm:$0xff]
  %v57 = vld [vmem:[%s0 + $0x120] sm:$0xff]
  %v58 = vld [vmem:[%s0 + $0x128] sm:$0xff]
  %v59 = vld [vmem:[%s0 + $0x130] sm:$0xff]
  %v60 = vld [vmem:[%s0 + $0x138] sm:$0xff]
  %v61 = vld [vmem:[%s0 + $0x140] sm:$0xff]
  %v62 = vld [vmem:[%s0 + $0x148] sm:$0xff]
  %v63 = vld [vmem:[%s0 + $0x150] sm:$0xff]
  %v64 = vld [vmem:[%s0 + $0x158] sm:$0xff]
  %v65 = vld [vmem:[%s0 + $0x160] sm:$0xff]
  %v66 = vld [vmem:[%s0 + $0x168] sm:$0xff]
  %v67 = vld [vmem:[%s0 + $0x170] sm:$0xff]
  %v68 = vld [vmem:[%s0 + $0x178] sm:$0xff]
  %v69 = vld [vmem:[%s0 + $0x180] sm:$0xff]
  %v70 = vld [vmem:[%s0 + $0x188] sm:$0xff]
  %v71 = vld [vmem:[%s0 + $0x190] sm:$0xff]
  %v72 = vld [vmem:[%s0 + $0x198] sm:$0xff]
  %v73 = vld [vmem:[%s0 + $0x1a0] sm:$0xff]
  %v74 = vld [vmem:[%s0 + $0x1a8] sm:$0xff]
  %v75 = vld [vmem:[%s0 + $0x1b0] sm:$0xff]
  %v76 = vld [vmem:[%s0 + $0x1b8] sm:$0xff]
  %v77 = vld [vmem:[%s0 + $0x1c0] sm:$0xff]
  %v78 = vld [vmem:[%s0 + $0x1c8] sm:$0xff]
  %v79 = vld [vmem:[%s0 + $0x1d0] sm:$0xff]
  %v80 = vld [vmem:[%s0 + $0x1d8] sm:$0xff]
  %v81 = vld [vmem:[%s0 + $0x1e0] sm:$0xff]
  %v82 = vld [vmem:[%s0 + $0x1e8] sm:$0xff]
  %v83 = vld [vmem:[%s0 + $0x1f0] sm:$0xff]
  %v84 = vld [vmem:[%s0 + $0x1f8] sm:$0xff]
  %v85 = vld [vmem:[%s1] sm:$0xf]
  %v86 = vld [vmem:[%s1 + $0x4] sm:$0xf]
  %v87 = vld [vmem:[%s1 + $0x8] sm:$0xf]
  %v88 = vld [vmem:[%s1 + $0xc] sm:$0xf]
  %v89 = vld [vmem:[%s1 + $0x10] sm:$0xf]
  %v90 = vld [vmem:[%s1 + $0x14] sm:$0xf]
  %v91 = vld [vmem:[%s1 + $0x18] sm:$0xf]
  %v92 = vld [vmem:[%s1 + $0x1c] sm:$0xf]
  %v93 = vld [vmem:[%s1 + $0x20] sm:$0xf]
  %v94 = vld [vmem:[%s1 + $0x24] sm:$0xf]
  %v95 = vld [vmem:[%s1 + $0x28] sm:$0xf]
  %v96 = vld [vmem:[%s1 + $0x2c] sm:$0xf]
  %v97 = vld [vmem:[%s1 + $0x30] sm:$0xf]
  %v98 = vld [vmem:[%s1 + $0x34] sm:$0xf]
  %v99 = vld [vmem:[%s1 + $0x38] sm:$0xf]
  %v100 = vld [vmem:[%s1 + $0x3c] sm:$0xf]
  %v101 = vld [vmem:[%s1 + $0x40] sm:$0xf]
  %v102 = vld [vmem:[%s1 + $0x44] sm:$0xf]
  %v167 = vunpack.c.l.b16 %v21
  %v168 = vunpack.c.h.b16 %v21
  %v169 = vunpack.c.l.b16 %v22
  %v170 = vunpack.c.h.b16 %v22
  %v171 = vunpack.c.l.b16 %v23
  %v172 = vunpack.c.h.b16 %v23
  %v173 = vunpack.c.l.b16 %v24
  %v174 = vunpack.c.h.b16 %v24
  %v175 = vunpack.c.l.b16 %v25
  %v176 = vunpack.c.h.b16 %v25
  %v177 = vunpack.c.l.b16 %v26
  %v178 = vunpack.c.h.b16 %v26
  %v179 = vunpack.c.l.b16 %v27
  %v180 = vunpack.c.h.b16 %v27
  %v181 = vunpack.c.l.b16 %v28
  %v182 = vunpack.c.h.b16 %v28
  %v183 = vunpack.c.l.b16 %v29
  %v184 = vunpack.c.h.b16 %v29
  %v185 = vunpack.c.l.b16 %v30
  %v186 = vunpack.c.h.b16 %v30
  %v187 = vunpack.c.l.b16 %v31
  %v188 = vunpack.c.h.b16 %v31
  %v189 = vunpack.c.l.b16 %v32
  %v190 = vunpack.c.h.b16 %v32
  %v191 = vunpack.c.l.b16 %v33
  %v192 = vunpack.c.h.b16 %v33
  %v193 = vunpack.c.l.b16 %v34
  %v194 = vunpack.c.h.b16 %v34
  %v195 = vunpack.c.l.b16 %v35
  %v196 = vunpack.c.h.b16 %v35
  %v197 = vunpack.c.l.b16 %v36
  %v198 = vunpack.c.h.b16 %v36
  %v199 = vunpack.c.l.b16 %v37
  %v200 = vunpack.c.h.b16 %v37
  %v201 = vunpack.c.l.b16 %v38
  %v202 = vunpack.c.h.b16 %v38
  %v203 = vunpack.c.l.b16 %v39
  %v204 = vunpack.c.h.b16 %v39
  %v205 = vunpack.c.l.b16 %v40
  %v206 = vunpack.c.h.b16 %v40
  %v207 = vunpack.c.l.b16 %v41
  %v208 = vunpack.c.h.b16 %v41
  %v209 = vunpack.c.l.b16 %v42
  %v210 = vunpack.c.h.b16 %v42
  %v211 = vunpack.c.l.b16 %v43
  %v212 = vunpack.c.h.b16 %v43
  %v213 = vunpack.c.l.b16 %v44
  %v214 = vunpack.c.h.b16 %v44
  %v215 = vunpack.c.l.b16 %v45
  %v216 = vunpack.c.h.b16 %v45
  %v217 = vunpack.c.l.b16 %v46
  %v218 = vunpack.c.h.b16 %v46
  %v219 = vunpack.c.l.b16 %v47
  %v220 = vunpack.c.h.b16 %v47
  %v221 = vunpack.c.l.b16 %v48
  %v222 = vunpack.c.h.b16 %v48
  %v223 = vunpack.c.l.b16 %v49
  %v224 = vunpack.c.h.b16 %v49
  %v225 = vunpack.c.l.b16 %v50
  %v226 = vunpack.c.h.b16 %v50
  %v227 = vunpack.c.l.b16 %v51
  %v228 = vunpack.c.h.b16 %v51
  %v229 = vunpack.c.l.b16 %v52
  %v230 = vunpack.c.h.b16 %v52
  %v231 = vunpack.c.l.b16 %v53
  %v232 = vunpack.c.h.b16 %v53
  %v233 = vunpack.c.l.b16 %v54
  %v234 = vunpack.c.h.b16 %v54
  %v235 = vunpack.c.l.b16 %v55
  %v236 = vunpack.c.h.b16 %v55
  %v237 = vunpack.c.l.b16 %v56
  %v238 = vunpack.c.h.b16 %v56
  %v239 = vunpack.c.l.b16 %v57
  %v240 = vunpack.c.h.b16 %v57
  %v241 = vunpack.c.l.b16 %v58
  %v242 = vunpack.c.h.b16 %v58
  %v243 = vunpack.c.l.b16 %v59
  %v244 = vunpack.c.h.b16 %v59
  %v245 = vunpack.c.l.b16 %v60
  %v246 = vunpack.c.h.b16 %v60
  %v247 = vunpack.c.l.b16 %v61
  %v248 = vunpack.c.h.b16 %v61
  %v249 = vunpack.c.l.b16 %v62
  %v250 = vunpack.c.h.b16 %v62
  %v251 = vunpack.c.l.b16 %v63
  %v252 = vunpack.c.h.b16 %v63
  %v253 = vunpack.c.l.b16 %v64
  %v254 = vunpack.c.h.b16 %v64
  %v255 = vunpack.c.l.b16 %v65
  %v256 = vunpack.c.h.b16 %v65
  %v257 = vunpack.c.l.b16 %v66
  %v258 = vunpack.c.h.b16 %v66
  %v259 = vunpack.c.l.b16 %v67
  %v260 = vunpack.c.h.b16 %v67
  %v261 = vunpack.c.l.b16 %v68
  %v262 = vunpack.c.h.b16 %v68
  %v263 = vunpack.c.l.b16 %v69
  %v264 = vunpack.c.h.b16 %v69
  %v265 = vunpack.c.l.b16 %v70
  %v266 = vunpack.c.h.b16 %v70
  %v267 = vunpack.c.l.b16 %v71
  %v268 = vunpack.c.h.b16 %v71
  %v269 = vunpack.c.l.b16 %v72
  %v270 = vunpack.c.h.b16 %v72
  %v271 = vunpack.c.l.b16 %v73
  %v272 = vunpack.c.h.b16 %v73
  %v273 = vunpack.c.l.b16 %v74
  %v274 = vunpack.c.h.b16 %v74
  %v275 = vunpack.c.l.b16 %v75
  %v276 = vunpack.c.h.b16 %v75
  %v277 = vunpack.c.l.b16 %v76
  %v278 = vunpack.c.h.b16 %v76
  %v279 = vunpack.c.l.b16 %v77
  %v280 = vunpack.c.h.b16 %v77
  %v281 = vunpack.c.l.b16 %v78
  %v282 = vunpack.c.h.b16 %v78
  %v283 = vunpack.c.l.b16 %v79
  %v284 = vunpack.c.h.b16 %v79
  %v285 = vunpack.c.l.b16 %v80
  %v286 = vunpack.c.h.b16 %v80
  %v287 = vunpack.c.l.b16 %v81
  %v288 = vunpack.c.h.b16 %v81
  %v289 = vunpack.c.l.b16 %v82
  %v290 = vunpack.c.h.b16 %v82
  %v291 = vunpack.c.l.b16 %v83
  %v292 = vunpack.c.h.b16 %v83
  %v293 = vunpack.c.l.b16 %v84
  %v294 = vunpack.c.h.b16 %v84
  %v295 = vpack.c.b16 %v169, %v167
  %v296 = vpack.c.b16 %v170, %v168
  %v297 = vpack.c.b16 %v173, %v171
  %v298 = vpack.c.b16 %v174, %v172
  %v299 = vpack.c.b16 %v177, %v175
  %v300 = vpack.c.b16 %v178, %v176
  %v301 = vpack.c.b16 %v181, %v179
  %v302 = vpack.c.b16 %v182, %v180
  %v303 = vpack.c.b16 %v185, %v183
  %v304 = vpack.c.b16 %v186, %v184
  %v305 = vpack.c.b16 %v189, %v187
  %v306 = vpack.c.b16 %v190, %v188
  %v307 = vpack.c.b16 %v193, %v191
  %v308 = vpack.c.b16 %v194, %v192
  %v309 = vpack.c.b16 %v197, %v195
  %v310 = vpack.c.b16 %v198, %v196
  %v311 = vpack.c.b16 %v201, %v199
  %v312 = vpack.c.b16 %v202, %v200
  %v313 = vpack.c.b16 %v205, %v203
  %v314 = vpack.c.b16 %v206, %v204
  %v315 = vpack.c.b16 %v209, %v207
  %v316 = vpack.c.b16 %v210, %v208
  %v317 = vpack.c.b16 %v213, %v211
  %v318 = vpack.c.b16 %v214, %v212
  %v319 = vpack.c.b16 %v217, %v215
  %v320 = vpack.c.b16 %v218, %v216
  %v321 = vpack.c.b16 %v221, %v219
  %v322 = vpack.c.b16 %v222, %v220
  %v323 = vpack.c.b16 %v225, %v223
  %v324 = vpack.c.b16 %v226, %v224
  %v325 = vpack.c.b16 %v229, %v227
  %v326 = vpack.c.b16 %v230, %v228
  %v327 = vpack.c.b16 %v233, %v231
  %v328 = vpack.c.b16 %v234, %v232
  %v329 = vpack.c.b16 %v237, %v235
  %v330 = vpack.c.b16 %v238, %v236
  %v331 = vpack.c.b16 %v241, %v239
  %v332 = vpack.c.b16 %v242, %v240
  %v333 = vpack.c.b16 %v245, %v243
  %v334 = vpack.c.b16 %v246, %v244
  %v335 = vpack.c.b16 %v249, %v247
  %v336 = vpack.c.b16 %v250, %v248
  %v337 = vpack.c.b16 %v253, %v251
  %v338 = vpack.c.b16 %v254, %v252
  %v339 = vpack.c.b16 %v257, %v255
  %v340 = vpack.c.b16 %v258, %v256
  %v341 = vpack.c.b16 %v261, %v259
  %v342 = vpack.c.b16 %v262, %v260
  %v343 = vpack.c.b16 %v265, %v263
  %v344 = vpack.c.b16 %v266, %v264
  %v345 = vpack.c.b16 %v269, %v267
  %v346 = vpack.c.b16 %v270, %v268
  %v347 = vpack.c.b16 %v273, %v271
  %v348 = vpack.c.b16 %v274, %v272
  %v349 = vpack.c.b16 %v277, %v275
  %v350 = vpack.c.b16 %v278, %v276
  %v351 = vpack.c.b16 %v281, %v279
  %v352 = vpack.c.b16 %v282, %v280
  %v353 = vpack.c.b16 %v285, %v283
  %v354 = vpack.c.b16 %v286, %v284
  %v355 = vpack.c.b16 %v289, %v287
  %v356 = vpack.c.b16 %v290, %v288
  %v357 = vpack.c.b16 %v293, %v291
  %v358 = vpack.c.b16 %v294, %v292
  %v409 = vunpack.c.l.b16 %v85
  %v410 = vunpack.c.l.b16 %v86
  %v411 = vunpack.c.l.b16 %v87
  %v412 = vunpack.c.l.b16 %v88
  %v413 = vunpack.c.l.b16 %v89
  %v414 = vunpack.c.l.b16 %v90
  %v415 = vunpack.c.l.b16 %v91
  %v416 = vunpack.c.l.b16 %v92
  %v417 = vunpack.c.l.b16 %v93
  %v418 = vunpack.c.l.b16 %v94
  %v419 = vunpack.c.l.b16 %v95
  %v420 = vunpack.c.l.b16 %v96
  %v421 = vunpack.c.l.b16 %v97
  %v422 = vunpack.c.l.b16 %v98
  %v423 = vunpack.c.l.b16 %v99
  %v424 = vunpack.c.l.b16 %v100
  %v425 = vunpack.c.l.b16 %v101
  %v426 = vunpack.c.l.b16 %v102
  %v427 = vpack.c.b16 %v410, %v409
  %v428 = vpack.c.b16 %v412, %v411
  %v429 = vpack.c.b16 %v414, %v413
  %v430 = vpack.c.b16 %v416, %v415
  %v431 = vpack.c.b16 %v418, %v417
  %v432 = vpack.c.b16 %v420, %v419
  %v433 = vpack.c.b16 %v422, %v421
  %v434 = vpack.c.b16 %v424, %v423
  %v435 = vpack.c.b16 %v426, %v425
  %vm445 = vcmask 130048
  %v447 = vsel %vm445, %v296, 0
  %v450 = vsel %vm445, %v298, 0
  %v453 = vsel %vm445, %v300, 0
  %v456 = vsel %vm445, %v302, 0
  %v459 = vsel %vm445, %v304, 0
  %v462 = vsel %vm445, %v306, 0
  %v465 = vsel %vm445, %v308, 0
  %v468 = vsel %vm445, %v310, 0
  %v471 = vsel %vm445, %v312, 0
  %v474 = vsel %vm445, %v314, 0
  %v477 = vsel %vm445, %v316, 0
  %v480 = vsel %vm445, %v318, 0
  %v483 = vsel %vm445, %v320, 0
  %v486 = vsel %vm445, %v322, 0
  %v489 = vsel %vm445, %v324, 0
  %v492 = vsel %vm445, %v326, 0
  %v495 = vsel %vm445, %v328, 0
  %v498 = vsel %vm445, %v330, 0
  %v501 = vsel %vm445, %v332, 0
  %v504 = vsel %vm445, %v334, 0
  %v507 = vsel %vm445, %v336, 0
  %v510 = vsel %vm445, %v338, 0
  %v513 = vsel %vm445, %v340, 0
  %v516 = vsel %vm445, %v342, 0
  %v519 = vsel %vm445, %v344, 0
  %v522 = vsel %vm445, %v346, 0
  %v525 = vsel %vm445, %v348, 0
  %v528 = vsel %vm445, %v350, 0
  %v531 = vsel %vm445, %v352, 0
  %v534 = vsel %vm445, %v354, 0
  %v537 = vsel %vm445, %v356, 0
  %v540 = vsel %vm445, %v358, 0
  %542 = vmatpush.bf16.msra.mxu0 %v434
  %543 = vmatpush.bf16.msra.mxu0 %v433
  %544 = vmatpush.bf16.msra.mxu0 %v432
  %545 = vmatpush.bf16.msra.mxu0 %v431
  %546 = vmatpush.bf16.msra.mxu0 %v430
  %547 = vmatpush.bf16.msra.mxu0 %v429
  %548 = vmatpush.bf16.msra.mxu0 %v428
  %549 = vmatpush.bf16.msra.mxu0 %v427
  %550 = vmatmul.bf16.gmra.mxu0 %v295
  %v551 = vpop.f32.mrf.mxu0
  %v552 = vadd.f32 0.0, %v551
  %v553 = vpop.f32.mrf.mxu0
  %v554 = vadd.f32 0.0, %v553
  %555 = vmatmul.bf16.gmra.mxu0 %v297
  %v556 = vpop.f32.mrf.mxu0
  %v557 = vadd.f32 0.0, %v556
  %v558 = vpop.f32.mrf.mxu0
  %v559 = vadd.f32 0.0, %v558
  %560 = vmatmul.bf16.gmra.mxu0 %v299
  %v561 = vpop.f32.mrf.mxu0
  %v562 = vadd.f32 0.0, %v561
  %v563 = vpop.f32.mrf.mxu0
  %v564 = vadd.f32 0.0, %v563
  %565 = vmatmul.bf16.gmra.mxu0 %v301
  %v566 = vpop.f32.mrf.mxu0
  %v567 = vadd.f32 0.0, %v566
  %v568 = vpop.f32.mrf.mxu0
  %v569 = vadd.f32 0.0, %v568
  %570 = vmatmul.bf16.gmra.mxu0 %v303
  %v571 = vpop.f32.mrf.mxu0
  %v572 = vadd.f32 0.0, %v571
  %v573 = vpop.f32.mrf.mxu0
  %v574 = vadd.f32 0.0, %v573
  %575 = vmatmul.bf16.gmra.mxu0 %v305
  %v576 = vpop.f32.mrf.mxu0
  %v577 = vadd.f32 0.0, %v576
  %v578 = vpop.f32.mrf.mxu0
  %v579 = vadd.f32 0.0, %v578
  %580 = vmatmul.bf16.gmra.mxu0 %v307
  %v581 = vpop.f32.mrf.mxu0
  %v582 = vadd.f32 0.0, %v581
  %v583 = vpop.f32.mrf.mxu0
  %v584 = vadd.f32 0.0, %v583
  %585 = vmatmul.bf16.gmra.mxu0 %v309
  %v586 = vpop.f32.mrf.mxu0
  %v587 = vadd.f32 0.0, %v586
  %v588 = vpop.f32.mrf.mxu0
  %v589 = vadd.f32 0.0, %v588
  %590 = vmatmul.bf16.gmra.mxu0 %v311
  %v591 = vpop.f32.mrf.mxu0
  %v592 = vadd.f32 0.0, %v591
  %v593 = vpop.f32.mrf.mxu0
  %v594 = vadd.f32 0.0, %v593
  %595 = vmatmul.bf16.gmra.mxu0 %v313
  %v596 = vpop.f32.mrf.mxu0
  %v597 = vadd.f32 0.0, %v596
  %v598 = vpop.f32.mrf.mxu0
  %v599 = vadd.f32 0.0, %v598
  %600 = vmatmul.bf16.gmra.mxu0 %v315
  %v601 = vpop.f32.mrf.mxu0
  %v602 = vadd.f32 0.0, %v601
  %v603 = vpop.f32.mrf.mxu0
  %v604 = vadd.f32 0.0, %v603
  %605 = vmatmul.bf16.gmra.mxu0 %v317
  %v606 = vpop.f32.mrf.mxu0
  %v607 = vadd.f32 0.0, %v606
  %v608 = vpop.f32.mrf.mxu0
  %v609 = vadd.f32 0.0, %v608
  %610 = vmatmul.bf16.gmra.mxu0 %v319
  %v611 = vpop.f32.mrf.mxu0
  %v612 = vadd.f32 0.0, %v611
  %v613 = vpop.f32.mrf.mxu0
  %v614 = vadd.f32 0.0, %v613
  %615 = vmatmul.bf16.gmra.mxu0 %v321
  %v616 = vpop.f32.mrf.mxu0
  %v617 = vadd.f32 0.0, %v616
  %v618 = vpop.f32.mrf.mxu0
  %v619 = vadd.f32 0.0, %v618
  %620 = vmatmul.bf16.gmra.mxu0 %v323
  %v621 = vpop.f32.mrf.mxu0
  %v622 = vadd.f32 0.0, %v621
  %v623 = vpop.f32.mrf.mxu0
  %v624 = vadd.f32 0.0, %v623
  %625 = vmatmul.bf16.gmra.mxu0 %v325
  %v626 = vpop.f32.mrf.mxu0
  %v627 = vadd.f32 0.0, %v626
  %v628 = vpop.f32.mrf.mxu0
  %v629 = vadd.f32 0.0, %v628
  %630 = vmatmul.bf16.gmra.mxu0 %v327
  %v631 = vpop.f32.mrf.mxu0
  %v632 = vadd.f32 0.0, %v631
  %v633 = vpop.f32.mrf.mxu0
  %v634 = vadd.f32 0.0, %v633
  %635 = vmatmul.bf16.gmra.mxu0 %v329
  %v636 = vpop.f32.mrf.mxu0
  %v637 = vadd.f32 0.0, %v636
  %v638 = vpop.f32.mrf.mxu0
  %v639 = vadd.f32 0.0, %v638
  %640 = vmatmul.bf16.gmra.mxu0 %v331
  %v641 = vpop.f32.mrf.mxu0
  %v642 = vadd.f32 0.0, %v641
  %v643 = vpop.f32.mrf.mxu0
  %v644 = vadd.f32 0.0, %v643
  %645 = vmatmul.bf16.gmra.mxu0 %v333
  %v646 = vpop.f32.mrf.mxu0
  %v647 = vadd.f32 0.0, %v646
  %v648 = vpop.f32.mrf.mxu0
  %v649 = vadd.f32 0.0, %v648
  %650 = vmatmul.bf16.gmra.mxu0 %v335
  %v651 = vpop.f32.mrf.mxu0
  %v652 = vadd.f32 0.0, %v651
  %v653 = vpop.f32.mrf.mxu0
  %v654 = vadd.f32 0.0, %v653
  %655 = vmatmul.bf16.gmra.mxu0 %v337
  %v656 = vpop.f32.mrf.mxu0
  %v657 = vadd.f32 0.0, %v656
  %v658 = vpop.f32.mrf.mxu0
  %v659 = vadd.f32 0.0, %v658
  %660 = vmatmul.bf16.gmra.mxu0 %v339
  %v661 = vpop.f32.mrf.mxu0
  %v662 = vadd.f32 0.0, %v661
  %v663 = vpop.f32.mrf.mxu0
  %v664 = vadd.f32 0.0, %v663
  %665 = vmatmul.bf16.gmra.mxu0 %v341
  %v666 = vpop.f32.mrf.mxu0
  %v667 = vadd.f32 0.0, %v666
  %v668 = vpop.f32.mrf.mxu0
  %v669 = vadd.f32 0.0, %v668
  %670 = vmatmul.bf16.gmra.mxu0 %v343
  %v671 = vpop.f32.mrf.mxu0
  %v672 = vadd.f32 0.0, %v671
  %v673 = vpop.f32.mrf.mxu0
  %v674 = vadd.f32 0.0, %v673
  %675 = vmatmul.bf16.gmra.mxu0 %v345
  %v676 = vpop.f32.mrf.mxu0
  %v677 = vadd.f32 0.0, %v676
  %v678 = vpop.f32.mrf.mxu0
  %v679 = vadd.f32 0.0, %v678
  %680 = vmatmul.bf16.gmra.mxu0 %v347
  %v681 = vpop.f32.mrf.mxu0
  %v682 = vadd.f32 0.0, %v681
  %v683 = vpop.f32.mrf.mxu0
  %v684 = vadd.f32 0.0, %v683
  %685 = vmatmul.bf16.gmra.mxu0 %v349
  %v686 = vpop.f32.mrf.mxu0
  %v687 = vadd.f32 0.0, %v686
  %v688 = vpop.f32.mrf.mxu0
  %v689 = vadd.f32 0.0, %v688
  %690 = vmatmul.bf16.gmra.mxu0 %v351
  %v691 = vpop.f32.mrf.mxu0
  %v692 = vadd.f32 0.0, %v691
  %v693 = vpop.f32.mrf.mxu0
  %v694 = vadd.f32 0.0, %v693
  %695 = vmatmul.bf16.gmra.mxu0 %v353
  %v696 = vpop.f32.mrf.mxu0
  %v697 = vadd.f32 0.0, %v696
  %v698 = vpop.f32.mrf.mxu0
  %v699 = vadd.f32 0.0, %v698
  %700 = vmatmul.bf16.gmra.mxu0 %v355
  %v701 = vpop.f32.mrf.mxu0
  %v702 = vadd.f32 0.0, %v701
  %v703 = vpop.f32.mrf.mxu0
  %v704 = vadd.f32 0.0, %v703
  %705 = vmatmul.bf16.gmra.mxu0 %v357
  %v706 = vpop.f32.mrf.mxu0
  %v707 = vadd.f32 0.0, %v706
  %v708 = vpop.f32.mrf.mxu0
  %v709 = vadd.f32 0.0, %v708
  %710 = vdwg.mxu0
  %711 = vmatpush.bf16.msra.mxu0 0
  %712 = vmatpush.bf16.msra.mxu0 0
  %713 = vmatpush.bf16.msra.mxu0 0
  %714 = vmatpush.bf16.msra.mxu0 0
  %715 = vmatpush.bf16.msra.mxu0 0
  %716 = vmatpush.bf16.msra.mxu0 0
  %717 = vmatpush.bf16.msra.mxu0 0
  %718 = vmatpush.bf16.msra.mxu0 %v435
  %719 = vmatmul.bf16.gmra.mxu0 %v447
  %v720 = vpop.f32.mrf.mxu0
  %v721 = vadd.f32 %v552, %v720
  %v722 = vpop.f32.mrf.mxu0
  %v723 = vadd.f32 %v554, %v722
  %724 = vmatmul.bf16.gmra.mxu0 %v450
  %v725 = vpop.f32.mrf.mxu0
  %v726 = vadd.f32 %v557, %v725
  %v727 = vpop.f32.mrf.mxu0
  %v728 = vadd.f32 %v559, %v727
  %729 = vmatmul.bf16.gmra.mxu0 %v453
  %v730 = vpop.f32.mrf.mxu0
  %v731 = vadd.f32 %v562, %v730
  %v732 = vpop.f32.mrf.mxu0
  %v733 = vadd.f32 %v564, %v732
  %734 = vmatmul.bf16.gmra.mxu0 %v456
  %v735 = vpop.f32.mrf.mxu0
  %v736 = vadd.f32 %v567, %v735
  %v737 = vpop.f32.mrf.mxu0
  %v738 = vadd.f32 %v569, %v737
  %739 = vmatmul.bf16.gmra.mxu0 %v459
  %v740 = vpop.f32.mrf.mxu0
  %v741 = vadd.f32 %v572, %v740
  %v742 = vpop.f32.mrf.mxu0
  %v743 = vadd.f32 %v574, %v742
  %744 = vmatmul.bf16.gmra.mxu0 %v462
  %v745 = vpop.f32.mrf.mxu0
  %v746 = vadd.f32 %v577, %v745
  %v747 = vpop.f32.mrf.mxu0
  %v748 = vadd.f32 %v579, %v747
  %749 = vmatmul.bf16.gmra.mxu0 %v465
  %v750 = vpop.f32.mrf.mxu0
  %v751 = vadd.f32 %v582, %v750
  %v752 = vpop.f32.mrf.mxu0
  %v753 = vadd.f32 %v584, %v752
  %754 = vmatmul.bf16.gmra.mxu0 %v468
  %v755 = vpop.f32.mrf.mxu0
  %v756 = vadd.f32 %v587, %v755
  %v757 = vpop.f32.mrf.mxu0
  %v758 = vadd.f32 %v589, %v757
  %759 = vmatmul.bf16.gmra.mxu0 %v471
  %v760 = vpop.f32.mrf.mxu0
  %v761 = vadd.f32 %v592, %v760
  %v762 = vpop.f32.mrf.mxu0
  %v763 = vadd.f32 %v594, %v762
  %764 = vmatmul.bf16.gmra.mxu0 %v474
  %v765 = vpop.f32.mrf.mxu0
  %v766 = vadd.f32 %v597, %v765
  %v767 = vpop.f32.mrf.mxu0
  %v768 = vadd.f32 %v599, %v767
  %769 = vmatmul.bf16.gmra.mxu0 %v477
  %v770 = vpop.f32.mrf.mxu0
  %v771 = vadd.f32 %v602, %v770
  %v772 = vpop.f32.mrf.mxu0
  %v773 = vadd.f32 %v604, %v772
  %774 = vmatmul.bf16.gmra.mxu0 %v480
  %v775 = vpop.f32.mrf.mxu0
  %v776 = vadd.f32 %v607, %v775
  %v777 = vpop.f32.mrf.mxu0
  %v778 = vadd.f32 %v609, %v777
  %779 = vmatmul.bf16.gmra.mxu0 %v483
  %v780 = vpop.f32.mrf.mxu0
  %v781 = vadd.f32 %v612, %v780
  %v782 = vpop.f32.mrf.mxu0
  %v783 = vadd.f32 %v614, %v782
  %784 = vmatmul.bf16.gmra.mxu0 %v486
  %v785 = vpop.f32.mrf.mxu0
  %v786 = vadd.f32 %v617, %v785
  %v787 = vpop.f32.mrf.mxu0
  %v788 = vadd.f32 %v619, %v787
  %789 = vmatmul.bf16.gmra.mxu0 %v489
  %v790 = vpop.f32.mrf.mxu0
  %v791 = vadd.f32 %v622, %v790
  %v792 = vpop.f32.mrf.mxu0
  %v793 = vadd.f32 %v624, %v792
  %794 = vmatmul.bf16.gmra.mxu0 %v492
  %v795 = vpop.f32.mrf.mxu0
  %v796 = vadd.f32 %v627, %v795
  %v797 = vpop.f32.mrf.mxu0
  %v798 = vadd.f32 %v629, %v797
  %799 = vmatmul.bf16.gmra.mxu0 %v495
  %v800 = vpop.f32.mrf.mxu0
  %v801 = vadd.f32 %v632, %v800
  %v802 = vpop.f32.mrf.mxu0
  %v803 = vadd.f32 %v634, %v802
  %804 = vmatmul.bf16.gmra.mxu0 %v498
  %v805 = vpop.f32.mrf.mxu0
  %v806 = vadd.f32 %v637, %v805
  %v807 = vpop.f32.mrf.mxu0
  %v808 = vadd.f32 %v639, %v807
  %809 = vmatmul.bf16.gmra.mxu0 %v501
  %v810 = vpop.f32.mrf.mxu0
  %v811 = vadd.f32 %v642, %v810
  %v812 = vpop.f32.mrf.mxu0
  %v813 = vadd.f32 %v644, %v812
  %814 = vmatmul.bf16.gmra.mxu0 %v504
  %v815 = vpop.f32.mrf.mxu0
  %v816 = vadd.f32 %v647, %v815
  %v817 = vpop.f32.mrf.mxu0
  %v818 = vadd.f32 %v649, %v817
  %819 = vmatmul.bf16.gmra.mxu0 %v507
  %v820 = vpop.f32.mrf.mxu0
  %v821 = vadd.f32 %v652, %v820
  %v822 = vpop.f32.mrf.mxu0
  %v823 = vadd.f32 %v654, %v822
  %824 = vmatmul.bf16.gmra.mxu0 %v510
  %v825 = vpop.f32.mrf.mxu0
  %v826 = vadd.f32 %v657, %v825
  %v827 = vpop.f32.mrf.mxu0
  %v828 = vadd.f32 %v659, %v827
  %829 = vmatmul.bf16.gmra.mxu0 %v513
  %v830 = vpop.f32.mrf.mxu0
  %v831 = vadd.f32 %v662, %v830
  %v832 = vpop.f32.mrf.mxu0
  %v833 = vadd.f32 %v664, %v832
  %834 = vmatmul.bf16.gmra.mxu0 %v516
  %v835 = vpop.f32.mrf.mxu0
  %v836 = vadd.f32 %v667, %v835
  %v837 = vpop.f32.mrf.mxu0
  %v838 = vadd.f32 %v669, %v837
  %839 = vmatmul.bf16.gmra.mxu0 %v519
  %v840 = vpop.f32.mrf.mxu0
  %v841 = vadd.f32 %v672, %v840
  %v842 = vpop.f32.mrf.mxu0
  %v843 = vadd.f32 %v674, %v842
  %844 = vmatmul.bf16.gmra.mxu0 %v522
  %v845 = vpop.f32.mrf.mxu0
  %v846 = vadd.f32 %v677, %v845
  %v847 = vpop.f32.mrf.mxu0
  %v848 = vadd.f32 %v679, %v847
  %849 = vmatmul.bf16.gmra.mxu0 %v525
  %v850 = vpop.f32.mrf.mxu0
  %v851 = vadd.f32 %v682, %v850
  %v852 = vpop.f32.mrf.mxu0
  %v853 = vadd.f32 %v684, %v852
  %854 = vmatmul.bf16.gmra.mxu0 %v528
  %v855 = vpop.f32.mrf.mxu0
  %v856 = vadd.f32 %v687, %v855
  %v857 = vpop.f32.mrf.mxu0
  %v858 = vadd.f32 %v689, %v857
  %859 = vmatmul.bf16.gmra.mxu0 %v531
  %v860 = vpop.f32.mrf.mxu0
  %v861 = vadd.f32 %v692, %v860
  %v862 = vpop.f32.mrf.mxu0
  %v863 = vadd.f32 %v694, %v862
  %864 = vmatmul.bf16.gmra.mxu0 %v534
  %v865 = vpop.f32.mrf.mxu0
  %v866 = vadd.f32 %v697, %v865
  %v867 = vpop.f32.mrf.mxu0
  %v868 = vadd.f32 %v699, %v867
  %869 = vmatmul.bf16.gmra.mxu0 %v537
  %v870 = vpop.f32.mrf.mxu0
  %v871 = vadd.f32 %v702, %v870
  %v872 = vpop.f32.mrf.mxu0
  %v873 = vadd.f32 %v704, %v872
  %874 = vmatmul.bf16.gmra.mxu0 %v540
  %v875 = vpop.f32.mrf.mxu0
  %v876 = vadd.f32 %v707, %v875
  %v877 = vpop.f32.mrf.mxu0
  %v878 = vadd.f32 %v709, %v877
  %879 = vdwg.mxu0
  %v880 = vld [vmem:[%s2] sm:$0x1]
  %v882 = vperm.slane %v880, 0
  %v884 = vmul.f32 %v721, %v882
  %v885 = vmul.f32 %v723, %v882
  %v886 = vmul.f32 %v726, %v882
  %v887 = vmul.f32 %v728, %v882
  %v888 = vmul.f32 %v731, %v882
  %v889 = vmul.f32 %v733, %v882
  %v890 = vmul.f32 %v736, %v882
  %v891 = vmul.f32 %v738, %v882
  %v892 = vmul.f32 %v741, %v882
  %v893 = vmul.f32 %v743, %v882
  %v894 = vmul.f32 %v746, %v882
  %v895 = vmul.f32 %v748, %v882
  %v896 = vmul.f32 %v751, %v882
  %v897 = vmul.f32 %v753, %v882
  %v898 = vmul.f32 %v756, %v882
  %v899 = vmul.f32 %v758, %v882
  %v900 = vmul.f32 %v761, %v882
  %v901 = vmul.f32 %v763, %v882
  %v902 = vmul.f32 %v766, %v882
  %v903 = vmul.f32 %v768, %v882
  %v904 = vmul.f32 %v771, %v882
  %v905 = vmul.f32 %v773, %v882
  %v906 = vmul.f32 %v776, %v882
  %v907 = vmul.f32 %v778, %v882
  %v908 = vmul.f32 %v781, %v882
  %v909 = vmul.f32 %v783, %v882
  %v910 = vmul.f32 %v786, %v882
  %v911 = vmul.f32 %v788, %v882
  %v912 = vmul.f32 %v791, %v882
  %v913 = vmul.f32 %v793, %v882
  %v914 = vmul.f32 %v796, %v882
  %v915 = vmul.f32 %v798, %v882
  %v916 = vmul.f32 %v801, %v882
  %v917 = vmul.f32 %v803, %v882
  %v918 = vmul.f32 %v806, %v882
  %v919 = vmul.f32 %v808, %v882
  %v920 = vmul.f32 %v811, %v882
  %v921 = vmul.f32 %v813, %v882
  %v922 = vmul.f32 %v816, %v882
  %v923 = vmul.f32 %v818, %v882
  %v924 = vmul.f32 %v821, %v882
  %v925 = vmul.f32 %v823, %v882
  %v926 = vmul.f32 %v826, %v882
  %v927 = vmul.f32 %v828, %v882
  %v928 = vmul.f32 %v831, %v882
  %v929 = vmul.f32 %v833, %v882
  %v930 = vmul.f32 %v836, %v882
  %v931 = vmul.f32 %v838, %v882
  %v932 = vmul.f32 %v841, %v882
  %v933 = vmul.f32 %v843, %v882
  %v934 = vmul.f32 %v846, %v882
  %v935 = vmul.f32 %v848, %v882
  %v936 = vmul.f32 %v851, %v882
  %v937 = vmul.f32 %v853, %v882
  %v938 = vmul.f32 %v856, %v882
  %v939 = vmul.f32 %v858, %v882
  %v940 = vmul.f32 %v861, %v882
  %v941 = vmul.f32 %v863, %v882
  %v942 = vmul.f32 %v866, %v882
  %v943 = vmul.f32 %v868, %v882
  %v944 = vmul.f32 %v871, %v882
  %v945 = vmul.f32 %v873, %v882
  %v946 = vmul.f32 %v876, %v882
  %v947 = vmul.f32 %v878, %v882
  %v948 = vld [vmem:[%s3] sm:$0x1]
  %v950 = vperm.slane %v948, 0
  %v952 = vadd.f32 %v884, %v950
  %v953 = vadd.f32 %v885, %v950
  %v954 = vadd.f32 %v886, %v950
  %v955 = vadd.f32 %v887, %v950
  %v956 = vadd.f32 %v888, %v950
  %v957 = vadd.f32 %v889, %v950
  %v958 = vadd.f32 %v890, %v950
  %v959 = vadd.f32 %v891, %v950
  %v960 = vadd.f32 %v892, %v950
  %v961 = vadd.f32 %v893, %v950
  %v962 = vadd.f32 %v894, %v950
  %v963 = vadd.f32 %v895, %v950
  %v964 = vadd.f32 %v896, %v950
  %v965 = vadd.f32 %v897, %v950
  %v966 = vadd.f32 %v898, %v950
  %v967 = vadd.f32 %v899, %v950
  %v968 = vadd.f32 %v900, %v950
  %v969 = vadd.f32 %v901, %v950
  %v970 = vadd.f32 %v902, %v950
  %v971 = vadd.f32 %v903, %v950
  %v972 = vadd.f32 %v904, %v950
  %v973 = vadd.f32 %v905, %v950
  %v974 = vadd.f32 %v906, %v950
  %v975 = vadd.f32 %v907, %v950
  %v976 = vadd.f32 %v908, %v950
  %v977 = vadd.f32 %v909, %v950
  %v978 = vadd.f32 %v910, %v950
  %v979 = vadd.f32 %v911, %v950
  %v980 = vadd.f32 %v912, %v950
  %v981 = vadd.f32 %v913, %v950
  %v982 = vadd.f32 %v914, %v950
  %v983 = vadd.f32 %v915, %v950
  %v984 = vadd.f32 %v916, %v950
  %v985 = vadd.f32 %v917, %v950
  %v986 = vadd.f32 %v918, %v950
  %v987 = vadd.f32 %v919, %v950
  %v988 = vadd.f32 %v920, %v950
  %v989 = vadd.f32 %v921, %v950
  %v990 = vadd.f32 %v922, %v950
  %v991 = vadd.f32 %v923, %v950
  %v992 = vadd.f32 %v924, %v950
  %v993 = vadd.f32 %v925, %v950
  %v994 = vadd.f32 %v926, %v950
  %v995 = vadd.f32 %v927, %v950
  %v996 = vadd.f32 %v928, %v950
  %v997 = vadd.f32 %v929, %v950
  %v998 = vadd.f32 %v930, %v950
  %v999 = vadd.f32 %v931, %v950
  %v1000 = vadd.f32 %v932, %v950
  %v1001 = vadd.f32 %v933, %v950
  %v1002 = vadd.f32 %v934, %v950
  %v1003 = vadd.f32 %v935, %v950
  %v1004 = vadd.f32 %v936, %v950
  %v1005 = vadd.f32 %v937, %v950
  %v1006 = vadd.f32 %v938, %v950
  %v1007 = vadd.f32 %v939, %v950
  %v1008 = vadd.f32 %v940, %v950
  %v1009 = vadd.f32 %v941, %v950
  %v1010 = vadd.f32 %v942, %v950
  %v1011 = vadd.f32 %v943, %v950
  %v1012 = vadd.f32 %v944, %v950
  %v1013 = vadd.f32 %v945, %v950
  %v1014 = vadd.f32 %v946, %v950
  %v1015 = vadd.f32 %v947, %v950
  %v1016 = vld [vmem:[%s4] sm:$0xff]
  %v1017 = vld [vmem:[%s4 + $0x8] sm:$0xff]
  %v1018 = vld [vmem:[%s4 + $0x10] sm:$0xff]
  %v1019 = vld [vmem:[%s4 + $0x18] sm:$0xff]
  %v1020 = vld [vmem:[%s4 + $0x20] sm:$0xff]
  %v1021 = vld [vmem:[%s4 + $0x28] sm:$0xff]
  %v1022 = vld [vmem:[%s4 + $0x30] sm:$0xff]
  %v1023 = vld [vmem:[%s4 + $0x38] sm:$0xff]
  %v1024 = vld [vmem:[%s4 + $0x40] sm:$0xff]
  %v1025 = vld [vmem:[%s4 + $0x48] sm:$0xff]
  %v1026 = vld [vmem:[%s4 + $0x50] sm:$0xff]
  %v1027 = vld [vmem:[%s4 + $0x58] sm:$0xff]
  %v1028 = vld [vmem:[%s4 + $0x60] sm:$0xff]
  %v1029 = vld [vmem:[%s4 + $0x68] sm:$0xff]
  %v1030 = vld [vmem:[%s4 + $0x70] sm:$0xff]
  %v1031 = vld [vmem:[%s4 + $0x78] sm:$0xff]
  %v1032 = vld [vmem:[%s4 + $0x80] sm:$0xff]
  %v1033 = vld [vmem:[%s4 + $0x88] sm:$0xff]
  %v1034 = vld [vmem:[%s4 + $0x90] sm:$0xff]
  %v1035 = vld [vmem:[%s4 + $0x98] sm:$0xff]
  %v1036 = vld [vmem:[%s4 + $0xa0] sm:$0xff]
  %v1037 = vld [vmem:[%s4 + $0xa8] sm:$0xff]
  %v1038 = vld [vmem:[%s4 + $0xb0] sm:$0xff]
  %v1039 = vld [vmem:[%s4 + $0xb8] sm:$0xff]
  %v1040 = vld [vmem:[%s4 + $0xc0] sm:$0xff]
  %v1041 = vld [vmem:[%s4 + $0xc8] sm:$0xff]
  %v1042 = vld [vmem:[%s4 + $0xd0] sm:$0xff]
  %v1043 = vld [vmem:[%s4 + $0xd8] sm:$0xff]
  %v1044 = vld [vmem:[%s4 + $0xe0] sm:$0xff]
  %v1045 = vld [vmem:[%s4 + $0xe8] sm:$0xff]
  %v1046 = vld [vmem:[%s4 + $0xf0] sm:$0xff]
  %v1047 = vld [vmem:[%s4 + $0xf8] sm:$0xff]
  %v1048 = vld [vmem:[%s4 + $0x100] sm:$0xff]
  %v1049 = vld [vmem:[%s4 + $0x108] sm:$0xff]
  %v1050 = vld [vmem:[%s4 + $0x110] sm:$0xff]
  %v1051 = vld [vmem:[%s4 + $0x118] sm:$0xff]
  %v1052 = vld [vmem:[%s4 + $0x120] sm:$0xff]
  %v1053 = vld [vmem:[%s4 + $0x128] sm:$0xff]
  %v1054 = vld [vmem:[%s4 + $0x130] sm:$0xff]
  %v1055 = vld [vmem:[%s4 + $0x138] sm:$0xff]
  %v1056 = vld [vmem:[%s4 + $0x140] sm:$0xff]
  %v1057 = vld [vmem:[%s4 + $0x148] sm:$0xff]
  %v1058 = vld [vmem:[%s4 + $0x150] sm:$0xff]
  %v1059 = vld [vmem:[%s4 + $0x158] sm:$0xff]
  %v1060 = vld [vmem:[%s4 + $0x160] sm:$0xff]
  %v1061 = vld [vmem:[%s4 + $0x168] sm:$0xff]
  %v1062 = vld [vmem:[%s4 + $0x170] sm:$0xff]
  %v1063 = vld [vmem:[%s4 + $0x178] sm:$0xff]
  %v1064 = vld [vmem:[%s4 + $0x180] sm:$0xff]
  %v1065 = vld [vmem:[%s4 + $0x188] sm:$0xff]
  %v1066 = vld [vmem:[%s4 + $0x190] sm:$0xff]
  %v1067 = vld [vmem:[%s4 + $0x198] sm:$0xff]
  %v1068 = vld [vmem:[%s4 + $0x1a0] sm:$0xff]
  %v1069 = vld [vmem:[%s4 + $0x1a8] sm:$0xff]
  %v1070 = vld [vmem:[%s4 + $0x1b0] sm:$0xff]
  %v1071 = vld [vmem:[%s4 + $0x1b8] sm:$0xff]
  %v1072 = vld [vmem:[%s4 + $0x1c0] sm:$0xff]
  %v1073 = vld [vmem:[%s4 + $0x1c8] sm:$0xff]
  %v1074 = vld [vmem:[%s4 + $0x1d0] sm:$0xff]
  %v1075 = vld [vmem:[%s4 + $0x1d8] sm:$0xff]
  %v1076 = vld [vmem:[%s4 + $0x1e0] sm:$0xff]
  %v1077 = vld [vmem:[%s4 + $0x1e8] sm:$0xff]
  %v1078 = vld [vmem:[%s4 + $0x1f0] sm:$0xff]
  %v1079 = vld [vmem:[%s4 + $0x1f8] sm:$0xff]
  %v1080 = vadd.f32 %v952, %v1016
  %v1081 = vadd.f32 %v953, %v1017
  %v1082 = vadd.f32 %v954, %v1018
  %v1083 = vadd.f32 %v955, %v1019
  %v1084 = vadd.f32 %v956, %v1020
  %v1085 = vadd.f32 %v957, %v1021
  %v1086 = vadd.f32 %v958, %v1022
  %v1087 = vadd.f32 %v959, %v1023
  %v1088 = vadd.f32 %v960, %v1024
  %v1089 = vadd.f32 %v961, %v1025
  %v1090 = vadd.f32 %v962, %v1026
  %v1091 = vadd.f32 %v963, %v1027
  %v1092 = vadd.f32 %v964, %v1028
  %v1093 = vadd.f32 %v965, %v1029
  %v1094 = vadd.f32 %v966, %v1030
  %v1095 = vadd.f32 %v967, %v1031
  %v1096 = vadd.f32 %v968, %v1032
  %v1097 = vadd.f32 %v969, %v1033
  %v1098 = vadd.f32 %v970, %v1034
  %v1099 = vadd.f32 %v971, %v1035
  %v1100 = vadd.f32 %v972, %v1036
  %v1101 = vadd.f32 %v973, %v1037
  %v1102 = vadd.f32 %v974, %v1038
  %v1103 = vadd.f32 %v975, %v1039
  %v1104 = vadd.f32 %v976, %v1040
  %v1105 = vadd.f32 %v977, %v1041
  %v1106 = vadd.f32 %v978, %v1042
  %v1107 = vadd.f32 %v979, %v1043
  %v1108 = vadd.f32 %v980, %v1044
  %v1109 = vadd.f32 %v981, %v1045
  %v1110 = vadd.f32 %v982, %v1046
  %v1111 = vadd.f32 %v983, %v1047
  %v1112 = vadd.f32 %v984, %v1048
  %v1113 = vadd.f32 %v985, %v1049
  %v1114 = vadd.f32 %v986, %v1050
  %v1115 = vadd.f32 %v987, %v1051
  %v1116 = vadd.f32 %v988, %v1052
  %v1117 = vadd.f32 %v989, %v1053
  %v1118 = vadd.f32 %v990, %v1054
  %v1119 = vadd.f32 %v991, %v1055
  %v1120 = vadd.f32 %v992, %v1056
  %v1121 = vadd.f32 %v993, %v1057
  %v1122 = vadd.f32 %v994, %v1058
  %v1123 = vadd.f32 %v995, %v1059
  %v1124 = vadd.f32 %v996, %v1060
  %v1125 = vadd.f32 %v997, %v1061
  %v1126 = vadd.f32 %v998, %v1062
  %v1127 = vadd.f32 %v999, %v1063
  %v1128 = vadd.f32 %v1000, %v1064
  %v1129 = vadd.f32 %v1001, %v1065
  %v1130 = vadd.f32 %v1002, %v1066
  %v1131 = vadd.f32 %v1003, %v1067
  %v1132 = vadd.f32 %v1004, %v1068
  %v1133 = vadd.f32 %v1005, %v1069
  %v1134 = vadd.f32 %v1006, %v1070
  %v1135 = vadd.f32 %v1007, %v1071
  %v1136 = vadd.f32 %v1008, %v1072
  %v1137 = vadd.f32 %v1009, %v1073
  %v1138 = vadd.f32 %v1010, %v1074
  %v1139 = vadd.f32 %v1011, %v1075
  %v1140 = vadd.f32 %v1012, %v1076
  %v1141 = vadd.f32 %v1013, %v1077
  %v1142 = vadd.f32 %v1014, %v1078
  %v1143 = vadd.f32 %v1015, %v1079
  %v1144 = vmax.f32 %v1080, 0.0
  %v1145 = vmax.f32 %v1081, 0.0
  %v1146 = vmax.f32 %v1082, 0.0
  %v1147 = vmax.f32 %v1083, 0.0
  %v1148 = vmax.f32 %v1084, 0.0
  %v1149 = vmax.f32 %v1085, 0.0
  %v1150 = vmax.f32 %v1086, 0.0
  %v1151 = vmax.f32 %v1087, 0.0
  %v1152 = vmax.f32 %v1088, 0.0
  %v1153 = vmax.f32 %v1089, 0.0
  %v1154 = vmax.f32 %v1090, 0.0
  %v1155 = vmax.f32 %v1091, 0.0
  %v1156 = vmax.f32 %v1092, 0.0
  %v1157 = vmax.f32 %v1093, 0.0
  %v1158 = vmax.f32 %v1094, 0.0
  %v1159 = vmax.f32 %v1095, 0.0
  %v1160 = vmax.f32 %v1096, 0.0
  %v1161 = vmax.f32 %v1097, 0.0
  %v1162 = vmax.f32 %v1098, 0.0
  %v1163 = vmax.f32 %v1099, 0.0
  %v1164 = vmax.f32 %v1100, 0.0
  %v1165 = vmax.f32 %v1101, 0.0
  %v1166 = vmax.f32 %v1102, 0.0
  %v1167 = vmax.f32 %v1103, 0.0
  %v1168 = vmax.f32 %v1104, 0.0
  %v1169 = vmax.f32 %v1105, 0.0
  %v1170 = vmax.f32 %v1106, 0.0
  %v1171 = vmax.f32 %v1107, 0.0
  %v1172 = vmax.f32 %v1108, 0.0
  %v1173 = vmax.f32 %v1109, 0.0
  %v1174 = vmax.f32 %v1110, 0.0
  %v1175 = vmax.f32 %v1111, 0.0
  %v1176 = vmax.f32 %v1112, 0.0
  %v1177 = vmax.f32 %v1113, 0.0
  %v1178 = vmax.f32 %v1114, 0.0
  %v1179 = vmax.f32 %v1115, 0.0
  %v1180 = vmax.f32 %v1116, 0.0
  %v1181 = vmax.f32 %v1117, 0.0
  %v1182 = vmax.f32 %v1118, 0.0
  %v1183 = vmax.f32 %v1119, 0.0
  %v1184 = vmax.f32 %v1120, 0.0
  %v1185 = vmax.f32 %v1121, 0.0
  %v1186 = vmax.f32 %v1122, 0.0
  %v1187 = vmax.f32 %v1123, 0.0
  %v1188 = vmax.f32 %v1124, 0.0
  %v1189 = vmax.f32 %v1125, 0.0
  %v1190 = vmax.f32 %v1126, 0.0
  %v1191 = vmax.f32 %v1127, 0.0
  %v1192 = vmax.f32 %v1128, 0.0
  %v1193 = vmax.f32 %v1129, 0.0
  %v1194 = vmax.f32 %v1130, 0.0
  %v1195 = vmax.f32 %v1131, 0.0
  %v1196 = vmax.f32 %v1132, 0.0
  %v1197 = vmax.f32 %v1133, 0.0
  %v1198 = vmax.f32 %v1134, 0.0
  %v1199 = vmax.f32 %v1135, 0.0
  %v1200 = vmax.f32 %v1136, 0.0
  %v1201 = vmax.f32 %v1137, 0.0
  %v1202 = vmax.f32 %v1138, 0.0
  %v1203 = vmax.f32 %v1139, 0.0
  %v1204 = vmax.f32 %v1140, 0.0
  %v1205 = vmax.f32 %v1141, 0.0
  %v1206 = vmax.f32 %v1142, 0.0
  %v1207 = vmax.f32 %v1143, 0.0
  %1208 = vst [vmem:[%s5] sm:$0xff] %v1144
  %1209 = vst [vmem:[%s5 + $0x8] sm:$0xff] %v1145
  %1210 = vst [vmem:[%s5 + $0x10] sm:$0xff] %v1146
  %1211 = vst [vmem:[%s5 + $0x18] sm:$0xff] %v1147
  %1212 = vst [vmem:[%s5 + $0x20] sm:$0xff] %v1148
  %1213 = vst [vmem:[%s5 + $0x28] sm:$0xff] %v1149
  %1214 = vst [vmem:[%s5 + $0x30] sm:$0xff] %v1150
  %1215 = vst [vmem:[%s5 + $0x38] sm:$0xff] %v1151
  %1216 = vst [vmem:[%s5 + $0x40] sm:$0xff] %v1152
  %1217 = vst [vmem:[%s5 + $0x48] sm:$0xff] %v1153
  %1218 = vst [vmem:[%s5 + $0x50] sm:$0xff] %v1154
  %1219 = vst [vmem:[%s5 + $0x58] sm:$0xff] %v1155
  %1220 = vst [vmem:[%s5 + $0x60] sm:$0xff] %v1156
  %1221 = vst [vmem:[%s5 + $0x68] sm:$0xff] %v1157
  %1222 = vst [vmem:[%s5 + $0x70] sm:$0xff] %v1158
  %1223 = vst [vmem:[%s5 + $0x78] sm:$0xff] %v1159
  %1224 = vst [vmem:[%s5 + $0x80] sm:$0xff] %v1160
  %1225 = vst [vmem:[%s5 + $0x88] sm:$0xff] %v1161
  %1226 = vst [vmem:[%s5 + $0x90] sm:$0xff] %v1162
  %1227 = vst [vmem:[%s5 + $0x98] sm:$0xff] %v1163
  %1228 = vst [vmem:[%s5 + $0xa0] sm:$0xff] %v1164
  %1229 = vst [vmem:[%s5 + $0xa8] sm:$0xff] %v1165
  %1230 = vst [vmem:[%s5 + $0xb0] sm:$0xff] %v1166
  %1231 = vst [vmem:[%s5 + $0xb8] sm:$0xff] %v1167
  %1232 = vst [vmem:[%s5 + $0xc0] sm:$0xff] %v1168
  %1233 = vst [vmem:[%s5 + $0xc8] sm:$0xff] %v1169
  %1234 = vst [vmem:[%s5 + $0xd0] sm:$0xff] %v1170
  %1235 = vst [vmem:[%s5 + $0xd8] sm:$0xff] %v1171
  %1236 = vst [vmem:[%s5 + $0xe0] sm:$0xff] %v1172
  %1237 = vst [vmem:[%s5 + $0xe8] sm:$0xff] %v1173
  %1238 = vst [vmem:[%s5 + $0xf0] sm:$0xff] %v1174
  %1239 = vst [vmem:[%s5 + $0xf8] sm:$0xff] %v1175
  %1240 = vst [vmem:[%s5 + $0x100] sm:$0xff] %v1176
  %1241 = vst [vmem:[%s5 + $0x108] sm:$0xff] %v1177
  %1242 = vst [vmem:[%s5 + $0x110] sm:$0xff] %v1178
  %1243 = vst [vmem:[%s5 + $0x118] sm:$0xff] %v1179
  %1244 = vst [vmem:[%s5 + $0x120] sm:$0xff] %v1180
  %1245 = vst [vmem:[%s5 + $0x128] sm:$0xff] %v1181
  %1246 = vst [vmem:[%s5 + $0x130] sm:$0xff] %v1182
  %1247 = vst [vmem:[%s5 + $0x138] sm:$0xff] %v1183
  %1248 = vst [vmem:[%s5 + $0x140] sm:$0xff] %v1184
  %1249 = vst [vmem:[%s5 + $0x148] sm:$0xff] %v1185
  %1250 = vst [vmem:[%s5 + $0x150] sm:$0xff] %v1186
  %1251 = vst [vmem:[%s5 + $0x158] sm:$0xff] %v1187
  %1252 = vst [vmem:[%s5 + $0x160] sm:$0xff] %v1188
  %1253 = vst [vmem:[%s5 + $0x168] sm:$0xff] %v1189
  %1254 = vst [vmem:[%s5 + $0x170] sm:$0xff] %v1190
  %1255 = vst [vmem:[%s5 + $0x178] sm:$0xff] %v1191
  %1256 = vst [vmem:[%s5 + $0x180] sm:$0xff] %v1192
  %1257 = vst [vmem:[%s5 + $0x188] sm:$0xff] %v1193
  %1258 = vst [vmem:[%s5 + $0x190] sm:$0xff] %v1194
  %1259 = vst [vmem:[%s5 + $0x198] sm:$0xff] %v1195
  %1260 = vst [vmem:[%s5 + $0x1a0] sm:$0xff] %v1196
  %1261 = vst [vmem:[%s5 + $0x1a8] sm:$0xff] %v1197
  %1262 = vst [vmem:[%s5 + $0x1b0] sm:$0xff] %v1198
  %1263 = vst [vmem:[%s5 + $0x1b8] sm:$0xff] %v1199
  %1264 = vst [vmem:[%s5 + $0x1c0] sm:$0xff] %v1200
  %1265 = vst [vmem:[%s5 + $0x1c8] sm:$0xff] %v1201
  %1266 = vst [vmem:[%s5 + $0x1d0] sm:$0xff] %v1202
  %1267 = vst [vmem:[%s5 + $0x1d8] sm:$0xff] %v1203
  %1268 = vst [vmem:[%s5 + $0x1e0] sm:$0xff] %v1204
  %1269 = vst [vmem:[%s5 + $0x1e8] sm:$0xff] %v1205
  %1270 = vst [vmem:[%s5 + $0x1f0] sm:$0xff] %v1206
  %1271 = vst [vmem:[%s5 + $0x1f8] sm:$0xff] %v1207
  // Predicated region
  $region22: #{_lambda_.24} parent=0 // pred_check
    _
  $region23: #{_lambda_.24} parent=0 // pred_check_branch
    %1273 = sbr.rel (0) target = $region25
  $region24: #{_lambda_.24} parent=0 // pred_region
    _
  $region25: #{_lambda_.24} parent=0 // pred_fallthru
    _
  // Predicated region
  $region26: #{_lambda_.24} parent=0 // pred_check
    _
  $region27: #{_lambda_.24} parent=0 // pred_check_branch
    %1275 = sbr.rel (0) target = $region29
  $region28: #{_lambda_.24} parent=0 // pred_region
    _
  $region29: #{_lambda_.24} parent=0 // pred_fallthru
    _

// kernel: _lambda_.29
$region0: #{_lambda_.29}
  #allocation0 [shape = 'u32[]', space=smem, size = 0x4, offset = 0x4, fixed_abs, tag = 'smem constant byte address 0x4 - core index']
  #allocation1 [shape = 'u32[72,128]{1,0:T(1,128)}', space=vmem, size = 0x9000, scoped, tag = 'internal scratch']
  %s0 = inlined_call_operand.vmem [shape: bf16[128,144], index: 0, kind: input, shape index: {}]
  %s1 = inlined_call_operand.vmem [shape: bf16[144,128], index: 1, kind: input, shape index: {}]
  %s2 = inlined_call_operand.vmem [shape: f32[1,128], index: 2, kind: input, shape index: {}]
  %s3 = inlined_call_operand.vmem [shape: f32[1,128], index: 3, kind: input, shape index: {}]
  %s4 = inlined_call_operand.vmem [shape: f32[128,128], index: 4, kind: output, shape index: {}]
  %s5 = sld [smem:[#allocation0]]
  $region26: #{_lambda_.29} parent=0
    _
  %s7 = ssub.s32 1, %s5
  %s8 = scalar_select 0, %s7, %s5
  // Predicated region
  $region2: #{_lambda_.29} parent=0 // pred_check
    _
  $region3: #{_lambda_.29} parent=0 // pred_check_branch
    %10 = sbr.rel (0) target = $region5
  $region4: #{_lambda_.29} parent=0 // pred_region
    _
  $region5: #{_lambda_.29} parent=0 // pred_fallthru
    _
  // Predicated region
  $region6: #{_lambda_.29} parent=0 // pred_check
    _
  $region7: #{_lambda_.29} parent=0 // pred_check_branch
    %12 = sbr.rel (0) target = $region9
  $region8: #{_lambda_.29} parent=0 // pred_region
    _
  $region9: #{_lambda_.29} parent=0 // pred_fallthru
    _
  // Predicated region
  $region10: #{_lambda_.29} parent=0 // pred_check
    _
  $region11: #{_lambda_.29} parent=0 // pred_check_branch
    %14 = sbr.rel (0) target = $region13
  $region12: #{_lambda_.29} parent=0 // pred_region
    _
  $region13: #{_lambda_.29} parent=0 // pred_fallthru
    _
  // Predicated region
  $region14: #{_lambda_.29} parent=0 // pred_check
    _
  $region15: #{_lambda_.29} parent=0 // pred_check_branch
    %16 = sbr.rel (0) target = $region17
  $region16: #{_lambda_.29} parent=0 // pred_region
    _
  $region17: #{_lambda_.29} parent=0 // pred_fallthru
    _
  %v18 = vld [vmem:[%s0] sm:$0xff]
  %v19 = vld [vmem:[%s0 + $0x8] sm:$0xff]
  %v20 = vld [vmem:[%s0 + $0x10] sm:$0xff]
  %v21 = vld [vmem:[%s0 + $0x18] sm:$0xff]
  %v22 = vld [vmem:[%s0 + $0x20] sm:$0xff]
  %v23 = vld [vmem:[%s0 + $0x28] sm:$0xff]
  %v24 = vld [vmem:[%s0 + $0x30] sm:$0xff]
  %v25 = vld [vmem:[%s0 + $0x38] sm:$0xff]
  %v26 = vld [vmem:[%s0 + $0x40] sm:$0xff]
  %v27 = vld [vmem:[%s0 + $0x48] sm:$0xff]
  %v28 = vld [vmem:[%s0 + $0x50] sm:$0xff]
  %v29 = vld [vmem:[%s0 + $0x58] sm:$0xff]
  %v30 = vld [vmem:[%s0 + $0x60] sm:$0xff]
  %v31 = vld [vmem:[%s0 + $0x68] sm:$0xff]
  %v32 = vld [vmem:[%s0 + $0x70] sm:$0xff]
  %v33 = vld [vmem:[%s0 + $0x78] sm:$0xff]
  %v34 = vld [vmem:[%s1] sm:$0xf]
  %v35 = vld [vmem:[%s1 + $0x4] sm:$0xf]
  %v36 = vld [vmem:[%s1 + $0x8] sm:$0xf]
  %v37 = vld [vmem:[%s1 + $0xc] sm:$0xf]
  %v38 = vld [vmem:[%s1 + $0x10] sm:$0xf]
  %v39 = vld [vmem:[%s1 + $0x14] sm:$0xf]
  %v40 = vld [vmem:[%s1 + $0x18] sm:$0xf]
  %v41 = vld [vmem:[%s1 + $0x1c] sm:$0xf]
  %v42 = vld [vmem:[%s1 + $0x20] sm:$0xf]
  %v43 = vld [vmem:[%s1 + $0x24] sm:$0xf]
  %v44 = vld [vmem:[%s1 + $0x28] sm:$0xf]
  %v45 = vld [vmem:[%s1 + $0x2c] sm:$0xf]
  %v46 = vld [vmem:[%s1 + $0x30] sm:$0xf]
  %v47 = vld [vmem:[%s1 + $0x34] sm:$0xf]
  %v48 = vld [vmem:[%s1 + $0x38] sm:$0xf]
  %v49 = vld [vmem:[%s1 + $0x3c] sm:$0xf]
  %v50 = vld [vmem:[%s1 + $0x40] sm:$0xf]
  %v51 = vld [vmem:[%s1 + $0x44] sm:$0xf]
  %v68 = vunpack.c.l.b16 %v18
  %v69 = vunpack.c.h.b16 %v18
  %v70 = vunpack.c.l.b16 %v19
  %v71 = vunpack.c.h.b16 %v19
  %v72 = vunpack.c.l.b16 %v20
  %v73 = vunpack.c.h.b16 %v20
  %v74 = vunpack.c.l.b16 %v21
  %v75 = vunpack.c.h.b16 %v21
  %v76 = vunpack.c.l.b16 %v22
  %v77 = vunpack.c.h.b16 %v22
  %v78 = vunpack.c.l.b16 %v23
  %v79 = vunpack.c.h.b16 %v23
  %v80 = vunpack.c.l.b16 %v24
  %v81 = vunpack.c.h.b16 %v24
  %v82 = vunpack.c.l.b16 %v25
  %v83 = vunpack.c.h.b16 %v25
  %v84 = vunpack.c.l.b16 %v26
  %v85 = vunpack.c.h.b16 %v26
  %v86 = vunpack.c.l.b16 %v27
  %v87 = vunpack.c.h.b16 %v27
  %v88 = vunpack.c.l.b16 %v28
  %v89 = vunpack.c.h.b16 %v28
  %v90 = vunpack.c.l.b16 %v29
  %v91 = vunpack.c.h.b16 %v29
  %v92 = vunpack.c.l.b16 %v30
  %v93 = vunpack.c.h.b16 %v30
  %v94 = vunpack.c.l.b16 %v31
  %v95 = vunpack.c.h.b16 %v31
  %v96 = vunpack.c.l.b16 %v32
  %v97 = vunpack.c.h.b16 %v32
  %v98 = vunpack.c.l.b16 %v33
  %v99 = vunpack.c.h.b16 %v33
  %v100 = vpack.c.b16 %v70, %v68
  %v101 = vpack.c.b16 %v71, %v69
  %v102 = vpack.c.b16 %v74, %v72
  %v103 = vpack.c.b16 %v75, %v73
  %v104 = vpack.c.b16 %v78, %v76
  %v105 = vpack.c.b16 %v79, %v77
  %v106 = vpack.c.b16 %v82, %v80
  %v107 = vpack.c.b16 %v83, %v81
  %v108 = vpack.c.b16 %v86, %v84
  %v109 = vpack.c.b16 %v87, %v85
  %v110 = vpack.c.b16 %v90, %v88
  %v111 = vpack.c.b16 %v91, %v89
  %v112 = vpack.c.b16 %v94, %v92
  %v113 = vpack.c.b16 %v95, %v93
  %v114 = vpack.c.b16 %v98, %v96
  %v115 = vpack.c.b16 %v99, %v97
  %v142 = vunpack.c.l.b16 %v34
  %v143 = vunpack.c.l.b16 %v35
  %v144 = vunpack.c.l.b16 %v36
  %v145 = vunpack.c.l.b16 %v37
  %v146 = vunpack.c.l.b16 %v38
  %v147 = vunpack.c.l.b16 %v39
  %v148 = vunpack.c.l.b16 %v40
  %v149 = vunpack.c.l.b16 %v41
  %v150 = vunpack.c.l.b16 %v42
  %v151 = vunpack.c.l.b16 %v43
  %v152 = vunpack.c.l.b16 %v44
  %v153 = vunpack.c.l.b16 %v45
  %v154 = vunpack.c.l.b16 %v46
  %v155 = vunpack.c.l.b16 %v47
  %v156 = vunpack.c.l.b16 %v48
  %v157 = vunpack.c.l.b16 %v49
  %v158 = vunpack.c.l.b16 %v50
  %v159 = vunpack.c.l.b16 %v51
  %v160 = vpack.c.b16 %v143, %v142
  %v161 = vpack.c.b16 %v145, %v144
  %v162 = vpack.c.b16 %v147, %v146
  %v163 = vpack.c.b16 %v149, %v148
  %v164 = vpack.c.b16 %v151, %v150
  %v165 = vpack.c.b16 %v153, %v152
  %v166 = vpack.c.b16 %v155, %v154
  %v167 = vpack.c.b16 %v157, %v156
  %v168 = vpack.c.b16 %v159, %v158
  %vm178 = vcmask 130048
  %v180 = vsel %vm178, %v101, 0
  %v183 = vsel %vm178, %v103, 0
  %v186 = vsel %vm178, %v105, 0
  %v189 = vsel %vm178, %v107, 0
  %v192 = vsel %vm178, %v109, 0
  %v195 = vsel %vm178, %v111, 0
  %v198 = vsel %vm178, %v113, 0
  %v201 = vsel %vm178, %v115, 0
  %203 = vmatpush.bf16.msra.mxu0 %v167
  %204 = vmatpush.bf16.msra.mxu0 %v166
  %205 = vmatpush.bf16.msra.mxu0 %v165
  %206 = vmatpush.bf16.msra.mxu0 %v164
  %207 = vmatpush.bf16.msra.mxu0 %v163
  %208 = vmatpush.bf16.msra.mxu0 %v162
  %209 = vmatpush.bf16.msra.mxu0 %v161
  %210 = vmatpush.bf16.msra.mxu0 %v160
  %211 = vmatmul.bf16.gmra.mxu0 %v100
  %v212 = vpop.f32.mrf.mxu0
  %v213 = vadd.f32 0.0, %v212
  %v214 = vpop.f32.mrf.mxu0
  %v215 = vadd.f32 0.0, %v214
  %216 = vmatmul.bf16.gmra.mxu0 %v102
  %v217 = vpop.f32.mrf.mxu0
  %v218 = vadd.f32 0.0, %v217
  %v219 = vpop.f32.mrf.mxu0
  %v220 = vadd.f32 0.0, %v219
  %221 = vmatmul.bf16.gmra.mxu0 %v104
  %v222 = vpop.f32.mrf.mxu0
  %v223 = vadd.f32 0.0, %v222
  %v224 = vpop.f32.mrf.mxu0
  %v225 = vadd.f32 0.0, %v224
  %226 = vmatmul.bf16.gmra.mxu0 %v106
  %v227 = vpop.f32.mrf.mxu0
  %v228 = vadd.f32 0.0, %v227
  %v229 = vpop.f32.mrf.mxu0
  %v230 = vadd.f32 0.0, %v229
  %231 = vmatmul.bf16.gmra.mxu0 %v108
  %v232 = vpop.f32.mrf.mxu0
  %v233 = vadd.f32 0.0, %v232
  %v234 = vpop.f32.mrf.mxu0
  %v235 = vadd.f32 0.0, %v234
  %236 = vmatmul.bf16.gmra.mxu0 %v110
  %v237 = vpop.f32.mrf.mxu0
  %v238 = vadd.f32 0.0, %v237
  %v239 = vpop.f32.mrf.mxu0
  %v240 = vadd.f32 0.0, %v239
  %241 = vmatmul.bf16.gmra.mxu0 %v112
  %v242 = vpop.f32.mrf.mxu0
  %v243 = vadd.f32 0.0, %v242
  %v244 = vpop.f32.mrf.mxu0
  %v245 = vadd.f32 0.0, %v244
  %246 = vmatmul.bf16.gmra.mxu0 %v114
  %v247 = vpop.f32.mrf.mxu0
  %v248 = vadd.f32 0.0, %v247
  %v249 = vpop.f32.mrf.mxu0
  %v250 = vadd.f32 0.0, %v249
  %251 = vdwg.mxu0
  %252 = vmatpush.bf16.msra.mxu0 0
  %253 = vmatpush.bf16.msra.mxu0 0
  %254 = vmatpush.bf16.msra.mxu0 0
  %255 = vmatpush.bf16.msra.mxu0 0
  %256 = vmatpush.bf16.msra.mxu0 0
  %257 = vmatpush.bf16.msra.mxu0 0
  %258 = vmatpush.bf16.msra.mxu0 0
  %259 = vmatpush.bf16.msra.mxu0 %v168
  %260 = vmatmul.bf16.gmra.mxu0 %v180
  %v261 = vpop.f32.mrf.mxu0
  %v262 = vadd.f32 %v213, %v261
  %v263 = vpop.f32.mrf.mxu0
  %v264 = vadd.f32 %v215, %v263
  %265 = vmatmul.bf16.gmra.mxu0 %v183
  %v266 = vpop.f32.mrf.mxu0
  %v267 = vadd.f32 %v218, %v266
  %v268 = vpop.f32.mrf.mxu0
  %v269 = vadd.f32 %v220, %v268
  %270 = vmatmul.bf16.gmra.mxu0 %v186
  %v271 = vpop.f32.mrf.mxu0
  %v272 = vadd.f32 %v223, %v271
  %v273 = vpop.f32.mrf.mxu0
  %v274 = vadd.f32 %v225, %v273
  %275 = vmatmul.bf16.gmra.mxu0 %v189
  %v276 = vpop.f32.mrf.mxu0
  %v277 = vadd.f32 %v228, %v276
  %v278 = vpop.f32.mrf.mxu0
  %v279 = vadd.f32 %v230, %v278
  %280 = vmatmul.bf16.gmra.mxu0 %v192
  %v281 = vpop.f32.mrf.mxu0
  %v282 = vadd.f32 %v233, %v281
  %v283 = vpop.f32.mrf.mxu0
  %v284 = vadd.f32 %v235, %v283
  %285 = vmatmul.bf16.gmra.mxu0 %v195
  %v286 = vpop.f32.mrf.mxu0
  %v287 = vadd.f32 %v238, %v286
  %v288 = vpop.f32.mrf.mxu0
  %v289 = vadd.f32 %v240, %v288
  %290 = vmatmul.bf16.gmra.mxu0 %v198
  %v291 = vpop.f32.mrf.mxu0
  %v292 = vadd.f32 %v243, %v291
  %v293 = vpop.f32.mrf.mxu0
  %v294 = vadd.f32 %v245, %v293
  %295 = vmatmul.bf16.gmra.mxu0 %v201
  %v296 = vpop.f32.mrf.mxu0
  %v297 = vadd.f32 %v248, %v296
  %v298 = vpop.f32.mrf.mxu0
  %v299 = vadd.f32 %v250, %v298
  %300 = vdwg.mxu0
  %v301 = vld [vmem:[%s2] sm:$0x1]
  %v303 = vperm.slane %v301, 0
  %v305 = vmul.f32 %v262, %v303
  %v306 = vmul.f32 %v264, %v303
  %v307 = vmul.f32 %v267, %v303
  %v308 = vmul.f32 %v269, %v303
  %v309 = vmul.f32 %v272, %v303
  %v310 = vmul.f32 %v274, %v303
  %v311 = vmul.f32 %v277, %v303
  %v312 = vmul.f32 %v279, %v303
  %v313 = vmul.f32 %v282, %v303
  %v314 = vmul.f32 %v284, %v303
  %v315 = vmul.f32 %v287, %v303
  %v316 = vmul.f32 %v289, %v303
  %v317 = vmul.f32 %v292, %v303
  %v318 = vmul.f32 %v294, %v303
  %v319 = vmul.f32 %v297, %v303
  %v320 = vmul.f32 %v299, %v303
  %v321 = vld [vmem:[%s3] sm:$0x1]
  %v323 = vperm.slane %v321, 0
  %v325 = vadd.f32 %v305, %v323
  %v326 = vadd.f32 %v306, %v323
  %v327 = vadd.f32 %v307, %v323
  %v328 = vadd.f32 %v308, %v323
  %v329 = vadd.f32 %v309, %v323
  %v330 = vadd.f32 %v310, %v323
  %v331 = vadd.f32 %v311, %v323
  %v332 = vadd.f32 %v312, %v323
  %v333 = vadd.f32 %v313, %v323
  %v334 = vadd.f32 %v314, %v323
  %v335 = vadd.f32 %v315, %v323
  %v336 = vadd.f32 %v316, %v323
  %v337 = vadd.f32 %v317, %v323
  %v338 = vadd.f32 %v318, %v323
  %v339 = vadd.f32 %v319, %v323
  %v340 = vadd.f32 %v320, %v323
  %v341 = vmax.f32 %v325, 0.0
  %v342 = vmax.f32 %v326, 0.0
  %v343 = vmax.f32 %v327, 0.0
  %v344 = vmax.f32 %v328, 0.0
  %v345 = vmax.f32 %v329, 0.0
  %v346 = vmax.f32 %v330, 0.0
  %v347 = vmax.f32 %v331, 0.0
  %v348 = vmax.f32 %v332, 0.0
  %v349 = vmax.f32 %v333, 0.0
  %v350 = vmax.f32 %v334, 0.0
  %v351 = vmax.f32 %v335, 0.0
  %v352 = vmax.f32 %v336, 0.0
  %v353 = vmax.f32 %v337, 0.0
  %v354 = vmax.f32 %v338, 0.0
  %v355 = vmax.f32 %v339, 0.0
  %v356 = vmax.f32 %v340, 0.0
  %357 = vst [vmem:[%s4] sm:$0xff] %v341
  %358 = vst [vmem:[%s4 + $0x8] sm:$0xff] %v342
  %359 = vst [vmem:[%s4 + $0x10] sm:$0xff] %v343
  %360 = vst [vmem:[%s4 + $0x18] sm:$0xff] %v344
  %361 = vst [vmem:[%s4 + $0x20] sm:$0xff] %v345
  %362 = vst [vmem:[%s4 + $0x28] sm:$0xff] %v346
  %363 = vst [vmem:[%s4 + $0x30] sm:$0xff] %v347
  %364 = vst [vmem:[%s4 + $0x38] sm:$0xff] %v348
  %365 = vst [vmem:[%s4 + $0x40] sm:$0xff] %v349
  %366 = vst [vmem:[%s4 + $0x48] sm:$0xff] %v350
  %367 = vst [vmem:[%s4 + $0x50] sm:$0xff] %v351
  %368 = vst [vmem:[%s4 + $0x58] sm:$0xff] %v352
  %369 = vst [vmem:[%s4 + $0x60] sm:$0xff] %v353
  %370 = vst [vmem:[%s4 + $0x68] sm:$0xff] %v354
  %371 = vst [vmem:[%s4 + $0x70] sm:$0xff] %v355
  %372 = vst [vmem:[%s4 + $0x78] sm:$0xff] %v356
  // Predicated region
  $region18: #{_lambda_.29} parent=0 // pred_check
    _
  $region19: #{_lambda_.29} parent=0 // pred_check_branch
    %374 = sbr.rel (0) target = $region21
  $region20: #{_lambda_.29} parent=0 // pred_region
    _
  $region21: #{_lambda_.29} parent=0 // pred_fallthru
    _
  // Predicated region
  $region22: #{_lambda_.29} parent=0 // pred_check
    _
  $region23: #{_lambda_.29} parent=0 // pred_check_branch
    %376 = sbr.rel (0) target = $region25
  $region24: #{_lambda_.29} parent=0 // pred_region
    _
  $region25: #{_lambda_.29} parent=0 // pred_fallthru
    _

// kernel: _lambda_.30
$region0: #{_lambda_.30}
  #allocation0 [shape = 'u32[]', space=smem, size = 0x4, offset = 0x4, fixed_abs, tag = 'smem constant byte address 0x4 - core index']
  #allocation1 [shape = 'u32[72,128]{1,0:T(1,128)}', space=vmem, size = 0x9000, scoped, tag = 'internal scratch']
  %s0 = inlined_call_operand.vmem [shape: bf16[128,16], index: 0, kind: input, shape index: {}]
  %s1 = inlined_call_operand.vmem [shape: bf16[16,128], index: 1, kind: input, shape index: {}]
  %s2 = inlined_call_operand.vmem [shape: f32[1,128], index: 2, kind: input, shape index: {}]
  %s3 = inlined_call_operand.vmem [shape: f32[1,128], index: 3, kind: input, shape index: {}]
  %s4 = inlined_call_operand.vmem [shape: f32[128,128], index: 4, kind: output, shape index: {}]
  %s5 = sld [smem:[#allocation0]]
  $region26: #{_lambda_.30} parent=0
    _
  %s7 = ssub.s32 1, %s5
  %s8 = scalar_select 0, %s7, %s5
  // Predicated region
  $region2: #{_lambda_.30} parent=0 // pred_check
    _
  $region3: #{_lambda_.30} parent=0 // pred_check_branch
    %10 = sbr.rel (0) target = $region5
  $region4: #{_lambda_.30} parent=0 // pred_region
    _
  $region5: #{_lambda_.30} parent=0 // pred_fallthru
    _
  // Predicated region
  $region6: #{_lambda_.30} parent=0 // pred_check
    _
  $region7: #{_lambda_.30} parent=0 // pred_check_branch
    %12 = sbr.rel (0) target = $region9
  $region8: #{_lambda_.30} parent=0 // pred_region
    _
  $region9: #{_lambda_.30} parent=0 // pred_fallthru
    _
  // Predicated region
  $region10: #{_lambda_.30} parent=0 // pred_check
    _
  $region11: #{_lambda_.30} parent=0 // pred_check_branch
    %14 = sbr.rel (0) target = $region13
  $region12: #{_lambda_.30} parent=0 // pred_region
    _
  $region13: #{_lambda_.30} parent=0 // pred_fallthru
    _
  // Predicated region
  $region14: #{_lambda_.30} parent=0 // pred_check
    _
  $region15: #{_lambda_.30} parent=0 // pred_check_branch
    %16 = sbr.rel (0) target = $region17
  $region16: #{_lambda_.30} parent=0 // pred_region
    _
  $region17: #{_lambda_.30} parent=0 // pred_fallthru
    _
  %v18 = vld [vmem:[%s0] sm:$0xf]
  %v19 = vld [vmem:[%s0 + $0x4] sm:$0xf]
  %v20 = vld [vmem:[%s0 + $0x8] sm:$0xf]
  %v21 = vld [vmem:[%s0 + $0xc] sm:$0xf]
  %v22 = vld [vmem:[%s0 + $0x10] sm:$0xf]
  %v23 = vld [vmem:[%s0 + $0x14] sm:$0xf]
  %v24 = vld [vmem:[%s0 + $0x18] sm:$0xf]
  %v25 = vld [vmem:[%s0 + $0x1c] sm:$0xf]
  %v26 = vld [vmem:[%s0 + $0x20] sm:$0xf]
  %v27 = vld [vmem:[%s0 + $0x24] sm:$0xf]
  %v28 = vld [vmem:[%s0 + $0x28] sm:$0xf]
  %v29 = vld [vmem:[%s0 + $0x2c] sm:$0xf]
  %v30 = vld [vmem:[%s0 + $0x30] sm:$0xf]
  %v31 = vld [vmem:[%s0 + $0x34] sm:$0xf]
  %v32 = vld [vmem:[%s0 + $0x38] sm:$0xf]
  %v33 = vld [vmem:[%s0 + $0x3c] sm:$0xf]
  %v34 = vld [vmem:[%s1] sm:$0xf]
  %v35 = vld [vmem:[%s1 + $0x4] sm:$0xf]
  %v52 = vunpack.c.l.b16 %v18
  %v53 = vunpack.c.l.b16 %v19
  %v54 = vunpack.c.l.b16 %v20
  %v55 = vunpack.c.l.b16 %v21
  %v56 = vunpack.c.l.b16 %v22
  %v57 = vunpack.c.l.b16 %v23
  %v58 = vunpack.c.l.b16 %v24
  %v59 = vunpack.c.l.b16 %v25
  %v60 = vunpack.c.l.b16 %v26
  %v61 = vunpack.c.l.b16 %v27
  %v62 = vunpack.c.l.b16 %v28
  %v63 = vunpack.c.l.b16 %v29
  %v64 = vunpack.c.l.b16 %v30
  %v65 = vunpack.c.l.b16 %v31
  %v66 = vunpack.c.l.b16 %v32
  %v67 = vunpack.c.l.b16 %v33
  %v68 = vpack.c.b16 %v53, %v52
  %v69 = vpack.c.b16 %v55, %v54
  %v70 = vpack.c.b16 %v57, %v56
  %v71 = vpack.c.b16 %v59, %v58
  %v72 = vpack.c.b16 %v61, %v60
  %v73 = vpack.c.b16 %v63, %v62
  %v74 = vpack.c.b16 %v65, %v64
  %v75 = vpack.c.b16 %v67, %v66
  %v78 = vunpack.c.l.b16 %v34
  %v79 = vunpack.c.l.b16 %v35
  %v80 = vpack.c.b16 %v79, %v78
  %vm82 = vcmask 130048
  %v84 = vsel %vm82, %v68, 0
  %v87 = vsel %vm82, %v69, 0
  %v90 = vsel %vm82, %v70, 0
  %v93 = vsel %vm82, %v71, 0
  %v96 = vsel %vm82, %v72, 0
  %v99 = vsel %vm82, %v73, 0
  %v102 = vsel %vm82, %v74, 0
  %v105 = vsel %vm82, %v75, 0
  %107 = vmatpush.bf16.msra.mxu0 0
  %108 = vmatpush.bf16.msra.mxu0 0
  %109 = vmatpush.bf16.msra.mxu0 0
  %110 = vmatpush.bf16.msra.mxu0 0
  %111 = vmatpush.bf16.msra.mxu0 0
  %112 = vmatpush.bf16.msra.mxu0 0
  %113 = vmatpush.bf16.msra.mxu0 0
  %114 = vmatpush.bf16.msra.mxu0 %v80
  %115 = vmatmul.bf16.gmra.mxu0 %v84
  %v116 = vpop.f32.mrf.mxu0
  %v117 = vadd.f32 0.0, %v116
  %v118 = vpop.f32.mrf.mxu0
  %v119 = vadd.f32 0.0, %v118
  %120 = vmatmul.bf16.gmra.mxu0 %v87
  %v121 = vpop.f32.mrf.mxu0
  %v122 = vadd.f32 0.0, %v121
  %v123 = vpop.f32.mrf.mxu0
  %v124 = vadd.f32 0.0, %v123
  %125 = vmatmul.bf16.gmra.mxu0 %v90
  %v126 = vpop.f32.mrf.mxu0
  %v127 = vadd.f32 0.0, %v126
  %v128 = vpop.f32.mrf.mxu0
  %v129 = vadd.f32 0.0, %v128
  %130 = vmatmul.bf16.gmra.mxu0 %v93
  %v131 = vpop.f32.mrf.mxu0
  %v132 = vadd.f32 0.0, %v131
  %v133 = vpop.f32.mrf.mxu0
  %v134 = vadd.f32 0.0, %v133
  %135 = vmatmul.bf16.gmra.mxu0 %v96
  %v136 = vpop.f32.mrf.mxu0
  %v137 = vadd.f32 0.0, %v136
  %v138 = vpop.f32.mrf.mxu0
  %v139 = vadd.f32 0.0, %v138
  %140 = vmatmul.bf16.gmra.mxu0 %v99
  %v141 = vpop.f32.mrf.mxu0
  %v142 = vadd.f32 0.0, %v141
  %v143 = vpop.f32.mrf.mxu0
  %v144 = vadd.f32 0.0, %v143
  %145 = vmatmul.bf16.gmra.mxu0 %v102
  %v146 = vpop.f32.mrf.mxu0
  %v147 = vadd.f32 0.0, %v146
  %v148 = vpop.f32.mrf.mxu0
  %v149 = vadd.f32 0.0, %v148
  %150 = vmatmul.bf16.gmra.mxu0 %v105
  %v151 = vpop.f32.mrf.mxu0
  %v152 = vadd.f32 0.0, %v151
  %v153 = vpop.f32.mrf.mxu0
  %v154 = vadd.f32 0.0, %v153
  %155 = vdwg.mxu0
  %v156 = vld [vmem:[%s2] sm:$0x1]
  %v158 = vperm.slane %v156, 0
  %v160 = vmul.f32 %v117, %v158
  %v161 = vmul.f32 %v119, %v158
  %v162 = vmul.f32 %v122, %v158
  %v163 = vmul.f32 %v124, %v158
  %v164 = vmul.f32 %v127, %v158
  %v165 = vmul.f32 %v129, %v158
  %v166 = vmul.f32 %v132, %v158
  %v167 = vmul.f32 %v134, %v158
  %v168 = vmul.f32 %v137, %v158
  %v169 = vmul.f32 %v139, %v158
  %v170 = vmul.f32 %v142, %v158
  %v171 = vmul.f32 %v144, %v158
  %v172 = vmul.f32 %v147, %v158
  %v173 = vmul.f32 %v149, %v158
  %v174 = vmul.f32 %v152, %v158
  %v175 = vmul.f32 %v154, %v158
  %v176 = vld [vmem:[%s3] sm:$0x1]
  %v178 = vperm.slane %v176, 0
  %v180 = vadd.f32 %v160, %v178
  %v181 = vadd.f32 %v161, %v178
  %v182 = vadd.f32 %v162, %v178
  %v183 = vadd.f32 %v163, %v178
  %v184 = vadd.f32 %v164, %v178
  %v185 = vadd.f32 %v165, %v178
  %v186 = vadd.f32 %v166, %v178
  %v187 = vadd.f32 %v167, %v178
  %v188 = vadd.f32 %v168, %v178
  %v189 = vadd.f32 %v169, %v178
  %v190 = vadd.f32 %v170, %v178
  %v191 = vadd.f32 %v171, %v178
  %v192 = vadd.f32 %v172, %v178
  %v193 = vadd.f32 %v173, %v178
  %v194 = vadd.f32 %v174, %v178
  %v195 = vadd.f32 %v175, %v178
  %196 = vst [vmem:[%s4] sm:$0xff] %v180
  %197 = vst [vmem:[%s4 + $0x8] sm:$0xff] %v181
  %198 = vst [vmem:[%s4 + $0x10] sm:$0xff] %v182
  %199 = vst [vmem:[%s4 + $0x18] sm:$0xff] %v183
  %200 = vst [vmem:[%s4 + $0x20] sm:$0xff] %v184
  %201 = vst [vmem:[%s4 + $0x28] sm:$0xff] %v185
  %202 = vst [vmem:[%s4 + $0x30] sm:$0xff] %v186
  %203 = vst [vmem:[%s4 + $0x38] sm:$0xff] %v187
  %204 = vst [vmem:[%s4 + $0x40] sm:$0xff] %v188
  %205 = vst [vmem:[%s4 + $0x48] sm:$0xff] %v189
  %206 = vst [vmem:[%s4 + $0x50] sm:$0xff] %v190
  %207 = vst [vmem:[%s4 + $0x58] sm:$0xff] %v191
  %208 = vst [vmem:[%s4 + $0x60] sm:$0xff] %v192
  %209 = vst [vmem:[%s4 + $0x68] sm:$0xff] %v193
  %210 = vst [vmem:[%s4 + $0x70] sm:$0xff] %v194
  %211 = vst [vmem:[%s4 + $0x78] sm:$0xff] %v195
  // Predicated region
  $region18: #{_lambda_.30} parent=0 // pred_check
    _
  $region19: #{_lambda_.30} parent=0 // pred_check_branch
    %213 = sbr.rel (0) target = $region21
  $region20: #{_lambda_.30} parent=0 // pred_region
    _
  $region21: #{_lambda_.30} parent=0 // pred_fallthru
    _
  // Predicated region
  $region22: #{_lambda_.30} parent=0 // pred_check
    _
  $region23: #{_lambda_.30} parent=0 // pred_check_branch
    %215 = sbr.rel (0) target = $region25
  $region24: #{_lambda_.30} parent=0 // pred_region
    _
  $region25: #{_lambda_.30} parent=0 // pred_fallthru
    _

// kernel: _lambda_.31
$region0: #{_lambda_.31}
  #allocation0 [shape = 'u32[]', space=smem, size = 0x4, offset = 0x4, fixed_abs, tag = 'smem constant byte address 0x4 - core index']
  #allocation1 [shape = 'u32[72,128]{1,0:T(1,128)}', space=vmem, size = 0x9000, scoped, tag = 'internal scratch']
  %s0 = inlined_call_operand.vmem [shape: bf16[128,288], index: 0, kind: input, shape index: {}]
  %s1 = inlined_call_operand.vmem [shape: bf16[288,128], index: 1, kind: input, shape index: {}]
  %s2 = inlined_call_operand.vmem [shape: f32[1,128], index: 2, kind: input, shape index: {}]
  %s3 = inlined_call_operand.vmem [shape: f32[1,128], index: 3, kind: input, shape index: {}]
  %s4 = inlined_call_operand.vmem [shape: f32[128,128], index: 4, kind: input, shape index: {}]
  %s5 = inlined_call_operand.vmem [shape: f32[128,128], index: 5, kind: output, shape index: {}]
  %s6 = sld [smem:[#allocation0]]
  $region30: #{_lambda_.31} parent=0
    _
  %s8 = ssub.s32 1, %s6
  %s9 = scalar_select 0, %s8, %s6
  // Predicated region
  $region2: #{_lambda_.31} parent=0 // pred_check
    _
  $region3: #{_lambda_.31} parent=0 // pred_check_branch
    %11 = sbr.rel (0) target = $region5
  $region4: #{_lambda_.31} parent=0 // pred_region
    _
  $region5: #{_lambda_.31} parent=0 // pred_fallthru
    _
  // Predicated region
  $region6: #{_lambda_.31} parent=0 // pred_check
    _
  $region7: #{_lambda_.31} parent=0 // pred_check_branch
    %13 = sbr.rel (0) target = $region9
  $region8: #{_lambda_.31} parent=0 // pred_region
    _
  $region9: #{_lambda_.31} parent=0 // pred_fallthru
    _
  // Predicated region
  $region10: #{_lambda_.31} parent=0 // pred_check
    _
  $region11: #{_lambda_.31} parent=0 // pred_check_branch
    %15 = sbr.rel (0) target = $region13
  $region12: #{_lambda_.31} parent=0 // pred_region
    _
  $region13: #{_lambda_.31} parent=0 // pred_fallthru
    _
  // Predicated region
  $region14: #{_lambda_.31} parent=0 // pred_check
    _
  $region15: #{_lambda_.31} parent=0 // pred_check_branch
    %17 = sbr.rel (0) target = $region17
  $region16: #{_lambda_.31} parent=0 // pred_region
    _
  $region17: #{_lambda_.31} parent=0 // pred_fallthru
    _
  // Predicated region
  $region18: #{_lambda_.31} parent=0 // pred_check
    _
  $region19: #{_lambda_.31} parent=0 // pred_check_branch
    %19 = sbr.rel (0) target = $region21
  $region20: #{_lambda_.31} parent=0 // pred_region
    _
  $region21: #{_lambda_.31} parent=0 // pred_fallthru
    _
  %v21 = vld [vmem:[%s0] sm:$0xff]
  %v22 = vld [vmem:[%s0 + $0x8] sm:$0xf]
  %v23 = vld [vmem:[%s0 + $0xc] sm:$0xff]
  %v24 = vld [vmem:[%s0 + $0x14] sm:$0xf]
  %v25 = vld [vmem:[%s0 + $0x18] sm:$0xff]
  %v26 = vld [vmem:[%s0 + $0x20] sm:$0xf]
  %v27 = vld [vmem:[%s0 + $0x24] sm:$0xff]
  %v28 = vld [vmem:[%s0 + $0x2c] sm:$0xf]
  %v29 = vld [vmem:[%s0 + $0x30] sm:$0xff]
  %v30 = vld [vmem:[%s0 + $0x38] sm:$0xf]
  %v31 = vld [vmem:[%s0 + $0x3c] sm:$0xff]
  %v32 = vld [vmem:[%s0 + $0x44] sm:$0xf]
  %v33 = vld [vmem:[%s0 + $0x48] sm:$0xff]
  %v34 = vld [vmem:[%s0 + $0x50] sm:$0xf]
  %v35 = vld [vmem:[%s0 + $0x54] sm:$0xff]
  %v36 = vld [vmem:[%s0 + $0x5c] sm:$0xf]
  %v37 = vld [vmem:[%s0 + $0x60] sm:$0xff]
  %v38 = vld [vmem:[%s0 + $0x68] sm:$0xf]
  %v39 = vld [vmem:[%s0 + $0x6c] sm:$0xff]
  %v40 = vld [vmem:[%s0 + $0x74] sm:$0xf]
  %v41 = vld [vmem:[%s0 + $0x78] sm:$0xff]
  %v42 = vld [vmem:[%s0 + $0x80] sm:$0xf]
  %v43 = vld [vmem:[%s0 + $0x84] sm:$0xff]
  %v44 = vld [vmem:[%s0 + $0x8c] sm:$0xf]
  %v45 = vld [vmem:[%s0 + $0x90] sm:$0xff]
  %v46 = vld [vmem:[%s0 + $0x98] sm:$0xf]
  %v47 = vld [vmem:[%s0 + $0x9c] sm:$0xff]
  %v48 = vld [vmem:[%s0 + $0xa4] sm:$0xf]
  %v49 = vld [vmem:[%s0 + $0xa8] sm:$0xff]
  %v50 = vld [vmem:[%s0 + $0xb0] sm:$0xf]
  %v51 = vld [vmem:[%s0 + $0xb4] sm:$0xff]
  %v52 = vld [vmem:[%s0 + $0xbc] sm:$0xf]
  %v53 = vld [vmem:[%s1] sm:$0xf]
  %v54 = vld [vmem:[%s1 + $0x4] sm:$0xf]
  %v55 = vld [vmem:[%s1 + $0x8] sm:$0xf]
  %v56 = vld [vmem:[%s1 + $0xc] sm:$0xf]
  %v57 = vld [vmem:[%s1 + $0x10] sm:$0xf]
  %v58 = vld [vmem:[%s1 + $0x14] sm:$0xf]
  %v59 = vld [vmem:[%s1 + $0x18] sm:$0xf]
  %v60 = vld [vmem:[%s1 + $0x1c] sm:$0xf]
  %v61 = vld [vmem:[%s1 + $0x20] sm:$0xf]
  %v62 = vld [vmem:[%s1 + $0x24] sm:$0xf]
  %v63 = vld [vmem:[%s1 + $0x28] sm:$0xf]
  %v64 = vld [vmem:[%s1 + $0x2c] sm:$0xf]
  %v65 = vld [vmem:[%s1 + $0x30] sm:$0xf]
  %v66 = vld [vmem:[%s1 + $0x34] sm:$0xf]
  %v67 = vld [vmem:[%s1 + $0x38] sm:$0xf]
  %v68 = vld [vmem:[%s1 + $0x3c] sm:$0xf]
  %v69 = vld [vmem:[%s1 + $0x40] sm:$0xf]
  %v70 = vld [vmem:[%s1 + $0x44] sm:$0xf]
  %v71 = vld [vmem:[%s1 + $0x48] sm:$0xf]
  %v72 = vld [vmem:[%s1 + $0x4c] sm:$0xf]
  %v73 = vld [vmem:[%s1 + $0x50] sm:$0xf]
  %v74 = vld [vmem:[%s1 + $0x54] sm:$0xf]
  %v75 = vld [vmem:[%s1 + $0x58] sm:$0xf]
  %v76 = vld [vmem:[%s1 + $0x5c] sm:$0xf]
  %v77 = vld [vmem:[%s1 + $0x60] sm:$0xf]
  %v78 = vld [vmem:[%s1 + $0x64] sm:$0xf]
  %v79 = vld [vmem:[%s1 + $0x68] sm:$0xf]
  %v80 = vld [vmem:[%s1 + $0x6c] sm:$0xf]
  %v81 = vld [vmem:[%s1 + $0x70] sm:$0xf]
  %v82 = vld [vmem:[%s1 + $0x74] sm:$0xf]
  %v83 = vld [vmem:[%s1 + $0x78] sm:$0xf]
  %v84 = vld [vmem:[%s1 + $0x7c] sm:$0xf]
  %v85 = vld [vmem:[%s1 + $0x80] sm:$0xf]
  %v86 = vld [vmem:[%s1 + $0x84] sm:$0xf]
  %v87 = vld [vmem:[%s1 + $0x88] sm:$0xf]
  %v88 = vld [vmem:[%s1 + $0x8c] sm:$0xf]
  %v121 = vunpack.c.l.b16 %v21
  %v122 = vunpack.c.h.b16 %v21
  %v123 = vunpack.c.l.b16 %v22
  %v124 = vunpack.c.l.b16 %v23
  %v125 = vunpack.c.h.b16 %v23
  %v126 = vunpack.c.l.b16 %v24
  %v127 = vunpack.c.l.b16 %v25
  %v128 = vunpack.c.h.b16 %v25
  %v129 = vunpack.c.l.b16 %v26
  %v130 = vunpack.c.l.b16 %v27
  %v131 = vunpack.c.h.b16 %v27
  %v132 = vunpack.c.l.b16 %v28
  %v133 = vunpack.c.l.b16 %v29
  %v134 = vunpack.c.h.b16 %v29
  %v135 = vunpack.c.l.b16 %v30
  %v136 = vunpack.c.l.b16 %v31
  %v137 = vunpack.c.h.b16 %v31
  %v138 = vunpack.c.l.b16 %v32
  %v139 = vunpack.c.l.b16 %v33
  %v140 = vunpack.c.h.b16 %v33
  %v141 = vunpack.c.l.b16 %v34
  %v142 = vunpack.c.l.b16 %v35
  %v143 = vunpack.c.h.b16 %v35
  %v144 = vunpack.c.l.b16 %v36
  %v145 = vunpack.c.l.b16 %v37
  %v146 = vunpack.c.h.b16 %v37
  %v147 = vunpack.c.l.b16 %v38
  %v148 = vunpack.c.l.b16 %v39
  %v149 = vunpack.c.h.b16 %v39
  %v150 = vunpack.c.l.b16 %v40
  %v151 = vunpack.c.l.b16 %v41
  %v152 = vunpack.c.h.b16 %v41
  %v153 = vunpack.c.l.b16 %v42
  %v154 = vunpack.c.l.b16 %v43
  %v155 = vunpack.c.h.b16 %v43
  %v156 = vunpack.c.l.b16 %v44
  %v157 = vunpack.c.l.b16 %v45
  %v158 = vunpack.c.h.b16 %v45
  %v159 = vunpack.c.l.b16 %v46
  %v160 = vunpack.c.l.b16 %v47
  %v161 = vunpack.c.h.b16 %v47
  %v162 = vunpack.c.l.b16 %v48
  %v163 = vunpack.c.l.b16 %v49
  %v164 = vunpack.c.h.b16 %v49
  %v165 = vunpack.c.l.b16 %v50
  %v166 = vunpack.c.l.b16 %v51
  %v167 = vunpack.c.h.b16 %v51
  %v168 = vunpack.c.l.b16 %v52
  %v169 = vpack.c.b16 %v124, %v121
  %v170 = vpack.c.b16 %v125, %v122
  %v171 = vpack.c.b16 %v126, %v123
  %v172 = vpack.c.b16 %v130, %v127
  %v173 = vpack.c.b16 %v131, %v128
  %v174 = vpack.c.b16 %v132, %v129
  %v175 = vpack.c.b16 %v136, %v133
  %v176 = vpack.c.b16 %v137, %v134
  %v177 = vpack.c.b16 %v138, %v135
  %v178 = vpack.c.b16 %v142, %v139
  %v179 = vpack.c.b16 %v143, %v140
  %v180 = vpack.c.b16 %v144, %v141
  %v181 = vpack.c.b16 %v148, %v145
  %v182 = vpack.c.b16 %v149, %v146
  %v183 = vpack.c.b16 %v150, %v147
  %v184 = vpack.c.b16 %v154, %v151
  %v185 = vpack.c.b16 %v155, %v152
  %v186 = vpack.c.b16 %v156, %v153
  %v187 = vpack.c.b16 %v160, %v157
  %v188 = vpack.c.b16 %v161, %v158
  %v189 = vpack.c.b16 %v162, %v159
  %v190 = vpack.c.b16 %v166, %v163
  %v191 = vpack.c.b16 %v167, %v164
  %v192 = vpack.c.b16 %v168, %v165
  %v245 = vunpack.c.l.b16 %v53
  %v246 = vunpack.c.l.b16 %v54
  %v247 = vunpack.c.l.b16 %v55
  %v248 = vunpack.c.l.b16 %v56
  %v249 = vunpack.c.l.b16 %v57
  %v250 = vunpack.c.l.b16 %v58
  %v251 = vunpack.c.l.b16 %v59
  %v252 = vunpack.c.l.b16 %v60
  %v253 = vunpack.c.l.b16 %v61
  %v254 = vunpack.c.l.b16 %v62
  %v255 = vunpack.c.l.b16 %v63
  %v256 = vunpack.c.l.b16 %v64
  %v257 = vunpack.c.l.b16 %v65
  %v258 = vunpack.c.l.b16 %v66
  %v259 = vunpack.c.l.b16 %v67
  %v260 = vunpack.c.l.b16 %v68
  %v261 = vunpack.c.l.b16 %v69
  %v262 = vunpack.c.l.b16 %v70
  %v263 = vunpack.c.l.b16 %v71
  %v264 = vunpack.c.l.b16 %v72
  %v265 = vunpack.c.l.b16 %v73
  %v266 = vunpack.c.l.b16 %v74
  %v267 = vunpack.c.l.b16 %v75
  %v268 = vunpack.c.l.b16 %v76
  %v269 = vunpack.c.l.b16 %v77
  %v270 = vunpack.c.l.b16 %v78
  %v271 = vunpack.c.l.b16 %v79
  %v272 = vunpack.c.l.b16 %v80
  %v273 = vunpack.c.l.b16 %v81
  %v274 = vunpack.c.l.b16 %v82
  %v275 = vunpack.c.l.b16 %v83
  %v276 = vunpack.c.l.b16 %v84
  %v277 = vunpack.c.l.b16 %v85
  %v278 = vunpack.c.l.b16 %v86
  %v279 = vunpack.c.l.b16 %v87
  %v280 = vunpack.c.l.b16 %v88
  %v281 = vpack.c.b16 %v246, %v245
  %v282 = vpack.c.b16 %v248, %v247
  %v283 = vpack.c.b16 %v250, %v249
  %v284 = vpack.c.b16 %v252, %v251
  %v285 = vpack.c.b16 %v254, %v253
  %v286 = vpack.c.b16 %v256, %v255
  %v287 = vpack.c.b16 %v258, %v257
  %v288 = vpack.c.b16 %v260, %v259
  %v289 = vpack.c.b16 %v262, %v261
  %v290 = vpack.c.b16 %v264, %v263
  %v291 = vpack.c.b16 %v266, %v265
  %v292 = vpack.c.b16 %v268, %v267
  %v293 = vpack.c.b16 %v270, %v269
  %v294 = vpack.c.b16 %v272, %v271
  %v295 = vpack.c.b16 %v274, %v273
  %v296 = vpack.c.b16 %v276, %v275
  %v297 = vpack.c.b16 %v278, %v277
  %v298 = vpack.c.b16 %v280, %v279
  %vm317 = vcmask 261120
  %v319 = vsel %vm317, %v171, 0
  %v322 = vsel %vm317, %v174, 0
  %v325 = vsel %vm317, %v177, 0
  %v328 = vsel %vm317, %v180, 0
  %v331 = vsel %vm317, %v183, 0
  %v334 = vsel %vm317, %v186, 0
  %v337 = vsel %vm317, %v189, 0
  %v340 = vsel %vm317, %v192, 0
  %342 = vmatpush.bf16.msra.mxu0 %v288
  %343 = vmatpush.bf16.msra.mxu0 %v287
  %344 = vmatpush.bf16.msra.mxu0 %v286
  %345 = vmatpush.bf16.msra.mxu0 %v285
  %346 = vmatpush.bf16.msra.mxu0 %v284
  %347 = vmatpush.bf16.msra.mxu0 %v283
  %348 = vmatpush.bf16.msra.mxu0 %v282
  %349 = vmatpush.bf16.msra.mxu0 %v281
  %350 = vmatmul.bf16.gmra.mxu0 %v169
  %v351 = vpop.f32.mrf.mxu0
  %v352 = vadd.f32 0.0, %v351
  %v353 = vpop.f32.mrf.mxu0
  %v354 = vadd.f32 0.0, %v353
  %355 = vmatmul.bf16.gmra.mxu0 %v172
  %v356 = vpop.f32.mrf.mxu0
  %v357 = vadd.f32 0.0, %v356
  %v358 = vpop.f32.mrf.mxu0
  %v359 = vadd.f32 0.0, %v358
  %360 = vmatmul.bf16.gmra.mxu0 %v175
  %v361 = vpop.f32.mrf.mxu0
  %v362 = vadd.f32 0.0, %v361
  %v363 = vpop.f32.mrf.mxu0
  %v364 = vadd.f32 0.0, %v363
  %365 = vmatmul.bf16.gmra.mxu0 %v178
  %v366 = vpop.f32.mrf.mxu0
  %v367 = vadd.f32 0.0, %v366
  %v368 = vpop.f32.mrf.mxu0
  %v369 = vadd.f32 0.0, %v368
  %370 = vmatmul.bf16.gmra.mxu0 %v181
  %v371 = vpop.f32.mrf.mxu0
  %v372 = vadd.f32 0.0, %v371
  %v373 = vpop.f32.mrf.mxu0
  %v374 = vadd.f32 0.0, %v373
  %375 = vmatmul.bf16.gmra.mxu0 %v184
  %v376 = vpop.f32.mrf.mxu0
  %v377 = vadd.f32 0.0, %v376
  %v378 = vpop.f32.mrf.mxu0
  %v379 = vadd.f32 0.0, %v378
  %380 = vmatmul.bf16.gmra.mxu0 %v187
  %v381 = vpop.f32.mrf.mxu0
  %v382 = vadd.f32 0.0, %v381
  %v383 = vpop.f32.mrf.mxu0
  %v384 = vadd.f32 0.0, %v383
  %385 = vmatmul.bf16.gmra.mxu0 %v190
  %v386 = vpop.f32.mrf.mxu0
  %v387 = vadd.f32 0.0, %v386
  %v388 = vpop.f32.mrf.mxu0
  %v389 = vadd.f32 0.0, %v388
  %390 = vdwg.mxu0
  %391 = vmatpush.bf16.msra.mxu0 %v296
  %392 = vmatpush.bf16.msra.mxu0 %v295
  %393 = vmatpush.bf16.msra.mxu0 %v294
  %394 = vmatpush.bf16.msra.mxu0 %v293
  %395 = vmatpush.bf16.msra.mxu0 %v292
  %396 = vmatpush.bf16.msra.mxu0 %v291
  %397 = vmatpush.bf16.msra.mxu0 %v290
  %398 = vmatpush.bf16.msra.mxu0 %v289
  %399 = vmatmul.bf16.gmra.mxu0 %v170
  %v400 = vpop.f32.mrf.mxu0
  %v401 = vadd.f32 %v352, %v400
  %v402 = vpop.f32.mrf.mxu0
  %v403 = vadd.f32 %v354, %v402
  %404 = vmatmul.bf16.gmra.mxu0 %v173
  %v405 = vpop.f32.mrf.mxu0
  %v406 = vadd.f32 %v357, %v405
  %v407 = vpop.f32.mrf.mxu0
  %v408 = vadd.f32 %v359, %v407
  %409 = vmatmul.bf16.gmra.mxu0 %v176
  %v410 = vpop.f32.mrf.mxu0
  %v411 = vadd.f32 %v362, %v410
  %v412 = vpop.f32.mrf.mxu0
  %v413 = vadd.f32 %v364, %v412
  %414 = vmatmul.bf16.gmra.mxu0 %v179
  %v415 = vpop.f32.mrf.mxu0
  %v416 = vadd.f32 %v367, %v415
  %v417 = vpop.f32.mrf.mxu0
  %v418 = vadd.f32 %v369, %v417
  %419 = vmatmul.bf16.gmra.mxu0 %v182
  %v420 = vpop.f32.mrf.mxu0
  %v421 = vadd.f32 %v372, %v420
  %v422 = vpop.f32.mrf.mxu0
  %v423 = vadd.f32 %v374, %v422
  %424 = vmatmul.bf16.gmra.mxu0 %v185
  %v425 = vpop.f32.mrf.mxu0
  %v426 = vadd.f32 %v377, %v425
  %v427 = vpop.f32.mrf.mxu0
  %v428 = vadd.f32 %v379, %v427
  %429 = vmatmul.bf16.gmra.mxu0 %v188
  %v430 = vpop.f32.mrf.mxu0
  %v431 = vadd.f32 %v382, %v430
  %v432 = vpop.f32.mrf.mxu0
  %v433 = vadd.f32 %v384, %v432
  %434 = vmatmul.bf16.gmra.mxu0 %v191
  %v435 = vpop.f32.mrf.mxu0
  %v436 = vadd.f32 %v387, %v435
  %v437 = vpop.f32.mrf.mxu0
  %v438 = vadd.f32 %v389, %v437
  %439 = vdwg.mxu0
  %440 = vmatpush.bf16.msra.mxu0 0
  %441 = vmatpush.bf16.msra.mxu0 0
  %442 = vmatpush.bf16.msra.mxu0 0
  %443 = vmatpush.bf16.msra.mxu0 0
  %444 = vmatpush.bf16.msra.mxu0 0
  %445 = vmatpush.bf16.msra.mxu0 0
  %446 = vmatpush.bf16.msra.mxu0 %v298
  %447 = vmatpush.bf16.msra.mxu0 %v297
  %448 = vmatmul.bf16.gmra.mxu0 %v319
  %v449 = vpop.f32.mrf.mxu0
  %v450 = vadd.f32 %v401, %v449
  %v451 = vpop.f32.mrf.mxu0
  %v452 = vadd.f32 %v403, %v451
  %453 = vmatmul.bf16.gmra.mxu0 %v322
  %v454 = vpop.f32.mrf.mxu0
  %v455 = vadd.f32 %v406, %v454
  %v456 = vpop.f32.mrf.mxu0
  %v457 = vadd.f32 %v408, %v456
  %458 = vmatmul.bf16.gmra.mxu0 %v325
  %v459 = vpop.f32.mrf.mxu0
  %v460 = vadd.f32 %v411, %v459
  %v461 = vpop.f32.mrf.mxu0
  %v462 = vadd.f32 %v413, %v461
  %463 = vmatmul.bf16.gmra.mxu0 %v328
  %v464 = vpop.f32.mrf.mxu0
  %v465 = vadd.f32 %v416, %v464
  %v466 = vpop.f32.mrf.mxu0
  %v467 = vadd.f32 %v418, %v466
  %468 = vmatmul.bf16.gmra.mxu0 %v331
  %v469 = vpop.f32.mrf.mxu0
  %v470 = vadd.f32 %v421, %v469
  %v471 = vpop.f32.mrf.mxu0
  %v472 = vadd.f32 %v423, %v471
  %473 = vmatmul.bf16.gmra.mxu0 %v334
  %v474 = vpop.f32.mrf.mxu0
  %v475 = vadd.f32 %v426, %v474
  %v476 = vpop.f32.mrf.mxu0
  %v477 = vadd.f32 %v428, %v476
  %478 = vmatmul.bf16.gmra.mxu0 %v337
  %v479 = vpop.f32.mrf.mxu0
  %v480 = vadd.f32 %v431, %v479
  %v481 = vpop.f32.mrf.mxu0
  %v482 = vadd.f32 %v433, %v481
  %483 = vmatmul.bf16.gmra.mxu0 %v340
  %v484 = vpop.f32.mrf.mxu0
  %v485 = vadd.f32 %v436, %v484
  %v486 = vpop.f32.mrf.mxu0
  %v487 = vadd.f32 %v438, %v486
  %488 = vdwg.mxu0
  %v489 = vld [vmem:[%s2] sm:$0x1]
  %v491 = vperm.slane %v489, 0
  %v493 = vmul.f32 %v450, %v491
  %v494 = vmul.f32 %v452, %v491
  %v495 = vmul.f32 %v455, %v491
  %v496 = vmul.f32 %v457, %v491
  %v497 = vmul.f32 %v460, %v491
  %v498 = vmul.f32 %v462, %v491
  %v499 = vmul.f32 %v465, %v491
  %v500 = vmul.f32 %v467, %v491
  %v501 = vmul.f32 %v470, %v491
  %v502 = vmul.f32 %v472, %v491
  %v503 = vmul.f32 %v475, %v491
  %v504 = vmul.f32 %v477, %v491
  %v505 = vmul.f32 %v480, %v491
  %v506 = vmul.f32 %v482, %v491
  %v507 = vmul.f32 %v485, %v491
  %v508 = vmul.f32 %v487, %v491
  %v509 = vld [vmem:[%s3] sm:$0x1]
  %v511 = vperm.slane %v509, 0
  %v513 = vadd.f32 %v493, %v511
  %v514 = vadd.f32 %v494, %v511
  %v515 = vadd.f32 %v495, %v511
  %v516 = vadd.f32 %v496, %v511
  %v517 = vadd.f32 %v497, %v511
  %v518 = vadd.f32 %v498, %v511
  %v519 = vadd.f32 %v499, %v511
  %v520 = vadd.f32 %v500, %v511
  %v521 = vadd.f32 %v501, %v511
  %v522 = vadd.f32 %v502, %v511
  %v523 = vadd.f32 %v503, %v511
  %v524 = vadd.f32 %v504, %v511
  %v525 = vadd.f32 %v505, %v511
  %v526 = vadd.f32 %v506, %v511
  %v527 = vadd.f32 %v507, %v511
  %v528 = vadd.f32 %v508, %v511
  %v529 = vld [vmem:[%s4] sm:$0xff]
  %v530 = vld [vmem:[%s4 + $0x8] sm:$0xff]
  %v531 = vld [vmem:[%s4 + $0x10] sm:$0xff]
  %v532 = vld [vmem:[%s4 + $0x18] sm:$0xff]
  %v533 = vld [vmem:[%s4 + $0x20] sm:$0xff]
  %v534 = vld [vmem:[%s4 + $0x28] sm:$0xff]
  %v535 = vld [vmem:[%s4 + $0x30] sm:$0xff]
  %v536 = vld [vmem:[%s4 + $0x38] sm:$0xff]
  %v537 = vld [vmem:[%s4 + $0x40] sm:$0xff]
  %v538 = vld [vmem:[%s4 + $0x48] sm:$0xff]
  %v539 = vld [vmem:[%s4 + $0x50] sm:$0xff]
  %v540 = vld [vmem:[%s4 + $0x58] sm:$0xff]
  %v541 = vld [vmem:[%s4 + $0x60] sm:$0xff]
  %v542 = vld [vmem:[%s4 + $0x68] sm:$0xff]
  %v543 = vld [vmem:[%s4 + $0x70] sm:$0xff]
  %v544 = vld [vmem:[%s4 + $0x78] sm:$0xff]
  %v545 = vadd.f32 %v513, %v529
  %v546 = vadd.f32 %v514, %v530
  %v547 = vadd.f32 %v515, %v531
  %v548 = vadd.f32 %v516, %v532
  %v549 = vadd.f32 %v517, %v533
  %v550 = vadd.f32 %v518, %v534
  %v551 = vadd.f32 %v519, %v535
  %v552 = vadd.f32 %v520, %v536
  %v553 = vadd.f32 %v521, %v537
  %v554 = vadd.f32 %v522, %v538
  %v555 = vadd.f32 %v523, %v539
  %v556 = vadd.f32 %v524, %v540
  %v557 = vadd.f32 %v525, %v541
  %v558 = vadd.f32 %v526, %v542
  %v559 = vadd.f32 %v527, %v543
  %v560 = vadd.f32 %v528, %v544
  %v561 = vmax.f32 %v545, 0.0
  %v562 = vmax.f32 %v546, 0.0
  %v563 = vmax.f32 %v547, 0.0
  %v564 = vmax.f32 %v548, 0.0
  %v565 = vmax.f32 %v549, 0.0
  %v566 = vmax.f32 %v550, 0.0
  %v567 = vmax.f32 %v551, 0.0
  %v568 = vmax.f32 %v552, 0.0
  %v569 = vmax.f32 %v553, 0.0
  %v570 = vmax.f32 %v554, 0.0
  %v571 = vmax.f32 %v555, 0.0
  %v572 = vmax.f32 %v556, 0.0
  %v573 = vmax.f32 %v557, 0.0
  %v574 = vmax.f32 %v558, 0.0
  %v575 = vmax.f32 %v559, 0.0
  %v576 = vmax.f32 %v560, 0.0
  %577 = vst [vmem:[%s5] sm:$0xff] %v561
  %578 = vst [vmem:[%s5 + $0x8] sm:$0xff] %v562
  %579 = vst [vmem:[%s5 + $0x10] sm:$0xff] %v563
  %580 = vst [vmem:[%s5 + $0x18] sm:$0xff] %v564
  %581 = vst [vmem:[%s5 + $0x20] sm:$0xff] %v565
  %582 = vst [vmem:[%s5 + $0x28] sm:$0xff] %v566
  %583 = vst [vmem:[%s5 + $0x30] sm:$0xff] %v567
  %584 = vst [vmem:[%s5 + $0x38] sm:$0xff] %v568
  %585 = vst [vmem:[%s5 + $0x40] sm:$0xff] %v569
  %586 = vst [vmem:[%s5 + $0x48] sm:$0xff] %v570
  %587 = vst [vmem:[%s5 + $0x50] sm:$0xff] %v571
  %588 = vst [vmem:[%s5 + $0x58] sm:$0xff] %v572
  %589 = vst [vmem:[%s5 + $0x60] sm:$0xff] %v573
  %590 = vst [vmem:[%s5 + $0x68] sm:$0xff] %v574
  %591 = vst [vmem:[%s5 + $0x70] sm:$0xff] %v575
  %592 = vst [vmem:[%s5 + $0x78] sm:$0xff] %v576
  // Predicated region
  $region22: #{_lambda_.31} parent=0 // pred_check
    _
  $region23: #{_lambda_.31} parent=0 // pred_check_branch
    %594 = sbr.rel (0) target = $region25
  $region24: #{_lambda_.31} parent=0 // pred_region
    _
  $region25: #{_lambda_.31} parent=0 // pred_fallthru
    _
  // Predicated region
  $region26: #{_lambda_.31} parent=0 // pred_check
    _
  $region27: #{_lambda_.31} parent=0 // pred_check_branch
    %596 = sbr.rel (0) target = $region29
  $region28: #{_lambda_.31} parent=0 // pred_region
    _
  $region29: #{_lambda_.31} parent=0 // pred_fallthru
    _

// kernel: _lambda_.32
$region0: #{_lambda_.32}
  #allocation0 [shape = 'u32[]', space=smem, size = 0x4, offset = 0x4, fixed_abs, tag = 'smem constant byte address 0x4 - core index']
  #allocation1 [shape = 'u32[72,128]{1,0:T(1,128)}', space=vmem, size = 0x9000, scoped, tag = 'internal scratch']
  %s0 = inlined_call_operand.vmem [shape: bf16[128,288], index: 0, kind: input, shape index: {}]
  %s1 = inlined_call_operand.vmem [shape: bf16[288,128], index: 1, kind: input, shape index: {}]
  %s2 = inlined_call_operand.vmem [shape: f32[1,128], index: 2, kind: input, shape index: {}]
  %s3 = inlined_call_operand.vmem [shape: f32[1,128], index: 3, kind: input, shape index: {}]
  %s4 = inlined_call_operand.vmem [shape: f32[128,128], index: 4, kind: output, shape index: {}]
  %s5 = sld [smem:[#allocation0]]
  $region26: #{_lambda_.32} parent=0
    _
  %s7 = ssub.s32 1, %s5
  %s8 = scalar_select 0, %s7, %s5
  // Predicated region
  $region2: #{_lambda_.32} parent=0 // pred_check
    _
  $region3: #{_lambda_.32} parent=0 // pred_check_branch
    %10 = sbr.rel (0) target = $region5
  $region4: #{_lambda_.32} parent=0 // pred_region
    _
  $region5: #{_lambda_.32} parent=0 // pred_fallthru
    _
  // Predicated region
  $region6: #{_lambda_.32} parent=0 // pred_check
    _
  $region7: #{_lambda_.32} parent=0 // pred_check_branch
    %12 = sbr.rel (0) target = $region9
  $region8: #{_lambda_.32} parent=0 // pred_region
    _
  $region9: #{_lambda_.32} parent=0 // pred_fallthru
    _
  // Predicated region
  $region10: #{_lambda_.32} parent=0 // pred_check
    _
  $region11: #{_lambda_.32} parent=0 // pred_check_branch
    %14 = sbr.rel (0) target = $region13
  $region12: #{_lambda_.32} parent=0 // pred_region
    _
  $region13: #{_lambda_.32} parent=0 // pred_fallthru
    _
  // Predicated region
  $region14: #{_lambda_.32} parent=0 // pred_check
    _
  $region15: #{_lambda_.32} parent=0 // pred_check_branch
    %16 = sbr.rel (0) target = $region17
  $region16: #{_lambda_.32} parent=0 // pred_region
    _
  $region17: #{_lambda_.32} parent=0 // pred_fallthru
    _
  %v18 = vld [vmem:[%s0] sm:$0xff]
  %v19 = vld [vmem:[%s0 + $0x8] sm:$0xf]
  %v20 = vld [vmem:[%s0 + $0xc] sm:$0xff]
  %v21 = vld [vmem:[%s0 + $0x14] sm:$0xf]
  %v22 = vld [vmem:[%s0 + $0x18] sm:$0xff]
  %v23 = vld [vmem:[%s0 + $0x20] sm:$0xf]
  %v24 = vld [vmem:[%s0 + $0x24] sm:$0xff]
  %v25 = vld [vmem:[%s0 + $0x2c] sm:$0xf]
  %v26 = vld [vmem:[%s0 + $0x30] sm:$0xff]
  %v27 = vld [vmem:[%s0 + $0x38] sm:$0xf]
  %v28 = vld [vmem:[%s0 + $0x3c] sm:$0xff]
  %v29 = vld [vmem:[%s0 + $0x44] sm:$0xf]
  %v30 = vld [vmem:[%s0 + $0x48] sm:$0xff]
  %v31 = vld [vmem:[%s0 + $0x50] sm:$0xf]
  %v32 = vld [vmem:[%s0 + $0x54] sm:$0xff]
  %v33 = vld [vmem:[%s0 + $0x5c] sm:$0xf]
  %v34 = vld [vmem:[%s0 + $0x60] sm:$0xff]
  %v35 = vld [vmem:[%s0 + $0x68] sm:$0xf]
  %v36 = vld [vmem:[%s0 + $0x6c] sm:$0xff]
  %v37 = vld [vmem:[%s0 + $0x74] sm:$0xf]
  %v38 = vld [vmem:[%s0 + $0x78] sm:$0xff]
  %v39 = vld [vmem:[%s0 + $0x80] sm:$0xf]
  %v40 = vld [vmem:[%s0 + $0x84] sm:$0xff]
  %v41 = vld [vmem:[%s0 + $0x8c] sm:$0xf]
  %v42 = vld [vmem:[%s0 + $0x90] sm:$0xff]
  %v43 = vld [vmem:[%s0 + $0x98] sm:$0xf]
  %v44 = vld [vmem:[%s0 + $0x9c] sm:$0xff]
  %v45 = vld [vmem:[%s0 + $0xa4] sm:$0xf]
  %v46 = vld [vmem:[%s0 + $0xa8] sm:$0xff]
  %v47 = vld [vmem:[%s0 + $0xb0] sm:$0xf]
  %v48 = vld [vmem:[%s0 + $0xb4] sm:$0xff]
  %v49 = vld [vmem:[%s0 + $0xbc] sm:$0xf]
  %v50 = vld [vmem:[%s1] sm:$0xf]
  %v51 = vld [vmem:[%s1 + $0x4] sm:$0xf]
  %v52 = vld [vmem:[%s1 + $0x8] sm:$0xf]
  %v53 = vld [vmem:[%s1 + $0xc] sm:$0xf]
  %v54 = vld [vmem:[%s1 + $0x10] sm:$0xf]
  %v55 = vld [vmem:[%s1 + $0x14] sm:$0xf]
  %v56 = vld [vmem:[%s1 + $0x18] sm:$0xf]
  %v57 = vld [vmem:[%s1 + $0x1c] sm:$0xf]
  %v58 = vld [vmem:[%s1 + $0x20] sm:$0xf]
  %v59 = vld [vmem:[%s1 + $0x24] sm:$0xf]
  %v60 = vld [vmem:[%s1 + $0x28] sm:$0xf]
  %v61 = vld [vmem:[%s1 + $0x2c] sm:$0xf]
  %v62 = vld [vmem:[%s1 + $0x30] sm:$0xf]
  %v63 = vld [vmem:[%s1 + $0x34] sm:$0xf]
  %v64 = vld [vmem:[%s1 + $0x38] sm:$0xf]
  %v65 = vld [vmem:[%s1 + $0x3c] sm:$0xf]
  %v66 = vld [vmem:[%s1 + $0x40] sm:$0xf]
  %v67 = vld [vmem:[%s1 + $0x44] sm:$0xf]
  %v68 = vld [vmem:[%s1 + $0x48] sm:$0xf]
  %v69 = vld [vmem:[%s1 + $0x4c] sm:$0xf]
  %v70 = vld [vmem:[%s1 + $0x50] sm:$0xf]
  %v71 = vld [vmem:[%s1 + $0x54] sm:$0xf]
  %v72 = vld [vmem:[%s1 + $0x58] sm:$0xf]
  %v73 = vld [vmem:[%s1 + $0x5c] sm:$0xf]
  %v74 = vld [vmem:[%s1 + $0x60] sm:$0xf]
  %v75 = vld [vmem:[%s1 + $0x64] sm:$0xf]
  %v76 = vld [vmem:[%s1 + $0x68] sm:$0xf]
  %v77 = vld [vmem:[%s1 + $0x6c] sm:$0xf]
  %v78 = vld [vmem:[%s1 + $0x70] sm:$0xf]
  %v79 = vld [vmem:[%s1 + $0x74] sm:$0xf]
  %v80 = vld [vmem:[%s1 + $0x78] sm:$0xf]
  %v81 = vld [vmem:[%s1 + $0x7c] sm:$0xf]
  %v82 = vld [vmem:[%s1 + $0x80] sm:$0xf]
  %v83 = vld [vmem:[%s1 + $0x84] sm:$0xf]
  %v84 = vld [vmem:[%s1 + $0x88] sm:$0xf]
  %v85 = vld [vmem:[%s1 + $0x8c] sm:$0xf]
  %v118 = vunpack.c.l.b16 %v18
  %v119 = vunpack.c.h.b16 %v18
  %v120 = vunpack.c.l.b16 %v19
  %v121 = vunpack.c.l.b16 %v20
  %v122 = vunpack.c.h.b16 %v20
  %v123 = vunpack.c.l.b16 %v21
  %v124 = vunpack.c.l.b16 %v22
  %v125 = vunpack.c.h.b16 %v22
  %v126 = vunpack.c.l.b16 %v23
  %v127 = vunpack.c.l.b16 %v24
  %v128 = vunpack.c.h.b16 %v24
  %v129 = vunpack.c.l.b16 %v25
  %v130 = vunpack.c.l.b16 %v26
  %v131 = vunpack.c.h.b16 %v26
  %v132 = vunpack.c.l.b16 %v27
  %v133 = vunpack.c.l.b16 %v28
  %v134 = vunpack.c.h.b16 %v28
  %v135 = vunpack.c.l.b16 %v29
  %v136 = vunpack.c.l.b16 %v30
  %v137 = vunpack.c.h.b16 %v30
  %v138 = vunpack.c.l.b16 %v31
  %v139 = vunpack.c.l.b16 %v32
  %v140 = vunpack.c.h.b16 %v32
  %v141 = vunpack.c.l.b16 %v33
  %v142 = vunpack.c.l.b16 %v34
  %v143 = vunpack.c.h.b16 %v34
  %v144 = vunpack.c.l.b16 %v35
  %v145 = vunpack.c.l.b16 %v36
  %v146 = vunpack.c.h.b16 %v36
  %v147 = vunpack.c.l.b16 %v37
  %v148 = vunpack.c.l.b16 %v38
  %v149 = vunpack.c.h.b16 %v38
  %v150 = vunpack.c.l.b16 %v39
  %v151 = vunpack.c.l.b16 %v40
  %v152 = vunpack.c.h.b16 %v40
  %v153 = vunpack.c.l.b16 %v41
  %v154 = vunpack.c.l.b16 %v42
  %v155 = vunpack.c.h.b16 %v42
  %v156 = vunpack.c.l.b16 %v43
  %v157 = vunpack.c.l.b16 %v44
  %v158 = vunpack.c.h.b16 %v44
  %v159 = vunpack.c.l.b16 %v45
  %v160 = vunpack.c.l.b16 %v46
  %v161 = vunpack.c.h.b16 %v46
  %v162 = vunpack.c.l.b16 %v47
  %v163 = vunpack.c.l.b16 %v48
  %v164 = vunpack.c.h.b16 %v48
  %v165 = vunpack.c.l.b16 %v49
  %v166 = vpack.c.b16 %v121, %v118
  %v167 = vpack.c.b16 %v122, %v119
  %v168 = vpack.c.b16 %v123, %v120
  %v169 = vpack.c.b16 %v127, %v124
  %v170 = vpack.c.b16 %v128, %v125
  %v171 = vpack.c.b16 %v129, %v126
  %v172 = vpack.c.b16 %v133, %v130
  %v173 = vpack.c.b16 %v134, %v131
  %v174 = vpack.c.b16 %v135, %v132
  %v175 = vpack.c.b16 %v139, %v136
  %v176 = vpack.c.b16 %v140, %v137
  %v177 = vpack.c.b16 %v141, %v138
  %v178 = vpack.c.b16 %v145, %v142
  %v179 = vpack.c.b16 %v146, %v143
  %v180 = vpack.c.b16 %v147, %v144
  %v181 = vpack.c.b16 %v151, %v148
  %v182 = vpack.c.b16 %v152, %v149
  %v183 = vpack.c.b16 %v153, %v150
  %v184 = vpack.c.b16 %v157, %v154
  %v185 = vpack.c.b16 %v158, %v155
  %v186 = vpack.c.b16 %v159, %v156
  %v187 = vpack.c.b16 %v163, %v160
  %v188 = vpack.c.b16 %v164, %v161
  %v189 = vpack.c.b16 %v165, %v162
  %v242 = vunpack.c.l.b16 %v50
  %v243 = vunpack.c.l.b16 %v51
  %v244 = vunpack.c.l.b16 %v52
  %v245 = vunpack.c.l.b16 %v53
  %v246 = vunpack.c.l.b16 %v54
  %v247 = vunpack.c.l.b16 %v55
  %v248 = vunpack.c.l.b16 %v56
  %v249 = vunpack.c.l.b16 %v57
  %v250 = vunpack.c.l.b16 %v58
  %v251 = vunpack.c.l.b16 %v59
  %v252 = vunpack.c.l.b16 %v60
  %v253 = vunpack.c.l.b16 %v61
  %v254 = vunpack.c.l.b16 %v62
  %v255 = vunpack.c.l.b16 %v63
  %v256 = vunpack.c.l.b16 %v64
  %v257 = vunpack.c.l.b16 %v65
  %v258 = vunpack.c.l.b16 %v66
  %v259 = vunpack.c.l.b16 %v67
  %v260 = vunpack.c.l.b16 %v68
  %v261 = vunpack.c.l.b16 %v69
  %v262 = vunpack.c.l.b16 %v70
  %v263 = vunpack.c.l.b16 %v71
  %v264 = vunpack.c.l.b16 %v72
  %v265 = vunpack.c.l.b16 %v73
  %v266 = vunpack.c.l.b16 %v74
  %v267 = vunpack.c.l.b16 %v75
  %v268 = vunpack.c.l.b16 %v76
  %v269 = vunpack.c.l.b16 %v77
  %v270 = vunpack.c.l.b16 %v78
  %v271 = vunpack.c.l.b16 %v79
  %v272 = vunpack.c.l.b16 %v80
  %v273 = vunpack.c.l.b16 %v81
  %v274 = vunpack.c.l.b16 %v82
  %v275 = vunpack.c.l.b16 %v83
  %v276 = vunpack.c.l.b16 %v84
  %v277 = vunpack.c.l.b16 %v85
  %v278 = vpack.c.b16 %v243, %v242
  %v279 = vpack.c.b16 %v245, %v244
  %v280 = vpack.c.b16 %v247, %v246
  %v281 = vpack.c.b16 %v249, %v248
  %v282 = vpack.c.b16 %v251, %v250
  %v283 = vpack.c.b16 %v253, %v252
  %v284 = vpack.c.b16 %v255, %v254
  %v285 = vpack.c.b16 %v257, %v256
  %v286 = vpack.c.b16 %v259, %v258
  %v287 = vpack.c.b16 %v261, %v260
  %v288 = vpack.c.b16 %v263, %v262
  %v289 = vpack.c.b16 %v265, %v264
  %v290 = vpack.c.b16 %v267, %v266
  %v291 = vpack.c.b16 %v269, %v268
  %v292 = vpack.c.b16 %v271, %v270
  %v293 = vpack.c.b16 %v273, %v272
  %v294 = vpack.c.b16 %v275, %v274
  %v295 = vpack.c.b16 %v277, %v276
  %vm314 = vcmask 261120
  %v316 = vsel %vm314, %v168, 0
  %v319 = vsel %vm314, %v171, 0
  %v322 = vsel %vm314, %v174, 0
  %v325 = vsel %vm314, %v177, 0
  %v328 = vsel %vm314, %v180, 0
  %v331 = vsel %vm314, %v183, 0
  %v334 = vsel %vm314, %v186, 0
  %v337 = vsel %vm314, %v189, 0
  %339 = vmatpush.bf16.msra.mxu0 %v285
  %340 = vmatpush.bf16.msra.mxu0 %v284
  %341 = vmatpush.bf16.msra.mxu0 %v283
  %342 = vmatpush.bf16.msra.mxu0 %v282
  %343 = vmatpush.bf16.msra.mxu0 %v281
  %344 = vmatpush.bf16.msra.mxu0 %v280
  %345 = vmatpush.bf16.msra.mxu0 %v279
  %346 = vmatpush.bf16.msra.mxu0 %v278
  %347 = vmatmul.bf16.gmra.mxu0 %v166
  %v348 = vpop.f32.mrf.mxu0
  %v349 = vadd.f32 0.0, %v348
  %v350 = vpop.f32.mrf.mxu0
  %v351 = vadd.f32 0.0, %v350
  %352 = vmatmul.bf16.gmra.mxu0 %v169
  %v353 = vpop.f32.mrf.mxu0
  %v354 = vadd.f32 0.0, %v353
  %v355 = vpop.f32.mrf.mxu0
  %v356 = vadd.f32 0.0, %v355
  %357 = vmatmul.bf16.gmra.mxu0 %v172
  %v358 = vpop.f32.mrf.mxu0
  %v359 = vadd.f32 0.0, %v358
  %v360 = vpop.f32.mrf.mxu0
  %v361 = vadd.f32 0.0, %v360
  %362 = vmatmul.bf16.gmra.mxu0 %v175
  %v363 = vpop.f32.mrf.mxu0
  %v364 = vadd.f32 0.0, %v363
  %v365 = vpop.f32.mrf.mxu0
  %v366 = vadd.f32 0.0, %v365
  %367 = vmatmul.bf16.gmra.mxu0 %v178
  %v368 = vpop.f32.mrf.mxu0
  %v369 = vadd.f32 0.0, %v368
  %v370 = vpop.f32.mrf.mxu0
  %v371 = vadd.f32 0.0, %v370
  %372 = vmatmul.bf16.gmra.mxu0 %v181
  %v373 = vpop.f32.mrf.mxu0
  %v374 = vadd.f32 0.0, %v373
  %v375 = vpop.f32.mrf.mxu0
  %v376 = vadd.f32 0.0, %v375
  %377 = vmatmul.bf16.gmra.mxu0 %v184
  %v378 = vpop.f32.mrf.mxu0
  %v379 = vadd.f32 0.0, %v378
  %v380 = vpop.f32.mrf.mxu0
  %v381 = vadd.f32 0.0, %v380
  %382 = vmatmul.bf16.gmra.mxu0 %v187
  %v383 = vpop.f32.mrf.mxu0
  %v384 = vadd.f32 0.0, %v383
  %v385 = vpop.f32.mrf.mxu0
  %v386 = vadd.f32 0.0, %v385
  %387 = vdwg.mxu0
  %388 = vmatpush.bf16.msra.mxu0 %v293
  %389 = vmatpush.bf16.msra.mxu0 %v292
  %390 = vmatpush.bf16.msra.mxu0 %v291
  %391 = vmatpush.bf16.msra.mxu0 %v290
  %392 = vmatpush.bf16.msra.mxu0 %v289
  %393 = vmatpush.bf16.msra.mxu0 %v288
  %394 = vmatpush.bf16.msra.mxu0 %v287
  %395 = vmatpush.bf16.msra.mxu0 %v286
  %396 = vmatmul.bf16.gmra.mxu0 %v167
  %v397 = vpop.f32.mrf.mxu0
  %v398 = vadd.f32 %v349, %v397
  %v399 = vpop.f32.mrf.mxu0
  %v400 = vadd.f32 %v351, %v399
  %401 = vmatmul.bf16.gmra.mxu0 %v170
  %v402 = vpop.f32.mrf.mxu0
  %v403 = vadd.f32 %v354, %v402
  %v404 = vpop.f32.mrf.mxu0
  %v405 = vadd.f32 %v356, %v404
  %406 = vmatmul.bf16.gmra.mxu0 %v173
  %v407 = vpop.f32.mrf.mxu0
  %v408 = vadd.f32 %v359, %v407
  %v409 = vpop.f32.mrf.mxu0
  %v410 = vadd.f32 %v361, %v409
  %411 = vmatmul.bf16.gmra.mxu0 %v176
  %v412 = vpop.f32.mrf.mxu0
  %v413 = vadd.f32 %v364, %v412
  %v414 = vpop.f32.mrf.mxu0
  %v415 = vadd.f32 %v366, %v414
  %416 = vmatmul.bf16.gmra.mxu0 %v179
  %v417 = vpop.f32.mrf.mxu0
  %v418 = vadd.f32 %v369, %v417
  %v419 = vpop.f32.mrf.mxu0
  %v420 = vadd.f32 %v371, %v419
  %421 = vmatmul.bf16.gmra.mxu0 %v182
  %v422 = vpop.f32.mrf.mxu0
  %v423 = vadd.f32 %v374, %v422
  %v424 = vpop.f32.mrf.mxu0
  %v425 = vadd.f32 %v376, %v424
  %426 = vmatmul.bf16.gmra.mxu0 %v185
  %v427 = vpop.f32.mrf.mxu0
  %v428 = vadd.f32 %v379, %v427
  %v429 = vpop.f32.mrf.mxu0
  %v430 = vadd.f32 %v381, %v429
  %431 = vmatmul.bf16.gmra.mxu0 %v188
  %v432 = vpop.f32.mrf.mxu0
  %v433 = vadd.f32 %v384, %v432
  %v434 = vpop.f32.mrf.mxu0
  %v435 = vadd.f32 %v386, %v434
  %436 = vdwg.mxu0
  %437 = vmatpush.bf16.msra.mxu0 0
  %438 = vmatpush.bf16.msra.mxu0 0
  %439 = vmatpush.bf16.msra.mxu0 0
  %440 = vmatpush.bf16.msra.mxu0 0
  %441 = vmatpush.bf16.msra.mxu0 0
  %442 = vmatpush.bf16.msra.mxu0 0
  %443 = vmatpush.bf16.msra.mxu0 %v295
  %444 = vmatpush.bf16.msra.mxu0 %v294
  %445 = vmatmul.bf16.gmra.mxu0 %v316
  %v446 = vpop.f32.mrf.mxu0
  %v447 = vadd.f32 %v398, %v446
  %v448 = vpop.f32.mrf.mxu0
  %v449 = vadd.f32 %v400, %v448
  %450 = vmatmul.bf16.gmra.mxu0 %v319
  %v451 = vpop.f32.mrf.mxu0
  %v452 = vadd.f32 %v403, %v451
  %v453 = vpop.f32.mrf.mxu0
  %v454 = vadd.f32 %v405, %v453
  %455 = vmatmul.bf16.gmra.mxu0 %v322
  %v456 = vpop.f32.mrf.mxu0
  %v457 = vadd.f32 %v408, %v456
  %v458 = vpop.f32.mrf.mxu0
  %v459 = vadd.f32 %v410, %v458
  %460 = vmatmul.bf16.gmra.mxu0 %v325
  %v461 = vpop.f32.mrf.mxu0
  %v462 = vadd.f32 %v413, %v461
  %v463 = vpop.f32.mrf.mxu0
  %v464 = vadd.f32 %v415, %v463
  %465 = vmatmul.bf16.gmra.mxu0 %v328
  %v466 = vpop.f32.mrf.mxu0
  %v467 = vadd.f32 %v418, %v466
  %v468 = vpop.f32.mrf.mxu0
  %v469 = vadd.f32 %v420, %v468
  %470 = vmatmul.bf16.gmra.mxu0 %v331
  %v471 = vpop.f32.mrf.mxu0
  %v472 = vadd.f32 %v423, %v471
  %v473 = vpop.f32.mrf.mxu0
  %v474 = vadd.f32 %v425, %v473
  %475 = vmatmul.bf16.gmra.mxu0 %v334
  %v476 = vpop.f32.mrf.mxu0
  %v477 = vadd.f32 %v428, %v476
  %v478 = vpop.f32.mrf.mxu0
  %v479 = vadd.f32 %v430, %v478
  %480 = vmatmul.bf16.gmra.mxu0 %v337
  %v481 = vpop.f32.mrf.mxu0
  %v482 = vadd.f32 %v433, %v481
  %v483 = vpop.f32.mrf.mxu0
  %v484 = vadd.f32 %v435, %v483
  %485 = vdwg.mxu0
  %v486 = vld [vmem:[%s2] sm:$0x1]
  %v488 = vperm.slane %v486, 0
  %v490 = vmul.f32 %v447, %v488
  %v491 = vmul.f32 %v449, %v488
  %v492 = vmul.f32 %v452, %v488
  %v493 = vmul.f32 %v454, %v488
  %v494 = vmul.f32 %v457, %v488
  %v495 = vmul.f32 %v459, %v488
  %v496 = vmul.f32 %v462, %v488
  %v497 = vmul.f32 %v464, %v488
  %v498 = vmul.f32 %v467, %v488
  %v499 = vmul.f32 %v469, %v488
  %v500 = vmul.f32 %v472, %v488
  %v501 = vmul.f32 %v474, %v488
  %v502 = vmul.f32 %v477, %v488
  %v503 = vmul.f32 %v479, %v488
  %v504 = vmul.f32 %v482, %v488
  %v505 = vmul.f32 %v484, %v488
  %v506 = vld [vmem:[%s3] sm:$0x1]
  %v508 = vperm.slane %v506, 0
  %v510 = vadd.f32 %v490, %v508
  %v511 = vadd.f32 %v491, %v508
  %v512 = vadd.f32 %v492, %v508
  %v513 = vadd.f32 %v493, %v508
  %v514 = vadd.f32 %v494, %v508
  %v515 = vadd.f32 %v495, %v508
  %v516 = vadd.f32 %v496, %v508
  %v517 = vadd.f32 %v497, %v508
  %v518 = vadd.f32 %v498, %v508
  %v519 = vadd.f32 %v499, %v508
  %v520 = vadd.f32 %v500, %v508
  %v521 = vadd.f32 %v501, %v508
  %v522 = vadd.f32 %v502, %v508
  %v523 = vadd.f32 %v503, %v508
  %v524 = vadd.f32 %v504, %v508
  %v525 = vadd.f32 %v505, %v508
  %v526 = vmax.f32 %v510, 0.0
  %v527 = vmax.f32 %v511, 0.0
  %v528 = vmax.f32 %v512, 0.0
  %v529 = vmax.f32 %v513, 0.0
  %v530 = vmax.f32 %v514, 0.0
  %v531 = vmax.f32 %v515, 0.0
  %v532 = vmax.f32 %v516, 0.0
  %v533 = vmax.f32 %v517, 0.0
  %v534 = vmax.f32 %v518, 0.0
  %v535 = vmax.f32 %v519, 0.0
  %v536 = vmax.f32 %v520, 0.0
  %v537 = vmax.f32 %v521, 0.0
  %v538 = vmax.f32 %v522, 0.0
  %v539 = vmax.f32 %v523, 0.0
  %v540 = vmax.f32 %v524, 0.0
  %v541 = vmax.f32 %v525, 0.0
  %542 = vst [vmem:[%s4] sm:$0xff] %v526
  %543 = vst [vmem:[%s4 + $0x8] sm:$0xff] %v527
  %544 = vst [vmem:[%s4 + $0x10] sm:$0xff] %v528
  %545 = vst [vmem:[%s4 + $0x18] sm:$0xff] %v529
  %546 = vst [vmem:[%s4 + $0x20] sm:$0xff] %v530
  %547 = vst [vmem:[%s4 + $0x28] sm:$0xff] %v531
  %548 = vst [vmem:[%s4 + $0x30] sm:$0xff] %v532
  %549 = vst [vmem:[%s4 + $0x38] sm:$0xff] %v533
  %550 = vst [vmem:[%s4 + $0x40] sm:$0xff] %v534
  %551 = vst [vmem:[%s4 + $0x48] sm:$0xff] %v535
  %552 = vst [vmem:[%s4 + $0x50] sm:$0xff] %v536
  %553 = vst [vmem:[%s4 + $0x58] sm:$0xff] %v537
  %554 = vst [vmem:[%s4 + $0x60] sm:$0xff] %v538
  %555 = vst [vmem:[%s4 + $0x68] sm:$0xff] %v539
  %556 = vst [vmem:[%s4 + $0x70] sm:$0xff] %v540
  %557 = vst [vmem:[%s4 + $0x78] sm:$0xff] %v541
  // Predicated region
  $region18: #{_lambda_.32} parent=0 // pred_check
    _
  $region19: #{_lambda_.32} parent=0 // pred_check_branch
    %559 = sbr.rel (0) target = $region21
  $region20: #{_lambda_.32} parent=0 // pred_region
    _
  $region21: #{_lambda_.32} parent=0 // pred_fallthru
    _
  // Predicated region
  $region22: #{_lambda_.32} parent=0 // pred_check
    _
  $region23: #{_lambda_.32} parent=0 // pred_check_branch
    %561 = sbr.rel (0) target = $region25
  $region24: #{_lambda_.32} parent=0 // pred_region
    _
  $region25: #{_lambda_.32} parent=0 // pred_fallthru
    _

// kernel: _lambda_.36
$region0: #{_lambda_.36}
  #allocation0 [shape = 'u32[]', space=smem, size = 0x4, offset = 0x4, fixed_abs, tag = 'smem constant byte address 0x4 - core index']
  #allocation1 [shape = 'u32[72,128]{1,0:T(1,128)}', space=vmem, size = 0x9000, scoped, tag = 'internal scratch']
  %s0 = inlined_call_operand.vmem [shape: bf16[32,288], index: 0, kind: input, shape index: {}]
  %s1 = inlined_call_operand.vmem [shape: bf16[288,128], index: 1, kind: input, shape index: {}]
  %s2 = inlined_call_operand.vmem [shape: f32[1,128], index: 2, kind: input, shape index: {}]
  %s3 = inlined_call_operand.vmem [shape: f32[1,128], index: 3, kind: input, shape index: {}]
  %s4 = inlined_call_operand.vmem [shape: f32[32,128], index: 4, kind: output, shape index: {}]
  %s5 = sld [smem:[#allocation0]]
  $region26: #{_lambda_.36} parent=0
    _
  %s7 = ssub.s32 1, %s5
  %s8 = scalar_select 0, %s7, %s5
  // Predicated region
  $region2: #{_lambda_.36} parent=0 // pred_check
    _
  $region3: #{_lambda_.36} parent=0 // pred_check_branch
    %10 = sbr.rel (0) target = $region5
  $region4: #{_lambda_.36} parent=0 // pred_region
    _
  $region5: #{_lambda_.36} parent=0 // pred_fallthru
    _
  // Predicated region
  $region6: #{_lambda_.36} parent=0 // pred_check
    _
  $region7: #{_lambda_.36} parent=0 // pred_check_branch
    %12 = sbr.rel (0) target = $region9
  $region8: #{_lambda_.36} parent=0 // pred_region
    _
  $region9: #{_lambda_.36} parent=0 // pred_fallthru
    _
  // Predicated region
  $region10: #{_lambda_.36} parent=0 // pred_check
    _
  $region11: #{_lambda_.36} parent=0 // pred_check_branch
    %14 = sbr.rel (0) target = $region13
  $region12: #{_lambda_.36} parent=0 // pred_region
    _
  $region13: #{_lambda_.36} parent=0 // pred_fallthru
    _
  // Predicated region
  $region14: #{_lambda_.36} parent=0 // pred_check
    _
  $region15: #{_lambda_.36} parent=0 // pred_check_branch
    %16 = sbr.rel (0) target = $region17
  $region16: #{_lambda_.36} parent=0 // pred_region
    _
  $region17: #{_lambda_.36} parent=0 // pred_fallthru
    _
  %v18 = vld [vmem:[%s0] sm:$0xff]
  %v19 = vld [vmem:[%s0 + $0x8] sm:$0xf]
  %v20 = vld [vmem:[%s0 + $0xc] sm:$0xff]
  %v21 = vld [vmem:[%s0 + $0x14] sm:$0xf]
  %v22 = vld [vmem:[%s0 + $0x18] sm:$0xff]
  %v23 = vld [vmem:[%s0 + $0x20] sm:$0xf]
  %v24 = vld [vmem:[%s0 + $0x24] sm:$0xff]
  %v25 = vld [vmem:[%s0 + $0x2c] sm:$0xf]
  %v26 = vld [vmem:[%s1] sm:$0xf]
  %v27 = vld [vmem:[%s1 + $0x4] sm:$0xf]
  %v28 = vld [vmem:[%s1 + $0x8] sm:$0xf]
  %v29 = vld [vmem:[%s1 + $0xc] sm:$0xf]
  %v30 = vld [vmem:[%s1 + $0x10] sm:$0xf]
  %v31 = vld [vmem:[%s1 + $0x14] sm:$0xf]
  %v32 = vld [vmem:[%s1 + $0x18] sm:$0xf]
  %v33 = vld [vmem:[%s1 + $0x1c] sm:$0xf]
  %v34 = vld [vmem:[%s1 + $0x20] sm:$0xf]
  %v35 = vld [vmem:[%s1 + $0x24] sm:$0xf]
  %v36 = vld [vmem:[%s1 + $0x28] sm:$0xf]
  %v37 = vld [vmem:[%s1 + $0x2c] sm:$0xf]
  %v38 = vld [vmem:[%s1 + $0x30] sm:$0xf]
  %v39 = vld [vmem:[%s1 + $0x34] sm:$0xf]
  %v40 = vld [vmem:[%s1 + $0x38] sm:$0xf]
  %v41 = vld [vmem:[%s1 + $0x3c] sm:$0xf]
  %v42 = vld [vmem:[%s1 + $0x40] sm:$0xf]
  %v43 = vld [vmem:[%s1 + $0x44] sm:$0xf]
  %v44 = vld [vmem:[%s1 + $0x48] sm:$0xf]
  %v45 = vld [vmem:[%s1 + $0x4c] sm:$0xf]
  %v46 = vld [vmem:[%s1 + $0x50] sm:$0xf]
  %v47 = vld [vmem:[%s1 + $0x54] sm:$0xf]
  %v48 = vld [vmem:[%s1 + $0x58] sm:$0xf]
  %v49 = vld [vmem:[%s1 + $0x5c] sm:$0xf]
  %v50 = vld [vmem:[%s1 + $0x60] sm:$0xf]
  %v51 = vld [vmem:[%s1 + $0x64] sm:$0xf]
  %v52 = vld [vmem:[%s1 + $0x68] sm:$0xf]
  %v53 = vld [vmem:[%s1 + $0x6c] sm:$0xf]
  %v54 = vld [vmem:[%s1 + $0x70] sm:$0xf]
  %v55 = vld [vmem:[%s1 + $0x74] sm:$0xf]
  %v56 = vld [vmem:[%s1 + $0x78] sm:$0xf]
  %v57 = vld [vmem:[%s1 + $0x7c] sm:$0xf]
  %v58 = vld [vmem:[%s1 + $0x80] sm:$0xf]
  %v59 = vld [vmem:[%s1 + $0x84] sm:$0xf]
  %v60 = vld [vmem:[%s1 + $0x88] sm:$0xf]
  %v61 = vld [vmem:[%s1 + $0x8c] sm:$0xf]
  %v70 = vunpack.c.l.b16 %v18
  %v71 = vunpack.c.h.b16 %v18
  %v72 = vunpack.c.l.b16 %v19
  %v73 = vunpack.c.l.b16 %v20
  %v74 = vunpack.c.h.b16 %v20
  %v75 = vunpack.c.l.b16 %v21
  %v76 = vunpack.c.l.b16 %v22
  %v77 = vunpack.c.h.b16 %v22
  %v78 = vunpack.c.l.b16 %v23
  %v79 = vunpack.c.l.b16 %v24
  %v80 = vunpack.c.h.b16 %v24
  %v81 = vunpack.c.l.b16 %v25
  %v82 = vpack.c.b16 %v73, %v70
  %v83 = vpack.c.b16 %v74, %v71
  %v84 = vpack.c.b16 %v75, %v72
  %v85 = vpack.c.b16 %v79, %v76
  %v86 = vpack.c.b16 %v80, %v77
  %v87 = vpack.c.b16 %v81, %v78
  %v128 = vunpack.c.l.b16 %v26
  %v129 = vunpack.c.l.b16 %v27
  %v130 = vunpack.c.l.b16 %v28
  %v131 = vunpack.c.l.b16 %v29
  %v132 = vunpack.c.l.b16 %v30
  %v133 = vunpack.c.l.b16 %v31
  %v134 = vunpack.c.l.b16 %v32
  %v135 = vunpack.c.l.b16 %v33
  %v136 = vunpack.c.l.b16 %v34
  %v137 = vunpack.c.l.b16 %v35
  %v138 = vunpack.c.l.b16 %v36
  %v139 = vunpack.c.l.b16 %v37
  %v140 = vunpack.c.l.b16 %v38
  %v141 = vunpack.c.l.b16 %v39
  %v142 = vunpack.c.l.b16 %v40
  %v143 = vunpack.c.l.b16 %v41
  %v144 = vunpack.c.l.b16 %v42
  %v145 = vunpack.c.l.b16 %v43
  %v146 = vunpack.c.l.b16 %v44
  %v147 = vunpack.c.l.b16 %v45
  %v148 = vunpack.c.l.b16 %v46
  %v149 = vunpack.c.l.b16 %v47
  %v150 = vunpack.c.l.b16 %v48
  %v151 = vunpack.c.l.b16 %v49
  %v152 = vunpack.c.l.b16 %v50
  %v153 = vunpack.c.l.b16 %v51
  %v154 = vunpack.c.l.b16 %v52
  %v155 = vunpack.c.l.b16 %v53
  %v156 = vunpack.c.l.b16 %v54
  %v157 = vunpack.c.l.b16 %v55
  %v158 = vunpack.c.l.b16 %v56
  %v159 = vunpack.c.l.b16 %v57
  %v160 = vunpack.c.l.b16 %v58
  %v161 = vunpack.c.l.b16 %v59
  %v162 = vunpack.c.l.b16 %v60
  %v163 = vunpack.c.l.b16 %v61
  %v164 = vpack.c.b16 %v129, %v128
  %v165 = vpack.c.b16 %v131, %v130
  %v166 = vpack.c.b16 %v133, %v132
  %v167 = vpack.c.b16 %v135, %v134
  %v168 = vpack.c.b16 %v137, %v136
  %v169 = vpack.c.b16 %v139, %v138
  %v170 = vpack.c.b16 %v141, %v140
  %v171 = vpack.c.b16 %v143, %v142
  %v172 = vpack.c.b16 %v145, %v144
  %v173 = vpack.c.b16 %v147, %v146
  %v174 = vpack.c.b16 %v149, %v148
  %v175 = vpack.c.b16 %v151, %v150
  %v176 = vpack.c.b16 %v153, %v152
  %v177 = vpack.c.b16 %v155, %v154
  %v178 = vpack.c.b16 %v157, %v156
  %v179 = vpack.c.b16 %v159, %v158
  %v180 = vpack.c.b16 %v161, %v160
  %v181 = vpack.c.b16 %v163, %v162
  %vm200 = vcmask 261120
  %v202 = vsel %vm200, %v84, 0
  %v205 = vsel %vm200, %v87, 0
  %207 = vmatpush.bf16.msra.mxu0 %v171
  %208 = vmatpush.bf16.msra.mxu0 %v170
  %209 = vmatpush.bf16.msra.mxu0 %v169
  %210 = vmatpush.bf16.msra.mxu0 %v168
  %211 = vmatpush.bf16.msra.mxu0 %v167
  %212 = vmatpush.bf16.msra.mxu0 %v166
  %213 = vmatpush.bf16.msra.mxu0 %v165
  %214 = vmatpush.bf16.msra.mxu0 %v164
  %215 = vmatmul.bf16.gmra.mxu0 %v82
  %v216 = vpop.f32.mrf.mxu0
  %v217 = vadd.f32 0.0, %v216
  %v218 = vpop.f32.mrf.mxu0
  %v219 = vadd.f32 0.0, %v218
  %220 = vmatmul.bf16.gmra.mxu0 %v85
  %v221 = vpop.f32.mrf.mxu0
  %v222 = vadd.f32 0.0, %v221
  %v223 = vpop.f32.mrf.mxu0
  %v224 = vadd.f32 0.0, %v223
  %225 = vdwg.mxu0
  %226 = vmatpush.bf16.msra.mxu0 %v179
  %227 = vmatpush.bf16.msra.mxu0 %v178
  %228 = vmatpush.bf16.msra.mxu0 %v177
  %229 = vmatpush.bf16.msra.mxu0 %v176
  %230 = vmatpush.bf16.msra.mxu0 %v175
  %231 = vmatpush.bf16.msra.mxu0 %v174
  %232 = vmatpush.bf16.msra.mxu0 %v173
  %233 = vmatpush.bf16.msra.mxu0 %v172
  %234 = vmatmul.bf16.gmra.mxu0 %v83
  %v235 = vpop.f32.mrf.mxu0
  %v236 = vadd.f32 %v217, %v235
  %v237 = vpop.f32.mrf.mxu0
  %v238 = vadd.f32 %v219, %v237
  %239 = vmatmul.bf16.gmra.mxu0 %v86
  %v240 = vpop.f32.mrf.mxu0
  %v241 = vadd.f32 %v222, %v240
  %v242 = vpop.f32.mrf.mxu0
  %v243 = vadd.f32 %v224, %v242
  %244 = vdwg.mxu0
  %245 = vmatpush.bf16.msra.mxu0 0
  %246 = vmatpush.bf16.msra.mxu0 0
  %247 = vmatpush.bf16.msra.mxu0 0
  %248 = vmatpush.bf16.msra.mxu0 0
  %249 = vmatpush.bf16.msra.mxu0 0
  %250 = vmatpush.bf16.msra.mxu0 0
  %251 = vmatpush.bf16.msra.mxu0 %v181
  %252 = vmatpush.bf16.msra.mxu0 %v180
  %253 = vmatmul.bf16.gmra.mxu0 %v202
  %v254 = vpop.f32.mrf.mxu0
  %v255 = vadd.f32 %v236, %v254
  %v256 = vpop.f32.mrf.mxu0
  %v257 = vadd.f32 %v238, %v256
  %258 = vmatmul.bf16.gmra.mxu0 %v205
  %v259 = vpop.f32.mrf.mxu0
  %v260 = vadd.f32 %v241, %v259
  %v261 = vpop.f32.mrf.mxu0
  %v262 = vadd.f32 %v243, %v261
  %263 = vdwg.mxu0
  %v264 = vld [vmem:[%s2] sm:$0x1]
  %v266 = vperm.slane %v264, 0
  %v268 = vmul.f32 %v255, %v266
  %v269 = vmul.f32 %v257, %v266
  %v270 = vmul.f32 %v260, %v266
  %v271 = vmul.f32 %v262, %v266
  %v272 = vld [vmem:[%s3] sm:$0x1]
  %v274 = vperm.slane %v272, 0
  %v276 = vadd.f32 %v268, %v274
  %v277 = vadd.f32 %v269, %v274
  %v278 = vadd.f32 %v270, %v274
  %v279 = vadd.f32 %v271, %v274
  %v280 = vmax.f32 %v276, 0.0
  %v281 = vmax.f32 %v277, 0.0
  %v282 = vmax.f32 %v278, 0.0
  %v283 = vmax.f32 %v279, 0.0
  %284 = vst [vmem:[%s4] sm:$0xff] %v280
  %285 = vst [vmem:[%s4 + $0x8] sm:$0xff] %v281
  %286 = vst [vmem:[%s4 + $0x10] sm:$0xff] %v282
  %287 = vst [vmem:[%s4 + $0x18] sm:$0xff] %v283
  // Predicated region
  $region18: #{_lambda_.36} parent=0 // pred_check
    _
  $region19: #{_lambda_.36} parent=0 // pred_check_branch
    %289 = sbr.rel (0) target = $region21
  $region20: #{_lambda_.36} parent=0 // pred_region
    _
  $region21: #{_lambda_.36} parent=0 // pred_fallthru
    _
  // Predicated region
  $region22: #{_lambda_.36} parent=0 // pred_check
    _
  $region23: #{_lambda_.36} parent=0 // pred_check_branch
    %291 = sbr.rel (0) target = $region25
  $region24: #{_lambda_.36} parent=0 // pred_region
    _
  $region25: #{_lambda_.36} parent=0 // pred_fallthru
    _

// kernel: _lambda_.37
$region0: #{_lambda_.37}
  #allocation0 [shape = 'u32[]', space=smem, size = 0x4, offset = 0x4, fixed_abs, tag = 'smem constant byte address 0x4 - core index']
  #allocation1 [shape = 'u32[72,128]{1,0:T(1,128)}', space=vmem, size = 0x9000, scoped, tag = 'internal scratch']
  %s0 = inlined_call_operand.vmem [shape: bf16[32,32], index: 0, kind: input, shape index: {}]
  %s1 = inlined_call_operand.vmem [shape: bf16[32,128], index: 1, kind: input, shape index: {}]
  %s2 = inlined_call_operand.vmem [shape: f32[1,128], index: 2, kind: input, shape index: {}]
  %s3 = inlined_call_operand.vmem [shape: f32[1,128], index: 3, kind: input, shape index: {}]
  %s4 = inlined_call_operand.vmem [shape: f32[32,128], index: 4, kind: output, shape index: {}]
  %s5 = sld [smem:[#allocation0]]
  $region26: #{_lambda_.37} parent=0
    _
  %s7 = ssub.s32 1, %s5
  %s8 = scalar_select 0, %s7, %s5
  // Predicated region
  $region2: #{_lambda_.37} parent=0 // pred_check
    _
  $region3: #{_lambda_.37} parent=0 // pred_check_branch
    %10 = sbr.rel (0) target = $region5
  $region4: #{_lambda_.37} parent=0 // pred_region
    _
  $region5: #{_lambda_.37} parent=0 // pred_fallthru
    _
  // Predicated region
  $region6: #{_lambda_.37} parent=0 // pred_check
    _
  $region7: #{_lambda_.37} parent=0 // pred_check_branch
    %12 = sbr.rel (0) target = $region9
  $region8: #{_lambda_.37} parent=0 // pred_region
    _
  $region9: #{_lambda_.37} parent=0 // pred_fallthru
    _
  // Predicated region
  $region10: #{_lambda_.37} parent=0 // pred_check
    _
  $region11: #{_lambda_.37} parent=0 // pred_check_branch
    %14 = sbr.rel (0) target = $region13
  $region12: #{_lambda_.37} parent=0 // pred_region
    _
  $region13: #{_lambda_.37} parent=0 // pred_fallthru
    _
  // Predicated region
  $region14: #{_lambda_.37} parent=0 // pred_check
    _
  $region15: #{_lambda_.37} parent=0 // pred_check_branch
    %16 = sbr.rel (0) target = $region17
  $region16: #{_lambda_.37} parent=0 // pred_region
    _
  $region17: #{_lambda_.37} parent=0 // pred_fallthru
    _
  %v18 = vld [vmem:[%s0] sm:$0xf]
  %v19 = vld [vmem:[%s0 + $0x4] sm:$0xf]
  %v20 = vld [vmem:[%s0 + $0x8] sm:$0xf]
  %v21 = vld [vmem:[%s0 + $0xc] sm:$0xf]
  %v22 = vld [vmem:[%s1] sm:$0xf]
  %v23 = vld [vmem:[%s1 + $0x4] sm:$0xf]
  %v24 = vld [vmem:[%s1 + $0x8] sm:$0xf]
  %v25 = vld [vmem:[%s1 + $0xc] sm:$0xf]
  %v30 = vunpack.c.l.b16 %v18
  %v31 = vunpack.c.l.b16 %v19
  %v32 = vunpack.c.l.b16 %v20
  %v33 = vunpack.c.l.b16 %v21
  %v34 = vpack.c.b16 %v31, %v30
  %v35 = vpack.c.b16 %v33, %v32
  %v40 = vunpack.c.l.b16 %v22
  %v41 = vunpack.c.l.b16 %v23
  %v42 = vunpack.c.l.b16 %v24
  %v43 = vunpack.c.l.b16 %v25
  %v44 = vpack.c.b16 %v41, %v40
  %v45 = vpack.c.b16 %v43, %v42
  %vm48 = vcmask 261120
  %v50 = vsel %vm48, %v34, 0
  %v53 = vsel %vm48, %v35, 0
  %55 = vmatpush.bf16.msra.mxu0 0
  %56 = vmatpush.bf16.msra.mxu0 0
  %57 = vmatpush.bf16.msra.mxu0 0
  %58 = vmatpush.bf16.msra.mxu0 0
  %59 = vmatpush.bf16.msra.mxu0 0
  %60 = vmatpush.bf16.msra.mxu0 0
  %61 = vmatpush.bf16.msra.mxu0 %v45
  %62 = vmatpush.bf16.msra.mxu0 %v44
  %63 = vmatmul.bf16.gmra.mxu0 %v50
  %v64 = vpop.f32.mrf.mxu0
  %v65 = vadd.f32 0.0, %v64
  %v66 = vpop.f32.mrf.mxu0
  %v67 = vadd.f32 0.0, %v66
  %68 = vmatmul.bf16.gmra.mxu0 %v53
  %v69 = vpop.f32.mrf.mxu0
  %v70 = vadd.f32 0.0, %v69
  %v71 = vpop.f32.mrf.mxu0
  %v72 = vadd.f32 0.0, %v71
  %73 = vdwg.mxu0
  %v74 = vld [vmem:[%s2] sm:$0x1]
  %v76 = vperm.slane %v74, 0
  %v78 = vmul.f32 %v65, %v76
  %v79 = vmul.f32 %v67, %v76
  %v80 = vmul.f32 %v70, %v76
  %v81 = vmul.f32 %v72, %v76
  %v82 = vld [vmem:[%s3] sm:$0x1]
  %v84 = vperm.slane %v82, 0
  %v86 = vadd.f32 %v78, %v84
  %v87 = vadd.f32 %v79, %v84
  %v88 = vadd.f32 %v80, %v84
  %v89 = vadd.f32 %v81, %v84
  %90 = vst [vmem:[%s4] sm:$0xff] %v86
  %91 = vst [vmem:[%s4 + $0x8] sm:$0xff] %v87
  %92 = vst [vmem:[%s4 + $0x10] sm:$0xff] %v88
  %93 = vst [vmem:[%s4 + $0x18] sm:$0xff] %v89
  // Predicated region
  $region18: #{_lambda_.37} parent=0 // pred_check
    _
  $region19: #{_lambda_.37} parent=0 // pred_check_branch
    %95 = sbr.rel (0) target = $region21
  $region20: #{_lambda_.37} parent=0 // pred_region
    _
  $region21: #{_lambda_.37} parent=0 // pred_fallthru
    _
  // Predicated region
  $region22: #{_lambda_.37} parent=0 // pred_check
    _
  $region23: #{_lambda_.37} parent=0 // pred_check_branch
    %97 = sbr.rel (0) target = $region25
  $region24: #{_lambda_.37} parent=0 // pred_region
    _
  $region25: #{_lambda_.37} parent=0 // pred_fallthru
    _

// kernel: _lambda_.38
$region0: #{_lambda_.38}
  #allocation0 [shape = 'u32[]', space=smem, size = 0x4, offset = 0x4, fixed_abs, tag = 'smem constant byte address 0x4 - core index']
  #allocation1 [shape = 'u32[72,128]{1,0:T(1,128)}', space=vmem, size = 0x9000, scoped, tag = 'internal scratch']
  %s0 = inlined_call_operand.vmem [shape: bf16[32,576], index: 0, kind: input, shape index: {}]
  %s1 = inlined_call_operand.vmem [shape: bf16[576,128], index: 1, kind: input, shape index: {}]
  %s2 = inlined_call_operand.vmem [shape: f32[1,128], index: 2, kind: input, shape index: {}]
  %s3 = inlined_call_operand.vmem [shape: f32[1,128], index: 3, kind: input, shape index: {}]
  %s4 = inlined_call_operand.vmem [shape: f32[32,128], index: 4, kind: input, shape index: {}]
  %s5 = inlined_call_operand.vmem [shape: f32[32,128], index: 5, kind: output, shape index: {}]
  %s6 = sld [smem:[#allocation0]]
  $region30: #{_lambda_.38} parent=0
    _
  %s8 = ssub.s32 1, %s6
  %s9 = scalar_select 0, %s8, %s6
  // Predicated region
  $region2: #{_lambda_.38} parent=0 // pred_check
    _
  $region3: #{_lambda_.38} parent=0 // pred_check_branch
    %11 = sbr.rel (0) target = $region5
  $region4: #{_lambda_.38} parent=0 // pred_region
    _
  $region5: #{_lambda_.38} parent=0 // pred_fallthru
    _
  // Predicated region
  $region6: #{_lambda_.38} parent=0 // pred_check
    _
  $region7: #{_lambda_.38} parent=0 // pred_check_branch
    %13 = sbr.rel (0) target = $region9
  $region8: #{_lambda_.38} parent=0 // pred_region
    _
  $region9: #{_lambda_.38} parent=0 // pred_fallthru
    _
  // Predicated region
  $region10: #{_lambda_.38} parent=0 // pred_check
    _
  $region11: #{_lambda_.38} parent=0 // pred_check_branch
    %15 = sbr.rel (0) target = $region13
  $region12: #{_lambda_.38} parent=0 // pred_region
    _
  $region13: #{_lambda_.38} parent=0 // pred_fallthru
    _
  // Predicated region
  $region14: #{_lambda_.38} parent=0 // pred_check
    _
  $region15: #{_lambda_.38} parent=0 // pred_check_branch
    %17 = sbr.rel (0) target = $region17
  $region16: #{_lambda_.38} parent=0 // pred_region
    _
  $region17: #{_lambda_.38} parent=0 // pred_fallthru
    _
  // Predicated region
  $region18: #{_lambda_.38} parent=0 // pred_check
    _
  $region19: #{_lambda_.38} parent=0 // pred_check_branch
    %19 = sbr.rel (0) target = $region21
  $region20: #{_lambda_.38} parent=0 // pred_region
    _
  $region21: #{_lambda_.38} parent=0 // pred_fallthru
    _
  %v21 = vld [vmem:[%s0] sm:$0xff]
  %v22 = vld [vmem:[%s0 + $0x8] sm:$0xff]
  %v23 = vld [vmem:[%s0 + $0x10] sm:$0xf]
  %v24 = vld [vmem:[%s0 + $0x14] sm:$0xff]
  %v25 = vld [vmem:[%s0 + $0x1c] sm:$0xff]
  %v26 = vld [vmem:[%s0 + $0x24] sm:$0xf]
  %v27 = vld [vmem:[%s0 + $0x28] sm:$0xff]
  %v28 = vld [vmem:[%s0 + $0x30] sm:$0xff]
  %v29 = vld [vmem:[%s0 + $0x38] sm:$0xf]
  %v30 = vld [vmem:[%s0 + $0x3c] sm:$0xff]
  %v31 = vld [vmem:[%s0 + $0x44] sm:$0xff]
  %v32 = vld [vmem:[%s0 + $0x4c] sm:$0xf]
  %v33 = vld [vmem:[%s1] sm:$0xf]
  %v34 = vld [vmem:[%s1 + $0x4] sm:$0xf]
  %v35 = vld [vmem:[%s1 + $0x8] sm:$0xf]
  %v36 = vld [vmem:[%s1 + $0xc] sm:$0xf]
  %v37 = vld [vmem:[%s1 + $0x10] sm:$0xf]
  %v38 = vld [vmem:[%s1 + $0x14] sm:$0xf]
  %v39 = vld [vmem:[%s1 + $0x18] sm:$0xf]
  %v40 = vld [vmem:[%s1 + $0x1c] sm:$0xf]
  %v41 = vld [vmem:[%s1 + $0x20] sm:$0xf]
  %v42 = vld [vmem:[%s1 + $0x24] sm:$0xf]
  %v43 = vld [vmem:[%s1 + $0x28] sm:$0xf]
  %v44 = vld [vmem:[%s1 + $0x2c] sm:$0xf]
  %v45 = vld [vmem:[%s1 + $0x30] sm:$0xf]
  %v46 = vld [vmem:[%s1 + $0x34] sm:$0xf]
  %v47 = vld [vmem:[%s1 + $0x38] sm:$0xf]
  %v48 = vld [vmem:[%s1 + $0x3c] sm:$0xf]
  %v49 = vld [vmem:[%s1 + $0x40] sm:$0xf]
  %v50 = vld [vmem:[%s1 + $0x44] sm:$0xf]
  %v51 = vld [vmem:[%s1 + $0x48] sm:$0xf]
  %v52 = vld [vmem:[%s1 + $0x4c] sm:$0xf]
  %v53 = vld [vmem:[%s1 + $0x50] sm:$0xf]
  %v54 = vld [vmem:[%s1 + $0x54] sm:$0xf]
  %v55 = vld [vmem:[%s1 + $0x58] sm:$0xf]
  %v56 = vld [vmem:[%s1 + $0x5c] sm:$0xf]
  %v57 = vld [vmem:[%s1 + $0x60] sm:$0xf]
  %v58 = vld [vmem:[%s1 + $0x64] sm:$0xf]
  %v59 = vld [vmem:[%s1 + $0x68] sm:$0xf]
  %v60 = vld [vmem:[%s1 + $0x6c] sm:$0xf]
  %v61 = vld [vmem:[%s1 + $0x70] sm:$0xf]
  %v62 = vld [vmem:[%s1 + $0x74] sm:$0xf]
  %v63 = vld [vmem:[%s1 + $0x78] sm:$0xf]
  %v64 = vld [vmem:[%s1 + $0x7c] sm:$0xf]
  %v65 = vld [vmem:[%s1 + $0x80] sm:$0xf]
  %v66 = vld [vmem:[%s1 + $0x84] sm:$0xf]
  %v67 = vld [vmem:[%s1 + $0x88] sm:$0xf]
  %v68 = vld [vmem:[%s1 + $0x8c] sm:$0xf]
  %v69 = vld [vmem:[%s1 + $0x90] sm:$0xf]
  %v70 = vld [vmem:[%s1 + $0x94] sm:$0xf]
  %v71 = vld [vmem:[%s1 + $0x98] sm:$0xf]
  %v72 = vld [vmem:[%s1 + $0x9c] sm:$0xf]
  %v73 = vld [vmem:[%s1 + $0xa0] sm:$0xf]
  %v74 = vld [vmem:[%s1 + $0xa4] sm:$0xf]
  %v75 = vld [vmem:[%s1 + $0xa8] sm:$0xf]
  %v76 = vld [vmem:[%s1 + $0xac] sm:$0xf]
  %v77 = vld [vmem:[%s1 + $0xb0] sm:$0xf]
  %v78 = vld [vmem:[%s1 + $0xb4] sm:$0xf]
  %v79 = vld [vmem:[%s1 + $0xb8] sm:$0xf]
  %v80 = vld [vmem:[%s1 + $0xbc] sm:$0xf]
  %v81 = vld [vmem:[%s1 + $0xc0] sm:$0xf]
  %v82 = vld [vmem:[%s1 + $0xc4] sm:$0xf]
  %v83 = vld [vmem:[%s1 + $0xc8] sm:$0xf]
  %v84 = vld [vmem:[%s1 + $0xcc] sm:$0xf]
  %v85 = vld [vmem:[%s1 + $0xd0] sm:$0xf]
  %v86 = vld [vmem:[%s1 + $0xd4] sm:$0xf]
  %v87 = vld [vmem:[%s1 + $0xd8] sm:$0xf]
  %v88 = vld [vmem:[%s1 + $0xdc] sm:$0xf]
  %v89 = vld [vmem:[%s1 + $0xe0] sm:$0xf]
  %v90 = vld [vmem:[%s1 + $0xe4] sm:$0xf]
  %v91 = vld [vmem:[%s1 + $0xe8] sm:$0xf]
  %v92 = vld [vmem:[%s1 + $0xec] sm:$0xf]
  %v93 = vld [vmem:[%s1 + $0xf0] sm:$0xf]
  %v94 = vld [vmem:[%s1 + $0xf4] sm:$0xf]
  %v95 = vld [vmem:[%s1 + $0xf8] sm:$0xf]
  %v96 = vld [vmem:[%s1 + $0xfc] sm:$0xf]
  %v97 = vld [vmem:[%s1 + $0x100] sm:$0xf]
  %v98 = vld [vmem:[%s1 + $0x104] sm:$0xf]
  %v99 = vld [vmem:[%s1 + $0x108] sm:$0xf]
  %v100 = vld [vmem:[%s1 + $0x10c] sm:$0xf]
  %v101 = vld [vmem:[%s1 + $0x110] sm:$0xf]
  %v102 = vld [vmem:[%s1 + $0x114] sm:$0xf]
  %v103 = vld [vmem:[%s1 + $0x118] sm:$0xf]
  %v104 = vld [vmem:[%s1 + $0x11c] sm:$0xf]
  %v117 = vunpack.c.l.b16 %v21
  %v118 = vunpack.c.h.b16 %v21
  %v119 = vunpack.c.l.b16 %v22
  %v120 = vunpack.c.h.b16 %v22
  %v121 = vunpack.c.l.b16 %v23
  %v122 = vunpack.c.l.b16 %v24
  %v123 = vunpack.c.h.b16 %v24
  %v124 = vunpack.c.l.b16 %v25
  %v125 = vunpack.c.h.b16 %v25
  %v126 = vunpack.c.l.b16 %v26
  %v127 = vunpack.c.l.b16 %v27
  %v128 = vunpack.c.h.b16 %v27
  %v129 = vunpack.c.l.b16 %v28
  %v130 = vunpack.c.h.b16 %v28
  %v131 = vunpack.c.l.b16 %v29
  %v132 = vunpack.c.l.b16 %v30
  %v133 = vunpack.c.h.b16 %v30
  %v134 = vunpack.c.l.b16 %v31
  %v135 = vunpack.c.h.b16 %v31
  %v136 = vunpack.c.l.b16 %v32
  %v137 = vpack.c.b16 %v122, %v117
  %v138 = vpack.c.b16 %v123, %v118
  %v139 = vpack.c.b16 %v124, %v119
  %v140 = vpack.c.b16 %v125, %v120
  %v141 = vpack.c.b16 %v126, %v121
  %v142 = vpack.c.b16 %v132, %v127
  %v143 = vpack.c.b16 %v133, %v128
  %v144 = vpack.c.b16 %v134, %v129
  %v145 = vpack.c.b16 %v135, %v130
  %v146 = vpack.c.b16 %v136, %v131
  %v227 = vunpack.c.l.b16 %v33
  %v228 = vunpack.c.l.b16 %v34
  %v229 = vunpack.c.l.b16 %v35
  %v230 = vunpack.c.l.b16 %v36
  %v231 = vunpack.c.l.b16 %v37
  %v232 = vunpack.c.l.b16 %v38
  %v233 = vunpack.c.l.b16 %v39
  %v234 = vunpack.c.l.b16 %v40
  %v235 = vunpack.c.l.b16 %v41
  %v236 = vunpack.c.l.b16 %v42
  %v237 = vunpack.c.l.b16 %v43
  %v238 = vunpack.c.l.b16 %v44
  %v239 = vunpack.c.l.b16 %v45
  %v240 = vunpack.c.l.b16 %v46
  %v241 = vunpack.c.l.b16 %v47
  %v242 = vunpack.c.l.b16 %v48
  %v243 = vunpack.c.l.b16 %v49
  %v244 = vunpack.c.l.b16 %v50
  %v245 = vunpack.c.l.b16 %v51
  %v246 = vunpack.c.l.b16 %v52
  %v247 = vunpack.c.l.b16 %v53
  %v248 = vunpack.c.l.b16 %v54
  %v249 = vunpack.c.l.b16 %v55
  %v250 = vunpack.c.l.b16 %v56
  %v251 = vunpack.c.l.b16 %v57
  %v252 = vunpack.c.l.b16 %v58
  %v253 = vunpack.c.l.b16 %v59
  %v254 = vunpack.c.l.b16 %v60
  %v255 = vunpack.c.l.b16 %v61
  %v256 = vunpack.c.l.b16 %v62
  %v257 = vunpack.c.l.b16 %v63
  %v258 = vunpack.c.l.b16 %v64
  %v259 = vunpack.c.l.b16 %v65
  %v260 = vunpack.c.l.b16 %v66
  %v261 = vunpack.c.l.b16 %v67
  %v262 = vunpack.c.l.b16 %v68
  %v263 = vunpack.c.l.b16 %v69
  %v264 = vunpack.c.l.b16 %v70
  %v265 = vunpack.c.l.b16 %v71
  %v266 = vunpack.c.l.b16 %v72
  %v267 = vunpack.c.l.b16 %v73
  %v268 = vunpack.c.l.b16 %v74
  %v269 = vunpack.c.l.b16 %v75
  %v270 = vunpack.c.l.b16 %v76
  %v271 = vunpack.c.l.b16 %v77
  %v272 = vunpack.c.l.b16 %v78
  %v273 = vunpack.c.l.b16 %v79
  %v274 = vunpack.c.l.b16 %v80
  %v275 = vunpack.c.l.b16 %v81
  %v276 = vunpack.c.l.b16 %v82
  %v277 = vunpack.c.l.b16 %v83
  %v278 = vunpack.c.l.b16 %v84
  %v279 = vunpack.c.l.b16 %v85
  %v280 = vunpack.c.l.b16 %v86
  %v281 = vunpack.c.l.b16 %v87
  %v282 = vunpack.c.l.b16 %v88
  %v283 = vunpack.c.l.b16 %v89
  %v284 = vunpack.c.l.b16 %v90
  %v285 = vunpack.c.l.b16 %v91
  %v286 = vunpack.c.l.b16 %v92
  %v287 = vunpack.c.l.b16 %v93
  %v288 = vunpack.c.l.b16 %v94
  %v289 = vunpack.c.l.b16 %v95
  %v290 = vunpack.c.l.b16 %v96
  %v291 = vunpack.c.l.b16 %v97
  %v292 = vunpack.c.l.b16 %v98
  %v293 = vunpack.c.l.b16 %v99
  %v294 = vunpack.c.l.b16 %v100
  %v295 = vunpack.c.l.b16 %v101
  %v296 = vunpack.c.l.b16 %v102
  %v297 = vunpack.c.l.b16 %v103
  %v298 = vunpack.c.l.b16 %v104
  %v299 = vpack.c.b16 %v228, %v227
  %v300 = vpack.c.b16 %v230, %v229
  %v301 = vpack.c.b16 %v232, %v231
  %v302 = vpack.c.b16 %v234, %v233
  %v303 = vpack.c.b16 %v236, %v235
  %v304 = vpack.c.b16 %v238, %v237
  %v305 = vpack.c.b16 %v240, %v239
  %v306 = vpack.c.b16 %v242, %v241
  %v307 = vpack.c.b16 %v244, %v243
  %v308 = vpack.c.b16 %v246, %v245
  %v309 = vpack.c.b16 %v248, %v247
  %v310 = vpack.c.b16 %v250, %v249
  %v311 = vpack.c.b16 %v252, %v251
  %v312 = vpack.c.b16 %v254, %v253
  %v313 = vpack.c.b16 %v256, %v255
  %v314 = vpack.c.b16 %v258, %v257
  %v315 = vpack.c.b16 %v260, %v259
  %v316 = vpack.c.b16 %v262, %v261
  %v317 = vpack.c.b16 %v264, %v263
  %v318 = vpack.c.b16 %v266, %v265
  %v319 = vpack.c.b16 %v268, %v267
  %v320 = vpack.c.b16 %v270, %v269
  %v321 = vpack.c.b16 %v272, %v271
  %v322 = vpack.c.b16 %v274, %v273
  %v323 = vpack.c.b16 %v276, %v275
  %v324 = vpack.c.b16 %v278, %v277
  %v325 = vpack.c.b16 %v280, %v279
  %v326 = vpack.c.b16 %v282, %v281
  %v327 = vpack.c.b16 %v284, %v283
  %v328 = vpack.c.b16 %v286, %v285
  %v329 = vpack.c.b16 %v288, %v287
  %v330 = vpack.c.b16 %v290, %v289
  %v331 = vpack.c.b16 %v292, %v291
  %v332 = vpack.c.b16 %v294, %v293
  %v333 = vpack.c.b16 %v296, %v295
  %v334 = vpack.c.b16 %v298, %v297
  %vm371 = vcmask 523264
  %v373 = vsel %vm371, %v141, 0
  %v376 = vsel %vm371, %v146, 0
  %378 = vmatpush.bf16.msra.mxu0 %v306
  %379 = vmatpush.bf16.msra.mxu0 %v305
  %380 = vmatpush.bf16.msra.mxu0 %v304
  %381 = vmatpush.bf16.msra.mxu0 %v303
  %382 = vmatpush.bf16.msra.mxu0 %v302
  %383 = vmatpush.bf16.msra.mxu0 %v301
  %384 = vmatpush.bf16.msra.mxu0 %v300
  %385 = vmatpush.bf16.msra.mxu0 %v299
  %386 = vmatmul.bf16.gmra.mxu0 %v137
  %v387 = vpop.f32.mrf.mxu0
  %v388 = vadd.f32 0.0, %v387
  %v389 = vpop.f32.mrf.mxu0
  %v390 = vadd.f32 0.0, %v389
  %391 = vmatmul.bf16.gmra.mxu0 %v142
  %v392 = vpop.f32.mrf.mxu0
  %v393 = vadd.f32 0.0, %v392
  %v394 = vpop.f32.mrf.mxu0
  %v395 = vadd.f32 0.0, %v394
  %396 = vdwg.mxu0
  %397 = vmatpush.bf16.msra.mxu0 %v314
  %398 = vmatpush.bf16.msra.mxu0 %v313
  %399 = vmatpush.bf16.msra.mxu0 %v312
  %400 = vmatpush.bf16.msra.mxu0 %v311
  %401 = vmatpush.bf16.msra.mxu0 %v310
  %402 = vmatpush.bf16.msra.mxu0 %v309
  %403 = vmatpush.bf16.msra.mxu0 %v308
  %404 = vmatpush.bf16.msra.mxu0 %v307
  %405 = vmatmul.bf16.gmra.mxu0 %v138
  %v406 = vpop.f32.mrf.mxu0
  %v407 = vadd.f32 %v388, %v406
  %v408 = vpop.f32.mrf.mxu0
  %v409 = vadd.f32 %v390, %v408
  %410 = vmatmul.bf16.gmra.mxu0 %v143
  %v411 = vpop.f32.mrf.mxu0
  %v412 = vadd.f32 %v393, %v411
  %v413 = vpop.f32.mrf.mxu0
  %v414 = vadd.f32 %v395, %v413
  %415 = vdwg.mxu0
  %416 = vmatpush.bf16.msra.mxu0 %v322
  %417 = vmatpush.bf16.msra.mxu0 %v321
  %418 = vmatpush.bf16.msra.mxu0 %v320
  %419 = vmatpush.bf16.msra.mxu0 %v319
  %420 = vmatpush.bf16.msra.mxu0 %v318
  %421 = vmatpush.bf16.msra.mxu0 %v317
  %422 = vmatpush.bf16.msra.mxu0 %v316
  %423 = vmatpush.bf16.msra.mxu0 %v315
  %424 = vmatmul.bf16.gmra.mxu0 %v139
  %v425 = vpop.f32.mrf.mxu0
  %v426 = vadd.f32 %v407, %v425
  %v427 = vpop.f32.mrf.mxu0
  %v428 = vadd.f32 %v409, %v427
  %429 = vmatmul.bf16.gmra.mxu0 %v144
  %v430 = vpop.f32.mrf.mxu0
  %v431 = vadd.f32 %v412, %v430
  %v432 = vpop.f32.mrf.mxu0
  %v433 = vadd.f32 %v414, %v432
  %434 = vdwg.mxu0
  %435 = vmatpush.bf16.msra.mxu0 %v330
  %436 = vmatpush.bf16.msra.mxu0 %v329
  %437 = vmatpush.bf16.msra.mxu0 %v328
  %438 = vmatpush.bf16.msra.mxu0 %v327
  %439 = vmatpush.bf16.msra.mxu0 %v326
  %440 = vmatpush.bf16.msra.mxu0 %v325
  %441 = vmatpush.bf16.msra.mxu0 %v324
  %442 = vmatpush.bf16.msra.mxu0 %v323
  %443 = vmatmul.bf16.gmra.mxu0 %v140
  %v444 = vpop.f32.mrf.mxu0
  %v445 = vadd.f32 %v426, %v444
  %v446 = vpop.f32.mrf.mxu0
  %v447 = vadd.f32 %v428, %v446
  %448 = vmatmul.bf16.gmra.mxu0 %v145
  %v449 = vpop.f32.mrf.mxu0
  %v450 = vadd.f32 %v431, %v449
  %v451 = vpop.f32.mrf.mxu0
  %v452 = vadd.f32 %v433, %v451
  %453 = vdwg.mxu0
  %454 = vmatpush.bf16.msra.mxu0 0
  %455 = vmatpush.bf16.msra.mxu0 0
  %456 = vmatpush.bf16.msra.mxu0 0
  %457 = vmatpush.bf16.msra.mxu0 0
  %458 = vmatpush.bf16.msra.mxu0 %v334
  %459 = vmatpush.bf16.msra.mxu0 %v333
  %460 = vmatpush.bf16.msra.mxu0 %v332
  %461 = vmatpush.bf16.msra.mxu0 %v331
  %462 = vmatmul.bf16.gmra.mxu0 %v373
  %v463 = vpop.f32.mrf.mxu0
  %v464 = vadd.f32 %v445, %v463
  %v465 = vpop.f32.mrf.mxu0
  %v466 = vadd.f32 %v447, %v465
  %467 = vmatmul.bf16.gmra.mxu0 %v376
  %v468 = vpop.f32.mrf.mxu0
  %v469 = vadd.f32 %v450, %v468
  %v470 = vpop.f32.mrf.mxu0
  %v471 = vadd.f32 %v452, %v470
  %472 = vdwg.mxu0
  %v473 = vld [vmem:[%s2] sm:$0x1]
  %v475 = vperm.slane %v473, 0
  %v477 = vmul.f32 %v464, %v475
  %v478 = vmul.f32 %v466, %v475
  %v479 = vmul.f32 %v469, %v475
  %v480 = vmul.f32 %v471, %v475
  %v481 = vld [vmem:[%s3] sm:$0x1]
  %v483 = vperm.slane %v481, 0
  %v485 = vadd.f32 %v477, %v483
  %v486 = vadd.f32 %v478, %v483
  %v487 = vadd.f32 %v479, %v483
  %v488 = vadd.f32 %v480, %v483
  %v489 = vld [vmem:[%s4] sm:$0xff]
  %v490 = vld [vmem:[%s4 + $0x8] sm:$0xff]
  %v491 = vld [vmem:[%s4 + $0x10] sm:$0xff]
  %v492 = vld [vmem:[%s4 + $0x18] sm:$0xff]
  %v493 = vadd.f32 %v485, %v489
  %v494 = vadd.f32 %v486, %v490
  %v495 = vadd.f32 %v487, %v491
  %v496 = vadd.f32 %v488, %v492
  %v497 = vmax.f32 %v493, 0.0
  %v498 = vmax.f32 %v494, 0.0
  %v499 = vmax.f32 %v495, 0.0
  %v500 = vmax.f32 %v496, 0.0
  %501 = vst [vmem:[%s5] sm:$0xff] %v497
  %502 = vst [vmem:[%s5 + $0x8] sm:$0xff] %v498
  %503 = vst [vmem:[%s5 + $0x10] sm:$0xff] %v499
  %504 = vst [vmem:[%s5 + $0x18] sm:$0xff] %v500
  // Predicated region
  $region22: #{_lambda_.38} parent=0 // pred_check
    _
  $region23: #{_lambda_.38} parent=0 // pred_check_branch
    %506 = sbr.rel (0) target = $region25
  $region24: #{_lambda_.38} parent=0 // pred_region
    _
  $region25: #{_lambda_.38} parent=0 // pred_fallthru
    _
  // Predicated region
  $region26: #{_lambda_.38} parent=0 // pred_check
    _
  $region27: #{_lambda_.38} parent=0 // pred_check_branch
    %508 = sbr.rel (0) target = $region29
  $region28: #{_lambda_.38} parent=0 // pred_region
    _
  $region29: #{_lambda_.38} parent=0 // pred_fallthru
    _

// kernel: _lambda_.39
$region0: #{_lambda_.39}
  #allocation0 [shape = 'u32[]', space=smem, size = 0x4, offset = 0x4, fixed_abs, tag = 'smem constant byte address 0x4 - core index']
  #allocation1 [shape = 'u32[72,128]{1,0:T(1,128)}', space=vmem, size = 0x9000, scoped, tag = 'internal scratch']
  %s0 = inlined_call_operand.vmem [shape: bf16[32,576], index: 0, kind: input, shape index: {}]
  %s1 = inlined_call_operand.vmem [shape: bf16[576,128], index: 1, kind: input, shape index: {}]
  %s2 = inlined_call_operand.vmem [shape: f32[1,128], index: 2, kind: input, shape index: {}]
  %s3 = inlined_call_operand.vmem [shape: f32[1,128], index: 3, kind: input, shape index: {}]
  %s4 = inlined_call_operand.vmem [shape: f32[32,128], index: 4, kind: output, shape index: {}]
  %s5 = sld [smem:[#allocation0]]
  $region26: #{_lambda_.39} parent=0
    _
  %s7 = ssub.s32 1, %s5
  %s8 = scalar_select 0, %s7, %s5
  // Predicated region
  $region2: #{_lambda_.39} parent=0 // pred_check
    _
  $region3: #{_lambda_.39} parent=0 // pred_check_branch
    %10 = sbr.rel (0) target = $region5
  $region4: #{_lambda_.39} parent=0 // pred_region
    _
  $region5: #{_lambda_.39} parent=0 // pred_fallthru
    _
  // Predicated region
  $region6: #{_lambda_.39} parent=0 // pred_check
    _
  $region7: #{_lambda_.39} parent=0 // pred_check_branch
    %12 = sbr.rel (0) target = $region9
  $region8: #{_lambda_.39} parent=0 // pred_region
    _
  $region9: #{_lambda_.39} parent=0 // pred_fallthru
    _
  // Predicated region
  $region10: #{_lambda_.39} parent=0 // pred_check
    _
  $region11: #{_lambda_.39} parent=0 // pred_check_branch
    %14 = sbr.rel (0) target = $region13
  $region12: #{_lambda_.39} parent=0 // pred_region
    _
  $region13: #{_lambda_.39} parent=0 // pred_fallthru
    _
  // Predicated region
  $region14: #{_lambda_.39} parent=0 // pred_check
    _
  $region15: #{_lambda_.39} parent=0 // pred_check_branch
    %16 = sbr.rel (0) target = $region17
  $region16: #{_lambda_.39} parent=0 // pred_region
    _
  $region17: #{_lambda_.39} parent=0 // pred_fallthru
    _
  %v18 = vld [vmem:[%s0] sm:$0xff]
  %v19 = vld [vmem:[%s0 + $0x8] sm:$0xff]
  %v20 = vld [vmem:[%s0 + $0x10] sm:$0xf]
  %v21 = vld [vmem:[%s0 + $0x14] sm:$0xff]
  %v22 = vld [vmem:[%s0 + $0x1c] sm:$0xff]
  %v23 = vld [vmem:[%s0 + $0x24] sm:$0xf]
  %v24 = vld [vmem:[%s0 + $0x28] sm:$0xff]
  %v25 = vld [vmem:[%s0 + $0x30] sm:$0xff]
  %v26 = vld [vmem:[%s0 + $0x38] sm:$0xf]
  %v27 = vld [vmem:[%s0 + $0x3c] sm:$0xff]
  %v28 = vld [vmem:[%s0 + $0x44] sm:$0xff]
  %v29 = vld [vmem:[%s0 + $0x4c] sm:$0xf]
  %v30 = vld [vmem:[%s1] sm:$0xf]
  %v31 = vld [vmem:[%s1 + $0x4] sm:$0xf]
  %v32 = vld [vmem:[%s1 + $0x8] sm:$0xf]
  %v33 = vld [vmem:[%s1 + $0xc] sm:$0xf]
  %v34 = vld [vmem:[%s1 + $0x10] sm:$0xf]
  %v35 = vld [vmem:[%s1 + $0x14] sm:$0xf]
  %v36 = vld [vmem:[%s1 + $0x18] sm:$0xf]
  %v37 = vld [vmem:[%s1 + $0x1c] sm:$0xf]
  %v38 = vld [vmem:[%s1 + $0x20] sm:$0xf]
  %v39 = vld [vmem:[%s1 + $0x24] sm:$0xf]
  %v40 = vld [vmem:[%s1 + $0x28] sm:$0xf]
  %v41 = vld [vmem:[%s1 + $0x2c] sm:$0xf]
  %v42 = vld [vmem:[%s1 + $0x30] sm:$0xf]
  %v43 = vld [vmem:[%s1 + $0x34] sm:$0xf]
  %v44 = vld [vmem:[%s1 + $0x38] sm:$0xf]
  %v45 = vld [vmem:[%s1 + $0x3c] sm:$0xf]
  %v46 = vld [vmem:[%s1 + $0x40] sm:$0xf]
  %v47 = vld [vmem:[%s1 + $0x44] sm:$0xf]
  %v48 = vld [vmem:[%s1 + $0x48] sm:$0xf]
  %v49 = vld [vmem:[%s1 + $0x4c] sm:$0xf]
  %v50 = vld [vmem:[%s1 + $0x50] sm:$0xf]
  %v51 = vld [vmem:[%s1 + $0x54] sm:$0xf]
  %v52 = vld [vmem:[%s1 + $0x58] sm:$0xf]
  %v53 = vld [vmem:[%s1 + $0x5c] sm:$0xf]
  %v54 = vld [vmem:[%s1 + $0x60] sm:$0xf]
  %v55 = vld [vmem:[%s1 + $0x64] sm:$0xf]
  %v56 = vld [vmem:[%s1 + $0x68] sm:$0xf]
  %v57 = vld [vmem:[%s1 + $0x6c] sm:$0xf]
  %v58 = vld [vmem:[%s1 + $0x70] sm:$0xf]
  %v59 = vld [vmem:[%s1 + $0x74] sm:$0xf]
  %v60 = vld [vmem:[%s1 + $0x78] sm:$0xf]
  %v61 = vld [vmem:[%s1 + $0x7c] sm:$0xf]
  %v62 = vld [vmem:[%s1 + $0x80] sm:$0xf]
  %v63 = vld [vmem:[%s1 + $0x84] sm:$0xf]
  %v64 = vld [vmem:[%s1 + $0x88] sm:$0xf]
  %v65 = vld [vmem:[%s1 + $0x8c] sm:$0xf]
  %v66 = vld [vmem:[%s1 + $0x90] sm:$0xf]
  %v67 = vld [vmem:[%s1 + $0x94] sm:$0xf]
  %v68 = vld [vmem:[%s1 + $0x98] sm:$0xf]
  %v69 = vld [vmem:[%s1 + $0x9c] sm:$0xf]
  %v70 = vld [vmem:[%s1 + $0xa0] sm:$0xf]
  %v71 = vld [vmem:[%s1 + $0xa4] sm:$0xf]
  %v72 = vld [vmem:[%s1 + $0xa8] sm:$0xf]
  %v73 = vld [vmem:[%s1 + $0xac] sm:$0xf]
  %v74 = vld [vmem:[%s1 + $0xb0] sm:$0xf]
  %v75 = vld [vmem:[%s1 + $0xb4] sm:$0xf]
  %v76 = vld [vmem:[%s1 + $0xb8] sm:$0xf]
  %v77 = vld [vmem:[%s1 + $0xbc] sm:$0xf]
  %v78 = vld [vmem:[%s1 + $0xc0] sm:$0xf]
  %v79 = vld [vmem:[%s1 + $0xc4] sm:$0xf]
  %v80 = vld [vmem:[%s1 + $0xc8] sm:$0xf]
  %v81 = vld [vmem:[%s1 + $0xcc] sm:$0xf]
  %v82 = vld [vmem:[%s1 + $0xd0] sm:$0xf]
  %v83 = vld [vmem:[%s1 + $0xd4] sm:$0xf]
  %v84 = vld [vmem:[%s1 + $0xd8] sm:$0xf]
  %v85 = vld [vmem:[%s1 + $0xdc] sm:$0xf]
  %v86 = vld [vmem:[%s1 + $0xe0] sm:$0xf]
  %v87 = vld [vmem:[%s1 + $0xe4] sm:$0xf]
  %v88 = vld [vmem:[%s1 + $0xe8] sm:$0xf]
  %v89 = vld [vmem:[%s1 + $0xec] sm:$0xf]
  %v90 = vld [vmem:[%s1 + $0xf0] sm:$0xf]
  %v91 = vld [vmem:[%s1 + $0xf4] sm:$0xf]
  %v92 = vld [vmem:[%s1 + $0xf8] sm:$0xf]
  %v93 = vld [vmem:[%s1 + $0xfc] sm:$0xf]
  %v94 = vld [vmem:[%s1 + $0x100] sm:$0xf]
  %v95 = vld [vmem:[%s1 + $0x104] sm:$0xf]
  %v96 = vld [vmem:[%s1 + $0x108] sm:$0xf]
  %v97 = vld [vmem:[%s1 + $0x10c] sm:$0xf]
  %v98 = vld [vmem:[%s1 + $0x110] sm:$0xf]
  %v99 = vld [vmem:[%s1 + $0x114] sm:$0xf]
  %v100 = vld [vmem:[%s1 + $0x118] sm:$0xf]
  %v101 = vld [vmem:[%s1 + $0x11c] sm:$0xf]
  %v114 = vunpack.c.l.b16 %v18
  %v115 = vunpack.c.h.b16 %v18
  %v116 = vunpack.c.l.b16 %v19
  %v117 = vunpack.c.h.b16 %v19
  %v118 = vunpack.c.l.b16 %v20
  %v119 = vunpack.c.l.b16 %v21
  %v120 = vunpack.c.h.b16 %v21
  %v121 = vunpack.c.l.b16 %v22
  %v122 = vunpack.c.h.b16 %v22
  %v123 = vunpack.c.l.b16 %v23
  %v124 = vunpack.c.l.b16 %v24
  %v125 = vunpack.c.h.b16 %v24
  %v126 = vunpack.c.l.b16 %v25
  %v127 = vunpack.c.h.b16 %v25
  %v128 = vunpack.c.l.b16 %v26
  %v129 = vunpack.c.l.b16 %v27
  %v130 = vunpack.c.h.b16 %v27
  %v131 = vunpack.c.l.b16 %v28
  %v132 = vunpack.c.h.b16 %v28
  %v133 = vunpack.c.l.b16 %v29
  %v134 = vpack.c.b16 %v119, %v114
  %v135 = vpack.c.b16 %v120, %v115
  %v136 = vpack.c.b16 %v121, %v116
  %v137 = vpack.c.b16 %v122, %v117
  %v138 = vpack.c.b16 %v123, %v118
  %v139 = vpack.c.b16 %v129, %v124
  %v140 = vpack.c.b16 %v130, %v125
  %v141 = vpack.c.b16 %v131, %v126
  %v142 = vpack.c.b16 %v132, %v127
  %v143 = vpack.c.b16 %v133, %v128
  %v224 = vunpack.c.l.b16 %v30
  %v225 = vunpack.c.l.b16 %v31
  %v226 = vunpack.c.l.b16 %v32
  %v227 = vunpack.c.l.b16 %v33
  %v228 = vunpack.c.l.b16 %v34
  %v229 = vunpack.c.l.b16 %v35
  %v230 = vunpack.c.l.b16 %v36
  %v231 = vunpack.c.l.b16 %v37
  %v232 = vunpack.c.l.b16 %v38
  %v233 = vunpack.c.l.b16 %v39
  %v234 = vunpack.c.l.b16 %v40
  %v235 = vunpack.c.l.b16 %v41
  %v236 = vunpack.c.l.b16 %v42
  %v237 = vunpack.c.l.b16 %v43
  %v238 = vunpack.c.l.b16 %v44
  %v239 = vunpack.c.l.b16 %v45
  %v240 = vunpack.c.l.b16 %v46
  %v241 = vunpack.c.l.b16 %v47
  %v242 = vunpack.c.l.b16 %v48
  %v243 = vunpack.c.l.b16 %v49
  %v244 = vunpack.c.l.b16 %v50
  %v245 = vunpack.c.l.b16 %v51
  %v246 = vunpack.c.l.b16 %v52
  %v247 = vunpack.c.l.b16 %v53
  %v248 = vunpack.c.l.b16 %v54
  %v249 = vunpack.c.l.b16 %v55
  %v250 = vunpack.c.l.b16 %v56
  %v251 = vunpack.c.l.b16 %v57
  %v252 = vunpack.c.l.b16 %v58
  %v253 = vunpack.c.l.b16 %v59
  %v254 = vunpack.c.l.b16 %v60
  %v255 = vunpack.c.l.b16 %v61
  %v256 = vunpack.c.l.b16 %v62
  %v257 = vunpack.c.l.b16 %v63
  %v258 = vunpack.c.l.b16 %v64
  %v259 = vunpack.c.l.b16 %v65
  %v260 = vunpack.c.l.b16 %v66
  %v261 = vunpack.c.l.b16 %v67
  %v262 = vunpack.c.l.b16 %v68
  %v263 = vunpack.c.l.b16 %v69
  %v264 = vunpack.c.l.b16 %v70
  %v265 = vunpack.c.l.b16 %v71
  %v266 = vunpack.c.l.b16 %v72
  %v267 = vunpack.c.l.b16 %v73
  %v268 = vunpack.c.l.b16 %v74
  %v269 = vunpack.c.l.b16 %v75
  %v270 = vunpack.c.l.b16 %v76
  %v271 = vunpack.c.l.b16 %v77
  %v272 = vunpack.c.l.b16 %v78
  %v273 = vunpack.c.l.b16 %v79
  %v274 = vunpack.c.l.b16 %v80
  %v275 = vunpack.c.l.b16 %v81
  %v276 = vunpack.c.l.b16 %v82
  %v277 = vunpack.c.l.b16 %v83
  %v278 = vunpack.c.l.b16 %v84
  %v279 = vunpack.c.l.b16 %v85
  %v280 = vunpack.c.l.b16 %v86
  %v281 = vunpack.c.l.b16 %v87
  %v282 = vunpack.c.l.b16 %v88
  %v283 = vunpack.c.l.b16 %v89
  %v284 = vunpack.c.l.b16 %v90
  %v285 = vunpack.c.l.b16 %v91
  %v286 = vunpack.c.l.b16 %v92
  %v287 = vunpack.c.l.b16 %v93
  %v288 = vunpack.c.l.b16 %v94
  %v289 = vunpack.c.l.b16 %v95
  %v290 = vunpack.c.l.b16 %v96
  %v291 = vunpack.c.l.b16 %v97
  %v292 = vunpack.c.l.b16 %v98
  %v293 = vunpack.c.l.b16 %v99
  %v294 = vunpack.c.l.b16 %v100
  %v295 = vunpack.c.l.b16 %v101
  %v296 = vpack.c.b16 %v225, %v224
  %v297 = vpack.c.b16 %v227, %v226
  %v298 = vpack.c.b16 %v229, %v228
  %v299 = vpack.c.b16 %v231, %v230
  %v300 = vpack.c.b16 %v233, %v232
  %v301 = vpack.c.b16 %v235, %v234
  %v302 = vpack.c.b16 %v237, %v236
  %v303 = vpack.c.b16 %v239, %v238
  %v304 = vpack.c.b16 %v241, %v240
  %v305 = vpack.c.b16 %v243, %v242
  %v306 = vpack.c.b16 %v245, %v244
  %v307 = vpack.c.b16 %v247, %v246
  %v308 = vpack.c.b16 %v249, %v248
  %v309 = vpack.c.b16 %v251, %v250
  %v310 = vpack.c.b16 %v253, %v252
  %v311 = vpack.c.b16 %v255, %v254
  %v312 = vpack.c.b16 %v257, %v256
  %v313 = vpack.c.b16 %v259, %v258
  %v314 = vpack.c.b16 %v261, %v260
  %v315 = vpack.c.b16 %v263, %v262
  %v316 = vpack.c.b16 %v265, %v264
  %v317 = vpack.c.b16 %v267, %v266
  %v318 = vpack.c.b16 %v269, %v268
  %v319 = vpack.c.b16 %v271, %v270
  %v320 = vpack.c.b16 %v273, %v272
  %v321 = vpack.c.b16 %v275, %v274
  %v322 = vpack.c.b16 %v277, %v276
  %v323 = vpack.c.b16 %v279, %v278
  %v324 = vpack.c.b16 %v281, %v280
  %v325 = vpack.c.b16 %v283, %v282
  %v326 = vpack.c.b16 %v285, %v284
  %v327 = vpack.c.b16 %v287, %v286
  %v328 = vpack.c.b16 %v289, %v288
  %v329 = vpack.c.b16 %v291, %v290
  %v330 = vpack.c.b16 %v293, %v292
  %v331 = vpack.c.b16 %v295, %v294
  %vm368 = vcmask 523264
  %v370 = vsel %vm368, %v138, 0
  %v373 = vsel %vm368, %v143, 0
  %375 = vmatpush.bf16.msra.mxu0 %v303
  %376 = vmatpush.bf16.msra.mxu0 %v302
  %377 = vmatpush.bf16.msra.mxu0 %v301
  %378 = vmatpush.bf16.msra.mxu0 %v300
  %379 = vmatpush.bf16.msra.mxu0 %v299
  %380 = vmatpush.bf16.msra.mxu0 %v298
  %381 = vmatpush.bf16.msra.mxu0 %v297
  %382 = vmatpush.bf16.msra.mxu0 %v296
  %383 = vmatmul.bf16.gmra.mxu0 %v134
  %v384 = vpop.f32.mrf.mxu0
  %v385 = vadd.f32 0.0, %v384
  %v386 = vpop.f32.mrf.mxu0
  %v387 = vadd.f32 0.0, %v386
  %388 = vmatmul.bf16.gmra.mxu0 %v139
  %v389 = vpop.f32.mrf.mxu0
  %v390 = vadd.f32 0.0, %v389
  %v391 = vpop.f32.mrf.mxu0
  %v392 = vadd.f32 0.0, %v391
  %393 = vdwg.mxu0
  %394 = vmatpush.bf16.msra.mxu0 %v311
  %395 = vmatpush.bf16.msra.mxu0 %v310
  %396 = vmatpush.bf16.msra.mxu0 %v309
  %397 = vmatpush.bf16.msra.mxu0 %v308
  %398 = vmatpush.bf16.msra.mxu0 %v307
  %399 = vmatpush.bf16.msra.mxu0 %v306
  %400 = vmatpush.bf16.msra.mxu0 %v305
  %401 = vmatpush.bf16.msra.mxu0 %v304
  %402 = vmatmul.bf16.gmra.mxu0 %v135
  %v403 = vpop.f32.mrf.mxu0
  %v404 = vadd.f32 %v385, %v403
  %v405 = vpop.f32.mrf.mxu0
  %v406 = vadd.f32 %v387, %v405
  %407 = vmatmul.bf16.gmra.mxu0 %v140
  %v408 = vpop.f32.mrf.mxu0
  %v409 = vadd.f32 %v390, %v408
  %v410 = vpop.f32.mrf.mxu0
  %v411 = vadd.f32 %v392, %v410
  %412 = vdwg.mxu0
  %413 = vmatpush.bf16.msra.mxu0 %v319
  %414 = vmatpush.bf16.msra.mxu0 %v318
  %415 = vmatpush.bf16.msra.mxu0 %v317
  %416 = vmatpush.bf16.msra.mxu0 %v316
  %417 = vmatpush.bf16.msra.mxu0 %v315
  %418 = vmatpush.bf16.msra.mxu0 %v314
  %419 = vmatpush.bf16.msra.mxu0 %v313
  %420 = vmatpush.bf16.msra.mxu0 %v312
  %421 = vmatmul.bf16.gmra.mxu0 %v136
  %v422 = vpop.f32.mrf.mxu0
  %v423 = vadd.f32 %v404, %v422
  %v424 = vpop.f32.mrf.mxu0
  %v425 = vadd.f32 %v406, %v424
  %426 = vmatmul.bf16.gmra.mxu0 %v141
  %v427 = vpop.f32.mrf.mxu0
  %v428 = vadd.f32 %v409, %v427
  %v429 = vpop.f32.mrf.mxu0
  %v430 = vadd.f32 %v411, %v429
  %431 = vdwg.mxu0
  %432 = vmatpush.bf16.msra.mxu0 %v327
  %433 = vmatpush.bf16.msra.mxu0 %v326
  %434 = vmatpush.bf16.msra.mxu0 %v325
  %435 = vmatpush.bf16.msra.mxu0 %v324
  %436 = vmatpush.bf16.msra.mxu0 %v323
  %437 = vmatpush.bf16.msra.mxu0 %v322
  %438 = vmatpush.bf16.msra.mxu0 %v321
  %439 = vmatpush.bf16.msra.mxu0 %v320
  %440 = vmatmul.bf16.gmra.mxu0 %v137
  %v441 = vpop.f32.mrf.mxu0
  %v442 = vadd.f32 %v423, %v441
  %v443 = vpop.f32.mrf.mxu0
  %v444 = vadd.f32 %v425, %v443
  %445 = vmatmul.bf16.gmra.mxu0 %v142
  %v446 = vpop.f32.mrf.mxu0
  %v447 = vadd.f32 %v428, %v446
  %v448 = vpop.f32.mrf.mxu0
  %v449 = vadd.f32 %v430, %v448
  %450 = vdwg.mxu0
  %451 = vmatpush.bf16.msra.mxu0 0
  %452 = vmatpush.bf16.msra.mxu0 0
  %453 = vmatpush.bf16.msra.mxu0 0
  %454 = vmatpush.bf16.msra.mxu0 0
  %455 = vmatpush.bf16.msra.mxu0 %v331
  %456 = vmatpush.bf16.msra.mxu0 %v330
  %457 = vmatpush.bf16.msra.mxu0 %v329
  %458 = vmatpush.bf16.msra.mxu0 %v328
  %459 = vmatmul.bf16.gmra.mxu0 %v370
  %v460 = vpop.f32.mrf.mxu0
  %v461 = vadd.f32 %v442, %v460
  %v462 = vpop.f32.mrf.mxu0
  %v463 = vadd.f32 %v444, %v462
  %464 = vmatmul.bf16.gmra.mxu0 %v373
  %v465 = vpop.f32.mrf.mxu0
  %v466 = vadd.f32 %v447, %v465
  %v467 = vpop.f32.mrf.mxu0
  %v468 = vadd.f32 %v449, %v467
  %469 = vdwg.mxu0
  %v470 = vld [vmem:[%s2] sm:$0x1]
  %v472 = vperm.slane %v470, 0
  %v474 = vmul.f32 %v461, %v472
  %v475 = vmul.f32 %v463, %v472
  %v476 = vmul.f32 %v466, %v472
  %v477 = vmul.f32 %v468, %v472
  %v478 = vld [vmem:[%s3] sm:$0x1]
  %v480 = vperm.slane %v478, 0
  %v482 = vadd.f32 %v474, %v480
  %v483 = vadd.f32 %v475, %v480
  %v484 = vadd.f32 %v476, %v480
  %v485 = vadd.f32 %v477, %v480
  %v486 = vmax.f32 %v482, 0.0
  %v487 = vmax.f32 %v483, 0.0
  %v488 = vmax.f32 %v484, 0.0
  %v489 = vmax.f32 %v485, 0.0
  %490 = vst [vmem:[%s4] sm:$0xff] %v486
  %491 = vst [vmem:[%s4 + $0x8] sm:$0xff] %v487
  %492 = vst [vmem:[%s4 + $0x10] sm:$0xff] %v488
  %493 = vst [vmem:[%s4 + $0x18] sm:$0xff] %v489
  // Predicated region
  $region18: #{_lambda_.39} parent=0 // pred_check
    _
  $region19: #{_lambda_.39} parent=0 // pred_check_branch
    %495 = sbr.rel (0) target = $region21
  $region20: #{_lambda_.39} parent=0 // pred_region
    _
  $region21: #{_lambda_.39} parent=0 // pred_fallthru
    _
  // Predicated region
  $region22: #{_lambda_.39} parent=0 // pred_check
    _
  $region23: #{_lambda_.39} parent=0 // pred_check_branch
    %497 = sbr.rel (0) target = $region25
  $region24: #{_lambda_.39} parent=0 // pred_region
    _
  $region25: #{_lambda_.39} parent=0 // pred_fallthru
    _

// kernel: _lambda_.43
$region0: #{_lambda_.43}
  #allocation0 [shape = 'u32[]', space=smem, size = 0x4, offset = 0x4, fixed_abs, tag = 'smem constant byte address 0x4 - core index']
  #allocation1 [shape = 'u32[72,128]{1,0:T(1,128)}', space=vmem, size = 0x9000, scoped, tag = 'internal scratch']
  %s0 = inlined_call_operand.vmem [shape: bf16[2,1024], index: 0, kind: input, shape index: {}]
  %s1 = inlined_call_operand.vmem [shape: bf16[1024,128], index: 1, kind: input, shape index: {}]
  %s2 = inlined_call_operand.vmem [shape: f32[1,128], index: 2, kind: input, shape index: {}]
  %s3 = inlined_call_operand.hbm [shape: f32[2,128], index: 3, kind: output, shape index: {}]
  %s4 = sld [smem:[#allocation0]]
  $region22: #{_lambda_.43} parent=0
    _
  %s6 = ssub.s32 1, %s4
  %s7 = scalar_select 0, %s6, %s4
  $region1: #{_lambda_.43} parent=0
    #allocation2 [shape = 'u8[1024]{0}', space=vmem, size = 0x400, scoped, tag = 'output window, operand 0, single buffered']
    #allocation3 [shape = 's32[1]{0}', space=sflag, size = 0x4, scoped, tag = 'scoped memory for _lambda_.43']
    %8 = vsyncpa [#allocation3], 0
    // Predicated region
    $region2: #{_lambda_.43} parent=1 // pred_check
      _
    $region3: #{_lambda_.43} parent=1 // pred_check_branch
      %10 = sbr.rel (0) target = $region5
    $region4: #{_lambda_.43} parent=1 // pred_region
      _
    $region5: #{_lambda_.43} parent=1 // pred_fallthru
      _
    // Predicated region
    $region6: #{_lambda_.43} parent=1 // pred_check
      _
    $region7: #{_lambda_.43} parent=1 // pred_check_branch
      %12 = sbr.rel (0) target = $region9
    $region8: #{_lambda_.43} parent=1 // pred_region
      _
    $region9: #{_lambda_.43} parent=1 // pred_fallthru
      _
    // Predicated region
    $region10: #{_lambda_.43} parent=1 // pred_check
      _
    $region11: #{_lambda_.43} parent=1 // pred_check_branch
      %14 = sbr.rel (0) target = $region13
    $region12: #{_lambda_.43} parent=1 // pred_region
      _
    $region13: #{_lambda_.43} parent=1 // pred_fallthru
      _
    %v15 = vld [vmem:[%s0] sm:$0xff]
    %v16 = vld [vmem:[%s1] sm:$0xf]
    %v17 = vld [vmem:[%s1 + $0x4] sm:$0xf]
    %v18 = vld [vmem:[%s1 + $0x8] sm:$0xf]
    %v19 = vld [vmem:[%s1 + $0xc] sm:$0xf]
    %v20 = vld [vmem:[%s1 + $0x10] sm:$0xf]
    %v21 = vld [vmem:[%s1 + $0x14] sm:$0xf]
    %v22 = vld [vmem:[%s1 + $0x18] sm:$0xf]
    %v23 = vld [vmem:[%s1 + $0x1c] sm:$0xf]
    %v24 = vld [vmem:[%s1 + $0x20] sm:$0xf]
    %v25 = vld [vmem:[%s1 + $0x24] sm:$0xf]
    %v26 = vld [vmem:[%s1 + $0x28] sm:$0xf]
    %v27 = vld [vmem:[%s1 + $0x2c] sm:$0xf]
    %v28 = vld [vmem:[%s1 + $0x30] sm:$0xf]
    %v29 = vld [vmem:[%s1 + $0x34] sm:$0xf]
    %v30 = vld [vmem:[%s1 + $0x38] sm:$0xf]
    %v31 = vld [vmem:[%s1 + $0x3c] sm:$0xf]
    %v32 = vld [vmem:[%s1 + $0x40] sm:$0xf]
    %v33 = vld [vmem:[%s1 + $0x44] sm:$0xf]
    %v34 = vld [vmem:[%s1 + $0x48] sm:$0xf]
    %v35 = vld [vmem:[%s1 + $0x4c] sm:$0xf]
    %v36 = vld [vmem:[%s1 + $0x50] sm:$0xf]
    %v37 = vld [vmem:[%s1 + $0x54] sm:$0xf]
    %v38 = vld [vmem:[%s1 + $0x58] sm:$0xf]
    %v39 = vld [vmem:[%s1 + $0x5c] sm:$0xf]
    %v40 = vld [vmem:[%s1 + $0x60] sm:$0xf]
    %v41 = vld [vmem:[%s1 + $0x64] sm:$0xf]
    %v42 = vld [vmem:[%s1 + $0x68] sm:$0xf]
    %v43 = vld [vmem:[%s1 + $0x6c] sm:$0xf]
    %v44 = vld [vmem:[%s1 + $0x70] sm:$0xf]
    %v45 = vld [vmem:[%s1 + $0x74] sm:$0xf]
    %v46 = vld [vmem:[%s1 + $0x78] sm:$0xf]
    %v47 = vld [vmem:[%s1 + $0x7c] sm:$0xf]
    %v48 = vld [vmem:[%s1 + $0x80] sm:$0xf]
    %v49 = vld [vmem:[%s1 + $0x84] sm:$0xf]
    %v50 = vld [vmem:[%s1 + $0x88] sm:$0xf]
    %v51 = vld [vmem:[%s1 + $0x8c] sm:$0xf]
    %v52 = vld [vmem:[%s1 + $0x90] sm:$0xf]
    %v53 = vld [vmem:[%s1 + $0x94] sm:$0xf]
    %v54 = vld [vmem:[%s1 + $0x98] sm:$0xf]
    %v55 = vld [vmem:[%s1 + $0x9c] sm:$0xf]
    %v56 = vld [vmem:[%s1 + $0xa0] sm:$0xf]
    %v57 = vld [vmem:[%s1 + $0xa4] sm:$0xf]
    %v58 = vld [vmem:[%s1 + $0xa8] sm:$0xf]
    %v59 = vld [vmem:[%s1 + $0xac] sm:$0xf]
    %v60 = vld [vmem:[%s1 + $0xb0] sm:$0xf]
    %v61 = vld [vmem:[%s1 + $0xb4] sm:$0xf]
    %v62 = vld [vmem:[%s1 + $0xb8] sm:$0xf]
    %v63 = vld [vmem:[%s1 + $0xbc] sm:$0xf]
    %v64 = vld [vmem:[%s1 + $0xc0] sm:$0xf]
    %v65 = vld [vmem:[%s1 + $0xc4] sm:$0xf]
    %v66 = vld [vmem:[%s1 + $0xc8] sm:$0xf]
    %v67 = vld [vmem:[%s1 + $0xcc] sm:$0xf]
    %v68 = vld [vmem:[%s1 + $0xd0] sm:$0xf]
    %v69 = vld [vmem:[%s1 + $0xd4] sm:$0xf]
    %v70 = vld [vmem:[%s1 + $0xd8] sm:$0xf]
    %v71 = vld [vmem:[%s1 + $0xdc] sm:$0xf]
    %v72 = vld [vmem:[%s1 + $0xe0] sm:$0xf]
    %v73 = vld [vmem:[%s1 + $0xe4] sm:$0xf]
    %v74 = vld [vmem:[%s1 + $0xe8] sm:$0xf]
    %v75 = vld [vmem:[%s1 + $0xec] sm:$0xf]
    %v76 = vld [vmem:[%s1 + $0xf0] sm:$0xf]
    %v77 = vld [vmem:[%s1 + $0xf4] sm:$0xf]
    %v78 = vld [vmem:[%s1 + $0xf8] sm:$0xf]
    %v79 = vld [vmem:[%s1 + $0xfc] sm:$0xf]
    %v80 = vld [vmem:[%s1 + $0x100] sm:$0xf]
    %v81 = vld [vmem:[%s1 + $0x104] sm:$0xf]
    %v82 = vld [vmem:[%s1 + $0x108] sm:$0xf]
    %v83 = vld [vmem:[%s1 + $0x10c] sm:$0xf]
    %v84 = vld [vmem:[%s1 + $0x110] sm:$0xf]
    %v85 = vld [vmem:[%s1 + $0x114] sm:$0xf]
    %v86 = vld [vmem:[%s1 + $0x118] sm:$0xf]
    %v87 = vld [vmem:[%s1 + $0x11c] sm:$0xf]
    %v88 = vld [vmem:[%s1 + $0x120] sm:$0xf]
    %v89 = vld [vmem:[%s1 + $0x124] sm:$0xf]
    %v90 = vld [vmem:[%s1 + $0x128] sm:$0xf]
    %v91 = vld [vmem:[%s1 + $0x12c] sm:$0xf]
    %v92 = vld [vmem:[%s1 + $0x130] sm:$0xf]
    %v93 = vld [vmem:[%s1 + $0x134] sm:$0xf]
    %v94 = vld [vmem:[%s1 + $0x138] sm:$0xf]
    %v95 = vld [vmem:[%s1 + $0x13c] sm:$0xf]
    %v96 = vld [vmem:[%s1 + $0x140] sm:$0xf]
    %v97 = vld [vmem:[%s1 + $0x144] sm:$0xf]
    %v98 = vld [vmem:[%s1 + $0x148] sm:$0xf]
    %v99 = vld [vmem:[%s1 + $0x14c] sm:$0xf]
    %v100 = vld [vmem:[%s1 + $0x150] sm:$0xf]
    %v101 = vld [vmem:[%s1 + $0x154] sm:$0xf]
    %v102 = vld [vmem:[%s1 + $0x158] sm:$0xf]
    %v103 = vld [vmem:[%s1 + $0x15c] sm:$0xf]
    %v104 = vld [vmem:[%s1 + $0x160] sm:$0xf]
    %v105 = vld [vmem:[%s1 + $0x164] sm:$0xf]
    %v106 = vld [vmem:[%s1 + $0x168] sm:$0xf]
    %v107 = vld [vmem:[%s1 + $0x16c] sm:$0xf]
    %v108 = vld [vmem:[%s1 + $0x170] sm:$0xf]
    %v109 = vld [vmem:[%s1 + $0x174] sm:$0xf]
    %v110 = vld [vmem:[%s1 + $0x178] sm:$0xf]
    %v111 = vld [vmem:[%s1 + $0x17c] sm:$0xf]
    %v112 = vld [vmem:[%s1 + $0x180] sm:$0xf]
    %v113 = vld [vmem:[%s1 + $0x184] sm:$0xf]
    %v114 = vld [vmem:[%s1 + $0x188] sm:$0xf]
    %v115 = vld [vmem:[%s1 + $0x18c] sm:$0xf]
    %v116 = vld [vmem:[%s1 + $0x190] sm:$0xf]
    %v117 = vld [vmem:[%s1 + $0x194] sm:$0xf]
    %v118 = vld [vmem:[%s1 + $0x198] sm:$0xf]
    %v119 = vld [vmem:[%s1 + $0x19c] sm:$0xf]
    %v120 = vld [vmem:[%s1 + $0x1a0] sm:$0xf]
    %v121 = vld [vmem:[%s1 + $0x1a4] sm:$0xf]
    %v122 = vld [vmem:[%s1 + $0x1a8] sm:$0xf]
    %v123 = vld [vmem:[%s1 + $0x1ac] sm:$0xf]
    %v124 = vld [vmem:[%s1 + $0x1b0] sm:$0xf]
    %v125 = vld [vmem:[%s1 + $0x1b4] sm:$0xf]
    %v126 = vld [vmem:[%s1 + $0x1b8] sm:$0xf]
    %v127 = vld [vmem:[%s1 + $0x1bc] sm:$0xf]
    %v128 = vld [vmem:[%s1 + $0x1c0] sm:$0xf]
    %v129 = vld [vmem:[%s1 + $0x1c4] sm:$0xf]
    %v130 = vld [vmem:[%s1 + $0x1c8] sm:$0xf]
    %v131 = vld [vmem:[%s1 + $0x1cc] sm:$0xf]
    %v132 = vld [vmem:[%s1 + $0x1d0] sm:$0xf]
    %v133 = vld [vmem:[%s1 + $0x1d4] sm:$0xf]
    %v134 = vld [vmem:[%s1 + $0x1d8] sm:$0xf]
    %v135 = vld [vmem:[%s1 + $0x1dc] sm:$0xf]
    %v136 = vld [vmem:[%s1 + $0x1e0] sm:$0xf]
    %v137 = vld [vmem:[%s1 + $0x1e4] sm:$0xf]
    %v138 = vld [vmem:[%s1 + $0x1e8] sm:$0xf]
    %v139 = vld [vmem:[%s1 + $0x1ec] sm:$0xf]
    %v140 = vld [vmem:[%s1 + $0x1f0] sm:$0xf]
    %v141 = vld [vmem:[%s1 + $0x1f4] sm:$0xf]
    %v142 = vld [vmem:[%s1 + $0x1f8] sm:$0xf]
    %v143 = vld [vmem:[%s1 + $0x1fc] sm:$0xf]
    %v144 = vld [vmem:[%s2] sm:$0x1]
    %v146 = vperm.slane %v144, 0
    %149 = vst [vmem:[#allocation1] ss:$9 sm:$0xff] %v15
    %v150 = vld [vmem:[#allocation1] sm:$0xff]
    %v151 = vld [vmem:[#allocation1 + $0x9] sm:$0xff]
    %v152 = vld [vmem:[#allocation1 + $0x12] sm:$0xff]
    %v153 = vld [vmem:[#allocation1 + $0x1b] sm:$0xff]
    %v154 = vld [vmem:[#allocation1 + $0x24] sm:$0xff]
    %v155 = vld [vmem:[#allocation1 + $0x2d] sm:$0xff]
    %v156 = vld [vmem:[#allocation1 + $0x36] sm:$0xff]
    %v157 = vld [vmem:[#allocation1 + $0x3f] sm:$0xff]
    %v294 = vunpack.c.l.b16 %v16
    %v295 = vunpack.c.l.b16 %v17
    %v296 = vunpack.c.l.b16 %v18
    %v297 = vunpack.c.l.b16 %v19
    %v298 = vunpack.c.l.b16 %v20
    %v299 = vunpack.c.l.b16 %v21
    %v300 = vunpack.c.l.b16 %v22
    %v301 = vunpack.c.l.b16 %v23
    %v302 = vunpack.c.l.b16 %v24
    %v303 = vunpack.c.l.b16 %v25
    %v304 = vunpack.c.l.b16 %v26
    %v305 = vunpack.c.l.b16 %v27
    %v306 = vunpack.c.l.b16 %v28
    %v307 = vunpack.c.l.b16 %v29
    %v308 = vunpack.c.l.b16 %v30
    %v309 = vunpack.c.l.b16 %v31
    %v310 = vunpack.c.l.b16 %v32
    %v311 = vunpack.c.l.b16 %v33
    %v312 = vunpack.c.l.b16 %v34
    %v313 = vunpack.c.l.b16 %v35
    %v314 = vunpack.c.l.b16 %v36
    %v315 = vunpack.c.l.b16 %v37
    %v316 = vunpack.c.l.b16 %v38
    %v317 = vunpack.c.l.b16 %v39
    %v318 = vunpack.c.l.b16 %v40
    %v319 = vunpack.c.l.b16 %v41
    %v320 = vunpack.c.l.b16 %v42
    %v321 = vunpack.c.l.b16 %v43
    %v322 = vunpack.c.l.b16 %v44
    %v323 = vunpack.c.l.b16 %v45
    %v324 = vunpack.c.l.b16 %v46
    %v325 = vunpack.c.l.b16 %v47
    %v326 = vunpack.c.l.b16 %v48
    %v327 = vunpack.c.l.b16 %v49
    %v328 = vunpack.c.l.b16 %v50
    %v329 = vunpack.c.l.b16 %v51
    %v330 = vunpack.c.l.b16 %v52
    %v331 = vunpack.c.l.b16 %v53
    %v332 = vunpack.c.l.b16 %v54
    %v333 = vunpack.c.l.b16 %v55
    %v334 = vunpack.c.l.b16 %v56
    %v335 = vunpack.c.l.b16 %v57
    %v336 = vunpack.c.l.b16 %v58
    %v337 = vunpack.c.l.b16 %v59
    %v338 = vunpack.c.l.b16 %v60
    %v339 = vunpack.c.l.b16 %v61
    %v340 = vunpack.c.l.b16 %v62
    %v341 = vunpack.c.l.b16 %v63
    %v342 = vunpack.c.l.b16 %v64
    %v343 = vunpack.c.l.b16 %v65
    %v344 = vunpack.c.l.b16 %v66
    %v345 = vunpack.c.l.b16 %v67
    %v346 = vunpack.c.l.b16 %v68
    %v347 = vunpack.c.l.b16 %v69
    %v348 = vunpack.c.l.b16 %v70
    %v349 = vunpack.c.l.b16 %v71
    %v350 = vunpack.c.l.b16 %v72
    %v351 = vunpack.c.l.b16 %v73
    %v352 = vunpack.c.l.b16 %v74
    %v353 = vunpack.c.l.b16 %v75
    %v354 = vunpack.c.l.b16 %v76
    %v355 = vunpack.c.l.b16 %v77
    %v356 = vunpack.c.l.b16 %v78
    %v357 = vunpack.c.l.b16 %v79
    %v358 = vunpack.c.l.b16 %v80
    %v359 = vunpack.c.l.b16 %v81
    %v360 = vunpack.c.l.b16 %v82
    %v361 = vunpack.c.l.b16 %v83
    %v362 = vunpack.c.l.b16 %v84
    %v363 = vunpack.c.l.b16 %v85
    %v364 = vunpack.c.l.b16 %v86
    %v365 = vunpack.c.l.b16 %v87
    %v366 = vunpack.c.l.b16 %v88
    %v367 = vunpack.c.l.b16 %v89
    %v368 = vunpack.c.l.b16 %v90
    %v369 = vunpack.c.l.b16 %v91
    %v370 = vunpack.c.l.b16 %v92
    %v371 = vunpack.c.l.b16 %v93
    %v372 = vunpack.c.l.b16 %v94
    %v373 = vunpack.c.l.b16 %v95
    %v374 = vunpack.c.l.b16 %v96
    %v375 = vunpack.c.l.b16 %v97
    %v376 = vunpack.c.l.b16 %v98
    %v377 = vunpack.c.l.b16 %v99
    %v378 = vunpack.c.l.b16 %v100
    %v379 = vunpack.c.l.b16 %v101
    %v380 = vunpack.c.l.b16 %v102
    %v381 = vunpack.c.l.b16 %v103
    %v382 = vunpack.c.l.b16 %v104
    %v383 = vunpack.c.l.b16 %v105
    %v384 = vunpack.c.l.b16 %v106
    %v385 = vunpack.c.l.b16 %v107
    %v386 = vunpack.c.l.b16 %v108
    %v387 = vunpack.c.l.b16 %v109
    %v388 = vunpack.c.l.b16 %v110
    %v389 = vunpack.c.l.b16 %v111
    %v390 = vunpack.c.l.b16 %v112
    %v391 = vunpack.c.l.b16 %v113
    %v392 = vunpack.c.l.b16 %v114
    %v393 = vunpack.c.l.b16 %v115
    %v394 = vunpack.c.l.b16 %v116
    %v395 = vunpack.c.l.b16 %v117
    %v396 = vunpack.c.l.b16 %v118
    %v397 = vunpack.c.l.b16 %v119
    %v398 = vunpack.c.l.b16 %v120
    %v399 = vunpack.c.l.b16 %v121
    %v400 = vunpack.c.l.b16 %v122
    %v401 = vunpack.c.l.b16 %v123
    %v402 = vunpack.c.l.b16 %v124
    %v403 = vunpack.c.l.b16 %v125
    %v404 = vunpack.c.l.b16 %v126
    %v405 = vunpack.c.l.b16 %v127
    %v406 = vunpack.c.l.b16 %v128
    %v407 = vunpack.c.l.b16 %v129
    %v408 = vunpack.c.l.b16 %v130
    %v409 = vunpack.c.l.b16 %v131
    %v410 = vunpack.c.l.b16 %v132
    %v411 = vunpack.c.l.b16 %v133
    %v412 = vunpack.c.l.b16 %v134
    %v413 = vunpack.c.l.b16 %v135
    %v414 = vunpack.c.l.b16 %v136
    %v415 = vunpack.c.l.b16 %v137
    %v416 = vunpack.c.l.b16 %v138
    %v417 = vunpack.c.l.b16 %v139
    %v418 = vunpack.c.l.b16 %v140
    %v419 = vunpack.c.l.b16 %v141
    %v420 = vunpack.c.l.b16 %v142
    %v421 = vunpack.c.l.b16 %v143
    %v422 = vpack.c.b16 %v295, %v294
    %v423 = vpack.c.b16 %v297, %v296
    %v424 = vpack.c.b16 %v299, %v298
    %v425 = vpack.c.b16 %v301, %v300
    %v426 = vpack.c.b16 %v303, %v302
    %v427 = vpack.c.b16 %v305, %v304
    %v428 = vpack.c.b16 %v307, %v306
    %v429 = vpack.c.b16 %v309, %v308
    %v430 = vpack.c.b16 %v311, %v310
    %v431 = vpack.c.b16 %v313, %v312
    %v432 = vpack.c.b16 %v315, %v314
    %v433 = vpack.c.b16 %v317, %v316
    %v434 = vpack.c.b16 %v319, %v318
    %v435 = vpack.c.b16 %v321, %v320
    %v436 = vpack.c.b16 %v323, %v322
    %v437 = vpack.c.b16 %v325, %v324
    %v438 = vpack.c.b16 %v327, %v326
    %v439 = vpack.c.b16 %v329, %v328
    %v440 = vpack.c.b16 %v331, %v330
    %v441 = vpack.c.b16 %v333, %v332
    %v442 = vpack.c.b16 %v335, %v334
    %v443 = vpack.c.b16 %v337, %v336
    %v444 = vpack.c.b16 %v339, %v338
    %v445 = vpack.c.b16 %v341, %v340
    %v446 = vpack.c.b16 %v343, %v342
    %v447 = vpack.c.b16 %v345, %v344
    %v448 = vpack.c.b16 %v347, %v346
    %v449 = vpack.c.b16 %v349, %v348
    %v450 = vpack.c.b16 %v351, %v350
    %v451 = vpack.c.b16 %v353, %v352
    %v452 = vpack.c.b16 %v355, %v354
    %v453 = vpack.c.b16 %v357, %v356
    %v454 = vpack.c.b16 %v359, %v358
    %v455 = vpack.c.b16 %v361, %v360
    %v456 = vpack.c.b16 %v363, %v362
    %v457 = vpack.c.b16 %v365, %v364
    %v458 = vpack.c.b16 %v367, %v366
    %v459 = vpack.c.b16 %v369, %v368
    %v460 = vpack.c.b16 %v371, %v370
    %v461 = vpack.c.b16 %v373, %v372
    %v462 = vpack.c.b16 %v375, %v374
    %v463 = vpack.c.b16 %v377, %v376
    %v464 = vpack.c.b16 %v379, %v378
    %v465 = vpack.c.b16 %v381, %v380
    %v466 = vpack.c.b16 %v383, %v382
    %v467 = vpack.c.b16 %v385, %v384
    %v468 = vpack.c.b16 %v387, %v386
    %v469 = vpack.c.b16 %v389, %v388
    %v470 = vpack.c.b16 %v391, %v390
    %v471 = vpack.c.b16 %v393, %v392
    %v472 = vpack.c.b16 %v395, %v394
    %v473 = vpack.c.b16 %v397, %v396
    %v474 = vpack.c.b16 %v399, %v398
    %v475 = vpack.c.b16 %v401, %v400
    %v476 = vpack.c.b16 %v403, %v402
    %v477 = vpack.c.b16 %v405, %v404
    %v478 = vpack.c.b16 %v407, %v406
    %v479 = vpack.c.b16 %v409, %v408
    %v480 = vpack.c.b16 %v411, %v410
    %v481 = vpack.c.b16 %v413, %v412
    %v482 = vpack.c.b16 %v415, %v414
    %v483 = vpack.c.b16 %v417, %v416
    %v484 = vpack.c.b16 %v419, %v418
    %v485 = vpack.c.b16 %v421, %v420
    %550 = vmatpush.bf16.msra.mxu0 %v429
    %551 = vmatpush.bf16.msra.mxu0 %v428
    %552 = vmatpush.bf16.msra.mxu0 %v427
    %553 = vmatpush.bf16.msra.mxu0 %v426
    %554 = vmatpush.bf16.msra.mxu0 %v425
    %555 = vmatpush.bf16.msra.mxu0 %v424
    %556 = vmatpush.bf16.msra.mxu0 %v423
    %557 = vmatpush.bf16.msra.mxu0 %v422
    %558 = vmatmul.bf16.gmra.mxu0 %v150
    %v559 = vpop.f32.mrf.mxu0
    %v560 = vadd.f32 %v146, %v559
    %v561 = vpop.f32.mrf.mxu0
    %562 = vdwg.mxu0
    %563 = vmatpush.bf16.msra.mxu0 %v437
    %564 = vmatpush.bf16.msra.mxu0 %v436
    %565 = vmatpush.bf16.msra.mxu0 %v435
    %566 = vmatpush.bf16.msra.mxu0 %v434
    %567 = vmatpush.bf16.msra.mxu0 %v433
    %568 = vmatpush.bf16.msra.mxu0 %v432
    %569 = vmatpush.bf16.msra.mxu0 %v431
    %570 = vmatpush.bf16.msra.mxu0 %v430
    %571 = vmatmul.bf16.gmra.mxu0 %v151
    %v572 = vpop.f32.mrf.mxu0
    %v573 = vadd.f32 %v560, %v572
    %v574 = vpop.f32.mrf.mxu0
    %575 = vdwg.mxu0
    %576 = vmatpush.bf16.msra.mxu0 %v445
    %577 = vmatpush.bf16.msra.mxu0 %v444
    %578 = vmatpush.bf16.msra.mxu0 %v443
    %579 = vmatpush.bf16.msra.mxu0 %v442
    %580 = vmatpush.bf16.msra.mxu0 %v441
    %581 = vmatpush.bf16.msra.mxu0 %v440
    %582 = vmatpush.bf16.msra.mxu0 %v439
    %583 = vmatpush.bf16.msra.mxu0 %v438
    %584 = vmatmul.bf16.gmra.mxu0 %v152
    %v585 = vpop.f32.mrf.mxu0
    %v586 = vadd.f32 %v573, %v585
    %v587 = vpop.f32.mrf.mxu0
    %588 = vdwg.mxu0
    %589 = vmatpush.bf16.msra.mxu0 %v453
    %590 = vmatpush.bf16.msra.mxu0 %v452
    %591 = vmatpush.bf16.msra.mxu0 %v451
    %592 = vmatpush.bf16.msra.mxu0 %v450
    %593 = vmatpush.bf16.msra.mxu0 %v449
    %594 = vmatpush.bf16.msra.mxu0 %v448
    %595 = vmatpush.bf16.msra.mxu0 %v447
    %596 = vmatpush.bf16.msra.mxu0 %v446
    %597 = vmatmul.bf16.gmra.mxu0 %v153
    %v598 = vpop.f32.mrf.mxu0
    %v599 = vadd.f32 %v586, %v598
    %v600 = vpop.f32.mrf.mxu0
    %601 = vdwg.mxu0
    %602 = vmatpush.bf16.msra.mxu0 %v461
    %603 = vmatpush.bf16.msra.mxu0 %v460
    %604 = vmatpush.bf16.msra.mxu0 %v459
    %605 = vmatpush.bf16.msra.mxu0 %v458
    %606 = vmatpush.bf16.msra.mxu0 %v457
    %607 = vmatpush.bf16.msra.mxu0 %v456
    %608 = vmatpush.bf16.msra.mxu0 %v455
    %609 = vmatpush.bf16.msra.mxu0 %v454
    %610 = vmatmul.bf16.gmra.mxu0 %v154
    %v611 = vpop.f32.mrf.mxu0
    %v612 = vadd.f32 %v599, %v611
    %v613 = vpop.f32.mrf.mxu0
    %614 = vdwg.mxu0
    %615 = vmatpush.bf16.msra.mxu0 %v469
    %616 = vmatpush.bf16.msra.mxu0 %v468
    %617 = vmatpush.bf16.msra.mxu0 %v467
    %618 = vmatpush.bf16.msra.mxu0 %v466
    %619 = vmatpush.bf16.msra.mxu0 %v465
    %620 = vmatpush.bf16.msra.mxu0 %v464
    %621 = vmatpush.bf16.msra.mxu0 %v463
    %622 = vmatpush.bf16.msra.mxu0 %v462
    %623 = vmatmul.bf16.gmra.mxu0 %v155
    %v624 = vpop.f32.mrf.mxu0
    %v625 = vadd.f32 %v612, %v624
    %v626 = vpop.f32.mrf.mxu0
    %627 = vdwg.mxu0
    %628 = vmatpush.bf16.msra.mxu0 %v477
    %629 = vmatpush.bf16.msra.mxu0 %v476
    %630 = vmatpush.bf16.msra.mxu0 %v475
    %631 = vmatpush.bf16.msra.mxu0 %v474
    %632 = vmatpush.bf16.msra.mxu0 %v473
    %633 = vmatpush.bf16.msra.mxu0 %v472
    %634 = vmatpush.bf16.msra.mxu0 %v471
    %635 = vmatpush.bf16.msra.mxu0 %v470
    %636 = vmatmul.bf16.gmra.mxu0 %v156
    %v637 = vpop.f32.mrf.mxu0
    %v638 = vadd.f32 %v625, %v637
    %v639 = vpop.f32.mrf.mxu0
    %640 = vdwg.mxu0
    %641 = vmatpush.bf16.msra.mxu0 %v485
    %642 = vmatpush.bf16.msra.mxu0 %v484
    %643 = vmatpush.bf16.msra.mxu0 %v483
    %644 = vmatpush.bf16.msra.mxu0 %v482
    %645 = vmatpush.bf16.msra.mxu0 %v481
    %646 = vmatpush.bf16.msra.mxu0 %v480
    %647 = vmatpush.bf16.msra.mxu0 %v479
    %648 = vmatpush.bf16.msra.mxu0 %v478
    %649 = vmatmul.bf16.gmra.mxu0 %v157
    %v650 = vpop.f32.mrf.mxu0
    %v651 = vadd.f32 %v638, %v650
    %v652 = vpop.f32.mrf.mxu0
    %653 = vdwg.mxu0
    %654 = vst [vmem:[#allocation2] sm:$0x3] %v651
    // Predicated region
    $region14: #{_lambda_.43} parent=1 // pred_check
      _
    $region15: #{_lambda_.43} parent=1 // pred_check_branch
      %656 = sbr.rel (0) target = $region17
    $region16: #{_lambda_.43} parent=1 // pred_region
      %658 = vsyncadd [#allocation3], 0
      %s660 = sshll.u32 [#allocation2], 4
      %s661 = int_to_ptr.vmem [resolvable:$true] %s660
      %s662 = sshll.u32 %s3, 4
      %s663 = int_to_ptr.hbm [resolvable:$true] %s662
      %665 = dma.vmem_to_hbm [thread:$0]  %s661, 32, %s663, [#allocation3]
    $region17: #{_lambda_.43} parent=1 // pred_fallthru
      _
    // Predicated region
    $region18: #{_lambda_.43} parent=1 // pred_check
      _
    $region19: #{_lambda_.43} parent=1 // pred_check_branch
      %667 = sbr.rel (0) target = $region21
    $region20: #{_lambda_.43} parent=1 // pred_region
      %669 = dma.done [#allocation3], 32
    $region21: #{_lambda_.43} parent=1 // pred_fallthru
      _
    %670 = vsyncpa [#allocation3], 1

</llo_original>
